<compile_context>
chip_gen: v7x
topology: tpu7x:2x2x1
jax: 0.10.0
libtpu: 0.0.40
codegen_flags: <defaults>
</compile_context>

<pallas_src>
import jax
import jax.numpy as jnp
from jax import lax
from jax.experimental import pallas as pl
from jax.experimental.pallas import tpu as pltpu


def pann_acceptor_kernel(t_ref, xs_ref, grp_ref, g_ref, wt_ref, b_ref, out_ref):
    L, B, _ = xs_ref.shape
    S = t_ref.shape[0]

    # h_0 = one-hot(state 0) for every batch row, kept (B, S) lane-major.
    h0 = (lax.broadcasted_iota(jnp.int32, (B, S), 1) == 0).astype(jnp.float32)

    t_all = t_ref[...]        # (S, (A+1)*S) softmaxed transitions + identity group
    grp = grp_ref[...]        # (1, (A+1)*S) lane -> symbol-group id (hoisted once)
    gather = g_ref[...]       # ((A+1)*S, S) block-stacked identities

    def step(i, h):
        # Candidate next-states for every possible symbol, one lane-group per symbol.
        expanded = jnp.dot(h, t_all,
                           preferred_element_type=jnp.float32,
                           precision=lax.Precision.HIGHEST)          # (B, (A+1)*S)
        # Keep only the lane-group of this row's symbol at step i (padding rows hit the
        # identity group, so their state passes through unchanged).
        sym = xs_ref[i]                                              # (B, 1) int32
        masked = jnp.where(grp == sym, expanded, 0.0)                # (B, (A+1)*S)
        # Collapse the symbol lane-groups back down to (B, S).
        return jnp.dot(masked, gather,
                       preferred_element_type=jnp.float32,
                       precision=lax.Precision.HIGHEST)              # (B, S)

    h = lax.fori_loop(0, L, step, h0, unroll=True)

    out_ref[...] = (
        jnp.dot(h, wt_ref[...],
                preferred_element_type=jnp.float32,
                precision=lax.Precision.HIGHEST)
        + b_ref[...]
    )


def pann_acceptor(xs, lengths, weight, w_lin, b_lin):
    """xs: [B, L] int, lengths: [B] int, weight: [A, S, S] f32,
    w_lin: [2, S] f32, b_lin: [2] f32  ->  [B, 2] f32"""
    B, L = xs.shape
    A, S, _ = weight.shape

    xs = xs.astype(jnp.int32)
    lens = lengths.astype(jnp.int32)

    # One-time softmax over the next-state dim, plus an appended identity "pad symbol"
    # (index A) so rows past their string length keep their state with no extra masking.
    T = jax.nn.softmax(jnp.asarray(weight, jnp.float32), axis=-1)          # (A, S, S)
    T_aug = jnp.concatenate([T, jnp.eye(S, dtype=jnp.float32)[None]], 0)   # (A+1, S, S)
    #   t_concat[t, a*S + s] = T_aug[a, s, t]
    t_concat = jnp.transpose(T_aug, (2, 0, 1)).reshape(S, (A + 1) * S)     # (S, (A+1)*S)

    # Rewrite padding positions to the identity symbol and lay symbols out (L, B, 1) so
    # the kernel's per-step load is already (batch-in-sublanes, 1 lane) — no relayout.
    pos = jnp.arange(L, dtype=jnp.int32)[None, :]                          # (1, L)
    xs_pad = jnp.where(pos < lens[:, None], xs, jnp.int32(A))              # (B, L)
    xs_tbl = jnp.transpose(xs_pad, (1, 0)).reshape(L, B, 1)                # (L, B, 1)

    # Lane -> symbol-group map (precomputed to avoid in-kernel integer division).
    grp = jnp.repeat(jnp.arange(A + 1, dtype=jnp.int32), S).reshape(1, (A + 1) * S)

    # Block-stacked identity that folds the (A+1) lane-groups back to S lanes.
    gather = jnp.tile(jnp.eye(S, dtype=jnp.float32), (A + 1, 1))           # ((A+1)*S, S)

    wt = jnp.asarray(w_lin, jnp.float32).T                                 # (S, 2)
    bl = jnp.asarray(b_lin, jnp.float32).reshape(1, 2)

    vmem = pl.BlockSpec(memory_space=pltpu.MemorySpace.VMEM)
    return pl.pallas_call(
        pann_acceptor_kernel,
        out_shape=jax.ShapeDtypeStruct((B, 2), jnp.float32),
        in_specs=[vmem, vmem, vmem, vmem, vmem, vmem],
        out_specs=vmem,
    )(t_concat, xs_tbl, grp, gather, wt, bl)


def pann_acceptor_reference(xs, lengths, weight, w_lin, b_lin):
    """Pure-JAX re-implementation of the PyTorch forward (for verification)."""
    B, L = xs.shape
    A, S, _ = weight.shape
    T = jax.nn.softmax(jnp.asarray(weight, jnp.float32), axis=-1)
    h = jnp.zeros((B, S), jnp.float32).at[:, 0].set(1.0)
    max_len = int(min(L, int(jnp.max(lengths))))
    hs = []
    for i in range(max_len):
        M = T[xs[:, i]]                                          # (B, S, S)
        h = jnp.einsum("bst,bt->bs", M, h, precision=jax.lax.Precision.HIGHEST)
        hs.append(h)
    hs = jnp.stack(hs, axis=-1)                                  # (B, S, max_len)
    h_sel = hs[jnp.arange(B), :, lengths - 1]                    # (B, S)
    return jnp.dot(h_sel, w_lin.T, precision=jax.lax.Precision.HIGHEST) + b_lin


if __name__ == "__main__":
    # Small deterministic setup.
    alphabet_size, num_states = 5, 8
    batch, max_length = 4, 12

    key = jax.random.PRNGKey(0)
    k_w, k_wl, k_bl, k_xs, k_len = jax.random.split(key, 5)

    # Parameters (shapes per PANNCell / nn.Linear __init__); deterministic init.
    weight = 0.5 * jax.random.normal(k_w, (alphabet_size, num_states, num_states), jnp.float32)
    w_lin = 0.3 * jax.random.normal(k_wl, (2, num_states), jnp.float32)
    b_lin = 0.1 * jax.random.normal(k_bl, (2,), jnp.float32)

    # Inputs.
    xs = jax.random.randint(k_xs, (batch, max_length), 0, alphabet_size, jnp.int32)
    lengths = jax.random.randint(k_len, (batch,), 1, max_length + 1, jnp.int32)

    out = pann_acceptor(xs, lengths, weight, w_lin, b_lin)
    out = jax.block_until_ready(out)

    ref = pann_acceptor_reference(xs, lengths, weight, w_lin, b_lin)
    assert out.shape == (batch, 2)
    assert jnp.allclose(out, ref, atol=1e-4, rtol=1e-4), (out, ref)

    print("KERNEL_OK")
</pallas_src>

<mosaic_0001>
module attributes {stable_mosaic.version = 11 : i64} {
  func.func @pann_acceptor_kernel(%arg0: memref<8x48xf32, #tpu.memory_space<vmem>>, %arg1: memref<12x4x1xi32, #tpu.memory_space<vmem>>, %arg2: memref<1x48xi32, #tpu.memory_space<vmem>>, %arg3: memref<48x8xf32, #tpu.memory_space<vmem>>, %arg4: memref<8x2xf32, #tpu.memory_space<vmem>>, %arg5: memref<1x2xf32, #tpu.memory_space<vmem>>, %arg6: memref<4x2xf32, #tpu.memory_space<vmem>>) attributes {dimension_semantics = [], scalar_prefetch = 0 : i64, scratch_operands = 0 : i64, tpu.core_type = #tpu.core_type<tc>} {
    %0 = tpu.iota {dimensions = array<i32: 1>} : vector<4x8xi32>
    %c0_i32 = arith.constant 0 : i32
    %1 = vector.broadcast %c0_i32 : i32 to vector<4x8xi32>
    %2 = arith.cmpi eq, %0, %1 : vector<4x8xi32>
    %3 = arith.extui %2 : vector<4x8xi1> to vector<4x8xi32>
    %4 = arith.sitofp %3 : vector<4x8xi32> to vector<4x8xf32>
    %c0 = arith.constant 0 : index
    %c0_0 = arith.constant 0 : index
    %5 = vector.load %arg0[%c0, %c0_0] : memref<8x48xf32, #tpu.memory_space<vmem>>, vector<8x48xf32>
    %c0_1 = arith.constant 0 : index
    %c0_2 = arith.constant 0 : index
    %6 = vector.load %arg2[%c0_1, %c0_2] : memref<1x48xi32, #tpu.memory_space<vmem>>, vector<1x48xi32>
    %c0_3 = arith.constant 0 : index
    %c0_4 = arith.constant 0 : index
    %7 = vector.load %arg3[%c0_3, %c0_4] : memref<48x8xf32, #tpu.memory_space<vmem>>, vector<48x8xf32>
    %c0_i32_5 = arith.constant 0 : i32
    %cst = arith.constant dense<0.000000e+00> : vector<4x48xf32>
    %8 = tpu.matmul %4, %5, %cst {dimension_numbers = #tpu.dot_dimension_numbers<[1], [0], [0], [1], [0, 0, 1, 1], [], []>, precision = #tpu.contract_precision<fp32>} : vector<4x8xf32>, vector<8x48xf32>, vector<4x48xf32> -> vector<4x48xf32>
    %9 = arith.index_cast %c0_i32_5 : i32 to index
    %c0_6 = arith.constant 0 : index
    %c0_7 = arith.constant 0 : index
    %10 = vector.load %arg1[%9, %c0_6, %c0_7] : memref<12x4x1xi32, #tpu.memory_space<vmem>>, vector<1x4x1xi32>
    %11 = vector.shape_cast %10 : vector<1x4x1xi32> to vector<4x1xi32>
    %12 = vector.broadcast %6 : vector<1x48xi32> to vector<4x48xi32>
    %13 = vector.broadcast %11 : vector<4x1xi32> to vector<4x48xi32>
    %14 = arith.cmpi eq, %12, %13 : vector<4x48xi32>
    %cst_8 = arith.constant 0.000000e+00 : f32
    %15 = vector.broadcast %cst_8 : f32 to vector<4x48xf32>
    %16 = arith.select %14, %8, %15 : vector<4x48xi1>, vector<4x48xf32>
    %cst_9 = arith.constant dense<0.000000e+00> : vector<4x8xf32>
    %17 = tpu.matmul %16, %7, %cst_9 {dimension_numbers = #tpu.dot_dimension_numbers<[1], [0], [0], [1], [0, 0, 1, 1], [], []>, precision = #tpu.contract_precision<fp32>} : vector<4x48xf32>, vector<48x8xf32>, vector<4x8xf32> -> vector<4x8xf32>
    %c1_i32 = arith.constant 1 : i32
    %cst_10 = arith.constant dense<0.000000e+00> : vector<4x48xf32>
    %18 = tpu.matmul %17, %5, %cst_10 {dimension_numbers = #tpu.dot_dimension_numbers<[1], [0], [0], [1], [0, 0, 1, 1], [], []>, precision = #tpu.contract_precision<fp32>} : vector<4x8xf32>, vector<8x48xf32>, vector<4x48xf32> -> vector<4x48xf32>
    %19 = arith.index_cast %c1_i32 : i32 to index
    %c0_11 = arith.constant 0 : index
    %c0_12 = arith.constant 0 : index
    %20 = vector.load %arg1[%19, %c0_11, %c0_12] : memref<12x4x1xi32, #tpu.memory_space<vmem>>, vector<1x4x1xi32>
    %21 = vector.shape_cast %20 : vector<1x4x1xi32> to vector<4x1xi32>
    %22 = vector.broadcast %6 : vector<1x48xi32> to vector<4x48xi32>
    %23 = vector.broadcast %21 : vector<4x1xi32> to vector<4x48xi32>
    %24 = arith.cmpi eq, %22, %23 : vector<4x48xi32>
    %cst_13 = arith.constant 0.000000e+00 : f32
    %25 = vector.broadcast %cst_13 : f32 to vector<4x48xf32>
    %26 = arith.select %24, %18, %25 : vector<4x48xi1>, vector<4x48xf32>
    %cst_14 = arith.constant dense<0.000000e+00> : vector<4x8xf32>
    %27 = tpu.matmul %26, %7, %cst_14 {dimension_numbers = #tpu.dot_dimension_numbers<[1], [0], [0], [1], [0, 0, 1, 1], [], []>, precision = #tpu.contract_precision<fp32>} : vector<4x48xf32>, vector<48x8xf32>, vector<4x8xf32> -> vector<4x8xf32>
    %c2_i32 = arith.constant 2 : i32
    %cst_15 = arith.constant dense<0.000000e+00> : vector<4x48xf32>
    %28 = tpu.matmul %27, %5, %cst_15 {dimension_numbers = #tpu.dot_dimension_numbers<[1], [0], [0], [1], [0, 0, 1, 1], [], []>, precision = #tpu.contract_precision<fp32>} : vector<4x8xf32>, vector<8x48xf32>, vector<4x48xf32> -> vector<4x48xf32>
    %29 = arith.index_cast %c2_i32 : i32 to index
    %c0_16 = arith.constant 0 : index
    %c0_17 = arith.constant 0 : index
    %30 = vector.load %arg1[%29, %c0_16, %c0_17] : memref<12x4x1xi32, #tpu.memory_space<vmem>>, vector<1x4x1xi32>
    %31 = vector.shape_cast %30 : vector<1x4x1xi32> to vector<4x1xi32>
    %32 = vector.broadcast %6 : vector<1x48xi32> to vector<4x48xi32>
    %33 = vector.broadcast %31 : vector<4x1xi32> to vector<4x48xi32>
    %34 = arith.cmpi eq, %32, %33 : vector<4x48xi32>
    %cst_18 = arith.constant 0.000000e+00 : f32
    %35 = vector.broadcast %cst_18 : f32 to vector<4x48xf32>
    %36 = arith.select %34, %28, %35 : vector<4x48xi1>, vector<4x48xf32>
    %cst_19 = arith.constant dense<0.000000e+00> : vector<4x8xf32>
    %37 = tpu.matmul %36, %7, %cst_19 {dimension_numbers = #tpu.dot_dimension_numbers<[1], [0], [0], [1], [0, 0, 1, 1], [], []>, precision = #tpu.contract_precision<fp32>} : vector<4x48xf32>, vector<48x8xf32>, vector<4x8xf32> -> vector<4x8xf32>
    %c3_i32 = arith.constant 3 : i32
    %cst_20 = arith.constant dense<0.000000e+00> : vector<4x48xf32>
    %38 = tpu.matmul %37, %5, %cst_20 {dimension_numbers = #tpu.dot_dimension_numbers<[1], [0], [0], [1], [0, 0, 1, 1], [], []>, precision = #tpu.contract_precision<fp32>} : vector<4x8xf32>, vector<8x48xf32>, vector<4x48xf32> -> vector<4x48xf32>
    %39 = arith.index_cast %c3_i32 : i32 to index
    %c0_21 = arith.constant 0 : index
    %c0_22 = arith.constant 0 : index
    %40 = vector.load %arg1[%39, %c0_21, %c0_22] : memref<12x4x1xi32, #tpu.memory_space<vmem>>, vector<1x4x1xi32>
    %41 = vector.shape_cast %40 : vector<1x4x1xi32> to vector<4x1xi32>
    %42 = vector.broadcast %6 : vector<1x48xi32> to vector<4x48xi32>
    %43 = vector.broadcast %41 : vector<4x1xi32> to vector<4x48xi32>
    %44 = arith.cmpi eq, %42, %43 : vector<4x48xi32>
    %cst_23 = arith.constant 0.000000e+00 : f32
    %45 = vector.broadcast %cst_23 : f32 to vector<4x48xf32>
    %46 = arith.select %44, %38, %45 : vector<4x48xi1>, vector<4x48xf32>
    %cst_24 = arith.constant dense<0.000000e+00> : vector<4x8xf32>
    %47 = tpu.matmul %46, %7, %cst_24 {dimension_numbers = #tpu.dot_dimension_numbers<[1], [0], [0], [1], [0, 0, 1, 1], [], []>, precision = #tpu.contract_precision<fp32>} : vector<4x48xf32>, vector<48x8xf32>, vector<4x8xf32> -> vector<4x8xf32>
    %c4_i32 = arith.constant 4 : i32
    %cst_25 = arith.constant dense<0.000000e+00> : vector<4x48xf32>
    %48 = tpu.matmul %47, %5, %cst_25 {dimension_numbers = #tpu.dot_dimension_numbers<[1], [0], [0], [1], [0, 0, 1, 1], [], []>, precision = #tpu.contract_precision<fp32>} : vector<4x8xf32>, vector<8x48xf32>, vector<4x48xf32> -> vector<4x48xf32>
    %49 = arith.index_cast %c4_i32 : i32 to index
    %c0_26 = arith.constant 0 : index
    %c0_27 = arith.constant 0 : index
    %50 = vector.load %arg1[%49, %c0_26, %c0_27] : memref<12x4x1xi32, #tpu.memory_space<vmem>>, vector<1x4x1xi32>
    %51 = vector.shape_cast %50 : vector<1x4x1xi32> to vector<4x1xi32>
    %52 = vector.broadcast %6 : vector<1x48xi32> to vector<4x48xi32>
    %53 = vector.broadcast %51 : vector<4x1xi32> to vector<4x48xi32>
    %54 = arith.cmpi eq, %52, %53 : vector<4x48xi32>
    %cst_28 = arith.constant 0.000000e+00 : f32
    %55 = vector.broadcast %cst_28 : f32 to vector<4x48xf32>
    %56 = arith.select %54, %48, %55 : vector<4x48xi1>, vector<4x48xf32>
    %cst_29 = arith.constant dense<0.000000e+00> : vector<4x8xf32>
    %57 = tpu.matmul %56, %7, %cst_29 {dimension_numbers = #tpu.dot_dimension_numbers<[1], [0], [0], [1], [0, 0, 1, 1], [], []>, precision = #tpu.contract_precision<fp32>} : vector<4x48xf32>, vector<48x8xf32>, vector<4x8xf32> -> vector<4x8xf32>
    %c5_i32 = arith.constant 5 : i32
    %cst_30 = arith.constant dense<0.000000e+00> : vector<4x48xf32>
    %58 = tpu.matmul %57, %5, %cst_30 {dimension_numbers = #tpu.dot_dimension_numbers<[1], [0], [0], [1], [0, 0, 1, 1], [], []>, precision = #tpu.contract_precision<fp32>} : vector<4x8xf32>, vector<8x48xf32>, vector<4x48xf32> -> vector<4x48xf32>
    %59 = arith.index_cast %c5_i32 : i32 to index
    %c0_31 = arith.constant 0 : index
    %c0_32 = arith.constant 0 : index
    %60 = vector.load %arg1[%59, %c0_31, %c0_32] : memref<12x4x1xi32, #tpu.memory_space<vmem>>, vector<1x4x1xi32>
    %61 = vector.shape_cast %60 : vector<1x4x1xi32> to vector<4x1xi32>
    %62 = vector.broadcast %6 : vector<1x48xi32> to vector<4x48xi32>
    %63 = vector.broadcast %61 : vector<4x1xi32> to vector<4x48xi32>
    %64 = arith.cmpi eq, %62, %63 : vector<4x48xi32>
    %cst_33 = arith.constant 0.000000e+00 : f32
    %65 = vector.broadcast %cst_33 : f32 to vector<4x48xf32>
    %66 = arith.select %64, %58, %65 : vector<4x48xi1>, vector<4x48xf32>
    %cst_34 = arith.constant dense<0.000000e+00> : vector<4x8xf32>
    %67 = tpu.matmul %66, %7, %cst_34 {dimension_numbers = #tpu.dot_dimension_numbers<[1], [0], [0], [1], [0, 0, 1, 1], [], []>, precision = #tpu.contract_precision<fp32>} : vector<4x48xf32>, vector<48x8xf32>, vector<4x8xf32> -> vector<4x8xf32>
    %c6_i32 = arith.constant 6 : i32
    %cst_35 = arith.constant dense<0.000000e+00> : vector<4x48xf32>
    %68 = tpu.matmul %67, %5, %cst_35 {dimension_numbers = #tpu.dot_dimension_numbers<[1], [0], [0], [1], [0, 0, 1, 1], [], []>, precision = #tpu.contract_precision<fp32>} : vector<4x8xf32>, vector<8x48xf32>, vector<4x48xf32> -> vector<4x48xf32>
    %69 = arith.index_cast %c6_i32 : i32 to index
    %c0_36 = arith.constant 0 : index
    %c0_37 = arith.constant 0 : index
    %70 = vector.load %arg1[%69, %c0_36, %c0_37] : memref<12x4x1xi32, #tpu.memory_space<vmem>>, vector<1x4x1xi32>
    %71 = vector.shape_cast %70 : vector<1x4x1xi32> to vector<4x1xi32>
    %72 = vector.broadcast %6 : vector<1x48xi32> to vector<4x48xi32>
    %73 = vector.broadcast %71 : vector<4x1xi32> to vector<4x48xi32>
    %74 = arith.cmpi eq, %72, %73 : vector<4x48xi32>
    %cst_38 = arith.constant 0.000000e+00 : f32
    %75 = vector.broadcast %cst_38 : f32 to vector<4x48xf32>
    %76 = arith.select %74, %68, %75 : vector<4x48xi1>, vector<4x48xf32>
    %cst_39 = arith.constant dense<0.000000e+00> : vector<4x8xf32>
    %77 = tpu.matmul %76, %7, %cst_39 {dimension_numbers = #tpu.dot_dimension_numbers<[1], [0], [0], [1], [0, 0, 1, 1], [], []>, precision = #tpu.contract_precision<fp32>} : vector<4x48xf32>, vector<48x8xf32>, vector<4x8xf32> -> vector<4x8xf32>
    %c7_i32 = arith.constant 7 : i32
    %cst_40 = arith.constant dense<0.000000e+00> : vector<4x48xf32>
    %78 = tpu.matmul %77, %5, %cst_40 {dimension_numbers = #tpu.dot_dimension_numbers<[1], [0], [0], [1], [0, 0, 1, 1], [], []>, precision = #tpu.contract_precision<fp32>} : vector<4x8xf32>, vector<8x48xf32>, vector<4x48xf32> -> vector<4x48xf32>
    %79 = arith.index_cast %c7_i32 : i32 to index
    %c0_41 = arith.constant 0 : index
    %c0_42 = arith.constant 0 : index
    %80 = vector.load %arg1[%79, %c0_41, %c0_42] : memref<12x4x1xi32, #tpu.memory_space<vmem>>, vector<1x4x1xi32>
    %81 = vector.shape_cast %80 : vector<1x4x1xi32> to vector<4x1xi32>
    %82 = vector.broadcast %6 : vector<1x48xi32> to vector<4x48xi32>
    %83 = vector.broadcast %81 : vector<4x1xi32> to vector<4x48xi32>
    %84 = arith.cmpi eq, %82, %83 : vector<4x48xi32>
    %cst_43 = arith.constant 0.000000e+00 : f32
    %85 = vector.broadcast %cst_43 : f32 to vector<4x48xf32>
    %86 = arith.select %84, %78, %85 : vector<4x48xi1>, vector<4x48xf32>
    %cst_44 = arith.constant dense<0.000000e+00> : vector<4x8xf32>
    %87 = tpu.matmul %86, %7, %cst_44 {dimension_numbers = #tpu.dot_dimension_numbers<[1], [0], [0], [1], [0, 0, 1, 1], [], []>, precision = #tpu.contract_precision<fp32>} : vector<4x48xf32>, vector<48x8xf32>, vector<4x8xf32> -> vector<4x8xf32>
    %c8_i32 = arith.constant 8 : i32
    %cst_45 = arith.constant dense<0.000000e+00> : vector<4x48xf32>
    %88 = tpu.matmul %87, %5, %cst_45 {dimension_numbers = #tpu.dot_dimension_numbers<[1], [0], [0], [1], [0, 0, 1, 1], [], []>, precision = #tpu.contract_precision<fp32>} : vector<4x8xf32>, vector<8x48xf32>, vector<4x48xf32> -> vector<4x48xf32>
    %89 = arith.index_cast %c8_i32 : i32 to index
    %c0_46 = arith.constant 0 : index
    %c0_47 = arith.constant 0 : index
    %90 = vector.load %arg1[%89, %c0_46, %c0_47] : memref<12x4x1xi32, #tpu.memory_space<vmem>>, vector<1x4x1xi32>
    %91 = vector.shape_cast %90 : vector<1x4x1xi32> to vector<4x1xi32>
    %92 = vector.broadcast %6 : vector<1x48xi32> to vector<4x48xi32>
    %93 = vector.broadcast %91 : vector<4x1xi32> to vector<4x48xi32>
    %94 = arith.cmpi eq, %92, %93 : vector<4x48xi32>
    %cst_48 = arith.constant 0.000000e+00 : f32
    %95 = vector.broadcast %cst_48 : f32 to vector<4x48xf32>
    %96 = arith.select %94, %88, %95 : vector<4x48xi1>, vector<4x48xf32>
    %cst_49 = arith.constant dense<0.000000e+00> : vector<4x8xf32>
    %97 = tpu.matmul %96, %7, %cst_49 {dimension_numbers = #tpu.dot_dimension_numbers<[1], [0], [0], [1], [0, 0, 1, 1], [], []>, precision = #tpu.contract_precision<fp32>} : vector<4x48xf32>, vector<48x8xf32>, vector<4x8xf32> -> vector<4x8xf32>
    %c9_i32 = arith.constant 9 : i32
    %cst_50 = arith.constant dense<0.000000e+00> : vector<4x48xf32>
    %98 = tpu.matmul %97, %5, %cst_50 {dimension_numbers = #tpu.dot_dimension_numbers<[1], [0], [0], [1], [0, 0, 1, 1], [], []>, precision = #tpu.contract_precision<fp32>} : vector<4x8xf32>, vector<8x48xf32>, vector<4x48xf32> -> vector<4x48xf32>
    %99 = arith.index_cast %c9_i32 : i32 to index
    %c0_51 = arith.constant 0 : index
    %c0_52 = arith.constant 0 : index
    %100 = vector.load %arg1[%99, %c0_51, %c0_52] : memref<12x4x1xi32, #tpu.memory_space<vmem>>, vector<1x4x1xi32>
    %101 = vector.shape_cast %100 : vector<1x4x1xi32> to vector<4x1xi32>
    %102 = vector.broadcast %6 : vector<1x48xi32> to vector<4x48xi32>
    %103 = vector.broadcast %101 : vector<4x1xi32> to vector<4x48xi32>
    %104 = arith.cmpi eq, %102, %103 : vector<4x48xi32>
    %cst_53 = arith.constant 0.000000e+00 : f32
    %105 = vector.broadcast %cst_53 : f32 to vector<4x48xf32>
    %106 = arith.select %104, %98, %105 : vector<4x48xi1>, vector<4x48xf32>
    %cst_54 = arith.constant dense<0.000000e+00> : vector<4x8xf32>
    %107 = tpu.matmul %106, %7, %cst_54 {dimension_numbers = #tpu.dot_dimension_numbers<[1], [0], [0], [1], [0, 0, 1, 1], [], []>, precision = #tpu.contract_precision<fp32>} : vector<4x48xf32>, vector<48x8xf32>, vector<4x8xf32> -> vector<4x8xf32>
    %c10_i32 = arith.constant 10 : i32
    %cst_55 = arith.constant dense<0.000000e+00> : vector<4x48xf32>
    %108 = tpu.matmul %107, %5, %cst_55 {dimension_numbers = #tpu.dot_dimension_numbers<[1], [0], [0], [1], [0, 0, 1, 1], [], []>, precision = #tpu.contract_precision<fp32>} : vector<4x8xf32>, vector<8x48xf32>, vector<4x48xf32> -> vector<4x48xf32>
    %109 = arith.index_cast %c10_i32 : i32 to index
    %c0_56 = arith.constant 0 : index
    %c0_57 = arith.constant 0 : index
    %110 = vector.load %arg1[%109, %c0_56, %c0_57] : memref<12x4x1xi32, #tpu.memory_space<vmem>>, vector<1x4x1xi32>
    %111 = vector.shape_cast %110 : vector<1x4x1xi32> to vector<4x1xi32>
    %112 = vector.broadcast %6 : vector<1x48xi32> to vector<4x48xi32>
    %113 = vector.broadcast %111 : vector<4x1xi32> to vector<4x48xi32>
    %114 = arith.cmpi eq, %112, %113 : vector<4x48xi32>
    %cst_58 = arith.constant 0.000000e+00 : f32
    %115 = vector.broadcast %cst_58 : f32 to vector<4x48xf32>
    %116 = arith.select %114, %108, %115 : vector<4x48xi1>, vector<4x48xf32>
    %cst_59 = arith.constant dense<0.000000e+00> : vector<4x8xf32>
    %117 = tpu.matmul %116, %7, %cst_59 {dimension_numbers = #tpu.dot_dimension_numbers<[1], [0], [0], [1], [0, 0, 1, 1], [], []>, precision = #tpu.contract_precision<fp32>} : vector<4x48xf32>, vector<48x8xf32>, vector<4x8xf32> -> vector<4x8xf32>
    %c11_i32 = arith.constant 11 : i32
    %cst_60 = arith.constant dense<0.000000e+00> : vector<4x48xf32>
    %118 = tpu.matmul %117, %5, %cst_60 {dimension_numbers = #tpu.dot_dimension_numbers<[1], [0], [0], [1], [0, 0, 1, 1], [], []>, precision = #tpu.contract_precision<fp32>} : vector<4x8xf32>, vector<8x48xf32>, vector<4x48xf32> -> vector<4x48xf32>
    %119 = arith.index_cast %c11_i32 : i32 to index
    %c0_61 = arith.constant 0 : index
    %c0_62 = arith.constant 0 : index
    %120 = vector.load %arg1[%119, %c0_61, %c0_62] : memref<12x4x1xi32, #tpu.memory_space<vmem>>, vector<1x4x1xi32>
    %121 = vector.shape_cast %120 : vector<1x4x1xi32> to vector<4x1xi32>
    %122 = vector.broadcast %6 : vector<1x48xi32> to vector<4x48xi32>
    %123 = vector.broadcast %121 : vector<4x1xi32> to vector<4x48xi32>
    %124 = arith.cmpi eq, %122, %123 : vector<4x48xi32>
    %cst_63 = arith.constant 0.000000e+00 : f32
    %125 = vector.broadcast %cst_63 : f32 to vector<4x48xf32>
    %126 = arith.select %124, %118, %125 : vector<4x48xi1>, vector<4x48xf32>
    %cst_64 = arith.constant dense<0.000000e+00> : vector<4x8xf32>
    %127 = tpu.matmul %126, %7, %cst_64 {dimension_numbers = #tpu.dot_dimension_numbers<[1], [0], [0], [1], [0, 0, 1, 1], [], []>, precision = #tpu.contract_precision<fp32>} : vector<4x48xf32>, vector<48x8xf32>, vector<4x8xf32> -> vector<4x8xf32>
    %c12_i32 = arith.constant 12 : i32
    %c0_65 = arith.constant 0 : index
    %c0_66 = arith.constant 0 : index
    %128 = vector.load %arg4[%c0_65, %c0_66] : memref<8x2xf32, #tpu.memory_space<vmem>>, vector<8x2xf32>
    %cst_67 = arith.constant dense<0.000000e+00> : vector<4x2xf32>
    %129 = tpu.matmul %127, %128, %cst_67 {dimension_numbers = #tpu.dot_dimension_numbers<[1], [0], [0], [1], [0, 0, 1, 1], [], []>, precision = #tpu.contract_precision<fp32>} : vector<4x8xf32>, vector<8x2xf32>, vector<4x2xf32> -> vector<4x2xf32>
    %c0_68 = arith.constant 0 : index
    %c0_69 = arith.constant 0 : index
    %130 = vector.load %arg5[%c0_68, %c0_69] : memref<1x2xf32, #tpu.memory_space<vmem>>, vector<1x2xf32>
    %131 = vector.broadcast %130 : vector<1x2xf32> to vector<4x2xf32>
    %132 = arith.addf %129, %131 : vector<4x2xf32>
    %c0_70 = arith.constant 0 : index
    %c0_71 = arith.constant 0 : index
    %133 = vector.load %arg6[%c0_70, %c0_71] : memref<4x2xf32, #tpu.memory_space<vmem>>, vector<4x2xf32>
    tpu.vector_store %arg6[%c0_70, %c0_71], %132 {strides = array<i32>} : memref<4x2xf32, #tpu.memory_space<vmem>>, vector<4x2xf32>,
    return
  }
}

</mosaic_0001>

<llo_original>
// kernel: tpu_custom_call.1
$region0: #{tpu_custom_call.1}
  #allocation0 [shape = 'u32[]', space=smem, size = 0x4, offset = 0x4, fixed_abs, tag = 'smem constant byte address 0x4 - core index']
  #allocation1 [shape = 'u32[144,128]{1,0:T(1,128)}', space=vmem, size = 0x12000, scoped, tag = 'internal scratch']
  %s0 = inlined_call_operand.vmem [shape: f32[8,48], index: 0, kind: input, shape index: {}]
  %s1 = inlined_call_operand.vmem [shape: s32[12,4,1], index: 1, kind: input, shape index: {}]
  %s2 = inlined_call_operand.vmem [shape: s32[1,48], index: 2, kind: input, shape index: {}]
  %s3 = inlined_call_operand.vmem [shape: f32[48,8], index: 3, kind: input, shape index: {}]
  %s4 = inlined_call_operand.vmem [shape: f32[8,2], index: 4, kind: input, shape index: {}]
  %s5 = inlined_call_operand.vmem [shape: f32[1,2], index: 5, kind: input, shape index: {}]
  %s6 = inlined_call_operand.vmem [shape: f32[4,2], index: 6, kind: output, shape index: {}]
  %s7 = sld [smem:[#allocation0]]
  $region34: #{tpu_custom_call.1} parent=0
    _
  %s9 = ssub.s32 1, %s7
  %s10 = scalar_select 0, %s9, %s7
  // Predicated region
  $region2: #{tpu_custom_call.1} parent=0 // pred_check
    _
  $region3: #{tpu_custom_call.1} parent=0 // pred_check_branch
    %12 = sbr.rel (0) target = $region5
  $region4: #{tpu_custom_call.1} parent=0 // pred_region
    _
  $region5: #{tpu_custom_call.1} parent=0 // pred_fallthru
    _
  // Predicated region
  $region6: #{tpu_custom_call.1} parent=0 // pred_check
    _
  $region7: #{tpu_custom_call.1} parent=0 // pred_check_branch
    %14 = sbr.rel (0) target = $region9
  $region8: #{tpu_custom_call.1} parent=0 // pred_region
    _
  $region9: #{tpu_custom_call.1} parent=0 // pred_fallthru
    _
  // Predicated region
  $region10: #{tpu_custom_call.1} parent=0 // pred_check
    _
  $region11: #{tpu_custom_call.1} parent=0 // pred_check_branch
    %16 = sbr.rel (0) target = $region13
  $region12: #{tpu_custom_call.1} parent=0 // pred_region
    _
  $region13: #{tpu_custom_call.1} parent=0 // pred_fallthru
    _
  // Predicated region
  $region14: #{tpu_custom_call.1} parent=0 // pred_check
    _
  $region15: #{tpu_custom_call.1} parent=0 // pred_check_branch
    %18 = sbr.rel (0) target = $region17
  $region16: #{tpu_custom_call.1} parent=0 // pred_region
    _
  $region17: #{tpu_custom_call.1} parent=0 // pred_fallthru
    _
  // Predicated region
  $region18: #{tpu_custom_call.1} parent=0 // pred_check
    _
  $region19: #{tpu_custom_call.1} parent=0 // pred_check_branch
    %20 = sbr.rel (0) target = $region21
  $region20: #{tpu_custom_call.1} parent=0 // pred_region
    _
  $region21: #{tpu_custom_call.1} parent=0 // pred_fallthru
    _
  // Predicated region
  $region22: #{tpu_custom_call.1} parent=0 // pred_check
    _
  $region23: #{tpu_custom_call.1} parent=0 // pred_check_branch
    %22 = sbr.rel (0) target = $region25
  $region24: #{tpu_custom_call.1} parent=0 // pred_region
    _
  $region25: #{tpu_custom_call.1} parent=0 // pred_fallthru
    _
  %v23 = vlaneseq
  %v24 = vand.u32 %v23, 127
  %vm25 = vcmp.eq.s32.totalorder %v24, 0
  %v26 = vsel %vm25, 1, 0
  %v27 = vcvt.s32.f32 %v26
  %v28 = vld [vmem:[%s0] sm:$0xff]
  %v29 = vld [vmem:[%s2] sm:$0x1]
  %v30 = vld [vmem:[%s3] sm:$0xff]
  %v31 = vld [vmem:[%s3 + $0x8] sm:$0xff]
  %v32 = vld [vmem:[%s3 + $0x10] sm:$0xff]
  %v33 = vld [vmem:[%s3 + $0x18] sm:$0xff]
  %v34 = vld [vmem:[%s3 + $0x20] sm:$0xff]
  %v35 = vld [vmem:[%s3 + $0x28] sm:$0xff]
  %vm36 = vcmask 64512
  %v38 = vsel %vm36, %v27, 0
  %40 = vmatprep.subr.mxu0 0.0
  %v41 = vand.u32 %v28, 4294901760
  %42 = vmatpush1.msra.mxu0 %v41
  %43 = vmatprep.subr.mxu0 0.0
  %44 = vmatpush1.msra.mxu0 0.0
  %45 = vmatprep.subr.mxu0 0.0
  %46 = vmatpush1.msra.mxu0 0.0
  %47 = vmatprep.subr.mxu0 0.0
  %48 = vmatpush1.msra.mxu0 0.0
  %49 = vmatprep.subr.mxu0 0.0
  %50 = vmatpush1.msra.mxu0 0.0
  %51 = vmatprep.subr.mxu0 0.0
  %52 = vmatpush1.msra.mxu0 0.0
  %53 = vmatprep.subr.mxu0 0.0
  %54 = vmatpush1.msra.mxu0 0.0
  %55 = vmatprep.subr.mxu0 0.0
  %56 = vmatpush1.msra.mxu0 0.0
  %57 = vmatprep.subr.mxu0 0.0
  %58 = vmatpush1.msra.mxu0 0.0
  %59 = vmatprep.subr.mxu0 0.0
  %60 = vmatpush1.msra.mxu0 0.0
  %61 = vmatprep.subr.mxu0 0.0
  %62 = vmatpush1.msra.mxu0 0.0
  %63 = vmatprep.subr.mxu0 0.0
  %64 = vmatpush1.msra.mxu0 0.0
  %65 = vmatprep.subr.mxu0 0.0
  %66 = vmatpush1.msra.mxu0 0.0
  %67 = vmatprep.subr.mxu0 0.0
  %68 = vmatpush1.msra.mxu0 0.0
  %69 = vmatprep.subr.mxu0 0.0
  %70 = vmatpush1.msra.mxu0 0.0
  %71 = vmatprep.subr.mxu0 0.0
  %72 = vmatpush1.msra.mxu0 0.0
  %73 = vmatprep.subr.mxu0 0.0
  %74 = vmatpush1.msra.mxu0 0.0
  %75 = vmatprep.subr.mxu0 0.0
  %76 = vmatpush1.msra.mxu0 0.0
  %77 = vmatprep.subr.mxu0 0.0
  %78 = vmatpush1.msra.mxu0 0.0
  %79 = vmatprep.subr.mxu0 0.0
  %80 = vmatpush1.msra.mxu0 0.0
  %81 = vmatprep.subr.mxu0 0.0
  %82 = vmatpush1.msra.mxu0 0.0
  %83 = vmatprep.subr.mxu0 0.0
  %84 = vmatpush1.msra.mxu0 0.0
  %85 = vmatprep.subr.mxu0 0.0
  %86 = vmatpush1.msra.mxu0 0.0
  %87 = vmatprep.subr.mxu0 0.0
  %88 = vmatpush1.msra.mxu0 0.0
  %89 = vmatprep.subr.mxu0 0.0
  %90 = vmatpush1.msra.mxu0 0.0
  %91 = vmatprep.subr.mxu0 0.0
  %92 = vmatpush1.msra.mxu0 0.0
  %93 = vmatprep.subr.mxu0 0.0
  %94 = vmatpush1.msra.mxu0 0.0
  %95 = vmatprep.subr.mxu0 0.0
  %96 = vmatpush1.msra.mxu0 0.0
  %97 = vmatprep.subr.mxu0 0.0
  %98 = vmatpush1.msra.mxu0 0.0
  %99 = vmatprep.subr.mxu0 0.0
  %100 = vmatpush1.msra.mxu0 0.0
  %101 = vmatprep.subr.mxu0 0.0
  %102 = vmatpush1.msra.mxu0 0.0
  %103 = vmatprep.subr.mxu0 0.0
  %104 = vmatpush1.msra.mxu0 0.0
  %105 = vmatprep.mubr.f32.mxu0 0.0
  %v106 = vand.u32 %v38, 4294901760
  %v107 = vsub.f32 %v38, %v106
  %v108 = vand.u32 %v107, 4294901760
  %v109 = vsub.f32 %v107, %v108
  %v110 = vand.u32 %v109, 4294901760
  %111 = vmatmul.mubr.f32.gmra.mrb[0].mxu0 %v110
  %v112 = vpop.f32.mrb[0].mxu0
  %v113 = vadd.f32 0.0, %v112
  %v114 = vpop.f32.mrb[0].mxu0
  %115 = vdwg.mxu0
  %116 = vmatprep.subr.mxu0 0.0
  %v117 = vand.u32 %v28, 4294901760
  %v118 = vsub.f32 %v28, %v117
  %v119 = vand.u32 %v118, 4294901760
  %v120 = vsub.f32 %v118, %v119
  %v121 = vand.u32 %v120, 4294901760
  %122 = vmatpush1.msra.mxu0 %v121
  %123 = vmatprep.subr.mxu0 0.0
  %124 = vmatpush1.msra.mxu0 0.0
  %125 = vmatprep.subr.mxu0 0.0
  %126 = vmatpush1.msra.mxu0 0.0
  %127 = vmatprep.subr.mxu0 0.0
  %128 = vmatpush1.msra.mxu0 0.0
  %129 = vmatprep.subr.mxu0 0.0
  %130 = vmatpush1.msra.mxu0 0.0
  %131 = vmatprep.subr.mxu0 0.0
  %132 = vmatpush1.msra.mxu0 0.0
  %133 = vmatprep.subr.mxu0 0.0
  %134 = vmatpush1.msra.mxu0 0.0
  %135 = vmatprep.subr.mxu0 0.0
  %136 = vmatpush1.msra.mxu0 0.0
  %137 = vmatprep.subr.mxu0 0.0
  %138 = vmatpush1.msra.mxu0 0.0
  %139 = vmatprep.subr.mxu0 0.0
  %140 = vmatpush1.msra.mxu0 0.0
  %141 = vmatprep.subr.mxu0 0.0
  %142 = vmatpush1.msra.mxu0 0.0
  %143 = vmatprep.subr.mxu0 0.0
  %144 = vmatpush1.msra.mxu0 0.0
  %145 = vmatprep.subr.mxu0 0.0
  %146 = vmatpush1.msra.mxu0 0.0
  %147 = vmatprep.subr.mxu0 0.0
  %148 = vmatpush1.msra.mxu0 0.0
  %149 = vmatprep.subr.mxu0 0.0
  %150 = vmatpush1.msra.mxu0 0.0
  %151 = vmatprep.subr.mxu0 0.0
  %152 = vmatpush1.msra.mxu0 0.0
  %153 = vmatprep.subr.mxu0 0.0
  %154 = vmatpush1.msra.mxu0 0.0
  %155 = vmatprep.subr.mxu0 0.0
  %156 = vmatpush1.msra.mxu0 0.0
  %157 = vmatprep.subr.mxu0 0.0
  %158 = vmatpush1.msra.mxu0 0.0
  %159 = vmatprep.subr.mxu0 0.0
  %160 = vmatpush1.msra.mxu0 0.0
  %161 = vmatprep.subr.mxu0 0.0
  %162 = vmatpush1.msra.mxu0 0.0
  %163 = vmatprep.subr.mxu0 0.0
  %164 = vmatpush1.msra.mxu0 0.0
  %165 = vmatprep.subr.mxu0 0.0
  %166 = vmatpush1.msra.mxu0 0.0
  %167 = vmatprep.subr.mxu0 0.0
  %168 = vmatpush1.msra.mxu0 0.0
  %169 = vmatprep.subr.mxu0 0.0
  %170 = vmatpush1.msra.mxu0 0.0
  %171 = vmatprep.subr.mxu0 0.0
  %172 = vmatpush1.msra.mxu0 0.0
  %173 = vmatprep.subr.mxu0 0.0
  %174 = vmatpush1.msra.mxu0 0.0
  %175 = vmatprep.subr.mxu0 0.0
  %176 = vmatpush1.msra.mxu0 0.0
  %177 = vmatprep.subr.mxu0 0.0
  %178 = vmatpush1.msra.mxu0 0.0
  %179 = vmatprep.subr.mxu0 0.0
  %180 = vmatpush1.msra.mxu0 0.0
  %181 = vmatprep.subr.mxu0 0.0
  %182 = vmatpush1.msra.mxu0 0.0
  %183 = vmatprep.subr.mxu0 0.0
  %184 = vmatpush1.msra.mxu0 0.0
  %185 = vmatprep.mubr.f32.mxu0 0.0
  %v186 = vand.u32 %v38, 4294901760
  %187 = vmatmul.mubr.f32.gmra.mrb[0].mxu0 %v186
  %v188 = vpop.f32.mrb[0].mxu0
  %v189 = vadd.f32 %v113, %v188
  %v190 = vpop.f32.mrb[0].mxu0
  %191 = vdwg.mxu0
  %192 = vmatprep.subr.mxu0 0.0
  %v193 = vand.u32 %v28, 4294901760
  %v194 = vsub.f32 %v28, %v193
  %195 = vmatpush1.msra.mxu0 %v194
  %196 = vmatprep.subr.mxu0 0.0
  %197 = vmatpush1.msra.mxu0 0.0
  %198 = vmatprep.subr.mxu0 0.0
  %199 = vmatpush1.msra.mxu0 0.0
  %200 = vmatprep.subr.mxu0 0.0
  %201 = vmatpush1.msra.mxu0 0.0
  %202 = vmatprep.subr.mxu0 0.0
  %203 = vmatpush1.msra.mxu0 0.0
  %204 = vmatprep.subr.mxu0 0.0
  %205 = vmatpush1.msra.mxu0 0.0
  %206 = vmatprep.subr.mxu0 0.0
  %207 = vmatpush1.msra.mxu0 0.0
  %208 = vmatprep.subr.mxu0 0.0
  %209 = vmatpush1.msra.mxu0 0.0
  %210 = vmatprep.subr.mxu0 0.0
  %211 = vmatpush1.msra.mxu0 0.0
  %212 = vmatprep.subr.mxu0 0.0
  %213 = vmatpush1.msra.mxu0 0.0
  %214 = vmatprep.subr.mxu0 0.0
  %215 = vmatpush1.msra.mxu0 0.0
  %216 = vmatprep.subr.mxu0 0.0
  %217 = vmatpush1.msra.mxu0 0.0
  %218 = vmatprep.subr.mxu0 0.0
  %219 = vmatpush1.msra.mxu0 0.0
  %220 = vmatprep.subr.mxu0 0.0
  %221 = vmatpush1.msra.mxu0 0.0
  %222 = vmatprep.subr.mxu0 0.0
  %223 = vmatpush1.msra.mxu0 0.0
  %224 = vmatprep.subr.mxu0 0.0
  %225 = vmatpush1.msra.mxu0 0.0
  %226 = vmatprep.subr.mxu0 0.0
  %227 = vmatpush1.msra.mxu0 0.0
  %228 = vmatprep.subr.mxu0 0.0
  %229 = vmatpush1.msra.mxu0 0.0
  %230 = vmatprep.subr.mxu0 0.0
  %231 = vmatpush1.msra.mxu0 0.0
  %232 = vmatprep.subr.mxu0 0.0
  %233 = vmatpush1.msra.mxu0 0.0
  %234 = vmatprep.subr.mxu0 0.0
  %235 = vmatpush1.msra.mxu0 0.0
  %236 = vmatprep.subr.mxu0 0.0
  %237 = vmatpush1.msra.mxu0 0.0
  %238 = vmatprep.subr.mxu0 0.0
  %239 = vmatpush1.msra.mxu0 0.0
  %240 = vmatprep.subr.mxu0 0.0
  %241 = vmatpush1.msra.mxu0 0.0
  %242 = vmatprep.subr.mxu0 0.0
  %243 = vmatpush1.msra.mxu0 0.0
  %244 = vmatprep.subr.mxu0 0.0
  %245 = vmatpush1.msra.mxu0 0.0
  %246 = vmatprep.subr.mxu0 0.0
  %247 = vmatpush1.msra.mxu0 0.0
  %248 = vmatprep.subr.mxu0 0.0
  %249 = vmatpush1.msra.mxu0 0.0
  %250 = vmatprep.subr.mxu0 0.0
  %251 = vmatpush1.msra.mxu0 0.0
  %252 = vmatprep.subr.mxu0 0.0
  %253 = vmatpush1.msra.mxu0 0.0
  %254 = vmatprep.subr.mxu0 0.0
  %255 = vmatpush1.msra.mxu0 0.0
  %256 = vmatprep.subr.mxu0 0.0
  %257 = vmatpush1.msra.mxu0 0.0
  %258 = vmatprep.mubr.f32.mxu0 0.0
  %v259 = vand.u32 %v38, 4294901760
  %v260 = vsub.f32 %v38, %v259
  %261 = vmatmul.mubr.f32.gmra.mrb[0].mxu0 %v260
  %v262 = vpop.f32.mrb[0].mxu0
  %v263 = vadd.f32 %v189, %v262
  %v264 = vpop.f32.mrb[0].mxu0
  %265 = vdwg.mxu0
  %266 = vmatprep.subr.mxu0 0.0
  %v267 = vand.u32 %v28, 4294901760
  %268 = vmatpush1.msra.mxu0 %v267
  %269 = vmatprep.subr.mxu0 0.0
  %270 = vmatpush1.msra.mxu0 0.0
  %271 = vmatprep.subr.mxu0 0.0
  %272 = vmatpush1.msra.mxu0 0.0
  %273 = vmatprep.subr.mxu0 0.0
  %274 = vmatpush1.msra.mxu0 0.0
  %275 = vmatprep.subr.mxu0 0.0
  %276 = vmatpush1.msra.mxu0 0.0
  %277 = vmatprep.subr.mxu0 0.0
  %278 = vmatpush1.msra.mxu0 0.0
  %279 = vmatprep.subr.mxu0 0.0
  %280 = vmatpush1.msra.mxu0 0.0
  %281 = vmatprep.subr.mxu0 0.0
  %282 = vmatpush1.msra.mxu0 0.0
  %283 = vmatprep.subr.mxu0 0.0
  %284 = vmatpush1.msra.mxu0 0.0
  %285 = vmatprep.subr.mxu0 0.0
  %286 = vmatpush1.msra.mxu0 0.0
  %287 = vmatprep.subr.mxu0 0.0
  %288 = vmatpush1.msra.mxu0 0.0
  %289 = vmatprep.subr.mxu0 0.0
  %290 = vmatpush1.msra.mxu0 0.0
  %291 = vmatprep.subr.mxu0 0.0
  %292 = vmatpush1.msra.mxu0 0.0
  %293 = vmatprep.subr.mxu0 0.0
  %294 = vmatpush1.msra.mxu0 0.0
  %295 = vmatprep.subr.mxu0 0.0
  %296 = vmatpush1.msra.mxu0 0.0
  %297 = vmatprep.subr.mxu0 0.0
  %298 = vmatpush1.msra.mxu0 0.0
  %299 = vmatprep.subr.mxu0 0.0
  %300 = vmatpush1.msra.mxu0 0.0
  %301 = vmatprep.subr.mxu0 0.0
  %302 = vmatpush1.msra.mxu0 0.0
  %303 = vmatprep.subr.mxu0 0.0
  %304 = vmatpush1.msra.mxu0 0.0
  %305 = vmatprep.subr.mxu0 0.0
  %306 = vmatpush1.msra.mxu0 0.0
  %307 = vmatprep.subr.mxu0 0.0
  %308 = vmatpush1.msra.mxu0 0.0
  %309 = vmatprep.subr.mxu0 0.0
  %310 = vmatpush1.msra.mxu0 0.0
  %311 = vmatprep.subr.mxu0 0.0
  %312 = vmatpush1.msra.mxu0 0.0
  %313 = vmatprep.subr.mxu0 0.0
  %314 = vmatpush1.msra.mxu0 0.0
  %315 = vmatprep.subr.mxu0 0.0
  %316 = vmatpush1.msra.mxu0 0.0
  %317 = vmatprep.subr.mxu0 0.0
  %318 = vmatpush1.msra.mxu0 0.0
  %319 = vmatprep.subr.mxu0 0.0
  %320 = vmatpush1.msra.mxu0 0.0
  %321 = vmatprep.subr.mxu0 0.0
  %322 = vmatpush1.msra.mxu0 0.0
  %323 = vmatprep.subr.mxu0 0.0
  %324 = vmatpush1.msra.mxu0 0.0
  %325 = vmatprep.subr.mxu0 0.0
  %326 = vmatpush1.msra.mxu0 0.0
  %327 = vmatprep.subr.mxu0 0.0
  %328 = vmatpush1.msra.mxu0 0.0
  %329 = vmatprep.subr.mxu0 0.0
  %330 = vmatpush1.msra.mxu0 0.0
  %331 = vmatprep.mubr.f32.mxu0 0.0
  %v332 = vand.u32 %v38, 4294901760
  %v333 = vsub.f32 %v38, %v332
  %v334 = vand.u32 %v333, 4294901760
  %335 = vmatmul.mubr.f32.gmra.mrb[0].mxu0 %v334
  %v336 = vpop.f32.mrb[0].mxu0
  %v337 = vadd.f32 %v263, %v336
  %v338 = vpop.f32.mrb[0].mxu0
  %339 = vdwg.mxu0
  %340 = vmatprep.subr.mxu0 0.0
  %v341 = vand.u32 %v28, 4294901760
  %v342 = vsub.f32 %v28, %v341
  %v343 = vand.u32 %v342, 4294901760
  %344 = vmatpush1.msra.mxu0 %v343
  %345 = vmatprep.subr.mxu0 0.0
  %346 = vmatpush1.msra.mxu0 0.0
  %347 = vmatprep.subr.mxu0 0.0
  %348 = vmatpush1.msra.mxu0 0.0
  %349 = vmatprep.subr.mxu0 0.0
  %350 = vmatpush1.msra.mxu0 0.0
  %351 = vmatprep.subr.mxu0 0.0
  %352 = vmatpush1.msra.mxu0 0.0
  %353 = vmatprep.subr.mxu0 0.0
  %354 = vmatpush1.msra.mxu0 0.0
  %355 = vmatprep.subr.mxu0 0.0
  %356 = vmatpush1.msra.mxu0 0.0
  %357 = vmatprep.subr.mxu0 0.0
  %358 = vmatpush1.msra.mxu0 0.0
  %359 = vmatprep.subr.mxu0 0.0
  %360 = vmatpush1.msra.mxu0 0.0
  %361 = vmatprep.subr.mxu0 0.0
  %362 = vmatpush1.msra.mxu0 0.0
  %363 = vmatprep.subr.mxu0 0.0
  %364 = vmatpush1.msra.mxu0 0.0
  %365 = vmatprep.subr.mxu0 0.0
  %366 = vmatpush1.msra.mxu0 0.0
  %367 = vmatprep.subr.mxu0 0.0
  %368 = vmatpush1.msra.mxu0 0.0
  %369 = vmatprep.subr.mxu0 0.0
  %370 = vmatpush1.msra.mxu0 0.0
  %371 = vmatprep.subr.mxu0 0.0
  %372 = vmatpush1.msra.mxu0 0.0
  %373 = vmatprep.subr.mxu0 0.0
  %374 = vmatpush1.msra.mxu0 0.0
  %375 = vmatprep.subr.mxu0 0.0
  %376 = vmatpush1.msra.mxu0 0.0
  %377 = vmatprep.subr.mxu0 0.0
  %378 = vmatpush1.msra.mxu0 0.0
  %379 = vmatprep.subr.mxu0 0.0
  %380 = vmatpush1.msra.mxu0 0.0
  %381 = vmatprep.subr.mxu0 0.0
  %382 = vmatpush1.msra.mxu0 0.0
  %383 = vmatprep.subr.mxu0 0.0
  %384 = vmatpush1.msra.mxu0 0.0
  %385 = vmatprep.subr.mxu0 0.0
  %386 = vmatpush1.msra.mxu0 0.0
  %387 = vmatprep.subr.mxu0 0.0
  %388 = vmatpush1.msra.mxu0 0.0
  %389 = vmatprep.subr.mxu0 0.0
  %390 = vmatpush1.msra.mxu0 0.0
  %391 = vmatprep.subr.mxu0 0.0
  %392 = vmatpush1.msra.mxu0 0.0
  %393 = vmatprep.subr.mxu0 0.0
  %394 = vmatpush1.msra.mxu0 0.0
  %395 = vmatprep.subr.mxu0 0.0
  %396 = vmatpush1.msra.mxu0 0.0
  %397 = vmatprep.subr.mxu0 0.0
  %398 = vmatpush1.msra.mxu0 0.0
  %399 = vmatprep.subr.mxu0 0.0
  %400 = vmatpush1.msra.mxu0 0.0
  %401 = vmatprep.subr.mxu0 0.0
  %402 = vmatpush1.msra.mxu0 0.0
  %403 = vmatprep.subr.mxu0 0.0
  %404 = vmatpush1.msra.mxu0 0.0
  %405 = vmatprep.subr.mxu0 0.0
  %406 = vmatpush1.msra.mxu0 0.0
  %407 = vmatprep.mubr.f32.mxu0 0.0
  %v408 = vand.u32 %v38, 4294901760
  %409 = vmatmul.mubr.f32.gmra.mrb[0].mxu0 %v408
  %v410 = vpop.f32.mrb[0].mxu0
  %v411 = vadd.f32 %v337, %v410
  %v412 = vpop.f32.mrb[0].mxu0
  %413 = vdwg.mxu0
  %414 = vmatprep.subr.mxu0 0.0
  %v415 = vand.u32 %v28, 4294901760
  %416 = vmatpush1.msra.mxu0 %v415
  %417 = vmatprep.subr.mxu0 0.0
  %418 = vmatpush1.msra.mxu0 0.0
  %419 = vmatprep.subr.mxu0 0.0
  %420 = vmatpush1.msra.mxu0 0.0
  %421 = vmatprep.subr.mxu0 0.0
  %422 = vmatpush1.msra.mxu0 0.0
  %423 = vmatprep.subr.mxu0 0.0
  %424 = vmatpush1.msra.mxu0 0.0
  %425 = vmatprep.subr.mxu0 0.0
  %426 = vmatpush1.msra.mxu0 0.0
  %427 = vmatprep.subr.mxu0 0.0
  %428 = vmatpush1.msra.mxu0 0.0
  %429 = vmatprep.subr.mxu0 0.0
  %430 = vmatpush1.msra.mxu0 0.0
  %431 = vmatprep.subr.mxu0 0.0
  %432 = vmatpush1.msra.mxu0 0.0
  %433 = vmatprep.subr.mxu0 0.0
  %434 = vmatpush1.msra.mxu0 0.0
  %435 = vmatprep.subr.mxu0 0.0
  %436 = vmatpush1.msra.mxu0 0.0
  %437 = vmatprep.subr.mxu0 0.0
  %438 = vmatpush1.msra.mxu0 0.0
  %439 = vmatprep.subr.mxu0 0.0
  %440 = vmatpush1.msra.mxu0 0.0
  %441 = vmatprep.subr.mxu0 0.0
  %442 = vmatpush1.msra.mxu0 0.0
  %443 = vmatprep.subr.mxu0 0.0
  %444 = vmatpush1.msra.mxu0 0.0
  %445 = vmatprep.subr.mxu0 0.0
  %446 = vmatpush1.msra.mxu0 0.0
  %447 = vmatprep.subr.mxu0 0.0
  %448 = vmatpush1.msra.mxu0 0.0
  %449 = vmatprep.subr.mxu0 0.0
  %450 = vmatpush1.msra.mxu0 0.0
  %451 = vmatprep.subr.mxu0 0.0
  %452 = vmatpush1.msra.mxu0 0.0
  %453 = vmatprep.subr.mxu0 0.0
  %454 = vmatpush1.msra.mxu0 0.0
  %455 = vmatprep.subr.mxu0 0.0
  %456 = vmatpush1.msra.mxu0 0.0
  %457 = vmatprep.subr.mxu0 0.0
  %458 = vmatpush1.msra.mxu0 0.0
  %459 = vmatprep.subr.mxu0 0.0
  %460 = vmatpush1.msra.mxu0 0.0
  %461 = vmatprep.subr.mxu0 0.0
  %462 = vmatpush1.msra.mxu0 0.0
  %463 = vmatprep.subr.mxu0 0.0
  %464 = vmatpush1.msra.mxu0 0.0
  %465 = vmatprep.subr.mxu0 0.0
  %466 = vmatpush1.msra.mxu0 0.0
  %467 = vmatprep.subr.mxu0 0.0
  %468 = vmatpush1.msra.mxu0 0.0
  %469 = vmatprep.subr.mxu0 0.0
  %470 = vmatpush1.msra.mxu0 0.0
  %471 = vmatprep.subr.mxu0 0.0
  %472 = vmatpush1.msra.mxu0 0.0
  %473 = vmatprep.subr.mxu0 0.0
  %474 = vmatpush1.msra.mxu0 0.0
  %475 = vmatprep.subr.mxu0 0.0
  %476 = vmatpush1.msra.mxu0 0.0
  %477 = vmatprep.subr.mxu0 0.0
  %478 = vmatpush1.msra.mxu0 0.0
  %479 = vmatprep.mubr.f32.mxu0 0.0
  %v480 = vand.u32 %v38, 4294901760
  %481 = vmatmul.mubr.f32.gmra.mrb[0].mxu0 %v480
  %v482 = vpop.f32.mrb[0].mxu0
  %v483 = vadd.f32 %v411, %v482
  %v484 = vpop.f32.mrb[0].mxu0
  %485 = vdwg.mxu0
  %v486 = vld [vmem:[%s1] sm:$0xf]
  %v487 = vlaneseq
  %v488 = vshrl.u32 %v487, 7
  %v489 = vsub.s32 0, %v488
  %v490 = vrot.slane %v29, %v489
  %491 = vset.pattern.permute.xlu0 0
  %492 = vperm.xlu0 %491, %v486
  %v493 = vpop.permute.xlu0 %492
  %vm494 = vcmp.eq.s32.totalorder %v490, %v493
  %v495 = vsel %vm494, %v483, 0.0
  %vm496 = vcmask 392192
  %v498 = vsel %vm496, %v495, 0
  %500 = vmatprep.subr.mxu0 0.0
  %v501 = vand.u32 %v30, 4294901760
  %502 = vmatpush1.msra.mxu0 %v501
  %503 = vmatprep.subr.mxu0 0.0
  %v504 = vand.u32 %v31, 4294901760
  %505 = vmatpush1.msra.mxu0 %v504
  %506 = vmatprep.subr.mxu0 0.0
  %v507 = vand.u32 %v32, 4294901760
  %508 = vmatpush1.msra.mxu0 %v507
  %509 = vmatprep.subr.mxu0 0.0
  %v510 = vand.u32 %v33, 4294901760
  %511 = vmatpush1.msra.mxu0 %v510
  %512 = vmatprep.subr.mxu0 0.0
  %v513 = vand.u32 %v34, 4294901760
  %514 = vmatpush1.msra.mxu0 %v513
  %515 = vmatprep.subr.mxu0 0.0
  %v516 = vand.u32 %v35, 4294901760
  %517 = vmatpush1.msra.mxu0 %v516
  %518 = vmatprep.subr.mxu0 0.0
  %519 = vmatpush1.msra.mxu0 0.0
  %520 = vmatprep.subr.mxu0 0.0
  %521 = vmatpush1.msra.mxu0 0.0
  %522 = vmatprep.subr.mxu0 0.0
  %523 = vmatpush1.msra.mxu0 0.0
  %524 = vmatprep.subr.mxu0 0.0
  %525 = vmatpush1.msra.mxu0 0.0
  %526 = vmatprep.subr.mxu0 0.0
  %527 = vmatpush1.msra.mxu0 0.0
  %528 = vmatprep.subr.mxu0 0.0
  %529 = vmatpush1.msra.mxu0 0.0
  %530 = vmatprep.subr.mxu0 0.0
  %531 = vmatpush1.msra.mxu0 0.0
  %532 = vmatprep.subr.mxu0 0.0
  %533 = vmatpush1.msra.mxu0 0.0
  %534 = vmatprep.subr.mxu0 0.0
  %535 = vmatpush1.msra.mxu0 0.0
  %536 = vmatprep.subr.mxu0 0.0
  %537 = vmatpush1.msra.mxu0 0.0
  %538 = vmatprep.subr.mxu0 0.0
  %539 = vmatpush1.msra.mxu0 0.0
  %540 = vmatprep.subr.mxu0 0.0
  %541 = vmatpush1.msra.mxu0 0.0
  %542 = vmatprep.subr.mxu0 0.0
  %543 = vmatpush1.msra.mxu0 0.0
  %544 = vmatprep.subr.mxu0 0.0
  %545 = vmatpush1.msra.mxu0 0.0
  %546 = vmatprep.subr.mxu0 0.0
  %547 = vmatpush1.msra.mxu0 0.0
  %548 = vmatprep.subr.mxu0 0.0
  %549 = vmatpush1.msra.mxu0 0.0
  %550 = vmatprep.subr.mxu0 0.0
  %551 = vmatpush1.msra.mxu0 0.0
  %552 = vmatprep.subr.mxu0 0.0
  %553 = vmatpush1.msra.mxu0 0.0
  %554 = vmatprep.subr.mxu0 0.0
  %555 = vmatpush1.msra.mxu0 0.0
  %556 = vmatprep.subr.mxu0 0.0
  %557 = vmatpush1.msra.mxu0 0.0
  %558 = vmatprep.subr.mxu0 0.0
  %559 = vmatpush1.msra.mxu0 0.0
  %560 = vmatprep.subr.mxu0 0.0
  %561 = vmatpush1.msra.mxu0 0.0
  %562 = vmatprep.subr.mxu0 0.0
  %563 = vmatpush1.msra.mxu0 0.0
  %564 = vmatprep.subr.mxu0 0.0
  %565 = vmatpush1.msra.mxu0 0.0
  %566 = vmatprep.subr.mxu0 0.0
  %567 = vmatpush1.msra.mxu0 0.0
  %568 = vmatprep.subr.mxu0 0.0
  %569 = vmatpush1.msra.mxu0 0.0
  %570 = vmatprep.mubr.f32.mxu0 0.0
  %v571 = vand.u32 %v498, 4294901760
  %v572 = vsub.f32 %v498, %v571
  %v573 = vand.u32 %v572, 4294901760
  %v574 = vsub.f32 %v572, %v573
  %v575 = vand.u32 %v574, 4294901760
  %576 = vmatmul.mubr.f32.gmra.mrb[0].mxu0 %v575
  %v577 = vpop.f32.mrb[0].mxu0
  %v578 = vadd.f32 0.0, %v577
  %v579 = vpop.f32.mrb[0].mxu0
  %580 = vdwg.mxu0
  %581 = vmatprep.subr.mxu0 0.0
  %v582 = vand.u32 %v30, 4294901760
  %v583 = vsub.f32 %v30, %v582
  %v584 = vand.u32 %v583, 4294901760
  %v585 = vsub.f32 %v583, %v584
  %v586 = vand.u32 %v585, 4294901760
  %587 = vmatpush1.msra.mxu0 %v586
  %588 = vmatprep.subr.mxu0 0.0
  %v589 = vand.u32 %v31, 4294901760
  %v590 = vsub.f32 %v31, %v589
  %v591 = vand.u32 %v590, 4294901760
  %v592 = vsub.f32 %v590, %v591
  %v593 = vand.u32 %v592, 4294901760
  %594 = vmatpush1.msra.mxu0 %v593
  %595 = vmatprep.subr.mxu0 0.0
  %v596 = vand.u32 %v32, 4294901760
  %v597 = vsub.f32 %v32, %v596
  %v598 = vand.u32 %v597, 4294901760
  %v599 = vsub.f32 %v597, %v598
  %v600 = vand.u32 %v599, 4294901760
  %601 = vmatpush1.msra.mxu0 %v600
  %602 = vmatprep.subr.mxu0 0.0
  %v603 = vand.u32 %v33, 4294901760
  %v604 = vsub.f32 %v33, %v603
  %v605 = vand.u32 %v604, 4294901760
  %v606 = vsub.f32 %v604, %v605
  %v607 = vand.u32 %v606, 4294901760
  %608 = vmatpush1.msra.mxu0 %v607
  %609 = vmatprep.subr.mxu0 0.0
  %v610 = vand.u32 %v34, 4294901760
  %v611 = vsub.f32 %v34, %v610
  %v612 = vand.u32 %v611, 4294901760
  %v613 = vsub.f32 %v611, %v612
  %v614 = vand.u32 %v613, 4294901760
  %615 = vmatpush1.msra.mxu0 %v614
  %616 = vmatprep.subr.mxu0 0.0
  %v617 = vand.u32 %v35, 4294901760
  %v618 = vsub.f32 %v35, %v617
  %v619 = vand.u32 %v618, 4294901760
  %v620 = vsub.f32 %v618, %v619
  %v621 = vand.u32 %v620, 4294901760
  %622 = vmatpush1.msra.mxu0 %v621
  %623 = vmatprep.subr.mxu0 0.0
  %624 = vmatpush1.msra.mxu0 0.0
  %625 = vmatprep.subr.mxu0 0.0
  %626 = vmatpush1.msra.mxu0 0.0
  %627 = vmatprep.subr.mxu0 0.0
  %628 = vmatpush1.msra.mxu0 0.0
  %629 = vmatprep.subr.mxu0 0.0
  %630 = vmatpush1.msra.mxu0 0.0
  %631 = vmatprep.subr.mxu0 0.0
  %632 = vmatpush1.msra.mxu0 0.0
  %633 = vmatprep.subr.mxu0 0.0
  %634 = vmatpush1.msra.mxu0 0.0
  %635 = vmatprep.subr.mxu0 0.0
  %636 = vmatpush1.msra.mxu0 0.0
  %637 = vmatprep.subr.mxu0 0.0
  %638 = vmatpush1.msra.mxu0 0.0
  %639 = vmatprep.subr.mxu0 0.0
  %640 = vmatpush1.msra.mxu0 0.0
  %641 = vmatprep.subr.mxu0 0.0
  %642 = vmatpush1.msra.mxu0 0.0
  %643 = vmatprep.subr.mxu0 0.0
  %644 = vmatpush1.msra.mxu0 0.0
  %645 = vmatprep.subr.mxu0 0.0
  %646 = vmatpush1.msra.mxu0 0.0
  %647 = vmatprep.subr.mxu0 0.0
  %648 = vmatpush1.msra.mxu0 0.0
  %649 = vmatprep.subr.mxu0 0.0
  %650 = vmatpush1.msra.mxu0 0.0
  %651 = vmatprep.subr.mxu0 0.0
  %652 = vmatpush1.msra.mxu0 0.0
  %653 = vmatprep.subr.mxu0 0.0
  %654 = vmatpush1.msra.mxu0 0.0
  %655 = vmatprep.subr.mxu0 0.0
  %656 = vmatpush1.msra.mxu0 0.0
  %657 = vmatprep.subr.mxu0 0.0
  %658 = vmatpush1.msra.mxu0 0.0
  %659 = vmatprep.subr.mxu0 0.0
  %660 = vmatpush1.msra.mxu0 0.0
  %661 = vmatprep.subr.mxu0 0.0
  %662 = vmatpush1.msra.mxu0 0.0
  %663 = vmatprep.subr.mxu0 0.0
  %664 = vmatpush1.msra.mxu0 0.0
  %665 = vmatprep.subr.mxu0 0.0
  %666 = vmatpush1.msra.mxu0 0.0
  %667 = vmatprep.subr.mxu0 0.0
  %668 = vmatpush1.msra.mxu0 0.0
  %669 = vmatprep.subr.mxu0 0.0
  %670 = vmatpush1.msra.mxu0 0.0
  %671 = vmatprep.subr.mxu0 0.0
  %672 = vmatpush1.msra.mxu0 0.0
  %673 = vmatprep.subr.mxu0 0.0
  %674 = vmatpush1.msra.mxu0 0.0
  %675 = vmatprep.mubr.f32.mxu0 0.0
  %v676 = vand.u32 %v498, 4294901760
  %677 = vmatmul.mubr.f32.gmra.mrb[0].mxu0 %v676
  %v678 = vpop.f32.mrb[0].mxu0
  %v679 = vadd.f32 %v578, %v678
  %v680 = vpop.f32.mrb[0].mxu0
  %681 = vdwg.mxu0
  %682 = vmatprep.subr.mxu0 0.0
  %v683 = vand.u32 %v30, 4294901760
  %v684 = vsub.f32 %v30, %v683
  %685 = vmatpush1.msra.mxu0 %v684
  %686 = vmatprep.subr.mxu0 0.0
  %v687 = vand.u32 %v31, 4294901760
  %v688 = vsub.f32 %v31, %v687
  %689 = vmatpush1.msra.mxu0 %v688
  %690 = vmatprep.subr.mxu0 0.0
  %v691 = vand.u32 %v32, 4294901760
  %v692 = vsub.f32 %v32, %v691
  %693 = vmatpush1.msra.mxu0 %v692
  %694 = vmatprep.subr.mxu0 0.0
  %v695 = vand.u32 %v33, 4294901760
  %v696 = vsub.f32 %v33, %v695
  %697 = vmatpush1.msra.mxu0 %v696
  %698 = vmatprep.subr.mxu0 0.0
  %v699 = vand.u32 %v34, 4294901760
  %v700 = vsub.f32 %v34, %v699
  %701 = vmatpush1.msra.mxu0 %v700
  %702 = vmatprep.subr.mxu0 0.0
  %v703 = vand.u32 %v35, 4294901760
  %v704 = vsub.f32 %v35, %v703
  %705 = vmatpush1.msra.mxu0 %v704
  %706 = vmatprep.subr.mxu0 0.0
  %707 = vmatpush1.msra.mxu0 0.0
  %708 = vmatprep.subr.mxu0 0.0
  %709 = vmatpush1.msra.mxu0 0.0
  %710 = vmatprep.subr.mxu0 0.0
  %711 = vmatpush1.msra.mxu0 0.0
  %712 = vmatprep.subr.mxu0 0.0
  %713 = vmatpush1.msra.mxu0 0.0
  %714 = vmatprep.subr.mxu0 0.0
  %715 = vmatpush1.msra.mxu0 0.0
  %716 = vmatprep.subr.mxu0 0.0
  %717 = vmatpush1.msra.mxu0 0.0
  %718 = vmatprep.subr.mxu0 0.0
  %719 = vmatpush1.msra.mxu0 0.0
  %720 = vmatprep.subr.mxu0 0.0
  %721 = vmatpush1.msra.mxu0 0.0
  %722 = vmatprep.subr.mxu0 0.0
  %723 = vmatpush1.msra.mxu0 0.0
  %724 = vmatprep.subr.mxu0 0.0
  %725 = vmatpush1.msra.mxu0 0.0
  %726 = vmatprep.subr.mxu0 0.0
  %727 = vmatpush1.msra.mxu0 0.0
  %728 = vmatprep.subr.mxu0 0.0
  %729 = vmatpush1.msra.mxu0 0.0
  %730 = vmatprep.subr.mxu0 0.0
  %731 = vmatpush1.msra.mxu0 0.0
  %732 = vmatprep.subr.mxu0 0.0
  %733 = vmatpush1.msra.mxu0 0.0
  %734 = vmatprep.subr.mxu0 0.0
  %735 = vmatpush1.msra.mxu0 0.0
  %736 = vmatprep.subr.mxu0 0.0
  %737 = vmatpush1.msra.mxu0 0.0
  %738 = vmatprep.subr.mxu0 0.0
  %739 = vmatpush1.msra.mxu0 0.0
  %740 = vmatprep.subr.mxu0 0.0
  %741 = vmatpush1.msra.mxu0 0.0
  %742 = vmatprep.subr.mxu0 0.0
  %743 = vmatpush1.msra.mxu0 0.0
  %744 = vmatprep.subr.mxu0 0.0
  %745 = vmatpush1.msra.mxu0 0.0
  %746 = vmatprep.subr.mxu0 0.0
  %747 = vmatpush1.msra.mxu0 0.0
  %748 = vmatprep.subr.mxu0 0.0
  %749 = vmatpush1.msra.mxu0 0.0
  %750 = vmatprep.subr.mxu0 0.0
  %751 = vmatpush1.msra.mxu0 0.0
  %752 = vmatprep.subr.mxu0 0.0
  %753 = vmatpush1.msra.mxu0 0.0
  %754 = vmatprep.subr.mxu0 0.0
  %755 = vmatpush1.msra.mxu0 0.0
  %756 = vmatprep.subr.mxu0 0.0
  %757 = vmatpush1.msra.mxu0 0.0
  %758 = vmatprep.mubr.f32.mxu0 0.0
  %v759 = vand.u32 %v498, 4294901760
  %v760 = vsub.f32 %v498, %v759
  %761 = vmatmul.mubr.f32.gmra.mrb[0].mxu0 %v760
  %v762 = vpop.f32.mrb[0].mxu0
  %v763 = vadd.f32 %v679, %v762
  %v764 = vpop.f32.mrb[0].mxu0
  %765 = vdwg.mxu0
  %766 = vmatprep.subr.mxu0 0.0
  %v767 = vand.u32 %v30, 4294901760
  %768 = vmatpush1.msra.mxu0 %v767
  %769 = vmatprep.subr.mxu0 0.0
  %v770 = vand.u32 %v31, 4294901760
  %771 = vmatpush1.msra.mxu0 %v770
  %772 = vmatprep.subr.mxu0 0.0
  %v773 = vand.u32 %v32, 4294901760
  %774 = vmatpush1.msra.mxu0 %v773
  %775 = vmatprep.subr.mxu0 0.0
  %v776 = vand.u32 %v33, 4294901760
  %777 = vmatpush1.msra.mxu0 %v776
  %778 = vmatprep.subr.mxu0 0.0
  %v779 = vand.u32 %v34, 4294901760
  %780 = vmatpush1.msra.mxu0 %v779
  %781 = vmatprep.subr.mxu0 0.0
  %v782 = vand.u32 %v35, 4294901760
  %783 = vmatpush1.msra.mxu0 %v782
  %784 = vmatprep.subr.mxu0 0.0
  %785 = vmatpush1.msra.mxu0 0.0
  %786 = vmatprep.subr.mxu0 0.0
  %787 = vmatpush1.msra.mxu0 0.0
  %788 = vmatprep.subr.mxu0 0.0
  %789 = vmatpush1.msra.mxu0 0.0
  %790 = vmatprep.subr.mxu0 0.0
  %791 = vmatpush1.msra.mxu0 0.0
  %792 = vmatprep.subr.mxu0 0.0
  %793 = vmatpush1.msra.mxu0 0.0
  %794 = vmatprep.subr.mxu0 0.0
  %795 = vmatpush1.msra.mxu0 0.0
  %796 = vmatprep.subr.mxu0 0.0
  %797 = vmatpush1.msra.mxu0 0.0
  %798 = vmatprep.subr.mxu0 0.0
  %799 = vmatpush1.msra.mxu0 0.0
  %800 = vmatprep.subr.mxu0 0.0
  %801 = vmatpush1.msra.mxu0 0.0
  %802 = vmatprep.subr.mxu0 0.0
  %803 = vmatpush1.msra.mxu0 0.0
  %804 = vmatprep.subr.mxu0 0.0
  %805 = vmatpush1.msra.mxu0 0.0
  %806 = vmatprep.subr.mxu0 0.0
  %807 = vmatpush1.msra.mxu0 0.0
  %808 = vmatprep.subr.mxu0 0.0
  %809 = vmatpush1.msra.mxu0 0.0
  %810 = vmatprep.subr.mxu0 0.0
  %811 = vmatpush1.msra.mxu0 0.0
  %812 = vmatprep.subr.mxu0 0.0
  %813 = vmatpush1.msra.mxu0 0.0
  %814 = vmatprep.subr.mxu0 0.0
  %815 = vmatpush1.msra.mxu0 0.0
  %816 = vmatprep.subr.mxu0 0.0
  %817 = vmatpush1.msra.mxu0 0.0
  %818 = vmatprep.subr.mxu0 0.0
  %819 = vmatpush1.msra.mxu0 0.0
  %820 = vmatprep.subr.mxu0 0.0
  %821 = vmatpush1.msra.mxu0 0.0
  %822 = vmatprep.subr.mxu0 0.0
  %823 = vmatpush1.msra.mxu0 0.0
  %824 = vmatprep.subr.mxu0 0.0
  %825 = vmatpush1.msra.mxu0 0.0
  %826 = vmatprep.subr.mxu0 0.0
  %827 = vmatpush1.msra.mxu0 0.0
  %828 = vmatprep.subr.mxu0 0.0
  %829 = vmatpush1.msra.mxu0 0.0
  %830 = vmatprep.subr.mxu0 0.0
  %831 = vmatpush1.msra.mxu0 0.0
  %832 = vmatprep.subr.mxu0 0.0
  %833 = vmatpush1.msra.mxu0 0.0
  %834 = vmatprep.subr.mxu0 0.0
  %835 = vmatpush1.msra.mxu0 0.0
  %836 = vmatprep.mubr.f32.mxu0 0.0
  %v837 = vand.u32 %v498, 4294901760
  %v838 = vsub.f32 %v498, %v837
  %v839 = vand.u32 %v838, 4294901760
  %840 = vmatmul.mubr.f32.gmra.mrb[0].mxu0 %v839
  %v841 = vpop.f32.mrb[0].mxu0
  %v842 = vadd.f32 %v763, %v841
  %v843 = vpop.f32.mrb[0].mxu0
  %844 = vdwg.mxu0
  %845 = vmatprep.subr.mxu0 0.0
  %v846 = vand.u32 %v30, 4294901760
  %v847 = vsub.f32 %v30, %v846
  %v848 = vand.u32 %v847, 4294901760
  %849 = vmatpush1.msra.mxu0 %v848
  %850 = vmatprep.subr.mxu0 0.0
  %v851 = vand.u32 %v31, 4294901760
  %v852 = vsub.f32 %v31, %v851
  %v853 = vand.u32 %v852, 4294901760
  %854 = vmatpush1.msra.mxu0 %v853
  %855 = vmatprep.subr.mxu0 0.0
  %v856 = vand.u32 %v32, 4294901760
  %v857 = vsub.f32 %v32, %v856
  %v858 = vand.u32 %v857, 4294901760
  %859 = vmatpush1.msra.mxu0 %v858
  %860 = vmatprep.subr.mxu0 0.0
  %v861 = vand.u32 %v33, 4294901760
  %v862 = vsub.f32 %v33, %v861
  %v863 = vand.u32 %v862, 4294901760
  %864 = vmatpush1.msra.mxu0 %v863
  %865 = vmatprep.subr.mxu0 0.0
  %v866 = vand.u32 %v34, 4294901760
  %v867 = vsub.f32 %v34, %v866
  %v868 = vand.u32 %v867, 4294901760
  %869 = vmatpush1.msra.mxu0 %v868
  %870 = vmatprep.subr.mxu0 0.0
  %v871 = vand.u32 %v35, 4294901760
  %v872 = vsub.f32 %v35, %v871
  %v873 = vand.u32 %v872, 4294901760
  %874 = vmatpush1.msra.mxu0 %v873
  %875 = vmatprep.subr.mxu0 0.0
  %876 = vmatpush1.msra.mxu0 0.0
  %877 = vmatprep.subr.mxu0 0.0
  %878 = vmatpush1.msra.mxu0 0.0
  %879 = vmatprep.subr.mxu0 0.0
  %880 = vmatpush1.msra.mxu0 0.0
  %881 = vmatprep.subr.mxu0 0.0
  %882 = vmatpush1.msra.mxu0 0.0
  %883 = vmatprep.subr.mxu0 0.0
  %884 = vmatpush1.msra.mxu0 0.0
  %885 = vmatprep.subr.mxu0 0.0
  %886 = vmatpush1.msra.mxu0 0.0
  %887 = vmatprep.subr.mxu0 0.0
  %888 = vmatpush1.msra.mxu0 0.0
  %889 = vmatprep.subr.mxu0 0.0
  %890 = vmatpush1.msra.mxu0 0.0
  %891 = vmatprep.subr.mxu0 0.0
  %892 = vmatpush1.msra.mxu0 0.0
  %893 = vmatprep.subr.mxu0 0.0
  %894 = vmatpush1.msra.mxu0 0.0
  %895 = vmatprep.subr.mxu0 0.0
  %896 = vmatpush1.msra.mxu0 0.0
  %897 = vmatprep.subr.mxu0 0.0
  %898 = vmatpush1.msra.mxu0 0.0
  %899 = vmatprep.subr.mxu0 0.0
  %900 = vmatpush1.msra.mxu0 0.0
  %901 = vmatprep.subr.mxu0 0.0
  %902 = vmatpush1.msra.mxu0 0.0
  %903 = vmatprep.subr.mxu0 0.0
  %904 = vmatpush1.msra.mxu0 0.0
  %905 = vmatprep.subr.mxu0 0.0
  %906 = vmatpush1.msra.mxu0 0.0
  %907 = vmatprep.subr.mxu0 0.0
  %908 = vmatpush1.msra.mxu0 0.0
  %909 = vmatprep.subr.mxu0 0.0
  %910 = vmatpush1.msra.mxu0 0.0
  %911 = vmatprep.subr.mxu0 0.0
  %912 = vmatpush1.msra.mxu0 0.0
  %913 = vmatprep.subr.mxu0 0.0
  %914 = vmatpush1.msra.mxu0 0.0
  %915 = vmatprep.subr.mxu0 0.0
  %916 = vmatpush1.msra.mxu0 0.0
  %917 = vmatprep.subr.mxu0 0.0
  %918 = vmatpush1.msra.mxu0 0.0
  %919 = vmatprep.subr.mxu0 0.0
  %920 = vmatpush1.msra.mxu0 0.0
  %921 = vmatprep.subr.mxu0 0.0
  %922 = vmatpush1.msra.mxu0 0.0
  %923 = vmatprep.subr.mxu0 0.0
  %924 = vmatpush1.msra.mxu0 0.0
  %925 = vmatprep.subr.mxu0 0.0
  %926 = vmatpush1.msra.mxu0 0.0
  %927 = vmatprep.mubr.f32.mxu0 0.0
  %v928 = vand.u32 %v498, 4294901760
  %929 = vmatmul.mubr.f32.gmra.mrb[0].mxu0 %v928
  %v930 = vpop.f32.mrb[0].mxu0
  %v931 = vadd.f32 %v842, %v930
  %v932 = vpop.f32.mrb[0].mxu0
  %933 = vdwg.mxu0
  %934 = vmatprep.subr.mxu0 0.0
  %v935 = vand.u32 %v30, 4294901760
  %936 = vmatpush1.msra.mxu0 %v935
  %937 = vmatprep.subr.mxu0 0.0
  %v938 = vand.u32 %v31, 4294901760
  %939 = vmatpush1.msra.mxu0 %v938
  %940 = vmatprep.subr.mxu0 0.0
  %v941 = vand.u32 %v32, 4294901760
  %942 = vmatpush1.msra.mxu0 %v941
  %943 = vmatprep.subr.mxu0 0.0
  %v944 = vand.u32 %v33, 4294901760
  %945 = vmatpush1.msra.mxu0 %v944
  %946 = vmatprep.subr.mxu0 0.0
  %v947 = vand.u32 %v34, 4294901760
  %948 = vmatpush1.msra.mxu0 %v947
  %949 = vmatprep.subr.mxu0 0.0
  %v950 = vand.u32 %v35, 4294901760
  %951 = vmatpush1.msra.mxu0 %v950
  %952 = vmatprep.subr.mxu0 0.0
  %953 = vmatpush1.msra.mxu0 0.0
  %954 = vmatprep.subr.mxu0 0.0
  %955 = vmatpush1.msra.mxu0 0.0
  %956 = vmatprep.subr.mxu0 0.0
  %957 = vmatpush1.msra.mxu0 0.0
  %958 = vmatprep.subr.mxu0 0.0
  %959 = vmatpush1.msra.mxu0 0.0
  %960 = vmatprep.subr.mxu0 0.0
  %961 = vmatpush1.msra.mxu0 0.0
  %962 = vmatprep.subr.mxu0 0.0
  %963 = vmatpush1.msra.mxu0 0.0
  %964 = vmatprep.subr.mxu0 0.0
  %965 = vmatpush1.msra.mxu0 0.0
  %966 = vmatprep.subr.mxu0 0.0
  %967 = vmatpush1.msra.mxu0 0.0
  %968 = vmatprep.subr.mxu0 0.0
  %969 = vmatpush1.msra.mxu0 0.0
  %970 = vmatprep.subr.mxu0 0.0
  %971 = vmatpush1.msra.mxu0 0.0
  %972 = vmatprep.subr.mxu0 0.0
  %973 = vmatpush1.msra.mxu0 0.0
  %974 = vmatprep.subr.mxu0 0.0
  %975 = vmatpush1.msra.mxu0 0.0
  %976 = vmatprep.subr.mxu0 0.0
  %977 = vmatpush1.msra.mxu0 0.0
  %978 = vmatprep.subr.mxu0 0.0
  %979 = vmatpush1.msra.mxu0 0.0
  %980 = vmatprep.subr.mxu0 0.0
  %981 = vmatpush1.msra.mxu0 0.0
  %982 = vmatprep.subr.mxu0 0.0
  %983 = vmatpush1.msra.mxu0 0.0
  %984 = vmatprep.subr.mxu0 0.0
  %985 = vmatpush1.msra.mxu0 0.0
  %986 = vmatprep.subr.mxu0 0.0
  %987 = vmatpush1.msra.mxu0 0.0
  %988 = vmatprep.subr.mxu0 0.0
  %989 = vmatpush1.msra.mxu0 0.0
  %990 = vmatprep.subr.mxu0 0.0
  %991 = vmatpush1.msra.mxu0 0.0
  %992 = vmatprep.subr.mxu0 0.0
  %993 = vmatpush1.msra.mxu0 0.0
  %994 = vmatprep.subr.mxu0 0.0
  %995 = vmatpush1.msra.mxu0 0.0
  %996 = vmatprep.subr.mxu0 0.0
  %997 = vmatpush1.msra.mxu0 0.0
  %998 = vmatprep.subr.mxu0 0.0
  %999 = vmatpush1.msra.mxu0 0.0
  %1000 = vmatprep.subr.mxu0 0.0
  %1001 = vmatpush1.msra.mxu0 0.0
  %1002 = vmatprep.subr.mxu0 0.0
  %1003 = vmatpush1.msra.mxu0 0.0
  %1004 = vmatprep.mubr.f32.mxu0 0.0
  %v1005 = vand.u32 %v498, 4294901760
  %1006 = vmatmul.mubr.f32.gmra.mrb[0].mxu0 %v1005
  %v1007 = vpop.f32.mrb[0].mxu0
  %v1008 = vadd.f32 %v931, %v1007
  %v1009 = vpop.f32.mrb[0].mxu0
  %1010 = vdwg.mxu0
  %v1012 = vsel %vm36, %v1008, 0
  %1014 = vmatprep.subr.mxu0 0.0
  %v1015 = vand.u32 %v28, 4294901760
  %1016 = vmatpush1.msra.mxu0 %v1015
  %1017 = vmatprep.subr.mxu0 0.0
  %1018 = vmatpush1.msra.mxu0 0.0
  %1019 = vmatprep.subr.mxu0 0.0
  %1020 = vmatpush1.msra.mxu0 0.0
  %1021 = vmatprep.subr.mxu0 0.0
  %1022 = vmatpush1.msra.mxu0 0.0
  %1023 = vmatprep.subr.mxu0 0.0
  %1024 = vmatpush1.msra.mxu0 0.0
  %1025 = vmatprep.subr.mxu0 0.0
  %1026 = vmatpush1.msra.mxu0 0.0
  %1027 = vmatprep.subr.mxu0 0.0
  %1028 = vmatpush1.msra.mxu0 0.0
  %1029 = vmatprep.subr.mxu0 0.0
  %1030 = vmatpush1.msra.mxu0 0.0
  %1031 = vmatprep.subr.mxu0 0.0
  %1032 = vmatpush1.msra.mxu0 0.0
  %1033 = vmatprep.subr.mxu0 0.0
  %1034 = vmatpush1.msra.mxu0 0.0
  %1035 = vmatprep.subr.mxu0 0.0
  %1036 = vmatpush1.msra.mxu0 0.0
  %1037 = vmatprep.subr.mxu0 0.0
  %1038 = vmatpush1.msra.mxu0 0.0
  %1039 = vmatprep.subr.mxu0 0.0
  %1040 = vmatpush1.msra.mxu0 0.0
  %1041 = vmatprep.subr.mxu0 0.0
  %1042 = vmatpush1.msra.mxu0 0.0
  %1043 = vmatprep.subr.mxu0 0.0
  %1044 = vmatpush1.msra.mxu0 0.0
  %1045 = vmatprep.subr.mxu0 0.0
  %1046 = vmatpush1.msra.mxu0 0.0
  %1047 = vmatprep.subr.mxu0 0.0
  %1048 = vmatpush1.msra.mxu0 0.0
  %1049 = vmatprep.subr.mxu0 0.0
  %1050 = vmatpush1.msra.mxu0 0.0
  %1051 = vmatprep.subr.mxu0 0.0
  %1052 = vmatpush1.msra.mxu0 0.0
  %1053 = vmatprep.subr.mxu0 0.0
  %1054 = vmatpush1.msra.mxu0 0.0
  %1055 = vmatprep.subr.mxu0 0.0
  %1056 = vmatpush1.msra.mxu0 0.0
  %1057 = vmatprep.subr.mxu0 0.0
  %1058 = vmatpush1.msra.mxu0 0.0
  %1059 = vmatprep.subr.mxu0 0.0
  %1060 = vmatpush1.msra.mxu0 0.0
  %1061 = vmatprep.subr.mxu0 0.0
  %1062 = vmatpush1.msra.mxu0 0.0
  %1063 = vmatprep.subr.mxu0 0.0
  %1064 = vmatpush1.msra.mxu0 0.0
  %1065 = vmatprep.subr.mxu0 0.0
  %1066 = vmatpush1.msra.mxu0 0.0
  %1067 = vmatprep.subr.mxu0 0.0
  %1068 = vmatpush1.msra.mxu0 0.0
  %1069 = vmatprep.subr.mxu0 0.0
  %1070 = vmatpush1.msra.mxu0 0.0
  %1071 = vmatprep.subr.mxu0 0.0
  %1072 = vmatpush1.msra.mxu0 0.0
  %1073 = vmatprep.subr.mxu0 0.0
  %1074 = vmatpush1.msra.mxu0 0.0
  %1075 = vmatprep.subr.mxu0 0.0
  %1076 = vmatpush1.msra.mxu0 0.0
  %1077 = vmatprep.subr.mxu0 0.0
  %1078 = vmatpush1.msra.mxu0 0.0
  %1079 = vmatprep.mubr.f32.mxu0 0.0
  %v1080 = vand.u32 %v1012, 4294901760
  %v1081 = vsub.f32 %v1012, %v1080
  %v1082 = vand.u32 %v1081, 4294901760
  %v1083 = vsub.f32 %v1081, %v1082
  %v1084 = vand.u32 %v1083, 4294901760
  %1085 = vmatmul.mubr.f32.gmra.mrb[0].mxu0 %v1084
  %v1086 = vpop.f32.mrb[0].mxu0
  %v1087 = vadd.f32 0.0, %v1086
  %v1088 = vpop.f32.mrb[0].mxu0
  %1089 = vdwg.mxu0
  %1090 = vmatprep.subr.mxu0 0.0
  %v1091 = vand.u32 %v28, 4294901760
  %v1092 = vsub.f32 %v28, %v1091
  %v1093 = vand.u32 %v1092, 4294901760
  %v1094 = vsub.f32 %v1092, %v1093
  %v1095 = vand.u32 %v1094, 4294901760
  %1096 = vmatpush1.msra.mxu0 %v1095
  %1097 = vmatprep.subr.mxu0 0.0
  %1098 = vmatpush1.msra.mxu0 0.0
  %1099 = vmatprep.subr.mxu0 0.0
  %1100 = vmatpush1.msra.mxu0 0.0
  %1101 = vmatprep.subr.mxu0 0.0
  %1102 = vmatpush1.msra.mxu0 0.0
  %1103 = vmatprep.subr.mxu0 0.0
  %1104 = vmatpush1.msra.mxu0 0.0
  %1105 = vmatprep.subr.mxu0 0.0
  %1106 = vmatpush1.msra.mxu0 0.0
  %1107 = vmatprep.subr.mxu0 0.0
  %1108 = vmatpush1.msra.mxu0 0.0
  %1109 = vmatprep.subr.mxu0 0.0
  %1110 = vmatpush1.msra.mxu0 0.0
  %1111 = vmatprep.subr.mxu0 0.0
  %1112 = vmatpush1.msra.mxu0 0.0
  %1113 = vmatprep.subr.mxu0 0.0
  %1114 = vmatpush1.msra.mxu0 0.0
  %1115 = vmatprep.subr.mxu0 0.0
  %1116 = vmatpush1.msra.mxu0 0.0
  %1117 = vmatprep.subr.mxu0 0.0
  %1118 = vmatpush1.msra.mxu0 0.0
  %1119 = vmatprep.subr.mxu0 0.0
  %1120 = vmatpush1.msra.mxu0 0.0
  %1121 = vmatprep.subr.mxu0 0.0
  %1122 = vmatpush1.msra.mxu0 0.0
  %1123 = vmatprep.subr.mxu0 0.0
  %1124 = vmatpush1.msra.mxu0 0.0
  %1125 = vmatprep.subr.mxu0 0.0
  %1126 = vmatpush1.msra.mxu0 0.0
  %1127 = vmatprep.subr.mxu0 0.0
  %1128 = vmatpush1.msra.mxu0 0.0
  %1129 = vmatprep.subr.mxu0 0.0
  %1130 = vmatpush1.msra.mxu0 0.0
  %1131 = vmatprep.subr.mxu0 0.0
  %1132 = vmatpush1.msra.mxu0 0.0
  %1133 = vmatprep.subr.mxu0 0.0
  %1134 = vmatpush1.msra.mxu0 0.0
  %1135 = vmatprep.subr.mxu0 0.0
  %1136 = vmatpush1.msra.mxu0 0.0
  %1137 = vmatprep.subr.mxu0 0.0
  %1138 = vmatpush1.msra.mxu0 0.0
  %1139 = vmatprep.subr.mxu0 0.0
  %1140 = vmatpush1.msra.mxu0 0.0
  %1141 = vmatprep.subr.mxu0 0.0
  %1142 = vmatpush1.msra.mxu0 0.0
  %1143 = vmatprep.subr.mxu0 0.0
  %1144 = vmatpush1.msra.mxu0 0.0
  %1145 = vmatprep.subr.mxu0 0.0
  %1146 = vmatpush1.msra.mxu0 0.0
  %1147 = vmatprep.subr.mxu0 0.0
  %1148 = vmatpush1.msra.mxu0 0.0
  %1149 = vmatprep.subr.mxu0 0.0
  %1150 = vmatpush1.msra.mxu0 0.0
  %1151 = vmatprep.subr.mxu0 0.0
  %1152 = vmatpush1.msra.mxu0 0.0
  %1153 = vmatprep.subr.mxu0 0.0
  %1154 = vmatpush1.msra.mxu0 0.0
  %1155 = vmatprep.subr.mxu0 0.0
  %1156 = vmatpush1.msra.mxu0 0.0
  %1157 = vmatprep.subr.mxu0 0.0
  %1158 = vmatpush1.msra.mxu0 0.0
  %1159 = vmatprep.mubr.f32.mxu0 0.0
  %v1160 = vand.u32 %v1012, 4294901760
  %1161 = vmatmul.mubr.f32.gmra.mrb[0].mxu0 %v1160
  %v1162 = vpop.f32.mrb[0].mxu0
  %v1163 = vadd.f32 %v1087, %v1162
  %v1164 = vpop.f32.mrb[0].mxu0
  %1165 = vdwg.mxu0
  %1166 = vmatprep.subr.mxu0 0.0
  %v1167 = vand.u32 %v28, 4294901760
  %v1168 = vsub.f32 %v28, %v1167
  %1169 = vmatpush1.msra.mxu0 %v1168
  %1170 = vmatprep.subr.mxu0 0.0
  %1171 = vmatpush1.msra.mxu0 0.0
  %1172 = vmatprep.subr.mxu0 0.0
  %1173 = vmatpush1.msra.mxu0 0.0
  %1174 = vmatprep.subr.mxu0 0.0
  %1175 = vmatpush1.msra.mxu0 0.0
  %1176 = vmatprep.subr.mxu0 0.0
  %1177 = vmatpush1.msra.mxu0 0.0
  %1178 = vmatprep.subr.mxu0 0.0
  %1179 = vmatpush1.msra.mxu0 0.0
  %1180 = vmatprep.subr.mxu0 0.0
  %1181 = vmatpush1.msra.mxu0 0.0
  %1182 = vmatprep.subr.mxu0 0.0
  %1183 = vmatpush1.msra.mxu0 0.0
  %1184 = vmatprep.subr.mxu0 0.0
  %1185 = vmatpush1.msra.mxu0 0.0
  %1186 = vmatprep.subr.mxu0 0.0
  %1187 = vmatpush1.msra.mxu0 0.0
  %1188 = vmatprep.subr.mxu0 0.0
  %1189 = vmatpush1.msra.mxu0 0.0
  %1190 = vmatprep.subr.mxu0 0.0
  %1191 = vmatpush1.msra.mxu0 0.0
  %1192 = vmatprep.subr.mxu0 0.0
  %1193 = vmatpush1.msra.mxu0 0.0
  %1194 = vmatprep.subr.mxu0 0.0
  %1195 = vmatpush1.msra.mxu0 0.0
  %1196 = vmatprep.subr.mxu0 0.0
  %1197 = vmatpush1.msra.mxu0 0.0
  %1198 = vmatprep.subr.mxu0 0.0
  %1199 = vmatpush1.msra.mxu0 0.0
  %1200 = vmatprep.subr.mxu0 0.0
  %1201 = vmatpush1.msra.mxu0 0.0
  %1202 = vmatprep.subr.mxu0 0.0
  %1203 = vmatpush1.msra.mxu0 0.0
  %1204 = vmatprep.subr.mxu0 0.0
  %1205 = vmatpush1.msra.mxu0 0.0
  %1206 = vmatprep.subr.mxu0 0.0
  %1207 = vmatpush1.msra.mxu0 0.0
  %1208 = vmatprep.subr.mxu0 0.0
  %1209 = vmatpush1.msra.mxu0 0.0
  %1210 = vmatprep.subr.mxu0 0.0
  %1211 = vmatpush1.msra.mxu0 0.0
  %1212 = vmatprep.subr.mxu0 0.0
  %1213 = vmatpush1.msra.mxu0 0.0
  %1214 = vmatprep.subr.mxu0 0.0
  %1215 = vmatpush1.msra.mxu0 0.0
  %1216 = vmatprep.subr.mxu0 0.0
  %1217 = vmatpush1.msra.mxu0 0.0
  %1218 = vmatprep.subr.mxu0 0.0
  %1219 = vmatpush1.msra.mxu0 0.0
  %1220 = vmatprep.subr.mxu0 0.0
  %1221 = vmatpush1.msra.mxu0 0.0
  %1222 = vmatprep.subr.mxu0 0.0
  %1223 = vmatpush1.msra.mxu0 0.0
  %1224 = vmatprep.subr.mxu0 0.0
  %1225 = vmatpush1.msra.mxu0 0.0
  %1226 = vmatprep.subr.mxu0 0.0
  %1227 = vmatpush1.msra.mxu0 0.0
  %1228 = vmatprep.subr.mxu0 0.0
  %1229 = vmatpush1.msra.mxu0 0.0
  %1230 = vmatprep.subr.mxu0 0.0
  %1231 = vmatpush1.msra.mxu0 0.0
  %1232 = vmatprep.mubr.f32.mxu0 0.0
  %v1233 = vand.u32 %v1012, 4294901760
  %v1234 = vsub.f32 %v1012, %v1233
  %1235 = vmatmul.mubr.f32.gmra.mrb[0].mxu0 %v1234
  %v1236 = vpop.f32.mrb[0].mxu0
  %v1237 = vadd.f32 %v1163, %v1236
  %v1238 = vpop.f32.mrb[0].mxu0
  %1239 = vdwg.mxu0
  %1240 = vmatprep.subr.mxu0 0.0
  %v1241 = vand.u32 %v28, 4294901760
  %1242 = vmatpush1.msra.mxu0 %v1241
  %1243 = vmatprep.subr.mxu0 0.0
  %1244 = vmatpush1.msra.mxu0 0.0
  %1245 = vmatprep.subr.mxu0 0.0
  %1246 = vmatpush1.msra.mxu0 0.0
  %1247 = vmatprep.subr.mxu0 0.0
  %1248 = vmatpush1.msra.mxu0 0.0
  %1249 = vmatprep.subr.mxu0 0.0
  %1250 = vmatpush1.msra.mxu0 0.0
  %1251 = vmatprep.subr.mxu0 0.0
  %1252 = vmatpush1.msra.mxu0 0.0
  %1253 = vmatprep.subr.mxu0 0.0
  %1254 = vmatpush1.msra.mxu0 0.0
  %1255 = vmatprep.subr.mxu0 0.0
  %1256 = vmatpush1.msra.mxu0 0.0
  %1257 = vmatprep.subr.mxu0 0.0
  %1258 = vmatpush1.msra.mxu0 0.0
  %1259 = vmatprep.subr.mxu0 0.0
  %1260 = vmatpush1.msra.mxu0 0.0
  %1261 = vmatprep.subr.mxu0 0.0
  %1262 = vmatpush1.msra.mxu0 0.0
  %1263 = vmatprep.subr.mxu0 0.0
  %1264 = vmatpush1.msra.mxu0 0.0
  %1265 = vmatprep.subr.mxu0 0.0
  %1266 = vmatpush1.msra.mxu0 0.0
  %1267 = vmatprep.subr.mxu0 0.0
  %1268 = vmatpush1.msra.mxu0 0.0
  %1269 = vmatprep.subr.mxu0 0.0
  %1270 = vmatpush1.msra.mxu0 0.0
  %1271 = vmatprep.subr.mxu0 0.0
  %1272 = vmatpush1.msra.mxu0 0.0
  %1273 = vmatprep.subr.mxu0 0.0
  %1274 = vmatpush1.msra.mxu0 0.0
  %1275 = vmatprep.subr.mxu0 0.0
  %1276 = vmatpush1.msra.mxu0 0.0
  %1277 = vmatprep.subr.mxu0 0.0
  %1278 = vmatpush1.msra.mxu0 0.0
  %1279 = vmatprep.subr.mxu0 0.0
  %1280 = vmatpush1.msra.mxu0 0.0
  %1281 = vmatprep.subr.mxu0 0.0
  %1282 = vmatpush1.msra.mxu0 0.0
  %1283 = vmatprep.subr.mxu0 0.0
  %1284 = vmatpush1.msra.mxu0 0.0
  %1285 = vmatprep.subr.mxu0 0.0
  %1286 = vmatpush1.msra.mxu0 0.0
  %1287 = vmatprep.subr.mxu0 0.0
  %1288 = vmatpush1.msra.mxu0 0.0
  %1289 = vmatprep.subr.mxu0 0.0
  %1290 = vmatpush1.msra.mxu0 0.0
  %1291 = vmatprep.subr.mxu0 0.0
  %1292 = vmatpush1.msra.mxu0 0.0
  %1293 = vmatprep.subr.mxu0 0.0
  %1294 = vmatpush1.msra.mxu0 0.0
  %1295 = vmatprep.subr.mxu0 0.0
  %1296 = vmatpush1.msra.mxu0 0.0
  %1297 = vmatprep.subr.mxu0 0.0
  %1298 = vmatpush1.msra.mxu0 0.0
  %1299 = vmatprep.subr.mxu0 0.0
  %1300 = vmatpush1.msra.mxu0 0.0
  %1301 = vmatprep.subr.mxu0 0.0
  %1302 = vmatpush1.msra.mxu0 0.0
  %1303 = vmatprep.subr.mxu0 0.0
  %1304 = vmatpush1.msra.mxu0 0.0
  %1305 = vmatprep.mubr.f32.mxu0 0.0
  %v1306 = vand.u32 %v1012, 4294901760
  %v1307 = vsub.f32 %v1012, %v1306
  %v1308 = vand.u32 %v1307, 4294901760
  %1309 = vmatmul.mubr.f32.gmra.mrb[0].mxu0 %v1308
  %v1310 = vpop.f32.mrb[0].mxu0
  %v1311 = vadd.f32 %v1237, %v1310
  %v1312 = vpop.f32.mrb[0].mxu0
  %1313 = vdwg.mxu0
  %1314 = vmatprep.subr.mxu0 0.0
  %v1315 = vand.u32 %v28, 4294901760
  %v1316 = vsub.f32 %v28, %v1315
  %v1317 = vand.u32 %v1316, 4294901760
  %1318 = vmatpush1.msra.mxu0 %v1317
  %1319 = vmatprep.subr.mxu0 0.0
  %1320 = vmatpush1.msra.mxu0 0.0
  %1321 = vmatprep.subr.mxu0 0.0
  %1322 = vmatpush1.msra.mxu0 0.0
  %1323 = vmatprep.subr.mxu0 0.0
  %1324 = vmatpush1.msra.mxu0 0.0
  %1325 = vmatprep.subr.mxu0 0.0
  %1326 = vmatpush1.msra.mxu0 0.0
  %1327 = vmatprep.subr.mxu0 0.0
  %1328 = vmatpush1.msra.mxu0 0.0
  %1329 = vmatprep.subr.mxu0 0.0
  %1330 = vmatpush1.msra.mxu0 0.0
  %1331 = vmatprep.subr.mxu0 0.0
  %1332 = vmatpush1.msra.mxu0 0.0
  %1333 = vmatprep.subr.mxu0 0.0
  %1334 = vmatpush1.msra.mxu0 0.0
  %1335 = vmatprep.subr.mxu0 0.0
  %1336 = vmatpush1.msra.mxu0 0.0
  %1337 = vmatprep.subr.mxu0 0.0
  %1338 = vmatpush1.msra.mxu0 0.0
  %1339 = vmatprep.subr.mxu0 0.0
  %1340 = vmatpush1.msra.mxu0 0.0
  %1341 = vmatprep.subr.mxu0 0.0
  %1342 = vmatpush1.msra.mxu0 0.0
  %1343 = vmatprep.subr.mxu0 0.0
  %1344 = vmatpush1.msra.mxu0 0.0
  %1345 = vmatprep.subr.mxu0 0.0
  %1346 = vmatpush1.msra.mxu0 0.0
  %1347 = vmatprep.subr.mxu0 0.0
  %1348 = vmatpush1.msra.mxu0 0.0
  %1349 = vmatprep.subr.mxu0 0.0
  %1350 = vmatpush1.msra.mxu0 0.0
  %1351 = vmatprep.subr.mxu0 0.0
  %1352 = vmatpush1.msra.mxu0 0.0
  %1353 = vmatprep.subr.mxu0 0.0
  %1354 = vmatpush1.msra.mxu0 0.0
  %1355 = vmatprep.subr.mxu0 0.0
  %1356 = vmatpush1.msra.mxu0 0.0
  %1357 = vmatprep.subr.mxu0 0.0
  %1358 = vmatpush1.msra.mxu0 0.0
  %1359 = vmatprep.subr.mxu0 0.0
  %1360 = vmatpush1.msra.mxu0 0.0
  %1361 = vmatprep.subr.mxu0 0.0
  %1362 = vmatpush1.msra.mxu0 0.0
  %1363 = vmatprep.subr.mxu0 0.0
  %1364 = vmatpush1.msra.mxu0 0.0
  %1365 = vmatprep.subr.mxu0 0.0
  %1366 = vmatpush1.msra.mxu0 0.0
  %1367 = vmatprep.subr.mxu0 0.0
  %1368 = vmatpush1.msra.mxu0 0.0
  %1369 = vmatprep.subr.mxu0 0.0
  %1370 = vmatpush1.msra.mxu0 0.0
  %1371 = vmatprep.subr.mxu0 0.0
  %1372 = vmatpush1.msra.mxu0 0.0
  %1373 = vmatprep.subr.mxu0 0.0
  %1374 = vmatpush1.msra.mxu0 0.0
  %1375 = vmatprep.subr.mxu0 0.0
  %1376 = vmatpush1.msra.mxu0 0.0
  %1377 = vmatprep.subr.mxu0 0.0
  %1378 = vmatpush1.msra.mxu0 0.0
  %1379 = vmatprep.subr.mxu0 0.0
  %1380 = vmatpush1.msra.mxu0 0.0
  %1381 = vmatprep.mubr.f32.mxu0 0.0
  %v1382 = vand.u32 %v1012, 4294901760
  %1383 = vmatmul.mubr.f32.gmra.mrb[0].mxu0 %v1382
  %v1384 = vpop.f32.mrb[0].mxu0
  %v1385 = vadd.f32 %v1311, %v1384
  %v1386 = vpop.f32.mrb[0].mxu0
  %1387 = vdwg.mxu0
  %1388 = vmatprep.subr.mxu0 0.0
  %v1389 = vand.u32 %v28, 4294901760
  %1390 = vmatpush1.msra.mxu0 %v1389
  %1391 = vmatprep.subr.mxu0 0.0
  %1392 = vmatpush1.msra.mxu0 0.0
  %1393 = vmatprep.subr.mxu0 0.0
  %1394 = vmatpush1.msra.mxu0 0.0
  %1395 = vmatprep.subr.mxu0 0.0
  %1396 = vmatpush1.msra.mxu0 0.0
  %1397 = vmatprep.subr.mxu0 0.0
  %1398 = vmatpush1.msra.mxu0 0.0
  %1399 = vmatprep.subr.mxu0 0.0
  %1400 = vmatpush1.msra.mxu0 0.0
  %1401 = vmatprep.subr.mxu0 0.0
  %1402 = vmatpush1.msra.mxu0 0.0
  %1403 = vmatprep.subr.mxu0 0.0
  %1404 = vmatpush1.msra.mxu0 0.0
  %1405 = vmatprep.subr.mxu0 0.0
  %1406 = vmatpush1.msra.mxu0 0.0
  %1407 = vmatprep.subr.mxu0 0.0
  %1408 = vmatpush1.msra.mxu0 0.0
  %1409 = vmatprep.subr.mxu0 0.0
  %1410 = vmatpush1.msra.mxu0 0.0
  %1411 = vmatprep.subr.mxu0 0.0
  %1412 = vmatpush1.msra.mxu0 0.0
  %1413 = vmatprep.subr.mxu0 0.0
  %1414 = vmatpush1.msra.mxu0 0.0
  %1415 = vmatprep.subr.mxu0 0.0
  %1416 = vmatpush1.msra.mxu0 0.0
  %1417 = vmatprep.subr.mxu0 0.0
  %1418 = vmatpush1.msra.mxu0 0.0
  %1419 = vmatprep.subr.mxu0 0.0
  %1420 = vmatpush1.msra.mxu0 0.0
  %1421 = vmatprep.subr.mxu0 0.0
  %1422 = vmatpush1.msra.mxu0 0.0
  %1423 = vmatprep.subr.mxu0 0.0
  %1424 = vmatpush1.msra.mxu0 0.0
  %1425 = vmatprep.subr.mxu0 0.0
  %1426 = vmatpush1.msra.mxu0 0.0
  %1427 = vmatprep.subr.mxu0 0.0
  %1428 = vmatpush1.msra.mxu0 0.0
  %1429 = vmatprep.subr.mxu0 0.0
  %1430 = vmatpush1.msra.mxu0 0.0
  %1431 = vmatprep.subr.mxu0 0.0
  %1432 = vmatpush1.msra.mxu0 0.0
  %1433 = vmatprep.subr.mxu0 0.0
  %1434 = vmatpush1.msra.mxu0 0.0
  %1435 = vmatprep.subr.mxu0 0.0
  %1436 = vmatpush1.msra.mxu0 0.0
  %1437 = vmatprep.subr.mxu0 0.0
  %1438 = vmatpush1.msra.mxu0 0.0
  %1439 = vmatprep.subr.mxu0 0.0
  %1440 = vmatpush1.msra.mxu0 0.0
  %1441 = vmatprep.subr.mxu0 0.0
  %1442 = vmatpush1.msra.mxu0 0.0
  %1443 = vmatprep.subr.mxu0 0.0
  %1444 = vmatpush1.msra.mxu0 0.0
  %1445 = vmatprep.subr.mxu0 0.0
  %1446 = vmatpush1.msra.mxu0 0.0
  %1447 = vmatprep.subr.mxu0 0.0
  %1448 = vmatpush1.msra.mxu0 0.0
  %1449 = vmatprep.subr.mxu0 0.0
  %1450 = vmatpush1.msra.mxu0 0.0
  %1451 = vmatprep.subr.mxu0 0.0
  %1452 = vmatpush1.msra.mxu0 0.0
  %1453 = vmatprep.mubr.f32.mxu0 0.0
  %v1454 = vand.u32 %v1012, 4294901760
  %1455 = vmatmul.mubr.f32.gmra.mrb[0].mxu0 %v1454
  %v1456 = vpop.f32.mrb[0].mxu0
  %v1457 = vadd.f32 %v1385, %v1456
  %v1458 = vpop.f32.mrb[0].mxu0
  %1459 = vdwg.mxu0
  %s1460 = scalar_lea.vmem %s1, 4
  %v1461 = vld [vmem:[%s1460] sm:$0xf]
  %1462 = vset.pattern.permute.xlu0 0
  %1463 = vperm.xlu0 %1462, %v1461
  %v1464 = vpop.permute.xlu0 %1463
  %vm1465 = vcmp.eq.s32.totalorder %v490, %v1464
  %v1466 = vsel %vm1465, %v1457, 0.0
  %v1468 = vsel %vm496, %v1466, 0
  %1470 = vmatprep.subr.mxu0 0.0
  %v1471 = vand.u32 %v30, 4294901760
  %1472 = vmatpush1.msra.mxu0 %v1471
  %1473 = vmatprep.subr.mxu0 0.0
  %v1474 = vand.u32 %v31, 4294901760
  %1475 = vmatpush1.msra.mxu0 %v1474
  %1476 = vmatprep.subr.mxu0 0.0
  %v1477 = vand.u32 %v32, 4294901760
  %1478 = vmatpush1.msra.mxu0 %v1477
  %1479 = vmatprep.subr.mxu0 0.0
  %v1480 = vand.u32 %v33, 4294901760
  %1481 = vmatpush1.msra.mxu0 %v1480
  %1482 = vmatprep.subr.mxu0 0.0
  %v1483 = vand.u32 %v34, 4294901760
  %1484 = vmatpush1.msra.mxu0 %v1483
  %1485 = vmatprep.subr.mxu0 0.0
  %v1486 = vand.u32 %v35, 4294901760
  %1487 = vmatpush1.msra.mxu0 %v1486
  %1488 = vmatprep.subr.mxu0 0.0
  %1489 = vmatpush1.msra.mxu0 0.0
  %1490 = vmatprep.subr.mxu0 0.0
  %1491 = vmatpush1.msra.mxu0 0.0
  %1492 = vmatprep.subr.mxu0 0.0
  %1493 = vmatpush1.msra.mxu0 0.0
  %1494 = vmatprep.subr.mxu0 0.0
  %1495 = vmatpush1.msra.mxu0 0.0
  %1496 = vmatprep.subr.mxu0 0.0
  %1497 = vmatpush1.msra.mxu0 0.0
  %1498 = vmatprep.subr.mxu0 0.0
  %1499 = vmatpush1.msra.mxu0 0.0
  %1500 = vmatprep.subr.mxu0 0.0
  %1501 = vmatpush1.msra.mxu0 0.0
  %1502 = vmatprep.subr.mxu0 0.0
  %1503 = vmatpush1.msra.mxu0 0.0
  %1504 = vmatprep.subr.mxu0 0.0
  %1505 = vmatpush1.msra.mxu0 0.0
  %1506 = vmatprep.subr.mxu0 0.0
  %1507 = vmatpush1.msra.mxu0 0.0
  %1508 = vmatprep.subr.mxu0 0.0
  %1509 = vmatpush1.msra.mxu0 0.0
  %1510 = vmatprep.subr.mxu0 0.0
  %1511 = vmatpush1.msra.mxu0 0.0
  %1512 = vmatprep.subr.mxu0 0.0
  %1513 = vmatpush1.msra.mxu0 0.0
  %1514 = vmatprep.subr.mxu0 0.0
  %1515 = vmatpush1.msra.mxu0 0.0
  %1516 = vmatprep.subr.mxu0 0.0
  %1517 = vmatpush1.msra.mxu0 0.0
  %1518 = vmatprep.subr.mxu0 0.0
  %1519 = vmatpush1.msra.mxu0 0.0
  %1520 = vmatprep.subr.mxu0 0.0
  %1521 = vmatpush1.msra.mxu0 0.0
  %1522 = vmatprep.subr.mxu0 0.0
  %1523 = vmatpush1.msra.mxu0 0.0
  %1524 = vmatprep.subr.mxu0 0.0
  %1525 = vmatpush1.msra.mxu0 0.0
  %1526 = vmatprep.subr.mxu0 0.0
  %1527 = vmatpush1.msra.mxu0 0.0
  %1528 = vmatprep.subr.mxu0 0.0
  %1529 = vmatpush1.msra.mxu0 0.0
  %1530 = vmatprep.subr.mxu0 0.0
  %1531 = vmatpush1.msra.mxu0 0.0
  %1532 = vmatprep.subr.mxu0 0.0
  %1533 = vmatpush1.msra.mxu0 0.0
  %1534 = vmatprep.subr.mxu0 0.0
  %1535 = vmatpush1.msra.mxu0 0.0
  %1536 = vmatprep.subr.mxu0 0.0
  %1537 = vmatpush1.msra.mxu0 0.0
  %1538 = vmatprep.subr.mxu0 0.0
  %1539 = vmatpush1.msra.mxu0 0.0
  %1540 = vmatprep.mubr.f32.mxu0 0.0
  %v1541 = vand.u32 %v1468, 4294901760
  %v1542 = vsub.f32 %v1468, %v1541
  %v1543 = vand.u32 %v1542, 4294901760
  %v1544 = vsub.f32 %v1542, %v1543
  %v1545 = vand.u32 %v1544, 4294901760
  %1546 = vmatmul.mubr.f32.gmra.mrb[0].mxu0 %v1545
  %v1547 = vpop.f32.mrb[0].mxu0
  %v1548 = vadd.f32 0.0, %v1547
  %v1549 = vpop.f32.mrb[0].mxu0
  %1550 = vdwg.mxu0
  %1551 = vmatprep.subr.mxu0 0.0
  %v1552 = vand.u32 %v30, 4294901760
  %v1553 = vsub.f32 %v30, %v1552
  %v1554 = vand.u32 %v1553, 4294901760
  %v1555 = vsub.f32 %v1553, %v1554
  %v1556 = vand.u32 %v1555, 4294901760
  %1557 = vmatpush1.msra.mxu0 %v1556
  %1558 = vmatprep.subr.mxu0 0.0
  %v1559 = vand.u32 %v31, 4294901760
  %v1560 = vsub.f32 %v31, %v1559
  %v1561 = vand.u32 %v1560, 4294901760
  %v1562 = vsub.f32 %v1560, %v1561
  %v1563 = vand.u32 %v1562, 4294901760
  %1564 = vmatpush1.msra.mxu0 %v1563
  %1565 = vmatprep.subr.mxu0 0.0
  %v1566 = vand.u32 %v32, 4294901760
  %v1567 = vsub.f32 %v32, %v1566
  %v1568 = vand.u32 %v1567, 4294901760
  %v1569 = vsub.f32 %v1567, %v1568
  %v1570 = vand.u32 %v1569, 4294901760
  %1571 = vmatpush1.msra.mxu0 %v1570
  %1572 = vmatprep.subr.mxu0 0.0
  %v1573 = vand.u32 %v33, 4294901760
  %v1574 = vsub.f32 %v33, %v1573
  %v1575 = vand.u32 %v1574, 4294901760
  %v1576 = vsub.f32 %v1574, %v1575
  %v1577 = vand.u32 %v1576, 4294901760
  %1578 = vmatpush1.msra.mxu0 %v1577
  %1579 = vmatprep.subr.mxu0 0.0
  %v1580 = vand.u32 %v34, 4294901760
  %v1581 = vsub.f32 %v34, %v1580
  %v1582 = vand.u32 %v1581, 4294901760
  %v1583 = vsub.f32 %v1581, %v1582
  %v1584 = vand.u32 %v1583, 4294901760
  %1585 = vmatpush1.msra.mxu0 %v1584
  %1586 = vmatprep.subr.mxu0 0.0
  %v1587 = vand.u32 %v35, 4294901760
  %v1588 = vsub.f32 %v35, %v1587
  %v1589 = vand.u32 %v1588, 4294901760
  %v1590 = vsub.f32 %v1588, %v1589
  %v1591 = vand.u32 %v1590, 4294901760
  %1592 = vmatpush1.msra.mxu0 %v1591
  %1593 = vmatprep.subr.mxu0 0.0
  %1594 = vmatpush1.msra.mxu0 0.0
  %1595 = vmatprep.subr.mxu0 0.0
  %1596 = vmatpush1.msra.mxu0 0.0
  %1597 = vmatprep.subr.mxu0 0.0
  %1598 = vmatpush1.msra.mxu0 0.0
  %1599 = vmatprep.subr.mxu0 0.0
  %1600 = vmatpush1.msra.mxu0 0.0
  %1601 = vmatprep.subr.mxu0 0.0
  %1602 = vmatpush1.msra.mxu0 0.0
  %1603 = vmatprep.subr.mxu0 0.0
  %1604 = vmatpush1.msra.mxu0 0.0
  %1605 = vmatprep.subr.mxu0 0.0
  %1606 = vmatpush1.msra.mxu0 0.0
  %1607 = vmatprep.subr.mxu0 0.0
  %1608 = vmatpush1.msra.mxu0 0.0
  %1609 = vmatprep.subr.mxu0 0.0
  %1610 = vmatpush1.msra.mxu0 0.0
  %1611 = vmatprep.subr.mxu0 0.0
  %1612 = vmatpush1.msra.mxu0 0.0
  %1613 = vmatprep.subr.mxu0 0.0
  %1614 = vmatpush1.msra.mxu0 0.0
  %1615 = vmatprep.subr.mxu0 0.0
  %1616 = vmatpush1.msra.mxu0 0.0
  %1617 = vmatprep.subr.mxu0 0.0
  %1618 = vmatpush1.msra.mxu0 0.0
  %1619 = vmatprep.subr.mxu0 0.0
  %1620 = vmatpush1.msra.mxu0 0.0
  %1621 = vmatprep.subr.mxu0 0.0
  %1622 = vmatpush1.msra.mxu0 0.0
  %1623 = vmatprep.subr.mxu0 0.0
  %1624 = vmatpush1.msra.mxu0 0.0
  %1625 = vmatprep.subr.mxu0 0.0
  %1626 = vmatpush1.msra.mxu0 0.0
  %1627 = vmatprep.subr.mxu0 0.0
  %1628 = vmatpush1.msra.mxu0 0.0
  %1629 = vmatprep.subr.mxu0 0.0
  %1630 = vmatpush1.msra.mxu0 0.0
  %1631 = vmatprep.subr.mxu0 0.0
  %1632 = vmatpush1.msra.mxu0 0.0
  %1633 = vmatprep.subr.mxu0 0.0
  %1634 = vmatpush1.msra.mxu0 0.0
  %1635 = vmatprep.subr.mxu0 0.0
  %1636 = vmatpush1.msra.mxu0 0.0
  %1637 = vmatprep.subr.mxu0 0.0
  %1638 = vmatpush1.msra.mxu0 0.0
  %1639 = vmatprep.subr.mxu0 0.0
  %1640 = vmatpush1.msra.mxu0 0.0
  %1641 = vmatprep.subr.mxu0 0.0
  %1642 = vmatpush1.msra.mxu0 0.0
  %1643 = vmatprep.subr.mxu0 0.0
  %1644 = vmatpush1.msra.mxu0 0.0
  %1645 = vmatprep.mubr.f32.mxu0 0.0
  %v1646 = vand.u32 %v1468, 4294901760
  %1647 = vmatmul.mubr.f32.gmra.mrb[0].mxu0 %v1646
  %v1648 = vpop.f32.mrb[0].mxu0
  %v1649 = vadd.f32 %v1548, %v1648
  %v1650 = vpop.f32.mrb[0].mxu0
  %1651 = vdwg.mxu0
  %1652 = vmatprep.subr.mxu0 0.0
  %v1653 = vand.u32 %v30, 4294901760
  %v1654 = vsub.f32 %v30, %v1653
  %1655 = vmatpush1.msra.mxu0 %v1654
  %1656 = vmatprep.subr.mxu0 0.0
  %v1657 = vand.u32 %v31, 4294901760
  %v1658 = vsub.f32 %v31, %v1657
  %1659 = vmatpush1.msra.mxu0 %v1658
  %1660 = vmatprep.subr.mxu0 0.0
  %v1661 = vand.u32 %v32, 4294901760
  %v1662 = vsub.f32 %v32, %v1661
  %1663 = vmatpush1.msra.mxu0 %v1662
  %1664 = vmatprep.subr.mxu0 0.0
  %v1665 = vand.u32 %v33, 4294901760
  %v1666 = vsub.f32 %v33, %v1665
  %1667 = vmatpush1.msra.mxu0 %v1666
  %1668 = vmatprep.subr.mxu0 0.0
  %v1669 = vand.u32 %v34, 4294901760
  %v1670 = vsub.f32 %v34, %v1669
  %1671 = vmatpush1.msra.mxu0 %v1670
  %1672 = vmatprep.subr.mxu0 0.0
  %v1673 = vand.u32 %v35, 4294901760
  %v1674 = vsub.f32 %v35, %v1673
  %1675 = vmatpush1.msra.mxu0 %v1674
  %1676 = vmatprep.subr.mxu0 0.0
  %1677 = vmatpush1.msra.mxu0 0.0
  %1678 = vmatprep.subr.mxu0 0.0
  %1679 = vmatpush1.msra.mxu0 0.0
  %1680 = vmatprep.subr.mxu0 0.0
  %1681 = vmatpush1.msra.mxu0 0.0
  %1682 = vmatprep.subr.mxu0 0.0
  %1683 = vmatpush1.msra.mxu0 0.0
  %1684 = vmatprep.subr.mxu0 0.0
  %1685 = vmatpush1.msra.mxu0 0.0
  %1686 = vmatprep.subr.mxu0 0.0
  %1687 = vmatpush1.msra.mxu0 0.0
  %1688 = vmatprep.subr.mxu0 0.0
  %1689 = vmatpush1.msra.mxu0 0.0
  %1690 = vmatprep.subr.mxu0 0.0
  %1691 = vmatpush1.msra.mxu0 0.0
  %1692 = vmatprep.subr.mxu0 0.0
  %1693 = vmatpush1.msra.mxu0 0.0
  %1694 = vmatprep.subr.mxu0 0.0
  %1695 = vmatpush1.msra.mxu0 0.0
  %1696 = vmatprep.subr.mxu0 0.0
  %1697 = vmatpush1.msra.mxu0 0.0
  %1698 = vmatprep.subr.mxu0 0.0
  %1699 = vmatpush1.msra.mxu0 0.0
  %1700 = vmatprep.subr.mxu0 0.0
  %1701 = vmatpush1.msra.mxu0 0.0
  %1702 = vmatprep.subr.mxu0 0.0
  %1703 = vmatpush1.msra.mxu0 0.0
  %1704 = vmatprep.subr.mxu0 0.0
  %1705 = vmatpush1.msra.mxu0 0.0
  %1706 = vmatprep.subr.mxu0 0.0
  %1707 = vmatpush1.msra.mxu0 0.0
  %1708 = vmatprep.subr.mxu0 0.0
  %1709 = vmatpush1.msra.mxu0 0.0
  %1710 = vmatprep.subr.mxu0 0.0
  %1711 = vmatpush1.msra.mxu0 0.0
  %1712 = vmatprep.subr.mxu0 0.0
  %1713 = vmatpush1.msra.mxu0 0.0
  %1714 = vmatprep.subr.mxu0 0.0
  %1715 = vmatpush1.msra.mxu0 0.0
  %1716 = vmatprep.subr.mxu0 0.0
  %1717 = vmatpush1.msra.mxu0 0.0
  %1718 = vmatprep.subr.mxu0 0.0
  %1719 = vmatpush1.msra.mxu0 0.0
  %1720 = vmatprep.subr.mxu0 0.0
  %1721 = vmatpush1.msra.mxu0 0.0
  %1722 = vmatprep.subr.mxu0 0.0
  %1723 = vmatpush1.msra.mxu0 0.0
  %1724 = vmatprep.subr.mxu0 0.0
  %1725 = vmatpush1.msra.mxu0 0.0
  %1726 = vmatprep.subr.mxu0 0.0
  %1727 = vmatpush1.msra.mxu0 0.0
  %1728 = vmatprep.mubr.f32.mxu0 0.0
  %v1729 = vand.u32 %v1468, 4294901760
  %v1730 = vsub.f32 %v1468, %v1729
  %1731 = vmatmul.mubr.f32.gmra.mrb[0].mxu0 %v1730
  %v1732 = vpop.f32.mrb[0].mxu0
  %v1733 = vadd.f32 %v1649, %v1732
  %v1734 = vpop.f32.mrb[0].mxu0
  %1735 = vdwg.mxu0
  %1736 = vmatprep.subr.mxu0 0.0
  %v1737 = vand.u32 %v30, 4294901760
  %1738 = vmatpush1.msra.mxu0 %v1737
  %1739 = vmatprep.subr.mxu0 0.0
  %v1740 = vand.u32 %v31, 4294901760
  %1741 = vmatpush1.msra.mxu0 %v1740
  %1742 = vmatprep.subr.mxu0 0.0
  %v1743 = vand.u32 %v32, 4294901760
  %1744 = vmatpush1.msra.mxu0 %v1743
  %1745 = vmatprep.subr.mxu0 0.0
  %v1746 = vand.u32 %v33, 4294901760
  %1747 = vmatpush1.msra.mxu0 %v1746
  %1748 = vmatprep.subr.mxu0 0.0
  %v1749 = vand.u32 %v34, 4294901760
  %1750 = vmatpush1.msra.mxu0 %v1749
  %1751 = vmatprep.subr.mxu0 0.0
  %v1752 = vand.u32 %v35, 4294901760
  %1753 = vmatpush1.msra.mxu0 %v1752
  %1754 = vmatprep.subr.mxu0 0.0
  %1755 = vmatpush1.msra.mxu0 0.0
  %1756 = vmatprep.subr.mxu0 0.0
  %1757 = vmatpush1.msra.mxu0 0.0
  %1758 = vmatprep.subr.mxu0 0.0
  %1759 = vmatpush1.msra.mxu0 0.0
  %1760 = vmatprep.subr.mxu0 0.0
  %1761 = vmatpush1.msra.mxu0 0.0
  %1762 = vmatprep.subr.mxu0 0.0
  %1763 = vmatpush1.msra.mxu0 0.0
  %1764 = vmatprep.subr.mxu0 0.0
  %1765 = vmatpush1.msra.mxu0 0.0
  %1766 = vmatprep.subr.mxu0 0.0
  %1767 = vmatpush1.msra.mxu0 0.0
  %1768 = vmatprep.subr.mxu0 0.0
  %1769 = vmatpush1.msra.mxu0 0.0
  %1770 = vmatprep.subr.mxu0 0.0
  %1771 = vmatpush1.msra.mxu0 0.0
  %1772 = vmatprep.subr.mxu0 0.0
  %1773 = vmatpush1.msra.mxu0 0.0
  %1774 = vmatprep.subr.mxu0 0.0
  %1775 = vmatpush1.msra.mxu0 0.0
  %1776 = vmatprep.subr.mxu0 0.0
  %1777 = vmatpush1.msra.mxu0 0.0
  %1778 = vmatprep.subr.mxu0 0.0
  %1779 = vmatpush1.msra.mxu0 0.0
  %1780 = vmatprep.subr.mxu0 0.0
  %1781 = vmatpush1.msra.mxu0 0.0
  %1782 = vmatprep.subr.mxu0 0.0
  %1783 = vmatpush1.msra.mxu0 0.0
  %1784 = vmatprep.subr.mxu0 0.0
  %1785 = vmatpush1.msra.mxu0 0.0
  %1786 = vmatprep.subr.mxu0 0.0
  %1787 = vmatpush1.msra.mxu0 0.0
  %1788 = vmatprep.subr.mxu0 0.0
  %1789 = vmatpush1.msra.mxu0 0.0
  %1790 = vmatprep.subr.mxu0 0.0
  %1791 = vmatpush1.msra.mxu0 0.0
  %1792 = vmatprep.subr.mxu0 0.0
  %1793 = vmatpush1.msra.mxu0 0.0
  %1794 = vmatprep.subr.mxu0 0.0
  %1795 = vmatpush1.msra.mxu0 0.0
  %1796 = vmatprep.subr.mxu0 0.0
  %1797 = vmatpush1.msra.mxu0 0.0
  %1798 = vmatprep.subr.mxu0 0.0
  %1799 = vmatpush1.msra.mxu0 0.0
  %1800 = vmatprep.subr.mxu0 0.0
  %1801 = vmatpush1.msra.mxu0 0.0
  %1802 = vmatprep.subr.mxu0 0.0
  %1803 = vmatpush1.msra.mxu0 0.0
  %1804 = vmatprep.subr.mxu0 0.0
  %1805 = vmatpush1.msra.mxu0 0.0
  %1806 = vmatprep.mubr.f32.mxu0 0.0
  %v1807 = vand.u32 %v1468, 4294901760
  %v1808 = vsub.f32 %v1468, %v1807
  %v1809 = vand.u32 %v1808, 4294901760
  %1810 = vmatmul.mubr.f32.gmra.mrb[0].mxu0 %v1809
  %v1811 = vpop.f32.mrb[0].mxu0
  %v1812 = vadd.f32 %v1733, %v1811
  %v1813 = vpop.f32.mrb[0].mxu0
  %1814 = vdwg.mxu0
  %1815 = vmatprep.subr.mxu0 0.0
  %v1816 = vand.u32 %v30, 4294901760
  %v1817 = vsub.f32 %v30, %v1816
  %v1818 = vand.u32 %v1817, 4294901760
  %1819 = vmatpush1.msra.mxu0 %v1818
  %1820 = vmatprep.subr.mxu0 0.0
  %v1821 = vand.u32 %v31, 4294901760
  %v1822 = vsub.f32 %v31, %v1821
  %v1823 = vand.u32 %v1822, 4294901760
  %1824 = vmatpush1.msra.mxu0 %v1823
  %1825 = vmatprep.subr.mxu0 0.0
  %v1826 = vand.u32 %v32, 4294901760
  %v1827 = vsub.f32 %v32, %v1826
  %v1828 = vand.u32 %v1827, 4294901760
  %1829 = vmatpush1.msra.mxu0 %v1828
  %1830 = vmatprep.subr.mxu0 0.0
  %v1831 = vand.u32 %v33, 4294901760
  %v1832 = vsub.f32 %v33, %v1831
  %v1833 = vand.u32 %v1832, 4294901760
  %1834 = vmatpush1.msra.mxu0 %v1833
  %1835 = vmatprep.subr.mxu0 0.0
  %v1836 = vand.u32 %v34, 4294901760
  %v1837 = vsub.f32 %v34, %v1836
  %v1838 = vand.u32 %v1837, 4294901760
  %1839 = vmatpush1.msra.mxu0 %v1838
  %1840 = vmatprep.subr.mxu0 0.0
  %v1841 = vand.u32 %v35, 4294901760
  %v1842 = vsub.f32 %v35, %v1841
  %v1843 = vand.u32 %v1842, 4294901760
  %1844 = vmatpush1.msra.mxu0 %v1843
  %1845 = vmatprep.subr.mxu0 0.0
  %1846 = vmatpush1.msra.mxu0 0.0
  %1847 = vmatprep.subr.mxu0 0.0
  %1848 = vmatpush1.msra.mxu0 0.0
  %1849 = vmatprep.subr.mxu0 0.0
  %1850 = vmatpush1.msra.mxu0 0.0
  %1851 = vmatprep.subr.mxu0 0.0
  %1852 = vmatpush1.msra.mxu0 0.0
  %1853 = vmatprep.subr.mxu0 0.0
  %1854 = vmatpush1.msra.mxu0 0.0
  %1855 = vmatprep.subr.mxu0 0.0
  %1856 = vmatpush1.msra.mxu0 0.0
  %1857 = vmatprep.subr.mxu0 0.0
  %1858 = vmatpush1.msra.mxu0 0.0
  %1859 = vmatprep.subr.mxu0 0.0
  %1860 = vmatpush1.msra.mxu0 0.0
  %1861 = vmatprep.subr.mxu0 0.0
  %1862 = vmatpush1.msra.mxu0 0.0
  %1863 = vmatprep.subr.mxu0 0.0
  %1864 = vmatpush1.msra.mxu0 0.0
  %1865 = vmatprep.subr.mxu0 0.0
  %1866 = vmatpush1.msra.mxu0 0.0
  %1867 = vmatprep.subr.mxu0 0.0
  %1868 = vmatpush1.msra.mxu0 0.0
  %1869 = vmatprep.subr.mxu0 0.0
  %1870 = vmatpush1.msra.mxu0 0.0
  %1871 = vmatprep.subr.mxu0 0.0
  %1872 = vmatpush1.msra.mxu0 0.0
  %1873 = vmatprep.subr.mxu0 0.0
  %1874 = vmatpush1.msra.mxu0 0.0
  %1875 = vmatprep.subr.mxu0 0.0
  %1876 = vmatpush1.msra.mxu0 0.0
  %1877 = vmatprep.subr.mxu0 0.0
  %1878 = vmatpush1.msra.mxu0 0.0
  %1879 = vmatprep.subr.mxu0 0.0
  %1880 = vmatpush1.msra.mxu0 0.0
  %1881 = vmatprep.subr.mxu0 0.0
  %1882 = vmatpush1.msra.mxu0 0.0
  %1883 = vmatprep.subr.mxu0 0.0
  %1884 = vmatpush1.msra.mxu0 0.0
  %1885 = vmatprep.subr.mxu0 0.0
  %1886 = vmatpush1.msra.mxu0 0.0
  %1887 = vmatprep.subr.mxu0 0.0
  %1888 = vmatpush1.msra.mxu0 0.0
  %1889 = vmatprep.subr.mxu0 0.0
  %1890 = vmatpush1.msra.mxu0 0.0
  %1891 = vmatprep.subr.mxu0 0.0
  %1892 = vmatpush1.msra.mxu0 0.0
  %1893 = vmatprep.subr.mxu0 0.0
  %1894 = vmatpush1.msra.mxu0 0.0
  %1895 = vmatprep.subr.mxu0 0.0
  %1896 = vmatpush1.msra.mxu0 0.0
  %1897 = vmatprep.mubr.f32.mxu0 0.0
  %v1898 = vand.u32 %v1468, 4294901760
  %1899 = vmatmul.mubr.f32.gmra.mrb[0].mxu0 %v1898
  %v1900 = vpop.f32.mrb[0].mxu0
  %v1901 = vadd.f32 %v1812, %v1900
  %v1902 = vpop.f32.mrb[0].mxu0
  %1903 = vdwg.mxu0
  %1904 = vmatprep.subr.mxu0 0.0
  %v1905 = vand.u32 %v30, 4294901760
  %1906 = vmatpush1.msra.mxu0 %v1905
  %1907 = vmatprep.subr.mxu0 0.0
  %v1908 = vand.u32 %v31, 4294901760
  %1909 = vmatpush1.msra.mxu0 %v1908
  %1910 = vmatprep.subr.mxu0 0.0
  %v1911 = vand.u32 %v32, 4294901760
  %1912 = vmatpush1.msra.mxu0 %v1911
  %1913 = vmatprep.subr.mxu0 0.0
  %v1914 = vand.u32 %v33, 4294901760
  %1915 = vmatpush1.msra.mxu0 %v1914
  %1916 = vmatprep.subr.mxu0 0.0
  %v1917 = vand.u32 %v34, 4294901760
  %1918 = vmatpush1.msra.mxu0 %v1917
  %1919 = vmatprep.subr.mxu0 0.0
  %v1920 = vand.u32 %v35, 4294901760
  %1921 = vmatpush1.msra.mxu0 %v1920
  %1922 = vmatprep.subr.mxu0 0.0
  %1923 = vmatpush1.msra.mxu0 0.0
  %1924 = vmatprep.subr.mxu0 0.0
  %1925 = vmatpush1.msra.mxu0 0.0
  %1926 = vmatprep.subr.mxu0 0.0
  %1927 = vmatpush1.msra.mxu0 0.0
  %1928 = vmatprep.subr.mxu0 0.0
  %1929 = vmatpush1.msra.mxu0 0.0
  %1930 = vmatprep.subr.mxu0 0.0
  %1931 = vmatpush1.msra.mxu0 0.0
  %1932 = vmatprep.subr.mxu0 0.0
  %1933 = vmatpush1.msra.mxu0 0.0
  %1934 = vmatprep.subr.mxu0 0.0
  %1935 = vmatpush1.msra.mxu0 0.0
  %1936 = vmatprep.subr.mxu0 0.0
  %1937 = vmatpush1.msra.mxu0 0.0
  %1938 = vmatprep.subr.mxu0 0.0
  %1939 = vmatpush1.msra.mxu0 0.0
  %1940 = vmatprep.subr.mxu0 0.0
  %1941 = vmatpush1.msra.mxu0 0.0
  %1942 = vmatprep.subr.mxu0 0.0
  %1943 = vmatpush1.msra.mxu0 0.0
  %1944 = vmatprep.subr.mxu0 0.0
  %1945 = vmatpush1.msra.mxu0 0.0
  %1946 = vmatprep.subr.mxu0 0.0
  %1947 = vmatpush1.msra.mxu0 0.0
  %1948 = vmatprep.subr.mxu0 0.0
  %1949 = vmatpush1.msra.mxu0 0.0
  %1950 = vmatprep.subr.mxu0 0.0
  %1951 = vmatpush1.msra.mxu0 0.0
  %1952 = vmatprep.subr.mxu0 0.0
  %1953 = vmatpush1.msra.mxu0 0.0
  %1954 = vmatprep.subr.mxu0 0.0
  %1955 = vmatpush1.msra.mxu0 0.0
  %1956 = vmatprep.subr.mxu0 0.0
  %1957 = vmatpush1.msra.mxu0 0.0
  %1958 = vmatprep.subr.mxu0 0.0
  %1959 = vmatpush1.msra.mxu0 0.0
  %1960 = vmatprep.subr.mxu0 0.0
  %1961 = vmatpush1.msra.mxu0 0.0
  %1962 = vmatprep.subr.mxu0 0.0
  %1963 = vmatpush1.msra.mxu0 0.0
  %1964 = vmatprep.subr.mxu0 0.0
  %1965 = vmatpush1.msra.mxu0 0.0
  %1966 = vmatprep.subr.mxu0 0.0
  %1967 = vmatpush1.msra.mxu0 0.0
  %1968 = vmatprep.subr.mxu0 0.0
  %1969 = vmatpush1.msra.mxu0 0.0
  %1970 = vmatprep.subr.mxu0 0.0
  %1971 = vmatpush1.msra.mxu0 0.0
  %1972 = vmatprep.subr.mxu0 0.0
  %1973 = vmatpush1.msra.mxu0 0.0
  %1974 = vmatprep.mubr.f32.mxu0 0.0
  %v1975 = vand.u32 %v1468, 4294901760
  %1976 = vmatmul.mubr.f32.gmra.mrb[0].mxu0 %v1975
  %v1977 = vpop.f32.mrb[0].mxu0
  %v1978 = vadd.f32 %v1901, %v1977
  %v1979 = vpop.f32.mrb[0].mxu0
  %1980 = vdwg.mxu0
  %v1982 = vsel %vm36, %v1978, 0
  %1984 = vmatprep.subr.mxu0 0.0
  %v1985 = vand.u32 %v28, 4294901760
  %1986 = vmatpush1.msra.mxu0 %v1985
  %1987 = vmatprep.subr.mxu0 0.0
  %1988 = vmatpush1.msra.mxu0 0.0
  %1989 = vmatprep.subr.mxu0 0.0
  %1990 = vmatpush1.msra.mxu0 0.0
  %1991 = vmatprep.subr.mxu0 0.0
  %1992 = vmatpush1.msra.mxu0 0.0
  %1993 = vmatprep.subr.mxu0 0.0
  %1994 = vmatpush1.msra.mxu0 0.0
  %1995 = vmatprep.subr.mxu0 0.0
  %1996 = vmatpush1.msra.mxu0 0.0
  %1997 = vmatprep.subr.mxu0 0.0
  %1998 = vmatpush1.msra.mxu0 0.0
  %1999 = vmatprep.subr.mxu0 0.0
  %2000 = vmatpush1.msra.mxu0 0.0
  %2001 = vmatprep.subr.mxu0 0.0
  %2002 = vmatpush1.msra.mxu0 0.0
  %2003 = vmatprep.subr.mxu0 0.0
  %2004 = vmatpush1.msra.mxu0 0.0
  %2005 = vmatprep.subr.mxu0 0.0
  %2006 = vmatpush1.msra.mxu0 0.0
  %2007 = vmatprep.subr.mxu0 0.0
  %2008 = vmatpush1.msra.mxu0 0.0
  %2009 = vmatprep.subr.mxu0 0.0
  %2010 = vmatpush1.msra.mxu0 0.0
  %2011 = vmatprep.subr.mxu0 0.0
  %2012 = vmatpush1.msra.mxu0 0.0
  %2013 = vmatprep.subr.mxu0 0.0
  %2014 = vmatpush1.msra.mxu0 0.0
  %2015 = vmatprep.subr.mxu0 0.0
  %2016 = vmatpush1.msra.mxu0 0.0
  %2017 = vmatprep.subr.mxu0 0.0
  %2018 = vmatpush1.msra.mxu0 0.0
  %2019 = vmatprep.subr.mxu0 0.0
  %2020 = vmatpush1.msra.mxu0 0.0
  %2021 = vmatprep.subr.mxu0 0.0
  %2022 = vmatpush1.msra.mxu0 0.0
  %2023 = vmatprep.subr.mxu0 0.0
  %2024 = vmatpush1.msra.mxu0 0.0
  %2025 = vmatprep.subr.mxu0 0.0
  %2026 = vmatpush1.msra.mxu0 0.0
  %2027 = vmatprep.subr.mxu0 0.0
  %2028 = vmatpush1.msra.mxu0 0.0
  %2029 = vmatprep.subr.mxu0 0.0
  %2030 = vmatpush1.msra.mxu0 0.0
  %2031 = vmatprep.subr.mxu0 0.0
  %2032 = vmatpush1.msra.mxu0 0.0
  %2033 = vmatprep.subr.mxu0 0.0
  %2034 = vmatpush1.msra.mxu0 0.0
  %2035 = vmatprep.subr.mxu0 0.0
  %2036 = vmatpush1.msra.mxu0 0.0
  %2037 = vmatprep.subr.mxu0 0.0
  %2038 = vmatpush1.msra.mxu0 0.0
  %2039 = vmatprep.subr.mxu0 0.0
  %2040 = vmatpush1.msra.mxu0 0.0
  %2041 = vmatprep.subr.mxu0 0.0
  %2042 = vmatpush1.msra.mxu0 0.0
  %2043 = vmatprep.subr.mxu0 0.0
  %2044 = vmatpush1.msra.mxu0 0.0
  %2045 = vmatprep.subr.mxu0 0.0
  %2046 = vmatpush1.msra.mxu0 0.0
  %2047 = vmatprep.subr.mxu0 0.0
  %2048 = vmatpush1.msra.mxu0 0.0
  %2049 = vmatprep.mubr.f32.mxu0 0.0
  %v2050 = vand.u32 %v1982, 4294901760
  %v2051 = vsub.f32 %v1982, %v2050
  %v2052 = vand.u32 %v2051, 4294901760
  %v2053 = vsub.f32 %v2051, %v2052
  %v2054 = vand.u32 %v2053, 4294901760
  %2055 = vmatmul.mubr.f32.gmra.mrb[0].mxu0 %v2054
  %v2056 = vpop.f32.mrb[0].mxu0
  %v2057 = vadd.f32 0.0, %v2056
  %v2058 = vpop.f32.mrb[0].mxu0
  %2059 = vdwg.mxu0
  %2060 = vmatprep.subr.mxu0 0.0
  %v2061 = vand.u32 %v28, 4294901760
  %v2062 = vsub.f32 %v28, %v2061
  %v2063 = vand.u32 %v2062, 4294901760
  %v2064 = vsub.f32 %v2062, %v2063
  %v2065 = vand.u32 %v2064, 4294901760
  %2066 = vmatpush1.msra.mxu0 %v2065
  %2067 = vmatprep.subr.mxu0 0.0
  %2068 = vmatpush1.msra.mxu0 0.0
  %2069 = vmatprep.subr.mxu0 0.0
  %2070 = vmatpush1.msra.mxu0 0.0
  %2071 = vmatprep.subr.mxu0 0.0
  %2072 = vmatpush1.msra.mxu0 0.0
  %2073 = vmatprep.subr.mxu0 0.0
  %2074 = vmatpush1.msra.mxu0 0.0
  %2075 = vmatprep.subr.mxu0 0.0
  %2076 = vmatpush1.msra.mxu0 0.0
  %2077 = vmatprep.subr.mxu0 0.0
  %2078 = vmatpush1.msra.mxu0 0.0
  %2079 = vmatprep.subr.mxu0 0.0
  %2080 = vmatpush1.msra.mxu0 0.0
  %2081 = vmatprep.subr.mxu0 0.0
  %2082 = vmatpush1.msra.mxu0 0.0
  %2083 = vmatprep.subr.mxu0 0.0
  %2084 = vmatpush1.msra.mxu0 0.0
  %2085 = vmatprep.subr.mxu0 0.0
  %2086 = vmatpush1.msra.mxu0 0.0
  %2087 = vmatprep.subr.mxu0 0.0
  %2088 = vmatpush1.msra.mxu0 0.0
  %2089 = vmatprep.subr.mxu0 0.0
  %2090 = vmatpush1.msra.mxu0 0.0
  %2091 = vmatprep.subr.mxu0 0.0
  %2092 = vmatpush1.msra.mxu0 0.0
  %2093 = vmatprep.subr.mxu0 0.0
  %2094 = vmatpush1.msra.mxu0 0.0
  %2095 = vmatprep.subr.mxu0 0.0
  %2096 = vmatpush1.msra.mxu0 0.0
  %2097 = vmatprep.subr.mxu0 0.0
  %2098 = vmatpush1.msra.mxu0 0.0
  %2099 = vmatprep.subr.mxu0 0.0
  %2100 = vmatpush1.msra.mxu0 0.0
  %2101 = vmatprep.subr.mxu0 0.0
  %2102 = vmatpush1.msra.mxu0 0.0
  %2103 = vmatprep.subr.mxu0 0.0
  %2104 = vmatpush1.msra.mxu0 0.0
  %2105 = vmatprep.subr.mxu0 0.0
  %2106 = vmatpush1.msra.mxu0 0.0
  %2107 = vmatprep.subr.mxu0 0.0
  %2108 = vmatpush1.msra.mxu0 0.0
  %2109 = vmatprep.subr.mxu0 0.0
  %2110 = vmatpush1.msra.mxu0 0.0
  %2111 = vmatprep.subr.mxu0 0.0
  %2112 = vmatpush1.msra.mxu0 0.0
  %2113 = vmatprep.subr.mxu0 0.0
  %2114 = vmatpush1.msra.mxu0 0.0
  %2115 = vmatprep.subr.mxu0 0.0
  %2116 = vmatpush1.msra.mxu0 0.0
  %2117 = vmatprep.subr.mxu0 0.0
  %2118 = vmatpush1.msra.mxu0 0.0
  %2119 = vmatprep.subr.mxu0 0.0
  %2120 = vmatpush1.msra.mxu0 0.0
  %2121 = vmatprep.subr.mxu0 0.0
  %2122 = vmatpush1.msra.mxu0 0.0
  %2123 = vmatprep.subr.mxu0 0.0
  %2124 = vmatpush1.msra.mxu0 0.0
  %2125 = vmatprep.subr.mxu0 0.0
  %2126 = vmatpush1.msra.mxu0 0.0
  %2127 = vmatprep.subr.mxu0 0.0
  %2128 = vmatpush1.msra.mxu0 0.0
  %2129 = vmatprep.mubr.f32.mxu0 0.0
  %v2130 = vand.u32 %v1982, 4294901760
  %2131 = vmatmul.mubr.f32.gmra.mrb[0].mxu0 %v2130
  %v2132 = vpop.f32.mrb[0].mxu0
  %v2133 = vadd.f32 %v2057, %v2132
  %v2134 = vpop.f32.mrb[0].mxu0
  %2135 = vdwg.mxu0
  %2136 = vmatprep.subr.mxu0 0.0
  %v2137 = vand.u32 %v28, 4294901760
  %v2138 = vsub.f32 %v28, %v2137
  %2139 = vmatpush1.msra.mxu0 %v2138
  %2140 = vmatprep.subr.mxu0 0.0
  %2141 = vmatpush1.msra.mxu0 0.0
  %2142 = vmatprep.subr.mxu0 0.0
  %2143 = vmatpush1.msra.mxu0 0.0
  %2144 = vmatprep.subr.mxu0 0.0
  %2145 = vmatpush1.msra.mxu0 0.0
  %2146 = vmatprep.subr.mxu0 0.0
  %2147 = vmatpush1.msra.mxu0 0.0
  %2148 = vmatprep.subr.mxu0 0.0
  %2149 = vmatpush1.msra.mxu0 0.0
  %2150 = vmatprep.subr.mxu0 0.0
  %2151 = vmatpush1.msra.mxu0 0.0
  %2152 = vmatprep.subr.mxu0 0.0
  %2153 = vmatpush1.msra.mxu0 0.0
  %2154 = vmatprep.subr.mxu0 0.0
  %2155 = vmatpush1.msra.mxu0 0.0
  %2156 = vmatprep.subr.mxu0 0.0
  %2157 = vmatpush1.msra.mxu0 0.0
  %2158 = vmatprep.subr.mxu0 0.0
  %2159 = vmatpush1.msra.mxu0 0.0
  %2160 = vmatprep.subr.mxu0 0.0
  %2161 = vmatpush1.msra.mxu0 0.0
  %2162 = vmatprep.subr.mxu0 0.0
  %2163 = vmatpush1.msra.mxu0 0.0
  %2164 = vmatprep.subr.mxu0 0.0
  %2165 = vmatpush1.msra.mxu0 0.0
  %2166 = vmatprep.subr.mxu0 0.0
  %2167 = vmatpush1.msra.mxu0 0.0
  %2168 = vmatprep.subr.mxu0 0.0
  %2169 = vmatpush1.msra.mxu0 0.0
  %2170 = vmatprep.subr.mxu0 0.0
  %2171 = vmatpush1.msra.mxu0 0.0
  %2172 = vmatprep.subr.mxu0 0.0
  %2173 = vmatpush1.msra.mxu0 0.0
  %2174 = vmatprep.subr.mxu0 0.0
  %2175 = vmatpush1.msra.mxu0 0.0
  %2176 = vmatprep.subr.mxu0 0.0
  %2177 = vmatpush1.msra.mxu0 0.0
  %2178 = vmatprep.subr.mxu0 0.0
  %2179 = vmatpush1.msra.mxu0 0.0
  %2180 = vmatprep.subr.mxu0 0.0
  %2181 = vmatpush1.msra.mxu0 0.0
  %2182 = vmatprep.subr.mxu0 0.0
  %2183 = vmatpush1.msra.mxu0 0.0
  %2184 = vmatprep.subr.mxu0 0.0
  %2185 = vmatpush1.msra.mxu0 0.0
  %2186 = vmatprep.subr.mxu0 0.0
  %2187 = vmatpush1.msra.mxu0 0.0
  %2188 = vmatprep.subr.mxu0 0.0
  %2189 = vmatpush1.msra.mxu0 0.0
  %2190 = vmatprep.subr.mxu0 0.0
  %2191 = vmatpush1.msra.mxu0 0.0
  %2192 = vmatprep.subr.mxu0 0.0
  %2193 = vmatpush1.msra.mxu0 0.0
  %2194 = vmatprep.subr.mxu0 0.0
  %2195 = vmatpush1.msra.mxu0 0.0
  %2196 = vmatprep.subr.mxu0 0.0
  %2197 = vmatpush1.msra.mxu0 0.0
  %2198 = vmatprep.subr.mxu0 0.0
  %2199 = vmatpush1.msra.mxu0 0.0
  %2200 = vmatprep.subr.mxu0 0.0
  %2201 = vmatpush1.msra.mxu0 0.0
  %2202 = vmatprep.mubr.f32.mxu0 0.0
  %v2203 = vand.u32 %v1982, 4294901760
  %v2204 = vsub.f32 %v1982, %v2203
  %2205 = vmatmul.mubr.f32.gmra.mrb[0].mxu0 %v2204
  %v2206 = vpop.f32.mrb[0].mxu0
  %v2207 = vadd.f32 %v2133, %v2206
  %v2208 = vpop.f32.mrb[0].mxu0
  %2209 = vdwg.mxu0
  %2210 = vmatprep.subr.mxu0 0.0
  %v2211 = vand.u32 %v28, 4294901760
  %2212 = vmatpush1.msra.mxu0 %v2211
  %2213 = vmatprep.subr.mxu0 0.0
  %2214 = vmatpush1.msra.mxu0 0.0
  %2215 = vmatprep.subr.mxu0 0.0
  %2216 = vmatpush1.msra.mxu0 0.0
  %2217 = vmatprep.subr.mxu0 0.0
  %2218 = vmatpush1.msra.mxu0 0.0
  %2219 = vmatprep.subr.mxu0 0.0
  %2220 = vmatpush1.msra.mxu0 0.0
  %2221 = vmatprep.subr.mxu0 0.0
  %2222 = vmatpush1.msra.mxu0 0.0
  %2223 = vmatprep.subr.mxu0 0.0
  %2224 = vmatpush1.msra.mxu0 0.0
  %2225 = vmatprep.subr.mxu0 0.0
  %2226 = vmatpush1.msra.mxu0 0.0
  %2227 = vmatprep.subr.mxu0 0.0
  %2228 = vmatpush1.msra.mxu0 0.0
  %2229 = vmatprep.subr.mxu0 0.0
  %2230 = vmatpush1.msra.mxu0 0.0
  %2231 = vmatprep.subr.mxu0 0.0
  %2232 = vmatpush1.msra.mxu0 0.0
  %2233 = vmatprep.subr.mxu0 0.0
  %2234 = vmatpush1.msra.mxu0 0.0
  %2235 = vmatprep.subr.mxu0 0.0
  %2236 = vmatpush1.msra.mxu0 0.0
  %2237 = vmatprep.subr.mxu0 0.0
  %2238 = vmatpush1.msra.mxu0 0.0
  %2239 = vmatprep.subr.mxu0 0.0
  %2240 = vmatpush1.msra.mxu0 0.0
  %2241 = vmatprep.subr.mxu0 0.0
  %2242 = vmatpush1.msra.mxu0 0.0
  %2243 = vmatprep.subr.mxu0 0.0
  %2244 = vmatpush1.msra.mxu0 0.0
  %2245 = vmatprep.subr.mxu0 0.0
  %2246 = vmatpush1.msra.mxu0 0.0
  %2247 = vmatprep.subr.mxu0 0.0
  %2248 = vmatpush1.msra.mxu0 0.0
  %2249 = vmatprep.subr.mxu0 0.0
  %2250 = vmatpush1.msra.mxu0 0.0
  %2251 = vmatprep.subr.mxu0 0.0
  %2252 = vmatpush1.msra.mxu0 0.0
  %2253 = vmatprep.subr.mxu0 0.0
  %2254 = vmatpush1.msra.mxu0 0.0
  %2255 = vmatprep.subr.mxu0 0.0
  %2256 = vmatpush1.msra.mxu0 0.0
  %2257 = vmatprep.subr.mxu0 0.0
  %2258 = vmatpush1.msra.mxu0 0.0
  %2259 = vmatprep.subr.mxu0 0.0
  %2260 = vmatpush1.msra.mxu0 0.0
  %2261 = vmatprep.subr.mxu0 0.0
  %2262 = vmatpush1.msra.mxu0 0.0
  %2263 = vmatprep.subr.mxu0 0.0
  %2264 = vmatpush1.msra.mxu0 0.0
  %2265 = vmatprep.subr.mxu0 0.0
  %2266 = vmatpush1.msra.mxu0 0.0
  %2267 = vmatprep.subr.mxu0 0.0
  %2268 = vmatpush1.msra.mxu0 0.0
  %2269 = vmatprep.subr.mxu0 0.0
  %2270 = vmatpush1.msra.mxu0 0.0
  %2271 = vmatprep.subr.mxu0 0.0
  %2272 = vmatpush1.msra.mxu0 0.0
  %2273 = vmatprep.subr.mxu0 0.0
  %2274 = vmatpush1.msra.mxu0 0.0
  %2275 = vmatprep.mubr.f32.mxu0 0.0
  %v2276 = vand.u32 %v1982, 4294901760
  %v2277 = vsub.f32 %v1982, %v2276
  %v2278 = vand.u32 %v2277, 4294901760
  %2279 = vmatmul.mubr.f32.gmra.mrb[0].mxu0 %v2278
  %v2280 = vpop.f32.mrb[0].mxu0
  %v2281 = vadd.f32 %v2207, %v2280
  %v2282 = vpop.f32.mrb[0].mxu0
  %2283 = vdwg.mxu0
  %2284 = vmatprep.subr.mxu0 0.0
  %v2285 = vand.u32 %v28, 4294901760
  %v2286 = vsub.f32 %v28, %v2285
  %v2287 = vand.u32 %v2286, 4294901760
  %2288 = vmatpush1.msra.mxu0 %v2287
  %2289 = vmatprep.subr.mxu0 0.0
  %2290 = vmatpush1.msra.mxu0 0.0
  %2291 = vmatprep.subr.mxu0 0.0
  %2292 = vmatpush1.msra.mxu0 0.0
  %2293 = vmatprep.subr.mxu0 0.0
  %2294 = vmatpush1.msra.mxu0 0.0
  %2295 = vmatprep.subr.mxu0 0.0
  %2296 = vmatpush1.msra.mxu0 0.0
  %2297 = vmatprep.subr.mxu0 0.0
  %2298 = vmatpush1.msra.mxu0 0.0
  %2299 = vmatprep.subr.mxu0 0.0
  %2300 = vmatpush1.msra.mxu0 0.0
  %2301 = vmatprep.subr.mxu0 0.0
  %2302 = vmatpush1.msra.mxu0 0.0
  %2303 = vmatprep.subr.mxu0 0.0
  %2304 = vmatpush1.msra.mxu0 0.0
  %2305 = vmatprep.subr.mxu0 0.0
  %2306 = vmatpush1.msra.mxu0 0.0
  %2307 = vmatprep.subr.mxu0 0.0
  %2308 = vmatpush1.msra.mxu0 0.0
  %2309 = vmatprep.subr.mxu0 0.0
  %2310 = vmatpush1.msra.mxu0 0.0
  %2311 = vmatprep.subr.mxu0 0.0
  %2312 = vmatpush1.msra.mxu0 0.0
  %2313 = vmatprep.subr.mxu0 0.0
  %2314 = vmatpush1.msra.mxu0 0.0
  %2315 = vmatprep.subr.mxu0 0.0
  %2316 = vmatpush1.msra.mxu0 0.0
  %2317 = vmatprep.subr.mxu0 0.0
  %2318 = vmatpush1.msra.mxu0 0.0
  %2319 = vmatprep.subr.mxu0 0.0
  %2320 = vmatpush1.msra.mxu0 0.0
  %2321 = vmatprep.subr.mxu0 0.0
  %2322 = vmatpush1.msra.mxu0 0.0
  %2323 = vmatprep.subr.mxu0 0.0
  %2324 = vmatpush1.msra.mxu0 0.0
  %2325 = vmatprep.subr.mxu0 0.0
  %2326 = vmatpush1.msra.mxu0 0.0
  %2327 = vmatprep.subr.mxu0 0.0
  %2328 = vmatpush1.msra.mxu0 0.0
  %2329 = vmatprep.subr.mxu0 0.0
  %2330 = vmatpush1.msra.mxu0 0.0
  %2331 = vmatprep.subr.mxu0 0.0
  %2332 = vmatpush1.msra.mxu0 0.0
  %2333 = vmatprep.subr.mxu0 0.0
  %2334 = vmatpush1.msra.mxu0 0.0
  %2335 = vmatprep.subr.mxu0 0.0
  %2336 = vmatpush1.msra.mxu0 0.0
  %2337 = vmatprep.subr.mxu0 0.0
  %2338 = vmatpush1.msra.mxu0 0.0
  %2339 = vmatprep.subr.mxu0 0.0
  %2340 = vmatpush1.msra.mxu0 0.0
  %2341 = vmatprep.subr.mxu0 0.0
  %2342 = vmatpush1.msra.mxu0 0.0
  %2343 = vmatprep.subr.mxu0 0.0
  %2344 = vmatpush1.msra.mxu0 0.0
  %2345 = vmatprep.subr.mxu0 0.0
  %2346 = vmatpush1.msra.mxu0 0.0
  %2347 = vmatprep.subr.mxu0 0.0
  %2348 = vmatpush1.msra.mxu0 0.0
  %2349 = vmatprep.subr.mxu0 0.0
  %2350 = vmatpush1.msra.mxu0 0.0
  %2351 = vmatprep.mubr.f32.mxu0 0.0
  %v2352 = vand.u32 %v1982, 4294901760
  %2353 = vmatmul.mubr.f32.gmra.mrb[0].mxu0 %v2352
  %v2354 = vpop.f32.mrb[0].mxu0
  %v2355 = vadd.f32 %v2281, %v2354
  %v2356 = vpop.f32.mrb[0].mxu0
  %2357 = vdwg.mxu0
  %2358 = vmatprep.subr.mxu0 0.0
  %v2359 = vand.u32 %v28, 4294901760
  %2360 = vmatpush1.msra.mxu0 %v2359
  %2361 = vmatprep.subr.mxu0 0.0
  %2362 = vmatpush1.msra.mxu0 0.0
  %2363 = vmatprep.subr.mxu0 0.0
  %2364 = vmatpush1.msra.mxu0 0.0
  %2365 = vmatprep.subr.mxu0 0.0
  %2366 = vmatpush1.msra.mxu0 0.0
  %2367 = vmatprep.subr.mxu0 0.0
  %2368 = vmatpush1.msra.mxu0 0.0
  %2369 = vmatprep.subr.mxu0 0.0
  %2370 = vmatpush1.msra.mxu0 0.0
  %2371 = vmatprep.subr.mxu0 0.0
  %2372 = vmatpush1.msra.mxu0 0.0
  %2373 = vmatprep.subr.mxu0 0.0
  %2374 = vmatpush1.msra.mxu0 0.0
  %2375 = vmatprep.subr.mxu0 0.0
  %2376 = vmatpush1.msra.mxu0 0.0
  %2377 = vmatprep.subr.mxu0 0.0
  %2378 = vmatpush1.msra.mxu0 0.0
  %2379 = vmatprep.subr.mxu0 0.0
  %2380 = vmatpush1.msra.mxu0 0.0
  %2381 = vmatprep.subr.mxu0 0.0
  %2382 = vmatpush1.msra.mxu0 0.0
  %2383 = vmatprep.subr.mxu0 0.0
  %2384 = vmatpush1.msra.mxu0 0.0
  %2385 = vmatprep.subr.mxu0 0.0
  %2386 = vmatpush1.msra.mxu0 0.0
  %2387 = vmatprep.subr.mxu0 0.0
  %2388 = vmatpush1.msra.mxu0 0.0
  %2389 = vmatprep.subr.mxu0 0.0
  %2390 = vmatpush1.msra.mxu0 0.0
  %2391 = vmatprep.subr.mxu0 0.0
  %2392 = vmatpush1.msra.mxu0 0.0
  %2393 = vmatprep.subr.mxu0 0.0
  %2394 = vmatpush1.msra.mxu0 0.0
  %2395 = vmatprep.subr.mxu0 0.0
  %2396 = vmatpush1.msra.mxu0 0.0
  %2397 = vmatprep.subr.mxu0 0.0
  %2398 = vmatpush1.msra.mxu0 0.0
  %2399 = vmatprep.subr.mxu0 0.0
  %2400 = vmatpush1.msra.mxu0 0.0
  %2401 = vmatprep.subr.mxu0 0.0
  %2402 = vmatpush1.msra.mxu0 0.0
  %2403 = vmatprep.subr.mxu0 0.0
  %2404 = vmatpush1.msra.mxu0 0.0
  %2405 = vmatprep.subr.mxu0 0.0
  %2406 = vmatpush1.msra.mxu0 0.0
  %2407 = vmatprep.subr.mxu0 0.0
  %2408 = vmatpush1.msra.mxu0 0.0
  %2409 = vmatprep.subr.mxu0 0.0
  %2410 = vmatpush1.msra.mxu0 0.0
  %2411 = vmatprep.subr.mxu0 0.0
  %2412 = vmatpush1.msra.mxu0 0.0
  %2413 = vmatprep.subr.mxu0 0.0
  %2414 = vmatpush1.msra.mxu0 0.0
  %2415 = vmatprep.subr.mxu0 0.0
  %2416 = vmatpush1.msra.mxu0 0.0
  %2417 = vmatprep.subr.mxu0 0.0
  %2418 = vmatpush1.msra.mxu0 0.0
  %2419 = vmatprep.subr.mxu0 0.0
  %2420 = vmatpush1.msra.mxu0 0.0
  %2421 = vmatprep.subr.mxu0 0.0
  %2422 = vmatpush1.msra.mxu0 0.0
  %2423 = vmatprep.mubr.f32.mxu0 0.0
  %v2424 = vand.u32 %v1982, 4294901760
  %2425 = vmatmul.mubr.f32.gmra.mrb[0].mxu0 %v2424
  %v2426 = vpop.f32.mrb[0].mxu0
  %v2427 = vadd.f32 %v2355, %v2426
  %v2428 = vpop.f32.mrb[0].mxu0
  %2429 = vdwg.mxu0
  %s2430 = scalar_lea.vmem %s1, 8
  %v2431 = vld [vmem:[%s2430] sm:$0xf]
  %2432 = vset.pattern.permute.xlu0 0
  %2433 = vperm.xlu0 %2432, %v2431
  %v2434 = vpop.permute.xlu0 %2433
  %vm2435 = vcmp.eq.s32.totalorder %v490, %v2434
  %v2436 = vsel %vm2435, %v2427, 0.0
  %v2438 = vsel %vm496, %v2436, 0
  %2440 = vmatprep.subr.mxu0 0.0
  %v2441 = vand.u32 %v30, 4294901760
  %2442 = vmatpush1.msra.mxu0 %v2441
  %2443 = vmatprep.subr.mxu0 0.0
  %v2444 = vand.u32 %v31, 4294901760
  %2445 = vmatpush1.msra.mxu0 %v2444
  %2446 = vmatprep.subr.mxu0 0.0
  %v2447 = vand.u32 %v32, 4294901760
  %2448 = vmatpush1.msra.mxu0 %v2447
  %2449 = vmatprep.subr.mxu0 0.0
  %v2450 = vand.u32 %v33, 4294901760
  %2451 = vmatpush1.msra.mxu0 %v2450
  %2452 = vmatprep.subr.mxu0 0.0
  %v2453 = vand.u32 %v34, 4294901760
  %2454 = vmatpush1.msra.mxu0 %v2453
  %2455 = vmatprep.subr.mxu0 0.0
  %v2456 = vand.u32 %v35, 4294901760
  %2457 = vmatpush1.msra.mxu0 %v2456
  %2458 = vmatprep.subr.mxu0 0.0
  %2459 = vmatpush1.msra.mxu0 0.0
  %2460 = vmatprep.subr.mxu0 0.0
  %2461 = vmatpush1.msra.mxu0 0.0
  %2462 = vmatprep.subr.mxu0 0.0
  %2463 = vmatpush1.msra.mxu0 0.0
  %2464 = vmatprep.subr.mxu0 0.0
  %2465 = vmatpush1.msra.mxu0 0.0
  %2466 = vmatprep.subr.mxu0 0.0
  %2467 = vmatpush1.msra.mxu0 0.0
  %2468 = vmatprep.subr.mxu0 0.0
  %2469 = vmatpush1.msra.mxu0 0.0
  %2470 = vmatprep.subr.mxu0 0.0
  %2471 = vmatpush1.msra.mxu0 0.0
  %2472 = vmatprep.subr.mxu0 0.0
  %2473 = vmatpush1.msra.mxu0 0.0
  %2474 = vmatprep.subr.mxu0 0.0
  %2475 = vmatpush1.msra.mxu0 0.0
  %2476 = vmatprep.subr.mxu0 0.0
  %2477 = vmatpush1.msra.mxu0 0.0
  %2478 = vmatprep.subr.mxu0 0.0
  %2479 = vmatpush1.msra.mxu0 0.0
  %2480 = vmatprep.subr.mxu0 0.0
  %2481 = vmatpush1.msra.mxu0 0.0
  %2482 = vmatprep.subr.mxu0 0.0
  %2483 = vmatpush1.msra.mxu0 0.0
  %2484 = vmatprep.subr.mxu0 0.0
  %2485 = vmatpush1.msra.mxu0 0.0
  %2486 = vmatprep.subr.mxu0 0.0
  %2487 = vmatpush1.msra.mxu0 0.0
  %2488 = vmatprep.subr.mxu0 0.0
  %2489 = vmatpush1.msra.mxu0 0.0
  %2490 = vmatprep.subr.mxu0 0.0
  %2491 = vmatpush1.msra.mxu0 0.0
  %2492 = vmatprep.subr.mxu0 0.0
  %2493 = vmatpush1.msra.mxu0 0.0
  %2494 = vmatprep.subr.mxu0 0.0
  %2495 = vmatpush1.msra.mxu0 0.0
  %2496 = vmatprep.subr.mxu0 0.0
  %2497 = vmatpush1.msra.mxu0 0.0
  %2498 = vmatprep.subr.mxu0 0.0
  %2499 = vmatpush1.msra.mxu0 0.0
  %2500 = vmatprep.subr.mxu0 0.0
  %2501 = vmatpush1.msra.mxu0 0.0
  %2502 = vmatprep.subr.mxu0 0.0
  %2503 = vmatpush1.msra.mxu0 0.0
  %2504 = vmatprep.subr.mxu0 0.0
  %2505 = vmatpush1.msra.mxu0 0.0
  %2506 = vmatprep.subr.mxu0 0.0
  %2507 = vmatpush1.msra.mxu0 0.0
  %2508 = vmatprep.subr.mxu0 0.0
  %2509 = vmatpush1.msra.mxu0 0.0
  %2510 = vmatprep.mubr.f32.mxu0 0.0
  %v2511 = vand.u32 %v2438, 4294901760
  %v2512 = vsub.f32 %v2438, %v2511
  %v2513 = vand.u32 %v2512, 4294901760
  %v2514 = vsub.f32 %v2512, %v2513
  %v2515 = vand.u32 %v2514, 4294901760
  %2516 = vmatmul.mubr.f32.gmra.mrb[0].mxu0 %v2515
  %v2517 = vpop.f32.mrb[0].mxu0
  %v2518 = vadd.f32 0.0, %v2517
  %v2519 = vpop.f32.mrb[0].mxu0
  %2520 = vdwg.mxu0
  %2521 = vmatprep.subr.mxu0 0.0
  %v2522 = vand.u32 %v30, 4294901760
  %v2523 = vsub.f32 %v30, %v2522
  %v2524 = vand.u32 %v2523, 4294901760
  %v2525 = vsub.f32 %v2523, %v2524
  %v2526 = vand.u32 %v2525, 4294901760
  %2527 = vmatpush1.msra.mxu0 %v2526
  %2528 = vmatprep.subr.mxu0 0.0
  %v2529 = vand.u32 %v31, 4294901760
  %v2530 = vsub.f32 %v31, %v2529
  %v2531 = vand.u32 %v2530, 4294901760
  %v2532 = vsub.f32 %v2530, %v2531
  %v2533 = vand.u32 %v2532, 4294901760
  %2534 = vmatpush1.msra.mxu0 %v2533
  %2535 = vmatprep.subr.mxu0 0.0
  %v2536 = vand.u32 %v32, 4294901760
  %v2537 = vsub.f32 %v32, %v2536
  %v2538 = vand.u32 %v2537, 4294901760
  %v2539 = vsub.f32 %v2537, %v2538
  %v2540 = vand.u32 %v2539, 4294901760
  %2541 = vmatpush1.msra.mxu0 %v2540
  %2542 = vmatprep.subr.mxu0 0.0
  %v2543 = vand.u32 %v33, 4294901760
  %v2544 = vsub.f32 %v33, %v2543
  %v2545 = vand.u32 %v2544, 4294901760
  %v2546 = vsub.f32 %v2544, %v2545
  %v2547 = vand.u32 %v2546, 4294901760
  %2548 = vmatpush1.msra.mxu0 %v2547
  %2549 = vmatprep.subr.mxu0 0.0
  %v2550 = vand.u32 %v34, 4294901760
  %v2551 = vsub.f32 %v34, %v2550
  %v2552 = vand.u32 %v2551, 4294901760
  %v2553 = vsub.f32 %v2551, %v2552
  %v2554 = vand.u32 %v2553, 4294901760
  %2555 = vmatpush1.msra.mxu0 %v2554
  %2556 = vmatprep.subr.mxu0 0.0
  %v2557 = vand.u32 %v35, 4294901760
  %v2558 = vsub.f32 %v35, %v2557
  %v2559 = vand.u32 %v2558, 4294901760
  %v2560 = vsub.f32 %v2558, %v2559
  %v2561 = vand.u32 %v2560, 4294901760
  %2562 = vmatpush1.msra.mxu0 %v2561
  %2563 = vmatprep.subr.mxu0 0.0
  %2564 = vmatpush1.msra.mxu0 0.0
  %2565 = vmatprep.subr.mxu0 0.0
  %2566 = vmatpush1.msra.mxu0 0.0
  %2567 = vmatprep.subr.mxu0 0.0
  %2568 = vmatpush1.msra.mxu0 0.0
  %2569 = vmatprep.subr.mxu0 0.0
  %2570 = vmatpush1.msra.mxu0 0.0
  %2571 = vmatprep.subr.mxu0 0.0
  %2572 = vmatpush1.msra.mxu0 0.0
  %2573 = vmatprep.subr.mxu0 0.0
  %2574 = vmatpush1.msra.mxu0 0.0
  %2575 = vmatprep.subr.mxu0 0.0
  %2576 = vmatpush1.msra.mxu0 0.0
  %2577 = vmatprep.subr.mxu0 0.0
  %2578 = vmatpush1.msra.mxu0 0.0
  %2579 = vmatprep.subr.mxu0 0.0
  %2580 = vmatpush1.msra.mxu0 0.0
  %2581 = vmatprep.subr.mxu0 0.0
  %2582 = vmatpush1.msra.mxu0 0.0
  %2583 = vmatprep.subr.mxu0 0.0
  %2584 = vmatpush1.msra.mxu0 0.0
  %2585 = vmatprep.subr.mxu0 0.0
  %2586 = vmatpush1.msra.mxu0 0.0
  %2587 = vmatprep.subr.mxu0 0.0
  %2588 = vmatpush1.msra.mxu0 0.0
  %2589 = vmatprep.subr.mxu0 0.0
  %2590 = vmatpush1.msra.mxu0 0.0
  %2591 = vmatprep.subr.mxu0 0.0
  %2592 = vmatpush1.msra.mxu0 0.0
  %2593 = vmatprep.subr.mxu0 0.0
  %2594 = vmatpush1.msra.mxu0 0.0
  %2595 = vmatprep.subr.mxu0 0.0
  %2596 = vmatpush1.msra.mxu0 0.0
  %2597 = vmatprep.subr.mxu0 0.0
  %2598 = vmatpush1.msra.mxu0 0.0
  %2599 = vmatprep.subr.mxu0 0.0
  %2600 = vmatpush1.msra.mxu0 0.0
  %2601 = vmatprep.subr.mxu0 0.0
  %2602 = vmatpush1.msra.mxu0 0.0
  %2603 = vmatprep.subr.mxu0 0.0
  %2604 = vmatpush1.msra.mxu0 0.0
  %2605 = vmatprep.subr.mxu0 0.0
  %2606 = vmatpush1.msra.mxu0 0.0
  %2607 = vmatprep.subr.mxu0 0.0
  %2608 = vmatpush1.msra.mxu0 0.0
  %2609 = vmatprep.subr.mxu0 0.0
  %2610 = vmatpush1.msra.mxu0 0.0
  %2611 = vmatprep.subr.mxu0 0.0
  %2612 = vmatpush1.msra.mxu0 0.0
  %2613 = vmatprep.subr.mxu0 0.0
  %2614 = vmatpush1.msra.mxu0 0.0
  %2615 = vmatprep.mubr.f32.mxu0 0.0
  %v2616 = vand.u32 %v2438, 4294901760
  %2617 = vmatmul.mubr.f32.gmra.mrb[0].mxu0 %v2616
  %v2618 = vpop.f32.mrb[0].mxu0
  %v2619 = vadd.f32 %v2518, %v2618
  %v2620 = vpop.f32.mrb[0].mxu0
  %2621 = vdwg.mxu0
  %2622 = vmatprep.subr.mxu0 0.0
  %v2623 = vand.u32 %v30, 4294901760
  %v2624 = vsub.f32 %v30, %v2623
  %2625 = vmatpush1.msra.mxu0 %v2624
  %2626 = vmatprep.subr.mxu0 0.0
  %v2627 = vand.u32 %v31, 4294901760
  %v2628 = vsub.f32 %v31, %v2627
  %2629 = vmatpush1.msra.mxu0 %v2628
  %2630 = vmatprep.subr.mxu0 0.0
  %v2631 = vand.u32 %v32, 4294901760
  %v2632 = vsub.f32 %v32, %v2631
  %2633 = vmatpush1.msra.mxu0 %v2632
  %2634 = vmatprep.subr.mxu0 0.0
  %v2635 = vand.u32 %v33, 4294901760
  %v2636 = vsub.f32 %v33, %v2635
  %2637 = vmatpush1.msra.mxu0 %v2636
  %2638 = vmatprep.subr.mxu0 0.0
  %v2639 = vand.u32 %v34, 4294901760
  %v2640 = vsub.f32 %v34, %v2639
  %2641 = vmatpush1.msra.mxu0 %v2640
  %2642 = vmatprep.subr.mxu0 0.0
  %v2643 = vand.u32 %v35, 4294901760
  %v2644 = vsub.f32 %v35, %v2643
  %2645 = vmatpush1.msra.mxu0 %v2644
  %2646 = vmatprep.subr.mxu0 0.0
  %2647 = vmatpush1.msra.mxu0 0.0
  %2648 = vmatprep.subr.mxu0 0.0
  %2649 = vmatpush1.msra.mxu0 0.0
  %2650 = vmatprep.subr.mxu0 0.0
  %2651 = vmatpush1.msra.mxu0 0.0
  %2652 = vmatprep.subr.mxu0 0.0
  %2653 = vmatpush1.msra.mxu0 0.0
  %2654 = vmatprep.subr.mxu0 0.0
  %2655 = vmatpush1.msra.mxu0 0.0
  %2656 = vmatprep.subr.mxu0 0.0
  %2657 = vmatpush1.msra.mxu0 0.0
  %2658 = vmatprep.subr.mxu0 0.0
  %2659 = vmatpush1.msra.mxu0 0.0
  %2660 = vmatprep.subr.mxu0 0.0
  %2661 = vmatpush1.msra.mxu0 0.0
  %2662 = vmatprep.subr.mxu0 0.0
  %2663 = vmatpush1.msra.mxu0 0.0
  %2664 = vmatprep.subr.mxu0 0.0
  %2665 = vmatpush1.msra.mxu0 0.0
  %2666 = vmatprep.subr.mxu0 0.0
  %2667 = vmatpush1.msra.mxu0 0.0
  %2668 = vmatprep.subr.mxu0 0.0
  %2669 = vmatpush1.msra.mxu0 0.0
  %2670 = vmatprep.subr.mxu0 0.0
  %2671 = vmatpush1.msra.mxu0 0.0
  %2672 = vmatprep.subr.mxu0 0.0
  %2673 = vmatpush1.msra.mxu0 0.0
  %2674 = vmatprep.subr.mxu0 0.0
  %2675 = vmatpush1.msra.mxu0 0.0
  %2676 = vmatprep.subr.mxu0 0.0
  %2677 = vmatpush1.msra.mxu0 0.0
  %2678 = vmatprep.subr.mxu0 0.0
  %2679 = vmatpush1.msra.mxu0 0.0
  %2680 = vmatprep.subr.mxu0 0.0
  %2681 = vmatpush1.msra.mxu0 0.0
  %2682 = vmatprep.subr.mxu0 0.0
  %2683 = vmatpush1.msra.mxu0 0.0
  %2684 = vmatprep.subr.mxu0 0.0
  %2685 = vmatpush1.msra.mxu0 0.0
  %2686 = vmatprep.subr.mxu0 0.0
  %2687 = vmatpush1.msra.mxu0 0.0
  %2688 = vmatprep.subr.mxu0 0.0
  %2689 = vmatpush1.msra.mxu0 0.0
  %2690 = vmatprep.subr.mxu0 0.0
  %2691 = vmatpush1.msra.mxu0 0.0
  %2692 = vmatprep.subr.mxu0 0.0
  %2693 = vmatpush1.msra.mxu0 0.0
  %2694 = vmatprep.subr.mxu0 0.0
  %2695 = vmatpush1.msra.mxu0 0.0
  %2696 = vmatprep.subr.mxu0 0.0
  %2697 = vmatpush1.msra.mxu0 0.0
  %2698 = vmatprep.mubr.f32.mxu0 0.0
  %v2699 = vand.u32 %v2438, 4294901760
  %v2700 = vsub.f32 %v2438, %v2699
  %2701 = vmatmul.mubr.f32.gmra.mrb[0].mxu0 %v2700
  %v2702 = vpop.f32.mrb[0].mxu0
  %v2703 = vadd.f32 %v2619, %v2702
  %v2704 = vpop.f32.mrb[0].mxu0
  %2705 = vdwg.mxu0
  %2706 = vmatprep.subr.mxu0 0.0
  %v2707 = vand.u32 %v30, 4294901760
  %2708 = vmatpush1.msra.mxu0 %v2707
  %2709 = vmatprep.subr.mxu0 0.0
  %v2710 = vand.u32 %v31, 4294901760
  %2711 = vmatpush1.msra.mxu0 %v2710
  %2712 = vmatprep.subr.mxu0 0.0
  %v2713 = vand.u32 %v32, 4294901760
  %2714 = vmatpush1.msra.mxu0 %v2713
  %2715 = vmatprep.subr.mxu0 0.0
  %v2716 = vand.u32 %v33, 4294901760
  %2717 = vmatpush1.msra.mxu0 %v2716
  %2718 = vmatprep.subr.mxu0 0.0
  %v2719 = vand.u32 %v34, 4294901760
  %2720 = vmatpush1.msra.mxu0 %v2719
  %2721 = vmatprep.subr.mxu0 0.0
  %v2722 = vand.u32 %v35, 4294901760
  %2723 = vmatpush1.msra.mxu0 %v2722
  %2724 = vmatprep.subr.mxu0 0.0
  %2725 = vmatpush1.msra.mxu0 0.0
  %2726 = vmatprep.subr.mxu0 0.0
  %2727 = vmatpush1.msra.mxu0 0.0
  %2728 = vmatprep.subr.mxu0 0.0
  %2729 = vmatpush1.msra.mxu0 0.0
  %2730 = vmatprep.subr.mxu0 0.0
  %2731 = vmatpush1.msra.mxu0 0.0
  %2732 = vmatprep.subr.mxu0 0.0
  %2733 = vmatpush1.msra.mxu0 0.0
  %2734 = vmatprep.subr.mxu0 0.0
  %2735 = vmatpush1.msra.mxu0 0.0
  %2736 = vmatprep.subr.mxu0 0.0
  %2737 = vmatpush1.msra.mxu0 0.0
  %2738 = vmatprep.subr.mxu0 0.0
  %2739 = vmatpush1.msra.mxu0 0.0
  %2740 = vmatprep.subr.mxu0 0.0
  %2741 = vmatpush1.msra.mxu0 0.0
  %2742 = vmatprep.subr.mxu0 0.0
  %2743 = vmatpush1.msra.mxu0 0.0
  %2744 = vmatprep.subr.mxu0 0.0
  %2745 = vmatpush1.msra.mxu0 0.0
  %2746 = vmatprep.subr.mxu0 0.0
  %2747 = vmatpush1.msra.mxu0 0.0
  %2748 = vmatprep.subr.mxu0 0.0
  %2749 = vmatpush1.msra.mxu0 0.0
  %2750 = vmatprep.subr.mxu0 0.0
  %2751 = vmatpush1.msra.mxu0 0.0
  %2752 = vmatprep.subr.mxu0 0.0
  %2753 = vmatpush1.msra.mxu0 0.0
  %2754 = vmatprep.subr.mxu0 0.0
  %2755 = vmatpush1.msra.mxu0 0.0
  %2756 = vmatprep.subr.mxu0 0.0
  %2757 = vmatpush1.msra.mxu0 0.0
  %2758 = vmatprep.subr.mxu0 0.0
  %2759 = vmatpush1.msra.mxu0 0.0
  %2760 = vmatprep.subr.mxu0 0.0
  %2761 = vmatpush1.msra.mxu0 0.0
  %2762 = vmatprep.subr.mxu0 0.0
  %2763 = vmatpush1.msra.mxu0 0.0
  %2764 = vmatprep.subr.mxu0 0.0
  %2765 = vmatpush1.msra.mxu0 0.0
  %2766 = vmatprep.subr.mxu0 0.0
  %2767 = vmatpush1.msra.mxu0 0.0
  %2768 = vmatprep.subr.mxu0 0.0
  %2769 = vmatpush1.msra.mxu0 0.0
  %2770 = vmatprep.subr.mxu0 0.0
  %2771 = vmatpush1.msra.mxu0 0.0
  %2772 = vmatprep.subr.mxu0 0.0
  %2773 = vmatpush1.msra.mxu0 0.0
  %2774 = vmatprep.subr.mxu0 0.0
  %2775 = vmatpush1.msra.mxu0 0.0
  %2776 = vmatprep.mubr.f32.mxu0 0.0
  %v2777 = vand.u32 %v2438, 4294901760
  %v2778 = vsub.f32 %v2438, %v2777
  %v2779 = vand.u32 %v2778, 4294901760
  %2780 = vmatmul.mubr.f32.gmra.mrb[0].mxu0 %v2779
  %v2781 = vpop.f32.mrb[0].mxu0
  %v2782 = vadd.f32 %v2703, %v2781
  %v2783 = vpop.f32.mrb[0].mxu0
  %2784 = vdwg.mxu0
  %2785 = vmatprep.subr.mxu0 0.0
  %v2786 = vand.u32 %v30, 4294901760
  %v2787 = vsub.f32 %v30, %v2786
  %v2788 = vand.u32 %v2787, 4294901760
  %2789 = vmatpush1.msra.mxu0 %v2788
  %2790 = vmatprep.subr.mxu0 0.0
  %v2791 = vand.u32 %v31, 4294901760
  %v2792 = vsub.f32 %v31, %v2791
  %v2793 = vand.u32 %v2792, 4294901760
  %2794 = vmatpush1.msra.mxu0 %v2793
  %2795 = vmatprep.subr.mxu0 0.0
  %v2796 = vand.u32 %v32, 4294901760
  %v2797 = vsub.f32 %v32, %v2796
  %v2798 = vand.u32 %v2797, 4294901760
  %2799 = vmatpush1.msra.mxu0 %v2798
  %2800 = vmatprep.subr.mxu0 0.0
  %v2801 = vand.u32 %v33, 4294901760
  %v2802 = vsub.f32 %v33, %v2801
  %v2803 = vand.u32 %v2802, 4294901760
  %2804 = vmatpush1.msra.mxu0 %v2803
  %2805 = vmatprep.subr.mxu0 0.0
  %v2806 = vand.u32 %v34, 4294901760
  %v2807 = vsub.f32 %v34, %v2806
  %v2808 = vand.u32 %v2807, 4294901760
  %2809 = vmatpush1.msra.mxu0 %v2808
  %2810 = vmatprep.subr.mxu0 0.0
  %v2811 = vand.u32 %v35, 4294901760
  %v2812 = vsub.f32 %v35, %v2811
  %v2813 = vand.u32 %v2812, 4294901760
  %2814 = vmatpush1.msra.mxu0 %v2813
  %2815 = vmatprep.subr.mxu0 0.0
  %2816 = vmatpush1.msra.mxu0 0.0
  %2817 = vmatprep.subr.mxu0 0.0
  %2818 = vmatpush1.msra.mxu0 0.0
  %2819 = vmatprep.subr.mxu0 0.0
  %2820 = vmatpush1.msra.mxu0 0.0
  %2821 = vmatprep.subr.mxu0 0.0
  %2822 = vmatpush1.msra.mxu0 0.0
  %2823 = vmatprep.subr.mxu0 0.0
  %2824 = vmatpush1.msra.mxu0 0.0
  %2825 = vmatprep.subr.mxu0 0.0
  %2826 = vmatpush1.msra.mxu0 0.0
  %2827 = vmatprep.subr.mxu0 0.0
  %2828 = vmatpush1.msra.mxu0 0.0
  %2829 = vmatprep.subr.mxu0 0.0
  %2830 = vmatpush1.msra.mxu0 0.0
  %2831 = vmatprep.subr.mxu0 0.0
  %2832 = vmatpush1.msra.mxu0 0.0
  %2833 = vmatprep.subr.mxu0 0.0
  %2834 = vmatpush1.msra.mxu0 0.0
  %2835 = vmatprep.subr.mxu0 0.0
  %2836 = vmatpush1.msra.mxu0 0.0
  %2837 = vmatprep.subr.mxu0 0.0
  %2838 = vmatpush1.msra.mxu0 0.0
  %2839 = vmatprep.subr.mxu0 0.0
  %2840 = vmatpush1.msra.mxu0 0.0
  %2841 = vmatprep.subr.mxu0 0.0
  %2842 = vmatpush1.msra.mxu0 0.0
  %2843 = vmatprep.subr.mxu0 0.0
  %2844 = vmatpush1.msra.mxu0 0.0
  %2845 = vmatprep.subr.mxu0 0.0
  %2846 = vmatpush1.msra.mxu0 0.0
  %2847 = vmatprep.subr.mxu0 0.0
  %2848 = vmatpush1.msra.mxu0 0.0
  %2849 = vmatprep.subr.mxu0 0.0
  %2850 = vmatpush1.msra.mxu0 0.0
  %2851 = vmatprep.subr.mxu0 0.0
  %2852 = vmatpush1.msra.mxu0 0.0
  %2853 = vmatprep.subr.mxu0 0.0
  %2854 = vmatpush1.msra.mxu0 0.0
  %2855 = vmatprep.subr.mxu0 0.0
  %2856 = vmatpush1.msra.mxu0 0.0
  %2857 = vmatprep.subr.mxu0 0.0
  %2858 = vmatpush1.msra.mxu0 0.0
  %2859 = vmatprep.subr.mxu0 0.0
  %2860 = vmatpush1.msra.mxu0 0.0
  %2861 = vmatprep.subr.mxu0 0.0
  %2862 = vmatpush1.msra.mxu0 0.0
  %2863 = vmatprep.subr.mxu0 0.0
  %2864 = vmatpush1.msra.mxu0 0.0
  %2865 = vmatprep.subr.mxu0 0.0
  %2866 = vmatpush1.msra.mxu0 0.0
  %2867 = vmatprep.mubr.f32.mxu0 0.0
  %v2868 = vand.u32 %v2438, 4294901760
  %2869 = vmatmul.mubr.f32.gmra.mrb[0].mxu0 %v2868
  %v2870 = vpop.f32.mrb[0].mxu0
  %v2871 = vadd.f32 %v2782, %v2870
  %v2872 = vpop.f32.mrb[0].mxu0
  %2873 = vdwg.mxu0
  %2874 = vmatprep.subr.mxu0 0.0
  %v2875 = vand.u32 %v30, 4294901760
  %2876 = vmatpush1.msra.mxu0 %v2875
  %2877 = vmatprep.subr.mxu0 0.0
  %v2878 = vand.u32 %v31, 4294901760
  %2879 = vmatpush1.msra.mxu0 %v2878
  %2880 = vmatprep.subr.mxu0 0.0
  %v2881 = vand.u32 %v32, 4294901760
  %2882 = vmatpush1.msra.mxu0 %v2881
  %2883 = vmatprep.subr.mxu0 0.0
  %v2884 = vand.u32 %v33, 4294901760
  %2885 = vmatpush1.msra.mxu0 %v2884
  %2886 = vmatprep.subr.mxu0 0.0
  %v2887 = vand.u32 %v34, 4294901760
  %2888 = vmatpush1.msra.mxu0 %v2887
  %2889 = vmatprep.subr.mxu0 0.0
  %v2890 = vand.u32 %v35, 4294901760
  %2891 = vmatpush1.msra.mxu0 %v2890
  %2892 = vmatprep.subr.mxu0 0.0
  %2893 = vmatpush1.msra.mxu0 0.0
  %2894 = vmatprep.subr.mxu0 0.0
  %2895 = vmatpush1.msra.mxu0 0.0
  %2896 = vmatprep.subr.mxu0 0.0
  %2897 = vmatpush1.msra.mxu0 0.0
  %2898 = vmatprep.subr.mxu0 0.0
  %2899 = vmatpush1.msra.mxu0 0.0
  %2900 = vmatprep.subr.mxu0 0.0
  %2901 = vmatpush1.msra.mxu0 0.0
  %2902 = vmatprep.subr.mxu0 0.0
  %2903 = vmatpush1.msra.mxu0 0.0
  %2904 = vmatprep.subr.mxu0 0.0
  %2905 = vmatpush1.msra.mxu0 0.0
  %2906 = vmatprep.subr.mxu0 0.0
  %2907 = vmatpush1.msra.mxu0 0.0
  %2908 = vmatprep.subr.mxu0 0.0
  %2909 = vmatpush1.msra.mxu0 0.0
  %2910 = vmatprep.subr.mxu0 0.0
  %2911 = vmatpush1.msra.mxu0 0.0
  %2912 = vmatprep.subr.mxu0 0.0
  %2913 = vmatpush1.msra.mxu0 0.0
  %2914 = vmatprep.subr.mxu0 0.0
  %2915 = vmatpush1.msra.mxu0 0.0
  %2916 = vmatprep.subr.mxu0 0.0
  %2917 = vmatpush1.msra.mxu0 0.0
  %2918 = vmatprep.subr.mxu0 0.0
  %2919 = vmatpush1.msra.mxu0 0.0
  %2920 = vmatprep.subr.mxu0 0.0
  %2921 = vmatpush1.msra.mxu0 0.0
  %2922 = vmatprep.subr.mxu0 0.0
  %2923 = vmatpush1.msra.mxu0 0.0
  %2924 = vmatprep.subr.mxu0 0.0
  %2925 = vmatpush1.msra.mxu0 0.0
  %2926 = vmatprep.subr.mxu0 0.0
  %2927 = vmatpush1.msra.mxu0 0.0
  %2928 = vmatprep.subr.mxu0 0.0
  %2929 = vmatpush1.msra.mxu0 0.0
  %2930 = vmatprep.subr.mxu0 0.0
  %2931 = vmatpush1.msra.mxu0 0.0
  %2932 = vmatprep.subr.mxu0 0.0
  %2933 = vmatpush1.msra.mxu0 0.0
  %2934 = vmatprep.subr.mxu0 0.0
  %2935 = vmatpush1.msra.mxu0 0.0
  %2936 = vmatprep.subr.mxu0 0.0
  %2937 = vmatpush1.msra.mxu0 0.0
  %2938 = vmatprep.subr.mxu0 0.0
  %2939 = vmatpush1.msra.mxu0 0.0
  %2940 = vmatprep.subr.mxu0 0.0
  %2941 = vmatpush1.msra.mxu0 0.0
  %2942 = vmatprep.subr.mxu0 0.0
  %2943 = vmatpush1.msra.mxu0 0.0
  %2944 = vmatprep.mubr.f32.mxu0 0.0
  %v2945 = vand.u32 %v2438, 4294901760
  %2946 = vmatmul.mubr.f32.gmra.mrb[0].mxu0 %v2945
  %v2947 = vpop.f32.mrb[0].mxu0
  %v2948 = vadd.f32 %v2871, %v2947
  %v2949 = vpop.f32.mrb[0].mxu0
  %2950 = vdwg.mxu0
  %v2952 = vsel %vm36, %v2948, 0
  %2954 = vmatprep.subr.mxu0 0.0
  %v2955 = vand.u32 %v28, 4294901760
  %2956 = vmatpush1.msra.mxu0 %v2955
  %2957 = vmatprep.subr.mxu0 0.0
  %2958 = vmatpush1.msra.mxu0 0.0
  %2959 = vmatprep.subr.mxu0 0.0
  %2960 = vmatpush1.msra.mxu0 0.0
  %2961 = vmatprep.subr.mxu0 0.0
  %2962 = vmatpush1.msra.mxu0 0.0
  %2963 = vmatprep.subr.mxu0 0.0
  %2964 = vmatpush1.msra.mxu0 0.0
  %2965 = vmatprep.subr.mxu0 0.0
  %2966 = vmatpush1.msra.mxu0 0.0
  %2967 = vmatprep.subr.mxu0 0.0
  %2968 = vmatpush1.msra.mxu0 0.0
  %2969 = vmatprep.subr.mxu0 0.0
  %2970 = vmatpush1.msra.mxu0 0.0
  %2971 = vmatprep.subr.mxu0 0.0
  %2972 = vmatpush1.msra.mxu0 0.0
  %2973 = vmatprep.subr.mxu0 0.0
  %2974 = vmatpush1.msra.mxu0 0.0
  %2975 = vmatprep.subr.mxu0 0.0
  %2976 = vmatpush1.msra.mxu0 0.0
  %2977 = vmatprep.subr.mxu0 0.0
  %2978 = vmatpush1.msra.mxu0 0.0
  %2979 = vmatprep.subr.mxu0 0.0
  %2980 = vmatpush1.msra.mxu0 0.0
  %2981 = vmatprep.subr.mxu0 0.0
  %2982 = vmatpush1.msra.mxu0 0.0
  %2983 = vmatprep.subr.mxu0 0.0
  %2984 = vmatpush1.msra.mxu0 0.0
  %2985 = vmatprep.subr.mxu0 0.0
  %2986 = vmatpush1.msra.mxu0 0.0
  %2987 = vmatprep.subr.mxu0 0.0
  %2988 = vmatpush1.msra.mxu0 0.0
  %2989 = vmatprep.subr.mxu0 0.0
  %2990 = vmatpush1.msra.mxu0 0.0
  %2991 = vmatprep.subr.mxu0 0.0
  %2992 = vmatpush1.msra.mxu0 0.0
  %2993 = vmatprep.subr.mxu0 0.0
  %2994 = vmatpush1.msra.mxu0 0.0
  %2995 = vmatprep.subr.mxu0 0.0
  %2996 = vmatpush1.msra.mxu0 0.0
  %2997 = vmatprep.subr.mxu0 0.0
  %2998 = vmatpush1.msra.mxu0 0.0
  %2999 = vmatprep.subr.mxu0 0.0
  %3000 = vmatpush1.msra.mxu0 0.0
  %3001 = vmatprep.subr.mxu0 0.0
  %3002 = vmatpush1.msra.mxu0 0.0
  %3003 = vmatprep.subr.mxu0 0.0
  %3004 = vmatpush1.msra.mxu0 0.0
  %3005 = vmatprep.subr.mxu0 0.0
  %3006 = vmatpush1.msra.mxu0 0.0
  %3007 = vmatprep.subr.mxu0 0.0
  %3008 = vmatpush1.msra.mxu0 0.0
  %3009 = vmatprep.subr.mxu0 0.0
  %3010 = vmatpush1.msra.mxu0 0.0
  %3011 = vmatprep.subr.mxu0 0.0
  %3012 = vmatpush1.msra.mxu0 0.0
  %3013 = vmatprep.subr.mxu0 0.0
  %3014 = vmatpush1.msra.mxu0 0.0
  %3015 = vmatprep.subr.mxu0 0.0
  %3016 = vmatpush1.msra.mxu0 0.0
  %3017 = vmatprep.subr.mxu0 0.0
  %3018 = vmatpush1.msra.mxu0 0.0
  %3019 = vmatprep.mubr.f32.mxu0 0.0
  %v3020 = vand.u32 %v2952, 4294901760
  %v3021 = vsub.f32 %v2952, %v3020
  %v3022 = vand.u32 %v3021, 4294901760
  %v3023 = vsub.f32 %v3021, %v3022
  %v3024 = vand.u32 %v3023, 4294901760
  %3025 = vmatmul.mubr.f32.gmra.mrb[0].mxu0 %v3024
  %v3026 = vpop.f32.mrb[0].mxu0
  %v3027 = vadd.f32 0.0, %v3026
  %v3028 = vpop.f32.mrb[0].mxu0
  %3029 = vdwg.mxu0
  %3030 = vmatprep.subr.mxu0 0.0
  %v3031 = vand.u32 %v28, 4294901760
  %v3032 = vsub.f32 %v28, %v3031
  %v3033 = vand.u32 %v3032, 4294901760
  %v3034 = vsub.f32 %v3032, %v3033
  %v3035 = vand.u32 %v3034, 4294901760
  %3036 = vmatpush1.msra.mxu0 %v3035
  %3037 = vmatprep.subr.mxu0 0.0
  %3038 = vmatpush1.msra.mxu0 0.0
  %3039 = vmatprep.subr.mxu0 0.0
  %3040 = vmatpush1.msra.mxu0 0.0
  %3041 = vmatprep.subr.mxu0 0.0
  %3042 = vmatpush1.msra.mxu0 0.0
  %3043 = vmatprep.subr.mxu0 0.0
  %3044 = vmatpush1.msra.mxu0 0.0
  %3045 = vmatprep.subr.mxu0 0.0
  %3046 = vmatpush1.msra.mxu0 0.0
  %3047 = vmatprep.subr.mxu0 0.0
  %3048 = vmatpush1.msra.mxu0 0.0
  %3049 = vmatprep.subr.mxu0 0.0
  %3050 = vmatpush1.msra.mxu0 0.0
  %3051 = vmatprep.subr.mxu0 0.0
  %3052 = vmatpush1.msra.mxu0 0.0
  %3053 = vmatprep.subr.mxu0 0.0
  %3054 = vmatpush1.msra.mxu0 0.0
  %3055 = vmatprep.subr.mxu0 0.0
  %3056 = vmatpush1.msra.mxu0 0.0
  %3057 = vmatprep.subr.mxu0 0.0
  %3058 = vmatpush1.msra.mxu0 0.0
  %3059 = vmatprep.subr.mxu0 0.0
  %3060 = vmatpush1.msra.mxu0 0.0
  %3061 = vmatprep.subr.mxu0 0.0
  %3062 = vmatpush1.msra.mxu0 0.0
  %3063 = vmatprep.subr.mxu0 0.0
  %3064 = vmatpush1.msra.mxu0 0.0
  %3065 = vmatprep.subr.mxu0 0.0
  %3066 = vmatpush1.msra.mxu0 0.0
  %3067 = vmatprep.subr.mxu0 0.0
  %3068 = vmatpush1.msra.mxu0 0.0
  %3069 = vmatprep.subr.mxu0 0.0
  %3070 = vmatpush1.msra.mxu0 0.0
  %3071 = vmatprep.subr.mxu0 0.0
  %3072 = vmatpush1.msra.mxu0 0.0
  %3073 = vmatprep.subr.mxu0 0.0
  %3074 = vmatpush1.msra.mxu0 0.0
  %3075 = vmatprep.subr.mxu0 0.0
  %3076 = vmatpush1.msra.mxu0 0.0
  %3077 = vmatprep.subr.mxu0 0.0
  %3078 = vmatpush1.msra.mxu0 0.0
  %3079 = vmatprep.subr.mxu0 0.0
  %3080 = vmatpush1.msra.mxu0 0.0
  %3081 = vmatprep.subr.mxu0 0.0
  %3082 = vmatpush1.msra.mxu0 0.0
  %3083 = vmatprep.subr.mxu0 0.0
  %3084 = vmatpush1.msra.mxu0 0.0
  %3085 = vmatprep.subr.mxu0 0.0
  %3086 = vmatpush1.msra.mxu0 0.0
  %3087 = vmatprep.subr.mxu0 0.0
  %3088 = vmatpush1.msra.mxu0 0.0
  %3089 = vmatprep.subr.mxu0 0.0
  %3090 = vmatpush1.msra.mxu0 0.0
  %3091 = vmatprep.subr.mxu0 0.0
  %3092 = vmatpush1.msra.mxu0 0.0
  %3093 = vmatprep.subr.mxu0 0.0
  %3094 = vmatpush1.msra.mxu0 0.0
  %3095 = vmatprep.subr.mxu0 0.0
  %3096 = vmatpush1.msra.mxu0 0.0
  %3097 = vmatprep.subr.mxu0 0.0
  %3098 = vmatpush1.msra.mxu0 0.0
  %3099 = vmatprep.mubr.f32.mxu0 0.0
  %v3100 = vand.u32 %v2952, 4294901760
  %3101 = vmatmul.mubr.f32.gmra.mrb[0].mxu0 %v3100
  %v3102 = vpop.f32.mrb[0].mxu0
  %v3103 = vadd.f32 %v3027, %v3102
  %v3104 = vpop.f32.mrb[0].mxu0
  %3105 = vdwg.mxu0
  %3106 = vmatprep.subr.mxu0 0.0
  %v3107 = vand.u32 %v28, 4294901760
  %v3108 = vsub.f32 %v28, %v3107
  %3109 = vmatpush1.msra.mxu0 %v3108
  %3110 = vmatprep.subr.mxu0 0.0
  %3111 = vmatpush1.msra.mxu0 0.0
  %3112 = vmatprep.subr.mxu0 0.0
  %3113 = vmatpush1.msra.mxu0 0.0
  %3114 = vmatprep.subr.mxu0 0.0
  %3115 = vmatpush1.msra.mxu0 0.0
  %3116 = vmatprep.subr.mxu0 0.0
  %3117 = vmatpush1.msra.mxu0 0.0
  %3118 = vmatprep.subr.mxu0 0.0
  %3119 = vmatpush1.msra.mxu0 0.0
  %3120 = vmatprep.subr.mxu0 0.0
  %3121 = vmatpush1.msra.mxu0 0.0
  %3122 = vmatprep.subr.mxu0 0.0
  %3123 = vmatpush1.msra.mxu0 0.0
  %3124 = vmatprep.subr.mxu0 0.0
  %3125 = vmatpush1.msra.mxu0 0.0
  %3126 = vmatprep.subr.mxu0 0.0
  %3127 = vmatpush1.msra.mxu0 0.0
  %3128 = vmatprep.subr.mxu0 0.0
  %3129 = vmatpush1.msra.mxu0 0.0
  %3130 = vmatprep.subr.mxu0 0.0
  %3131 = vmatpush1.msra.mxu0 0.0
  %3132 = vmatprep.subr.mxu0 0.0
  %3133 = vmatpush1.msra.mxu0 0.0
  %3134 = vmatprep.subr.mxu0 0.0
  %3135 = vmatpush1.msra.mxu0 0.0
  %3136 = vmatprep.subr.mxu0 0.0
  %3137 = vmatpush1.msra.mxu0 0.0
  %3138 = vmatprep.subr.mxu0 0.0
  %3139 = vmatpush1.msra.mxu0 0.0
  %3140 = vmatprep.subr.mxu0 0.0
  %3141 = vmatpush1.msra.mxu0 0.0
  %3142 = vmatprep.subr.mxu0 0.0
  %3143 = vmatpush1.msra.mxu0 0.0
  %3144 = vmatprep.subr.mxu0 0.0
  %3145 = vmatpush1.msra.mxu0 0.0
  %3146 = vmatprep.subr.mxu0 0.0
  %3147 = vmatpush1.msra.mxu0 0.0
  %3148 = vmatprep.subr.mxu0 0.0
  %3149 = vmatpush1.msra.mxu0 0.0
  %3150 = vmatprep.subr.mxu0 0.0
  %3151 = vmatpush1.msra.mxu0 0.0
  %3152 = vmatprep.subr.mxu0 0.0
  %3153 = vmatpush1.msra.mxu0 0.0
  %3154 = vmatprep.subr.mxu0 0.0
  %3155 = vmatpush1.msra.mxu0 0.0
  %3156 = vmatprep.subr.mxu0 0.0
  %3157 = vmatpush1.msra.mxu0 0.0
  %3158 = vmatprep.subr.mxu0 0.0
  %3159 = vmatpush1.msra.mxu0 0.0
  %3160 = vmatprep.subr.mxu0 0.0
  %3161 = vmatpush1.msra.mxu0 0.0
  %3162 = vmatprep.subr.mxu0 0.0
  %3163 = vmatpush1.msra.mxu0 0.0
  %3164 = vmatprep.subr.mxu0 0.0
  %3165 = vmatpush1.msra.mxu0 0.0
  %3166 = vmatprep.subr.mxu0 0.0
  %3167 = vmatpush1.msra.mxu0 0.0
  %3168 = vmatprep.subr.mxu0 0.0
  %3169 = vmatpush1.msra.mxu0 0.0
  %3170 = vmatprep.subr.mxu0 0.0
  %3171 = vmatpush1.msra.mxu0 0.0
  %3172 = vmatprep.mubr.f32.mxu0 0.0
  %v3173 = vand.u32 %v2952, 4294901760
  %v3174 = vsub.f32 %v2952, %v3173
  %3175 = vmatmul.mubr.f32.gmra.mrb[0].mxu0 %v3174
  %v3176 = vpop.f32.mrb[0].mxu0
  %v3177 = vadd.f32 %v3103, %v3176
  %v3178 = vpop.f32.mrb[0].mxu0
  %3179 = vdwg.mxu0
  %3180 = vmatprep.subr.mxu0 0.0
  %v3181 = vand.u32 %v28, 4294901760
  %3182 = vmatpush1.msra.mxu0 %v3181
  %3183 = vmatprep.subr.mxu0 0.0
  %3184 = vmatpush1.msra.mxu0 0.0
  %3185 = vmatprep.subr.mxu0 0.0
  %3186 = vmatpush1.msra.mxu0 0.0
  %3187 = vmatprep.subr.mxu0 0.0
  %3188 = vmatpush1.msra.mxu0 0.0
  %3189 = vmatprep.subr.mxu0 0.0
  %3190 = vmatpush1.msra.mxu0 0.0
  %3191 = vmatprep.subr.mxu0 0.0
  %3192 = vmatpush1.msra.mxu0 0.0
  %3193 = vmatprep.subr.mxu0 0.0
  %3194 = vmatpush1.msra.mxu0 0.0
  %3195 = vmatprep.subr.mxu0 0.0
  %3196 = vmatpush1.msra.mxu0 0.0
  %3197 = vmatprep.subr.mxu0 0.0
  %3198 = vmatpush1.msra.mxu0 0.0
  %3199 = vmatprep.subr.mxu0 0.0
  %3200 = vmatpush1.msra.mxu0 0.0
  %3201 = vmatprep.subr.mxu0 0.0
  %3202 = vmatpush1.msra.mxu0 0.0
  %3203 = vmatprep.subr.mxu0 0.0
  %3204 = vmatpush1.msra.mxu0 0.0
  %3205 = vmatprep.subr.mxu0 0.0
  %3206 = vmatpush1.msra.mxu0 0.0
  %3207 = vmatprep.subr.mxu0 0.0
  %3208 = vmatpush1.msra.mxu0 0.0
  %3209 = vmatprep.subr.mxu0 0.0
  %3210 = vmatpush1.msra.mxu0 0.0
  %3211 = vmatprep.subr.mxu0 0.0
  %3212 = vmatpush1.msra.mxu0 0.0
  %3213 = vmatprep.subr.mxu0 0.0
  %3214 = vmatpush1.msra.mxu0 0.0
  %3215 = vmatprep.subr.mxu0 0.0
  %3216 = vmatpush1.msra.mxu0 0.0
  %3217 = vmatprep.subr.mxu0 0.0
  %3218 = vmatpush1.msra.mxu0 0.0
  %3219 = vmatprep.subr.mxu0 0.0
  %3220 = vmatpush1.msra.mxu0 0.0
  %3221 = vmatprep.subr.mxu0 0.0
  %3222 = vmatpush1.msra.mxu0 0.0
  %3223 = vmatprep.subr.mxu0 0.0
  %3224 = vmatpush1.msra.mxu0 0.0
  %3225 = vmatprep.subr.mxu0 0.0
  %3226 = vmatpush1.msra.mxu0 0.0
  %3227 = vmatprep.subr.mxu0 0.0
  %3228 = vmatpush1.msra.mxu0 0.0
  %3229 = vmatprep.subr.mxu0 0.0
  %3230 = vmatpush1.msra.mxu0 0.0
  %3231 = vmatprep.subr.mxu0 0.0
  %3232 = vmatpush1.msra.mxu0 0.0
  %3233 = vmatprep.subr.mxu0 0.0
  %3234 = vmatpush1.msra.mxu0 0.0
  %3235 = vmatprep.subr.mxu0 0.0
  %3236 = vmatpush1.msra.mxu0 0.0
  %3237 = vmatprep.subr.mxu0 0.0
  %3238 = vmatpush1.msra.mxu0 0.0
  %3239 = vmatprep.subr.mxu0 0.0
  %3240 = vmatpush1.msra.mxu0 0.0
  %3241 = vmatprep.subr.mxu0 0.0
  %3242 = vmatpush1.msra.mxu0 0.0
  %3243 = vmatprep.subr.mxu0 0.0
  %3244 = vmatpush1.msra.mxu0 0.0
  %3245 = vmatprep.mubr.f32.mxu0 0.0
  %v3246 = vand.u32 %v2952, 4294901760
  %v3247 = vsub.f32 %v2952, %v3246
  %v3248 = vand.u32 %v3247, 4294901760
  %3249 = vmatmul.mubr.f32.gmra.mrb[0].mxu0 %v3248
  %v3250 = vpop.f32.mrb[0].mxu0
  %v3251 = vadd.f32 %v3177, %v3250
  %v3252 = vpop.f32.mrb[0].mxu0
  %3253 = vdwg.mxu0
  %3254 = vmatprep.subr.mxu0 0.0
  %v3255 = vand.u32 %v28, 4294901760
  %v3256 = vsub.f32 %v28, %v3255
  %v3257 = vand.u32 %v3256, 4294901760
  %3258 = vmatpush1.msra.mxu0 %v3257
  %3259 = vmatprep.subr.mxu0 0.0
  %3260 = vmatpush1.msra.mxu0 0.0
  %3261 = vmatprep.subr.mxu0 0.0
  %3262 = vmatpush1.msra.mxu0 0.0
  %3263 = vmatprep.subr.mxu0 0.0
  %3264 = vmatpush1.msra.mxu0 0.0
  %3265 = vmatprep.subr.mxu0 0.0
  %3266 = vmatpush1.msra.mxu0 0.0
  %3267 = vmatprep.subr.mxu0 0.0
  %3268 = vmatpush1.msra.mxu0 0.0
  %3269 = vmatprep.subr.mxu0 0.0
  %3270 = vmatpush1.msra.mxu0 0.0
  %3271 = vmatprep.subr.mxu0 0.0
  %3272 = vmatpush1.msra.mxu0 0.0
  %3273 = vmatprep.subr.mxu0 0.0
  %3274 = vmatpush1.msra.mxu0 0.0
  %3275 = vmatprep.subr.mxu0 0.0
  %3276 = vmatpush1.msra.mxu0 0.0
  %3277 = vmatprep.subr.mxu0 0.0
  %3278 = vmatpush1.msra.mxu0 0.0
  %3279 = vmatprep.subr.mxu0 0.0
  %3280 = vmatpush1.msra.mxu0 0.0
  %3281 = vmatprep.subr.mxu0 0.0
  %3282 = vmatpush1.msra.mxu0 0.0
  %3283 = vmatprep.subr.mxu0 0.0
  %3284 = vmatpush1.msra.mxu0 0.0
  %3285 = vmatprep.subr.mxu0 0.0
  %3286 = vmatpush1.msra.mxu0 0.0
  %3287 = vmatprep.subr.mxu0 0.0
  %3288 = vmatpush1.msra.mxu0 0.0
  %3289 = vmatprep.subr.mxu0 0.0
  %3290 = vmatpush1.msra.mxu0 0.0
  %3291 = vmatprep.subr.mxu0 0.0
  %3292 = vmatpush1.msra.mxu0 0.0
  %3293 = vmatprep.subr.mxu0 0.0
  %3294 = vmatpush1.msra.mxu0 0.0
  %3295 = vmatprep.subr.mxu0 0.0
  %3296 = vmatpush1.msra.mxu0 0.0
  %3297 = vmatprep.subr.mxu0 0.0
  %3298 = vmatpush1.msra.mxu0 0.0
  %3299 = vmatprep.subr.mxu0 0.0
  %3300 = vmatpush1.msra.mxu0 0.0
  %3301 = vmatprep.subr.mxu0 0.0
  %3302 = vmatpush1.msra.mxu0 0.0
  %3303 = vmatprep.subr.mxu0 0.0
  %3304 = vmatpush1.msra.mxu0 0.0
  %3305 = vmatprep.subr.mxu0 0.0
  %3306 = vmatpush1.msra.mxu0 0.0
  %3307 = vmatprep.subr.mxu0 0.0
  %3308 = vmatpush1.msra.mxu0 0.0
  %3309 = vmatprep.subr.mxu0 0.0
  %3310 = vmatpush1.msra.mxu0 0.0
  %3311 = vmatprep.subr.mxu0 0.0
  %3312 = vmatpush1.msra.mxu0 0.0
  %3313 = vmatprep.subr.mxu0 0.0
  %3314 = vmatpush1.msra.mxu0 0.0
  %3315 = vmatprep.subr.mxu0 0.0
  %3316 = vmatpush1.msra.mxu0 0.0
  %3317 = vmatprep.subr.mxu0 0.0
  %3318 = vmatpush1.msra.mxu0 0.0
  %3319 = vmatprep.subr.mxu0 0.0
  %3320 = vmatpush1.msra.mxu0 0.0
  %3321 = vmatprep.mubr.f32.mxu0 0.0
  %v3322 = vand.u32 %v2952, 4294901760
  %3323 = vmatmul.mubr.f32.gmra.mrb[0].mxu0 %v3322
  %v3324 = vpop.f32.mrb[0].mxu0
  %v3325 = vadd.f32 %v3251, %v3324
  %v3326 = vpop.f32.mrb[0].mxu0
  %3327 = vdwg.mxu0
  %3328 = vmatprep.subr.mxu0 0.0
  %v3329 = vand.u32 %v28, 4294901760
  %3330 = vmatpush1.msra.mxu0 %v3329
  %3331 = vmatprep.subr.mxu0 0.0
  %3332 = vmatpush1.msra.mxu0 0.0
  %3333 = vmatprep.subr.mxu0 0.0
  %3334 = vmatpush1.msra.mxu0 0.0
  %3335 = vmatprep.subr.mxu0 0.0
  %3336 = vmatpush1.msra.mxu0 0.0
  %3337 = vmatprep.subr.mxu0 0.0
  %3338 = vmatpush1.msra.mxu0 0.0
  %3339 = vmatprep.subr.mxu0 0.0
  %3340 = vmatpush1.msra.mxu0 0.0
  %3341 = vmatprep.subr.mxu0 0.0
  %3342 = vmatpush1.msra.mxu0 0.0
  %3343 = vmatprep.subr.mxu0 0.0
  %3344 = vmatpush1.msra.mxu0 0.0
  %3345 = vmatprep.subr.mxu0 0.0
  %3346 = vmatpush1.msra.mxu0 0.0
  %3347 = vmatprep.subr.mxu0 0.0
  %3348 = vmatpush1.msra.mxu0 0.0
  %3349 = vmatprep.subr.mxu0 0.0
  %3350 = vmatpush1.msra.mxu0 0.0
  %3351 = vmatprep.subr.mxu0 0.0
  %3352 = vmatpush1.msra.mxu0 0.0
  %3353 = vmatprep.subr.mxu0 0.0
  %3354 = vmatpush1.msra.mxu0 0.0
  %3355 = vmatprep.subr.mxu0 0.0
  %3356 = vmatpush1.msra.mxu0 0.0
  %3357 = vmatprep.subr.mxu0 0.0
  %3358 = vmatpush1.msra.mxu0 0.0
  %3359 = vmatprep.subr.mxu0 0.0
  %3360 = vmatpush1.msra.mxu0 0.0
  %3361 = vmatprep.subr.mxu0 0.0
  %3362 = vmatpush1.msra.mxu0 0.0
  %3363 = vmatprep.subr.mxu0 0.0
  %3364 = vmatpush1.msra.mxu0 0.0
  %3365 = vmatprep.subr.mxu0 0.0
  %3366 = vmatpush1.msra.mxu0 0.0
  %3367 = vmatprep.subr.mxu0 0.0
  %3368 = vmatpush1.msra.mxu0 0.0
  %3369 = vmatprep.subr.mxu0 0.0
  %3370 = vmatpush1.msra.mxu0 0.0
  %3371 = vmatprep.subr.mxu0 0.0
  %3372 = vmatpush1.msra.mxu0 0.0
  %3373 = vmatprep.subr.mxu0 0.0
  %3374 = vmatpush1.msra.mxu0 0.0
  %3375 = vmatprep.subr.mxu0 0.0
  %3376 = vmatpush1.msra.mxu0 0.0
  %3377 = vmatprep.subr.mxu0 0.0
  %3378 = vmatpush1.msra.mxu0 0.0
  %3379 = vmatprep.subr.mxu0 0.0
  %3380 = vmatpush1.msra.mxu0 0.0
  %3381 = vmatprep.subr.mxu0 0.0
  %3382 = vmatpush1.msra.mxu0 0.0
  %3383 = vmatprep.subr.mxu0 0.0
  %3384 = vmatpush1.msra.mxu0 0.0
  %3385 = vmatprep.subr.mxu0 0.0
  %3386 = vmatpush1.msra.mxu0 0.0
  %3387 = vmatprep.subr.mxu0 0.0
  %3388 = vmatpush1.msra.mxu0 0.0
  %3389 = vmatprep.subr.mxu0 0.0
  %3390 = vmatpush1.msra.mxu0 0.0
  %3391 = vmatprep.subr.mxu0 0.0
  %3392 = vmatpush1.msra.mxu0 0.0
  %3393 = vmatprep.mubr.f32.mxu0 0.0
  %v3394 = vand.u32 %v2952, 4294901760
  %3395 = vmatmul.mubr.f32.gmra.mrb[0].mxu0 %v3394
  %v3396 = vpop.f32.mrb[0].mxu0
  %v3397 = vadd.f32 %v3325, %v3396
  %v3398 = vpop.f32.mrb[0].mxu0
  %3399 = vdwg.mxu0
  %s3400 = scalar_lea.vmem %s1, 12
  %v3401 = vld [vmem:[%s3400] sm:$0xf]
  %3402 = vset.pattern.permute.xlu0 0
  %3403 = vperm.xlu0 %3402, %v3401
  %v3404 = vpop.permute.xlu0 %3403
  %vm3405 = vcmp.eq.s32.totalorder %v490, %v3404
  %v3406 = vsel %vm3405, %v3397, 0.0
  %v3408 = vsel %vm496, %v3406, 0
  %3410 = vmatprep.subr.mxu0 0.0
  %v3411 = vand.u32 %v30, 4294901760
  %3412 = vmatpush1.msra.mxu0 %v3411
  %3413 = vmatprep.subr.mxu0 0.0
  %v3414 = vand.u32 %v31, 4294901760
  %3415 = vmatpush1.msra.mxu0 %v3414
  %3416 = vmatprep.subr.mxu0 0.0
  %v3417 = vand.u32 %v32, 4294901760
  %3418 = vmatpush1.msra.mxu0 %v3417
  %3419 = vmatprep.subr.mxu0 0.0
  %v3420 = vand.u32 %v33, 4294901760
  %3421 = vmatpush1.msra.mxu0 %v3420
  %3422 = vmatprep.subr.mxu0 0.0
  %v3423 = vand.u32 %v34, 4294901760
  %3424 = vmatpush1.msra.mxu0 %v3423
  %3425 = vmatprep.subr.mxu0 0.0
  %v3426 = vand.u32 %v35, 4294901760
  %3427 = vmatpush1.msra.mxu0 %v3426
  %3428 = vmatprep.subr.mxu0 0.0
  %3429 = vmatpush1.msra.mxu0 0.0
  %3430 = vmatprep.subr.mxu0 0.0
  %3431 = vmatpush1.msra.mxu0 0.0
  %3432 = vmatprep.subr.mxu0 0.0
  %3433 = vmatpush1.msra.mxu0 0.0
  %3434 = vmatprep.subr.mxu0 0.0
  %3435 = vmatpush1.msra.mxu0 0.0
  %3436 = vmatprep.subr.mxu0 0.0
  %3437 = vmatpush1.msra.mxu0 0.0
  %3438 = vmatprep.subr.mxu0 0.0
  %3439 = vmatpush1.msra.mxu0 0.0
  %3440 = vmatprep.subr.mxu0 0.0
  %3441 = vmatpush1.msra.mxu0 0.0
  %3442 = vmatprep.subr.mxu0 0.0
  %3443 = vmatpush1.msra.mxu0 0.0
  %3444 = vmatprep.subr.mxu0 0.0
  %3445 = vmatpush1.msra.mxu0 0.0
  %3446 = vmatprep.subr.mxu0 0.0
  %3447 = vmatpush1.msra.mxu0 0.0
  %3448 = vmatprep.subr.mxu0 0.0
  %3449 = vmatpush1.msra.mxu0 0.0
  %3450 = vmatprep.subr.mxu0 0.0
  %3451 = vmatpush1.msra.mxu0 0.0
  %3452 = vmatprep.subr.mxu0 0.0
  %3453 = vmatpush1.msra.mxu0 0.0
  %3454 = vmatprep.subr.mxu0 0.0
  %3455 = vmatpush1.msra.mxu0 0.0
  %3456 = vmatprep.subr.mxu0 0.0
  %3457 = vmatpush1.msra.mxu0 0.0
  %3458 = vmatprep.subr.mxu0 0.0
  %3459 = vmatpush1.msra.mxu0 0.0
  %3460 = vmatprep.subr.mxu0 0.0
  %3461 = vmatpush1.msra.mxu0 0.0
  %3462 = vmatprep.subr.mxu0 0.0
  %3463 = vmatpush1.msra.mxu0 0.0
  %3464 = vmatprep.subr.mxu0 0.0
  %3465 = vmatpush1.msra.mxu0 0.0
  %3466 = vmatprep.subr.mxu0 0.0
  %3467 = vmatpush1.msra.mxu0 0.0
  %3468 = vmatprep.subr.mxu0 0.0
  %3469 = vmatpush1.msra.mxu0 0.0
  %3470 = vmatprep.subr.mxu0 0.0
  %3471 = vmatpush1.msra.mxu0 0.0
  %3472 = vmatprep.subr.mxu0 0.0
  %3473 = vmatpush1.msra.mxu0 0.0
  %3474 = vmatprep.subr.mxu0 0.0
  %3475 = vmatpush1.msra.mxu0 0.0
  %3476 = vmatprep.subr.mxu0 0.0
  %3477 = vmatpush1.msra.mxu0 0.0
  %3478 = vmatprep.subr.mxu0 0.0
  %3479 = vmatpush1.msra.mxu0 0.0
  %3480 = vmatprep.mubr.f32.mxu0 0.0
  %v3481 = vand.u32 %v3408, 4294901760
  %v3482 = vsub.f32 %v3408, %v3481
  %v3483 = vand.u32 %v3482, 4294901760
  %v3484 = vsub.f32 %v3482, %v3483
  %v3485 = vand.u32 %v3484, 4294901760
  %3486 = vmatmul.mubr.f32.gmra.mrb[0].mxu0 %v3485
  %v3487 = vpop.f32.mrb[0].mxu0
  %v3488 = vadd.f32 0.0, %v3487
  %v3489 = vpop.f32.mrb[0].mxu0
  %3490 = vdwg.mxu0
  %3491 = vmatprep.subr.mxu0 0.0
  %v3492 = vand.u32 %v30, 4294901760
  %v3493 = vsub.f32 %v30, %v3492
  %v3494 = vand.u32 %v3493, 4294901760
  %v3495 = vsub.f32 %v3493, %v3494
  %v3496 = vand.u32 %v3495, 4294901760
  %3497 = vmatpush1.msra.mxu0 %v3496
  %3498 = vmatprep.subr.mxu0 0.0
  %v3499 = vand.u32 %v31, 4294901760
  %v3500 = vsub.f32 %v31, %v3499
  %v3501 = vand.u32 %v3500, 4294901760
  %v3502 = vsub.f32 %v3500, %v3501
  %v3503 = vand.u32 %v3502, 4294901760
  %3504 = vmatpush1.msra.mxu0 %v3503
  %3505 = vmatprep.subr.mxu0 0.0
  %v3506 = vand.u32 %v32, 4294901760
  %v3507 = vsub.f32 %v32, %v3506
  %v3508 = vand.u32 %v3507, 4294901760
  %v3509 = vsub.f32 %v3507, %v3508
  %v3510 = vand.u32 %v3509, 4294901760
  %3511 = vmatpush1.msra.mxu0 %v3510
  %3512 = vmatprep.subr.mxu0 0.0
  %v3513 = vand.u32 %v33, 4294901760
  %v3514 = vsub.f32 %v33, %v3513
  %v3515 = vand.u32 %v3514, 4294901760
  %v3516 = vsub.f32 %v3514, %v3515
  %v3517 = vand.u32 %v3516, 4294901760
  %3518 = vmatpush1.msra.mxu0 %v3517
  %3519 = vmatprep.subr.mxu0 0.0
  %v3520 = vand.u32 %v34, 4294901760
  %v3521 = vsub.f32 %v34, %v3520
  %v3522 = vand.u32 %v3521, 4294901760
  %v3523 = vsub.f32 %v3521, %v3522
  %v3524 = vand.u32 %v3523, 4294901760
  %3525 = vmatpush1.msra.mxu0 %v3524
  %3526 = vmatprep.subr.mxu0 0.0
  %v3527 = vand.u32 %v35, 4294901760
  %v3528 = vsub.f32 %v35, %v3527
  %v3529 = vand.u32 %v3528, 4294901760
  %v3530 = vsub.f32 %v3528, %v3529
  %v3531 = vand.u32 %v3530, 4294901760
  %3532 = vmatpush1.msra.mxu0 %v3531
  %3533 = vmatprep.subr.mxu0 0.0
  %3534 = vmatpush1.msra.mxu0 0.0
  %3535 = vmatprep.subr.mxu0 0.0
  %3536 = vmatpush1.msra.mxu0 0.0
  %3537 = vmatprep.subr.mxu0 0.0
  %3538 = vmatpush1.msra.mxu0 0.0
  %3539 = vmatprep.subr.mxu0 0.0
  %3540 = vmatpush1.msra.mxu0 0.0
  %3541 = vmatprep.subr.mxu0 0.0
  %3542 = vmatpush1.msra.mxu0 0.0
  %3543 = vmatprep.subr.mxu0 0.0
  %3544 = vmatpush1.msra.mxu0 0.0
  %3545 = vmatprep.subr.mxu0 0.0
  %3546 = vmatpush1.msra.mxu0 0.0
  %3547 = vmatprep.subr.mxu0 0.0
  %3548 = vmatpush1.msra.mxu0 0.0
  %3549 = vmatprep.subr.mxu0 0.0
  %3550 = vmatpush1.msra.mxu0 0.0
  %3551 = vmatprep.subr.mxu0 0.0
  %3552 = vmatpush1.msra.mxu0 0.0
  %3553 = vmatprep.subr.mxu0 0.0
  %3554 = vmatpush1.msra.mxu0 0.0
  %3555 = vmatprep.subr.mxu0 0.0
  %3556 = vmatpush1.msra.mxu0 0.0
  %3557 = vmatprep.subr.mxu0 0.0
  %3558 = vmatpush1.msra.mxu0 0.0
  %3559 = vmatprep.subr.mxu0 0.0
  %3560 = vmatpush1.msra.mxu0 0.0
  %3561 = vmatprep.subr.mxu0 0.0
  %3562 = vmatpush1.msra.mxu0 0.0
  %3563 = vmatprep.subr.mxu0 0.0
  %3564 = vmatpush1.msra.mxu0 0.0
  %3565 = vmatprep.subr.mxu0 0.0
  %3566 = vmatpush1.msra.mxu0 0.0
  %3567 = vmatprep.subr.mxu0 0.0
  %3568 = vmatpush1.msra.mxu0 0.0
  %3569 = vmatprep.subr.mxu0 0.0
  %3570 = vmatpush1.msra.mxu0 0.0
  %3571 = vmatprep.subr.mxu0 0.0
  %3572 = vmatpush1.msra.mxu0 0.0
  %3573 = vmatprep.subr.mxu0 0.0
  %3574 = vmatpush1.msra.mxu0 0.0
  %3575 = vmatprep.subr.mxu0 0.0
  %3576 = vmatpush1.msra.mxu0 0.0
  %3577 = vmatprep.subr.mxu0 0.0
  %3578 = vmatpush1.msra.mxu0 0.0
  %3579 = vmatprep.subr.mxu0 0.0
  %3580 = vmatpush1.msra.mxu0 0.0
  %3581 = vmatprep.subr.mxu0 0.0
  %3582 = vmatpush1.msra.mxu0 0.0
  %3583 = vmatprep.subr.mxu0 0.0
  %3584 = vmatpush1.msra.mxu0 0.0
  %3585 = vmatprep.mubr.f32.mxu0 0.0
  %v3586 = vand.u32 %v3408, 4294901760
  %3587 = vmatmul.mubr.f32.gmra.mrb[0].mxu0 %v3586
  %v3588 = vpop.f32.mrb[0].mxu0
  %v3589 = vadd.f32 %v3488, %v3588
  %v3590 = vpop.f32.mrb[0].mxu0
  %3591 = vdwg.mxu0
  %3592 = vmatprep.subr.mxu0 0.0
  %v3593 = vand.u32 %v30, 4294901760
  %v3594 = vsub.f32 %v30, %v3593
  %3595 = vmatpush1.msra.mxu0 %v3594
  %3596 = vmatprep.subr.mxu0 0.0
  %v3597 = vand.u32 %v31, 4294901760
  %v3598 = vsub.f32 %v31, %v3597
  %3599 = vmatpush1.msra.mxu0 %v3598
  %3600 = vmatprep.subr.mxu0 0.0
  %v3601 = vand.u32 %v32, 4294901760
  %v3602 = vsub.f32 %v32, %v3601
  %3603 = vmatpush1.msra.mxu0 %v3602
  %3604 = vmatprep.subr.mxu0 0.0
  %v3605 = vand.u32 %v33, 4294901760
  %v3606 = vsub.f32 %v33, %v3605
  %3607 = vmatpush1.msra.mxu0 %v3606
  %3608 = vmatprep.subr.mxu0 0.0
  %v3609 = vand.u32 %v34, 4294901760
  %v3610 = vsub.f32 %v34, %v3609
  %3611 = vmatpush1.msra.mxu0 %v3610
  %3612 = vmatprep.subr.mxu0 0.0
  %v3613 = vand.u32 %v35, 4294901760
  %v3614 = vsub.f32 %v35, %v3613
  %3615 = vmatpush1.msra.mxu0 %v3614
  %3616 = vmatprep.subr.mxu0 0.0
  %3617 = vmatpush1.msra.mxu0 0.0
  %3618 = vmatprep.subr.mxu0 0.0
  %3619 = vmatpush1.msra.mxu0 0.0
  %3620 = vmatprep.subr.mxu0 0.0
  %3621 = vmatpush1.msra.mxu0 0.0
  %3622 = vmatprep.subr.mxu0 0.0
  %3623 = vmatpush1.msra.mxu0 0.0
  %3624 = vmatprep.subr.mxu0 0.0
  %3625 = vmatpush1.msra.mxu0 0.0
  %3626 = vmatprep.subr.mxu0 0.0
  %3627 = vmatpush1.msra.mxu0 0.0
  %3628 = vmatprep.subr.mxu0 0.0
  %3629 = vmatpush1.msra.mxu0 0.0
  %3630 = vmatprep.subr.mxu0 0.0
  %3631 = vmatpush1.msra.mxu0 0.0
  %3632 = vmatprep.subr.mxu0 0.0
  %3633 = vmatpush1.msra.mxu0 0.0
  %3634 = vmatprep.subr.mxu0 0.0
  %3635 = vmatpush1.msra.mxu0 0.0
  %3636 = vmatprep.subr.mxu0 0.0
  %3637 = vmatpush1.msra.mxu0 0.0
  %3638 = vmatprep.subr.mxu0 0.0
  %3639 = vmatpush1.msra.mxu0 0.0
  %3640 = vmatprep.subr.mxu0 0.0
  %3641 = vmatpush1.msra.mxu0 0.0
  %3642 = vmatprep.subr.mxu0 0.0
  %3643 = vmatpush1.msra.mxu0 0.0
  %3644 = vmatprep.subr.mxu0 0.0
  %3645 = vmatpush1.msra.mxu0 0.0
  %3646 = vmatprep.subr.mxu0 0.0
  %3647 = vmatpush1.msra.mxu0 0.0
  %3648 = vmatprep.subr.mxu0 0.0
  %3649 = vmatpush1.msra.mxu0 0.0
  %3650 = vmatprep.subr.mxu0 0.0
  %3651 = vmatpush1.msra.mxu0 0.0
  %3652 = vmatprep.subr.mxu0 0.0
  %3653 = vmatpush1.msra.mxu0 0.0
  %3654 = vmatprep.subr.mxu0 0.0
  %3655 = vmatpush1.msra.mxu0 0.0
  %3656 = vmatprep.subr.mxu0 0.0
  %3657 = vmatpush1.msra.mxu0 0.0
  %3658 = vmatprep.subr.mxu0 0.0
  %3659 = vmatpush1.msra.mxu0 0.0
  %3660 = vmatprep.subr.mxu0 0.0
  %3661 = vmatpush1.msra.mxu0 0.0
  %3662 = vmatprep.subr.mxu0 0.0
  %3663 = vmatpush1.msra.mxu0 0.0
  %3664 = vmatprep.subr.mxu0 0.0
  %3665 = vmatpush1.msra.mxu0 0.0
  %3666 = vmatprep.subr.mxu0 0.0
  %3667 = vmatpush1.msra.mxu0 0.0
  %3668 = vmatprep.mubr.f32.mxu0 0.0
  %v3669 = vand.u32 %v3408, 4294901760
  %v3670 = vsub.f32 %v3408, %v3669
  %3671 = vmatmul.mubr.f32.gmra.mrb[0].mxu0 %v3670
  %v3672 = vpop.f32.mrb[0].mxu0
  %v3673 = vadd.f32 %v3589, %v3672
  %v3674 = vpop.f32.mrb[0].mxu0
  %3675 = vdwg.mxu0
  %3676 = vmatprep.subr.mxu0 0.0
  %v3677 = vand.u32 %v30, 4294901760
  %3678 = vmatpush1.msra.mxu0 %v3677
  %3679 = vmatprep.subr.mxu0 0.0
  %v3680 = vand.u32 %v31, 4294901760
  %3681 = vmatpush1.msra.mxu0 %v3680
  %3682 = vmatprep.subr.mxu0 0.0
  %v3683 = vand.u32 %v32, 4294901760
  %3684 = vmatpush1.msra.mxu0 %v3683
  %3685 = vmatprep.subr.mxu0 0.0
  %v3686 = vand.u32 %v33, 4294901760
  %3687 = vmatpush1.msra.mxu0 %v3686
  %3688 = vmatprep.subr.mxu0 0.0
  %v3689 = vand.u32 %v34, 4294901760
  %3690 = vmatpush1.msra.mxu0 %v3689
  %3691 = vmatprep.subr.mxu0 0.0
  %v3692 = vand.u32 %v35, 4294901760
  %3693 = vmatpush1.msra.mxu0 %v3692
  %3694 = vmatprep.subr.mxu0 0.0
  %3695 = vmatpush1.msra.mxu0 0.0
  %3696 = vmatprep.subr.mxu0 0.0
  %3697 = vmatpush1.msra.mxu0 0.0
  %3698 = vmatprep.subr.mxu0 0.0
  %3699 = vmatpush1.msra.mxu0 0.0
  %3700 = vmatprep.subr.mxu0 0.0
  %3701 = vmatpush1.msra.mxu0 0.0
  %3702 = vmatprep.subr.mxu0 0.0
  %3703 = vmatpush1.msra.mxu0 0.0
  %3704 = vmatprep.subr.mxu0 0.0
  %3705 = vmatpush1.msra.mxu0 0.0
  %3706 = vmatprep.subr.mxu0 0.0
  %3707 = vmatpush1.msra.mxu0 0.0
  %3708 = vmatprep.subr.mxu0 0.0
  %3709 = vmatpush1.msra.mxu0 0.0
  %3710 = vmatprep.subr.mxu0 0.0
  %3711 = vmatpush1.msra.mxu0 0.0
  %3712 = vmatprep.subr.mxu0 0.0
  %3713 = vmatpush1.msra.mxu0 0.0
  %3714 = vmatprep.subr.mxu0 0.0
  %3715 = vmatpush1.msra.mxu0 0.0
  %3716 = vmatprep.subr.mxu0 0.0
  %3717 = vmatpush1.msra.mxu0 0.0
  %3718 = vmatprep.subr.mxu0 0.0
  %3719 = vmatpush1.msra.mxu0 0.0
  %3720 = vmatprep.subr.mxu0 0.0
  %3721 = vmatpush1.msra.mxu0 0.0
  %3722 = vmatprep.subr.mxu0 0.0
  %3723 = vmatpush1.msra.mxu0 0.0
  %3724 = vmatprep.subr.mxu0 0.0
  %3725 = vmatpush1.msra.mxu0 0.0
  %3726 = vmatprep.subr.mxu0 0.0
  %3727 = vmatpush1.msra.mxu0 0.0
  %3728 = vmatprep.subr.mxu0 0.0
  %3729 = vmatpush1.msra.mxu0 0.0
  %3730 = vmatprep.subr.mxu0 0.0
  %3731 = vmatpush1.msra.mxu0 0.0
  %3732 = vmatprep.subr.mxu0 0.0
  %3733 = vmatpush1.msra.mxu0 0.0
  %3734 = vmatprep.subr.mxu0 0.0
  %3735 = vmatpush1.msra.mxu0 0.0
  %3736 = vmatprep.subr.mxu0 0.0
  %3737 = vmatpush1.msra.mxu0 0.0
  %3738 = vmatprep.subr.mxu0 0.0
  %3739 = vmatpush1.msra.mxu0 0.0
  %3740 = vmatprep.subr.mxu0 0.0
  %3741 = vmatpush1.msra.mxu0 0.0
  %3742 = vmatprep.subr.mxu0 0.0
  %3743 = vmatpush1.msra.mxu0 0.0
  %3744 = vmatprep.subr.mxu0 0.0
  %3745 = vmatpush1.msra.mxu0 0.0
  %3746 = vmatprep.mubr.f32.mxu0 0.0
  %v3747 = vand.u32 %v3408, 4294901760
  %v3748 = vsub.f32 %v3408, %v3747
  %v3749 = vand.u32 %v3748, 4294901760
  %3750 = vmatmul.mubr.f32.gmra.mrb[0].mxu0 %v3749
  %v3751 = vpop.f32.mrb[0].mxu0
  %v3752 = vadd.f32 %v3673, %v3751
  %v3753 = vpop.f32.mrb[0].mxu0
  %3754 = vdwg.mxu0
  %3755 = vmatprep.subr.mxu0 0.0
  %v3756 = vand.u32 %v30, 4294901760
  %v3757 = vsub.f32 %v30, %v3756
  %v3758 = vand.u32 %v3757, 4294901760
  %3759 = vmatpush1.msra.mxu0 %v3758
  %3760 = vmatprep.subr.mxu0 0.0
  %v3761 = vand.u32 %v31, 4294901760
  %v3762 = vsub.f32 %v31, %v3761
  %v3763 = vand.u32 %v3762, 4294901760
  %3764 = vmatpush1.msra.mxu0 %v3763
  %3765 = vmatprep.subr.mxu0 0.0
  %v3766 = vand.u32 %v32, 4294901760
  %v3767 = vsub.f32 %v32, %v3766
  %v3768 = vand.u32 %v3767, 4294901760
  %3769 = vmatpush1.msra.mxu0 %v3768
  %3770 = vmatprep.subr.mxu0 0.0
  %v3771 = vand.u32 %v33, 4294901760
  %v3772 = vsub.f32 %v33, %v3771
  %v3773 = vand.u32 %v3772, 4294901760
  %3774 = vmatpush1.msra.mxu0 %v3773
  %3775 = vmatprep.subr.mxu0 0.0
  %v3776 = vand.u32 %v34, 4294901760
  %v3777 = vsub.f32 %v34, %v3776
  %v3778 = vand.u32 %v3777, 4294901760
  %3779 = vmatpush1.msra.mxu0 %v3778
  %3780 = vmatprep.subr.mxu0 0.0
  %v3781 = vand.u32 %v35, 4294901760
  %v3782 = vsub.f32 %v35, %v3781
  %v3783 = vand.u32 %v3782, 4294901760
  %3784 = vmatpush1.msra.mxu0 %v3783
  %3785 = vmatprep.subr.mxu0 0.0
  %3786 = vmatpush1.msra.mxu0 0.0
  %3787 = vmatprep.subr.mxu0 0.0
  %3788 = vmatpush1.msra.mxu0 0.0
  %3789 = vmatprep.subr.mxu0 0.0
  %3790 = vmatpush1.msra.mxu0 0.0
  %3791 = vmatprep.subr.mxu0 0.0
  %3792 = vmatpush1.msra.mxu0 0.0
  %3793 = vmatprep.subr.mxu0 0.0
  %3794 = vmatpush1.msra.mxu0 0.0
  %3795 = vmatprep.subr.mxu0 0.0
  %3796 = vmatpush1.msra.mxu0 0.0
  %3797 = vmatprep.subr.mxu0 0.0
  %3798 = vmatpush1.msra.mxu0 0.0
  %3799 = vmatprep.subr.mxu0 0.0
  %3800 = vmatpush1.msra.mxu0 0.0
  %3801 = vmatprep.subr.mxu0 0.0
  %3802 = vmatpush1.msra.mxu0 0.0
  %3803 = vmatprep.subr.mxu0 0.0
  %3804 = vmatpush1.msra.mxu0 0.0
  %3805 = vmatprep.subr.mxu0 0.0
  %3806 = vmatpush1.msra.mxu0 0.0
  %3807 = vmatprep.subr.mxu0 0.0
  %3808 = vmatpush1.msra.mxu0 0.0
  %3809 = vmatprep.subr.mxu0 0.0
  %3810 = vmatpush1.msra.mxu0 0.0
  %3811 = vmatprep.subr.mxu0 0.0
  %3812 = vmatpush1.msra.mxu0 0.0
  %3813 = vmatprep.subr.mxu0 0.0
  %3814 = vmatpush1.msra.mxu0 0.0
  %3815 = vmatprep.subr.mxu0 0.0
  %3816 = vmatpush1.msra.mxu0 0.0
  %3817 = vmatprep.subr.mxu0 0.0
  %3818 = vmatpush1.msra.mxu0 0.0
  %3819 = vmatprep.subr.mxu0 0.0
  %3820 = vmatpush1.msra.mxu0 0.0
  %3821 = vmatprep.subr.mxu0 0.0
  %3822 = vmatpush1.msra.mxu0 0.0
  %3823 = vmatprep.subr.mxu0 0.0
  %3824 = vmatpush1.msra.mxu0 0.0
  %3825 = vmatprep.subr.mxu0 0.0
  %3826 = vmatpush1.msra.mxu0 0.0
  %3827 = vmatprep.subr.mxu0 0.0
  %3828 = vmatpush1.msra.mxu0 0.0
  %3829 = vmatprep.subr.mxu0 0.0
  %3830 = vmatpush1.msra.mxu0 0.0
  %3831 = vmatprep.subr.mxu0 0.0
  %3832 = vmatpush1.msra.mxu0 0.0
  %3833 = vmatprep.subr.mxu0 0.0
  %3834 = vmatpush1.msra.mxu0 0.0
  %3835 = vmatprep.subr.mxu0 0.0
  %3836 = vmatpush1.msra.mxu0 0.0
  %3837 = vmatprep.mubr.f32.mxu0 0.0
  %v3838 = vand.u32 %v3408, 4294901760
  %3839 = vmatmul.mubr.f32.gmra.mrb[0].mxu0 %v3838
  %v3840 = vpop.f32.mrb[0].mxu0
  %v3841 = vadd.f32 %v3752, %v3840
  %v3842 = vpop.f32.mrb[0].mxu0
  %3843 = vdwg.mxu0
  %3844 = vmatprep.subr.mxu0 0.0
  %v3845 = vand.u32 %v30, 4294901760
  %3846 = vmatpush1.msra.mxu0 %v3845
  %3847 = vmatprep.subr.mxu0 0.0
  %v3848 = vand.u32 %v31, 4294901760
  %3849 = vmatpush1.msra.mxu0 %v3848
  %3850 = vmatprep.subr.mxu0 0.0
  %v3851 = vand.u32 %v32, 4294901760
  %3852 = vmatpush1.msra.mxu0 %v3851
  %3853 = vmatprep.subr.mxu0 0.0
  %v3854 = vand.u32 %v33, 4294901760
  %3855 = vmatpush1.msra.mxu0 %v3854
  %3856 = vmatprep.subr.mxu0 0.0
  %v3857 = vand.u32 %v34, 4294901760
  %3858 = vmatpush1.msra.mxu0 %v3857
  %3859 = vmatprep.subr.mxu0 0.0
  %v3860 = vand.u32 %v35, 4294901760
  %3861 = vmatpush1.msra.mxu0 %v3860
  %3862 = vmatprep.subr.mxu0 0.0
  %3863 = vmatpush1.msra.mxu0 0.0
  %3864 = vmatprep.subr.mxu0 0.0
  %3865 = vmatpush1.msra.mxu0 0.0
  %3866 = vmatprep.subr.mxu0 0.0
  %3867 = vmatpush1.msra.mxu0 0.0
  %3868 = vmatprep.subr.mxu0 0.0
  %3869 = vmatpush1.msra.mxu0 0.0
  %3870 = vmatprep.subr.mxu0 0.0
  %3871 = vmatpush1.msra.mxu0 0.0
  %3872 = vmatprep.subr.mxu0 0.0
  %3873 = vmatpush1.msra.mxu0 0.0
  %3874 = vmatprep.subr.mxu0 0.0
  %3875 = vmatpush1.msra.mxu0 0.0
  %3876 = vmatprep.subr.mxu0 0.0
  %3877 = vmatpush1.msra.mxu0 0.0
  %3878 = vmatprep.subr.mxu0 0.0
  %3879 = vmatpush1.msra.mxu0 0.0
  %3880 = vmatprep.subr.mxu0 0.0
  %3881 = vmatpush1.msra.mxu0 0.0
  %3882 = vmatprep.subr.mxu0 0.0
  %3883 = vmatpush1.msra.mxu0 0.0
  %3884 = vmatprep.subr.mxu0 0.0
  %3885 = vmatpush1.msra.mxu0 0.0
  %3886 = vmatprep.subr.mxu0 0.0
  %3887 = vmatpush1.msra.mxu0 0.0
  %3888 = vmatprep.subr.mxu0 0.0
  %3889 = vmatpush1.msra.mxu0 0.0
  %3890 = vmatprep.subr.mxu0 0.0
  %3891 = vmatpush1.msra.mxu0 0.0
  %3892 = vmatprep.subr.mxu0 0.0
  %3893 = vmatpush1.msra.mxu0 0.0
  %3894 = vmatprep.subr.mxu0 0.0
  %3895 = vmatpush1.msra.mxu0 0.0
  %3896 = vmatprep.subr.mxu0 0.0
  %3897 = vmatpush1.msra.mxu0 0.0
  %3898 = vmatprep.subr.mxu0 0.0
  %3899 = vmatpush1.msra.mxu0 0.0
  %3900 = vmatprep.subr.mxu0 0.0
  %3901 = vmatpush1.msra.mxu0 0.0
  %3902 = vmatprep.subr.mxu0 0.0
  %3903 = vmatpush1.msra.mxu0 0.0
  %3904 = vmatprep.subr.mxu0 0.0
  %3905 = vmatpush1.msra.mxu0 0.0
  %3906 = vmatprep.subr.mxu0 0.0
  %3907 = vmatpush1.msra.mxu0 0.0
  %3908 = vmatprep.subr.mxu0 0.0
  %3909 = vmatpush1.msra.mxu0 0.0
  %3910 = vmatprep.subr.mxu0 0.0
  %3911 = vmatpush1.msra.mxu0 0.0
  %3912 = vmatprep.subr.mxu0 0.0
  %3913 = vmatpush1.msra.mxu0 0.0
  %3914 = vmatprep.mubr.f32.mxu0 0.0
  %v3915 = vand.u32 %v3408, 4294901760
  %3916 = vmatmul.mubr.f32.gmra.mrb[0].mxu0 %v3915
  %v3917 = vpop.f32.mrb[0].mxu0
  %v3918 = vadd.f32 %v3841, %v3917
  %v3919 = vpop.f32.mrb[0].mxu0
  %3920 = vdwg.mxu0
  %v3922 = vsel %vm36, %v3918, 0
  %3924 = vmatprep.subr.mxu0 0.0
  %v3925 = vand.u32 %v28, 4294901760
  %3926 = vmatpush1.msra.mxu0 %v3925
  %3927 = vmatprep.subr.mxu0 0.0
  %3928 = vmatpush1.msra.mxu0 0.0
  %3929 = vmatprep.subr.mxu0 0.0
  %3930 = vmatpush1.msra.mxu0 0.0
  %3931 = vmatprep.subr.mxu0 0.0
  %3932 = vmatpush1.msra.mxu0 0.0
  %3933 = vmatprep.subr.mxu0 0.0
  %3934 = vmatpush1.msra.mxu0 0.0
  %3935 = vmatprep.subr.mxu0 0.0
  %3936 = vmatpush1.msra.mxu0 0.0
  %3937 = vmatprep.subr.mxu0 0.0
  %3938 = vmatpush1.msra.mxu0 0.0
  %3939 = vmatprep.subr.mxu0 0.0
  %3940 = vmatpush1.msra.mxu0 0.0
  %3941 = vmatprep.subr.mxu0 0.0
  %3942 = vmatpush1.msra.mxu0 0.0
  %3943 = vmatprep.subr.mxu0 0.0
  %3944 = vmatpush1.msra.mxu0 0.0
  %3945 = vmatprep.subr.mxu0 0.0
  %3946 = vmatpush1.msra.mxu0 0.0
  %3947 = vmatprep.subr.mxu0 0.0
  %3948 = vmatpush1.msra.mxu0 0.0
  %3949 = vmatprep.subr.mxu0 0.0
  %3950 = vmatpush1.msra.mxu0 0.0
  %3951 = vmatprep.subr.mxu0 0.0
  %3952 = vmatpush1.msra.mxu0 0.0
  %3953 = vmatprep.subr.mxu0 0.0
  %3954 = vmatpush1.msra.mxu0 0.0
  %3955 = vmatprep.subr.mxu0 0.0
  %3956 = vmatpush1.msra.mxu0 0.0
  %3957 = vmatprep.subr.mxu0 0.0
  %3958 = vmatpush1.msra.mxu0 0.0
  %3959 = vmatprep.subr.mxu0 0.0
  %3960 = vmatpush1.msra.mxu0 0.0
  %3961 = vmatprep.subr.mxu0 0.0
  %3962 = vmatpush1.msra.mxu0 0.0
  %3963 = vmatprep.subr.mxu0 0.0
  %3964 = vmatpush1.msra.mxu0 0.0
  %3965 = vmatprep.subr.mxu0 0.0
  %3966 = vmatpush1.msra.mxu0 0.0
  %3967 = vmatprep.subr.mxu0 0.0
  %3968 = vmatpush1.msra.mxu0 0.0
  %3969 = vmatprep.subr.mxu0 0.0
  %3970 = vmatpush1.msra.mxu0 0.0
  %3971 = vmatprep.subr.mxu0 0.0
  %3972 = vmatpush1.msra.mxu0 0.0
  %3973 = vmatprep.subr.mxu0 0.0
  %3974 = vmatpush1.msra.mxu0 0.0
  %3975 = vmatprep.subr.mxu0 0.0
  %3976 = vmatpush1.msra.mxu0 0.0
  %3977 = vmatprep.subr.mxu0 0.0
  %3978 = vmatpush1.msra.mxu0 0.0
  %3979 = vmatprep.subr.mxu0 0.0
  %3980 = vmatpush1.msra.mxu0 0.0
  %3981 = vmatprep.subr.mxu0 0.0
  %3982 = vmatpush1.msra.mxu0 0.0
  %3983 = vmatprep.subr.mxu0 0.0
  %3984 = vmatpush1.msra.mxu0 0.0
  %3985 = vmatprep.subr.mxu0 0.0
  %3986 = vmatpush1.msra.mxu0 0.0
  %3987 = vmatprep.subr.mxu0 0.0
  %3988 = vmatpush1.msra.mxu0 0.0
  %3989 = vmatprep.mubr.f32.mxu0 0.0
  %v3990 = vand.u32 %v3922, 4294901760
  %v3991 = vsub.f32 %v3922, %v3990
  %v3992 = vand.u32 %v3991, 4294901760
  %v3993 = vsub.f32 %v3991, %v3992
  %v3994 = vand.u32 %v3993, 4294901760
  %3995 = vmatmul.mubr.f32.gmra.mrb[0].mxu0 %v3994
  %v3996 = vpop.f32.mrb[0].mxu0
  %v3997 = vadd.f32 0.0, %v3996
  %v3998 = vpop.f32.mrb[0].mxu0
  %3999 = vdwg.mxu0
  %4000 = vmatprep.subr.mxu0 0.0
  %v4001 = vand.u32 %v28, 4294901760
  %v4002 = vsub.f32 %v28, %v4001
  %v4003 = vand.u32 %v4002, 4294901760
  %v4004 = vsub.f32 %v4002, %v4003
  %v4005 = vand.u32 %v4004, 4294901760
  %4006 = vmatpush1.msra.mxu0 %v4005
  %4007 = vmatprep.subr.mxu0 0.0
  %4008 = vmatpush1.msra.mxu0 0.0
  %4009 = vmatprep.subr.mxu0 0.0
  %4010 = vmatpush1.msra.mxu0 0.0
  %4011 = vmatprep.subr.mxu0 0.0
  %4012 = vmatpush1.msra.mxu0 0.0
  %4013 = vmatprep.subr.mxu0 0.0
  %4014 = vmatpush1.msra.mxu0 0.0
  %4015 = vmatprep.subr.mxu0 0.0
  %4016 = vmatpush1.msra.mxu0 0.0
  %4017 = vmatprep.subr.mxu0 0.0
  %4018 = vmatpush1.msra.mxu0 0.0
  %4019 = vmatprep.subr.mxu0 0.0
  %4020 = vmatpush1.msra.mxu0 0.0
  %4021 = vmatprep.subr.mxu0 0.0
  %4022 = vmatpush1.msra.mxu0 0.0
  %4023 = vmatprep.subr.mxu0 0.0
  %4024 = vmatpush1.msra.mxu0 0.0
  %4025 = vmatprep.subr.mxu0 0.0
  %4026 = vmatpush1.msra.mxu0 0.0
  %4027 = vmatprep.subr.mxu0 0.0
  %4028 = vmatpush1.msra.mxu0 0.0
  %4029 = vmatprep.subr.mxu0 0.0
  %4030 = vmatpush1.msra.mxu0 0.0
  %4031 = vmatprep.subr.mxu0 0.0
  %4032 = vmatpush1.msra.mxu0 0.0
  %4033 = vmatprep.subr.mxu0 0.0
  %4034 = vmatpush1.msra.mxu0 0.0
  %4035 = vmatprep.subr.mxu0 0.0
  %4036 = vmatpush1.msra.mxu0 0.0
  %4037 = vmatprep.subr.mxu0 0.0
  %4038 = vmatpush1.msra.mxu0 0.0
  %4039 = vmatprep.subr.mxu0 0.0
  %4040 = vmatpush1.msra.mxu0 0.0
  %4041 = vmatprep.subr.mxu0 0.0
  %4042 = vmatpush1.msra.mxu0 0.0
  %4043 = vmatprep.subr.mxu0 0.0
  %4044 = vmatpush1.msra.mxu0 0.0
  %4045 = vmatprep.subr.mxu0 0.0
  %4046 = vmatpush1.msra.mxu0 0.0
  %4047 = vmatprep.subr.mxu0 0.0
  %4048 = vmatpush1.msra.mxu0 0.0
  %4049 = vmatprep.subr.mxu0 0.0
  %4050 = vmatpush1.msra.mxu0 0.0
  %4051 = vmatprep.subr.mxu0 0.0
  %4052 = vmatpush1.msra.mxu0 0.0
  %4053 = vmatprep.subr.mxu0 0.0
  %4054 = vmatpush1.msra.mxu0 0.0
  %4055 = vmatprep.subr.mxu0 0.0
  %4056 = vmatpush1.msra.mxu0 0.0
  %4057 = vmatprep.subr.mxu0 0.0
  %4058 = vmatpush1.msra.mxu0 0.0
  %4059 = vmatprep.subr.mxu0 0.0
  %4060 = vmatpush1.msra.mxu0 0.0
  %4061 = vmatprep.subr.mxu0 0.0
  %4062 = vmatpush1.msra.mxu0 0.0
  %4063 = vmatprep.subr.mxu0 0.0
  %4064 = vmatpush1.msra.mxu0 0.0
  %4065 = vmatprep.subr.mxu0 0.0
  %4066 = vmatpush1.msra.mxu0 0.0
  %4067 = vmatprep.subr.mxu0 0.0
  %4068 = vmatpush1.msra.mxu0 0.0
  %4069 = vmatprep.mubr.f32.mxu0 0.0
  %v4070 = vand.u32 %v3922, 4294901760
  %4071 = vmatmul.mubr.f32.gmra.mrb[0].mxu0 %v4070
  %v4072 = vpop.f32.mrb[0].mxu0
  %v4073 = vadd.f32 %v3997, %v4072
  %v4074 = vpop.f32.mrb[0].mxu0
  %4075 = vdwg.mxu0
  %4076 = vmatprep.subr.mxu0 0.0
  %v4077 = vand.u32 %v28, 4294901760
  %v4078 = vsub.f32 %v28, %v4077
  %4079 = vmatpush1.msra.mxu0 %v4078
  %4080 = vmatprep.subr.mxu0 0.0
  %4081 = vmatpush1.msra.mxu0 0.0
  %4082 = vmatprep.subr.mxu0 0.0
  %4083 = vmatpush1.msra.mxu0 0.0
  %4084 = vmatprep.subr.mxu0 0.0
  %4085 = vmatpush1.msra.mxu0 0.0
  %4086 = vmatprep.subr.mxu0 0.0
  %4087 = vmatpush1.msra.mxu0 0.0
  %4088 = vmatprep.subr.mxu0 0.0
  %4089 = vmatpush1.msra.mxu0 0.0
  %4090 = vmatprep.subr.mxu0 0.0
  %4091 = vmatpush1.msra.mxu0 0.0
  %4092 = vmatprep.subr.mxu0 0.0
  %4093 = vmatpush1.msra.mxu0 0.0
  %4094 = vmatprep.subr.mxu0 0.0
  %4095 = vmatpush1.msra.mxu0 0.0
  %4096 = vmatprep.subr.mxu0 0.0
  %4097 = vmatpush1.msra.mxu0 0.0
  %4098 = vmatprep.subr.mxu0 0.0
  %4099 = vmatpush1.msra.mxu0 0.0
  %4100 = vmatprep.subr.mxu0 0.0
  %4101 = vmatpush1.msra.mxu0 0.0
  %4102 = vmatprep.subr.mxu0 0.0
  %4103 = vmatpush1.msra.mxu0 0.0
  %4104 = vmatprep.subr.mxu0 0.0
  %4105 = vmatpush1.msra.mxu0 0.0
  %4106 = vmatprep.subr.mxu0 0.0
  %4107 = vmatpush1.msra.mxu0 0.0
  %4108 = vmatprep.subr.mxu0 0.0
  %4109 = vmatpush1.msra.mxu0 0.0
  %4110 = vmatprep.subr.mxu0 0.0
  %4111 = vmatpush1.msra.mxu0 0.0
  %4112 = vmatprep.subr.mxu0 0.0
  %4113 = vmatpush1.msra.mxu0 0.0
  %4114 = vmatprep.subr.mxu0 0.0
  %4115 = vmatpush1.msra.mxu0 0.0
  %4116 = vmatprep.subr.mxu0 0.0
  %4117 = vmatpush1.msra.mxu0 0.0
  %4118 = vmatprep.subr.mxu0 0.0
  %4119 = vmatpush1.msra.mxu0 0.0
  %4120 = vmatprep.subr.mxu0 0.0
  %4121 = vmatpush1.msra.mxu0 0.0
  %4122 = vmatprep.subr.mxu0 0.0
  %4123 = vmatpush1.msra.mxu0 0.0
  %4124 = vmatprep.subr.mxu0 0.0
  %4125 = vmatpush1.msra.mxu0 0.0
  %4126 = vmatprep.subr.mxu0 0.0
  %4127 = vmatpush1.msra.mxu0 0.0
  %4128 = vmatprep.subr.mxu0 0.0
  %4129 = vmatpush1.msra.mxu0 0.0
  %4130 = vmatprep.subr.mxu0 0.0
  %4131 = vmatpush1.msra.mxu0 0.0
  %4132 = vmatprep.subr.mxu0 0.0
  %4133 = vmatpush1.msra.mxu0 0.0
  %4134 = vmatprep.subr.mxu0 0.0
  %4135 = vmatpush1.msra.mxu0 0.0
  %4136 = vmatprep.subr.mxu0 0.0
  %4137 = vmatpush1.msra.mxu0 0.0
  %4138 = vmatprep.subr.mxu0 0.0
  %4139 = vmatpush1.msra.mxu0 0.0
  %4140 = vmatprep.subr.mxu0 0.0
  %4141 = vmatpush1.msra.mxu0 0.0
  %4142 = vmatprep.mubr.f32.mxu0 0.0
  %v4143 = vand.u32 %v3922, 4294901760
  %v4144 = vsub.f32 %v3922, %v4143
  %4145 = vmatmul.mubr.f32.gmra.mrb[0].mxu0 %v4144
  %v4146 = vpop.f32.mrb[0].mxu0
  %v4147 = vadd.f32 %v4073, %v4146
  %v4148 = vpop.f32.mrb[0].mxu0
  %4149 = vdwg.mxu0
  %4150 = vmatprep.subr.mxu0 0.0
  %v4151 = vand.u32 %v28, 4294901760
  %4152 = vmatpush1.msra.mxu0 %v4151
  %4153 = vmatprep.subr.mxu0 0.0
  %4154 = vmatpush1.msra.mxu0 0.0
  %4155 = vmatprep.subr.mxu0 0.0
  %4156 = vmatpush1.msra.mxu0 0.0
  %4157 = vmatprep.subr.mxu0 0.0
  %4158 = vmatpush1.msra.mxu0 0.0
  %4159 = vmatprep.subr.mxu0 0.0
  %4160 = vmatpush1.msra.mxu0 0.0
  %4161 = vmatprep.subr.mxu0 0.0
  %4162 = vmatpush1.msra.mxu0 0.0
  %4163 = vmatprep.subr.mxu0 0.0
  %4164 = vmatpush1.msra.mxu0 0.0
  %4165 = vmatprep.subr.mxu0 0.0
  %4166 = vmatpush1.msra.mxu0 0.0
  %4167 = vmatprep.subr.mxu0 0.0
  %4168 = vmatpush1.msra.mxu0 0.0
  %4169 = vmatprep.subr.mxu0 0.0
  %4170 = vmatpush1.msra.mxu0 0.0
  %4171 = vmatprep.subr.mxu0 0.0
  %4172 = vmatpush1.msra.mxu0 0.0
  %4173 = vmatprep.subr.mxu0 0.0
  %4174 = vmatpush1.msra.mxu0 0.0
  %4175 = vmatprep.subr.mxu0 0.0
  %4176 = vmatpush1.msra.mxu0 0.0
  %4177 = vmatprep.subr.mxu0 0.0
  %4178 = vmatpush1.msra.mxu0 0.0
  %4179 = vmatprep.subr.mxu0 0.0
  %4180 = vmatpush1.msra.mxu0 0.0
  %4181 = vmatprep.subr.mxu0 0.0
  %4182 = vmatpush1.msra.mxu0 0.0
  %4183 = vmatprep.subr.mxu0 0.0
  %4184 = vmatpush1.msra.mxu0 0.0
  %4185 = vmatprep.subr.mxu0 0.0
  %4186 = vmatpush1.msra.mxu0 0.0
  %4187 = vmatprep.subr.mxu0 0.0
  %4188 = vmatpush1.msra.mxu0 0.0
  %4189 = vmatprep.subr.mxu0 0.0
  %4190 = vmatpush1.msra.mxu0 0.0
  %4191 = vmatprep.subr.mxu0 0.0
  %4192 = vmatpush1.msra.mxu0 0.0
  %4193 = vmatprep.subr.mxu0 0.0
  %4194 = vmatpush1.msra.mxu0 0.0
  %4195 = vmatprep.subr.mxu0 0.0
  %4196 = vmatpush1.msra.mxu0 0.0
  %4197 = vmatprep.subr.mxu0 0.0
  %4198 = vmatpush1.msra.mxu0 0.0
  %4199 = vmatprep.subr.mxu0 0.0
  %4200 = vmatpush1.msra.mxu0 0.0
  %4201 = vmatprep.subr.mxu0 0.0
  %4202 = vmatpush1.msra.mxu0 0.0
  %4203 = vmatprep.subr.mxu0 0.0
  %4204 = vmatpush1.msra.mxu0 0.0
  %4205 = vmatprep.subr.mxu0 0.0
  %4206 = vmatpush1.msra.mxu0 0.0
  %4207 = vmatprep.subr.mxu0 0.0
  %4208 = vmatpush1.msra.mxu0 0.0
  %4209 = vmatprep.subr.mxu0 0.0
  %4210 = vmatpush1.msra.mxu0 0.0
  %4211 = vmatprep.subr.mxu0 0.0
  %4212 = vmatpush1.msra.mxu0 0.0
  %4213 = vmatprep.subr.mxu0 0.0
  %4214 = vmatpush1.msra.mxu0 0.0
  %4215 = vmatprep.mubr.f32.mxu0 0.0
  %v4216 = vand.u32 %v3922, 4294901760
  %v4217 = vsub.f32 %v3922, %v4216
  %v4218 = vand.u32 %v4217, 4294901760
  %4219 = vmatmul.mubr.f32.gmra.mrb[0].mxu0 %v4218
  %v4220 = vpop.f32.mrb[0].mxu0
  %v4221 = vadd.f32 %v4147, %v4220
  %v4222 = vpop.f32.mrb[0].mxu0
  %4223 = vdwg.mxu0
  %4224 = vmatprep.subr.mxu0 0.0
  %v4225 = vand.u32 %v28, 4294901760
  %v4226 = vsub.f32 %v28, %v4225
  %v4227 = vand.u32 %v4226, 4294901760
  %4228 = vmatpush1.msra.mxu0 %v4227
  %4229 = vmatprep.subr.mxu0 0.0
  %4230 = vmatpush1.msra.mxu0 0.0
  %4231 = vmatprep.subr.mxu0 0.0
  %4232 = vmatpush1.msra.mxu0 0.0
  %4233 = vmatprep.subr.mxu0 0.0
  %4234 = vmatpush1.msra.mxu0 0.0
  %4235 = vmatprep.subr.mxu0 0.0
  %4236 = vmatpush1.msra.mxu0 0.0
  %4237 = vmatprep.subr.mxu0 0.0
  %4238 = vmatpush1.msra.mxu0 0.0
  %4239 = vmatprep.subr.mxu0 0.0
  %4240 = vmatpush1.msra.mxu0 0.0
  %4241 = vmatprep.subr.mxu0 0.0
  %4242 = vmatpush1.msra.mxu0 0.0
  %4243 = vmatprep.subr.mxu0 0.0
  %4244 = vmatpush1.msra.mxu0 0.0
  %4245 = vmatprep.subr.mxu0 0.0
  %4246 = vmatpush1.msra.mxu0 0.0
  %4247 = vmatprep.subr.mxu0 0.0
  %4248 = vmatpush1.msra.mxu0 0.0
  %4249 = vmatprep.subr.mxu0 0.0
  %4250 = vmatpush1.msra.mxu0 0.0
  %4251 = vmatprep.subr.mxu0 0.0
  %4252 = vmatpush1.msra.mxu0 0.0
  %4253 = vmatprep.subr.mxu0 0.0
  %4254 = vmatpush1.msra.mxu0 0.0
  %4255 = vmatprep.subr.mxu0 0.0
  %4256 = vmatpush1.msra.mxu0 0.0
  %4257 = vmatprep.subr.mxu0 0.0
  %4258 = vmatpush1.msra.mxu0 0.0
  %4259 = vmatprep.subr.mxu0 0.0
  %4260 = vmatpush1.msra.mxu0 0.0
  %4261 = vmatprep.subr.mxu0 0.0
  %4262 = vmatpush1.msra.mxu0 0.0
  %4263 = vmatprep.subr.mxu0 0.0
  %4264 = vmatpush1.msra.mxu0 0.0
  %4265 = vmatprep.subr.mxu0 0.0
  %4266 = vmatpush1.msra.mxu0 0.0
  %4267 = vmatprep.subr.mxu0 0.0
  %4268 = vmatpush1.msra.mxu0 0.0
  %4269 = vmatprep.subr.mxu0 0.0
  %4270 = vmatpush1.msra.mxu0 0.0
  %4271 = vmatprep.subr.mxu0 0.0
  %4272 = vmatpush1.msra.mxu0 0.0
  %4273 = vmatprep.subr.mxu0 0.0
  %4274 = vmatpush1.msra.mxu0 0.0
  %4275 = vmatprep.subr.mxu0 0.0
  %4276 = vmatpush1.msra.mxu0 0.0
  %4277 = vmatprep.subr.mxu0 0.0
  %4278 = vmatpush1.msra.mxu0 0.0
  %4279 = vmatprep.subr.mxu0 0.0
  %4280 = vmatpush1.msra.mxu0 0.0
  %4281 = vmatprep.subr.mxu0 0.0
  %4282 = vmatpush1.msra.mxu0 0.0
  %4283 = vmatprep.subr.mxu0 0.0
  %4284 = vmatpush1.msra.mxu0 0.0
  %4285 = vmatprep.subr.mxu0 0.0
  %4286 = vmatpush1.msra.mxu0 0.0
  %4287 = vmatprep.subr.mxu0 0.0
  %4288 = vmatpush1.msra.mxu0 0.0
  %4289 = vmatprep.subr.mxu0 0.0
  %4290 = vmatpush1.msra.mxu0 0.0
  %4291 = vmatprep.mubr.f32.mxu0 0.0
  %v4292 = vand.u32 %v3922, 4294901760
  %4293 = vmatmul.mubr.f32.gmra.mrb[0].mxu0 %v4292
  %v4294 = vpop.f32.mrb[0].mxu0
  %v4295 = vadd.f32 %v4221, %v4294
  %v4296 = vpop.f32.mrb[0].mxu0
  %4297 = vdwg.mxu0
  %4298 = vmatprep.subr.mxu0 0.0
  %v4299 = vand.u32 %v28, 4294901760
  %4300 = vmatpush1.msra.mxu0 %v4299
  %4301 = vmatprep.subr.mxu0 0.0
  %4302 = vmatpush1.msra.mxu0 0.0
  %4303 = vmatprep.subr.mxu0 0.0
  %4304 = vmatpush1.msra.mxu0 0.0
  %4305 = vmatprep.subr.mxu0 0.0
  %4306 = vmatpush1.msra.mxu0 0.0
  %4307 = vmatprep.subr.mxu0 0.0
  %4308 = vmatpush1.msra.mxu0 0.0
  %4309 = vmatprep.subr.mxu0 0.0
  %4310 = vmatpush1.msra.mxu0 0.0
  %4311 = vmatprep.subr.mxu0 0.0
  %4312 = vmatpush1.msra.mxu0 0.0
  %4313 = vmatprep.subr.mxu0 0.0
  %4314 = vmatpush1.msra.mxu0 0.0
  %4315 = vmatprep.subr.mxu0 0.0
  %4316 = vmatpush1.msra.mxu0 0.0
  %4317 = vmatprep.subr.mxu0 0.0
  %4318 = vmatpush1.msra.mxu0 0.0
  %4319 = vmatprep.subr.mxu0 0.0
  %4320 = vmatpush1.msra.mxu0 0.0
  %4321 = vmatprep.subr.mxu0 0.0
  %4322 = vmatpush1.msra.mxu0 0.0
  %4323 = vmatprep.subr.mxu0 0.0
  %4324 = vmatpush1.msra.mxu0 0.0
  %4325 = vmatprep.subr.mxu0 0.0
  %4326 = vmatpush1.msra.mxu0 0.0
  %4327 = vmatprep.subr.mxu0 0.0
  %4328 = vmatpush1.msra.mxu0 0.0
  %4329 = vmatprep.subr.mxu0 0.0
  %4330 = vmatpush1.msra.mxu0 0.0
  %4331 = vmatprep.subr.mxu0 0.0
  %4332 = vmatpush1.msra.mxu0 0.0
  %4333 = vmatprep.subr.mxu0 0.0
  %4334 = vmatpush1.msra.mxu0 0.0
  %4335 = vmatprep.subr.mxu0 0.0
  %4336 = vmatpush1.msra.mxu0 0.0
  %4337 = vmatprep.subr.mxu0 0.0
  %4338 = vmatpush1.msra.mxu0 0.0
  %4339 = vmatprep.subr.mxu0 0.0
  %4340 = vmatpush1.msra.mxu0 0.0
  %4341 = vmatprep.subr.mxu0 0.0
  %4342 = vmatpush1.msra.mxu0 0.0
  %4343 = vmatprep.subr.mxu0 0.0
  %4344 = vmatpush1.msra.mxu0 0.0
  %4345 = vmatprep.subr.mxu0 0.0
  %4346 = vmatpush1.msra.mxu0 0.0
  %4347 = vmatprep.subr.mxu0 0.0
  %4348 = vmatpush1.msra.mxu0 0.0
  %4349 = vmatprep.subr.mxu0 0.0
  %4350 = vmatpush1.msra.mxu0 0.0
  %4351 = vmatprep.subr.mxu0 0.0
  %4352 = vmatpush1.msra.mxu0 0.0
  %4353 = vmatprep.subr.mxu0 0.0
  %4354 = vmatpush1.msra.mxu0 0.0
  %4355 = vmatprep.subr.mxu0 0.0
  %4356 = vmatpush1.msra.mxu0 0.0
  %4357 = vmatprep.subr.mxu0 0.0
  %4358 = vmatpush1.msra.mxu0 0.0
  %4359 = vmatprep.subr.mxu0 0.0
  %4360 = vmatpush1.msra.mxu0 0.0
  %4361 = vmatprep.subr.mxu0 0.0
  %4362 = vmatpush1.msra.mxu0 0.0
  %4363 = vmatprep.mubr.f32.mxu0 0.0
  %v4364 = vand.u32 %v3922, 4294901760
  %4365 = vmatmul.mubr.f32.gmra.mrb[0].mxu0 %v4364
  %v4366 = vpop.f32.mrb[0].mxu0
  %v4367 = vadd.f32 %v4295, %v4366
  %v4368 = vpop.f32.mrb[0].mxu0
  %4369 = vdwg.mxu0
  %s4370 = scalar_lea.vmem %s1, 16
  %v4371 = vld [vmem:[%s4370] sm:$0xf]
  %4372 = vset.pattern.permute.xlu0 0
  %4373 = vperm.xlu0 %4372, %v4371
  %v4374 = vpop.permute.xlu0 %4373
  %vm4375 = vcmp.eq.s32.totalorder %v490, %v4374
  %v4376 = vsel %vm4375, %v4367, 0.0
  %v4378 = vsel %vm496, %v4376, 0
  %4380 = vmatprep.subr.mxu0 0.0
  %v4381 = vand.u32 %v30, 4294901760
  %4382 = vmatpush1.msra.mxu0 %v4381
  %4383 = vmatprep.subr.mxu0 0.0
  %v4384 = vand.u32 %v31, 4294901760
  %4385 = vmatpush1.msra.mxu0 %v4384
  %4386 = vmatprep.subr.mxu0 0.0
  %v4387 = vand.u32 %v32, 4294901760
  %4388 = vmatpush1.msra.mxu0 %v4387
  %4389 = vmatprep.subr.mxu0 0.0
  %v4390 = vand.u32 %v33, 4294901760
  %4391 = vmatpush1.msra.mxu0 %v4390
  %4392 = vmatprep.subr.mxu0 0.0
  %v4393 = vand.u32 %v34, 4294901760
  %4394 = vmatpush1.msra.mxu0 %v4393
  %4395 = vmatprep.subr.mxu0 0.0
  %v4396 = vand.u32 %v35, 4294901760
  %4397 = vmatpush1.msra.mxu0 %v4396
  %4398 = vmatprep.subr.mxu0 0.0
  %4399 = vmatpush1.msra.mxu0 0.0
  %4400 = vmatprep.subr.mxu0 0.0
  %4401 = vmatpush1.msra.mxu0 0.0
  %4402 = vmatprep.subr.mxu0 0.0
  %4403 = vmatpush1.msra.mxu0 0.0
  %4404 = vmatprep.subr.mxu0 0.0
  %4405 = vmatpush1.msra.mxu0 0.0
  %4406 = vmatprep.subr.mxu0 0.0
  %4407 = vmatpush1.msra.mxu0 0.0
  %4408 = vmatprep.subr.mxu0 0.0
  %4409 = vmatpush1.msra.mxu0 0.0
  %4410 = vmatprep.subr.mxu0 0.0
  %4411 = vmatpush1.msra.mxu0 0.0
  %4412 = vmatprep.subr.mxu0 0.0
  %4413 = vmatpush1.msra.mxu0 0.0
  %4414 = vmatprep.subr.mxu0 0.0
  %4415 = vmatpush1.msra.mxu0 0.0
  %4416 = vmatprep.subr.mxu0 0.0
  %4417 = vmatpush1.msra.mxu0 0.0
  %4418 = vmatprep.subr.mxu0 0.0
  %4419 = vmatpush1.msra.mxu0 0.0
  %4420 = vmatprep.subr.mxu0 0.0
  %4421 = vmatpush1.msra.mxu0 0.0
  %4422 = vmatprep.subr.mxu0 0.0
  %4423 = vmatpush1.msra.mxu0 0.0
  %4424 = vmatprep.subr.mxu0 0.0
  %4425 = vmatpush1.msra.mxu0 0.0
  %4426 = vmatprep.subr.mxu0 0.0
  %4427 = vmatpush1.msra.mxu0 0.0
  %4428 = vmatprep.subr.mxu0 0.0
  %4429 = vmatpush1.msra.mxu0 0.0
  %4430 = vmatprep.subr.mxu0 0.0
  %4431 = vmatpush1.msra.mxu0 0.0
  %4432 = vmatprep.subr.mxu0 0.0
  %4433 = vmatpush1.msra.mxu0 0.0
  %4434 = vmatprep.subr.mxu0 0.0
  %4435 = vmatpush1.msra.mxu0 0.0
  %4436 = vmatprep.subr.mxu0 0.0
  %4437 = vmatpush1.msra.mxu0 0.0
  %4438 = vmatprep.subr.mxu0 0.0
  %4439 = vmatpush1.msra.mxu0 0.0
  %4440 = vmatprep.subr.mxu0 0.0
  %4441 = vmatpush1.msra.mxu0 0.0
  %4442 = vmatprep.subr.mxu0 0.0
  %4443 = vmatpush1.msra.mxu0 0.0
  %4444 = vmatprep.subr.mxu0 0.0
  %4445 = vmatpush1.msra.mxu0 0.0
  %4446 = vmatprep.subr.mxu0 0.0
  %4447 = vmatpush1.msra.mxu0 0.0
  %4448 = vmatprep.subr.mxu0 0.0
  %4449 = vmatpush1.msra.mxu0 0.0
  %4450 = vmatprep.mubr.f32.mxu0 0.0
  %v4451 = vand.u32 %v4378, 4294901760
  %v4452 = vsub.f32 %v4378, %v4451
  %v4453 = vand.u32 %v4452, 4294901760
  %v4454 = vsub.f32 %v4452, %v4453
  %v4455 = vand.u32 %v4454, 4294901760
  %4456 = vmatmul.mubr.f32.gmra.mrb[0].mxu0 %v4455
  %v4457 = vpop.f32.mrb[0].mxu0
  %v4458 = vadd.f32 0.0, %v4457
  %v4459 = vpop.f32.mrb[0].mxu0
  %4460 = vdwg.mxu0
  %4461 = vmatprep.subr.mxu0 0.0
  %v4462 = vand.u32 %v30, 4294901760
  %v4463 = vsub.f32 %v30, %v4462
  %v4464 = vand.u32 %v4463, 4294901760
  %v4465 = vsub.f32 %v4463, %v4464
  %v4466 = vand.u32 %v4465, 4294901760
  %4467 = vmatpush1.msra.mxu0 %v4466
  %4468 = vmatprep.subr.mxu0 0.0
  %v4469 = vand.u32 %v31, 4294901760
  %v4470 = vsub.f32 %v31, %v4469
  %v4471 = vand.u32 %v4470, 4294901760
  %v4472 = vsub.f32 %v4470, %v4471
  %v4473 = vand.u32 %v4472, 4294901760
  %4474 = vmatpush1.msra.mxu0 %v4473
  %4475 = vmatprep.subr.mxu0 0.0
  %v4476 = vand.u32 %v32, 4294901760
  %v4477 = vsub.f32 %v32, %v4476
  %v4478 = vand.u32 %v4477, 4294901760
  %v4479 = vsub.f32 %v4477, %v4478
  %v4480 = vand.u32 %v4479, 4294901760
  %4481 = vmatpush1.msra.mxu0 %v4480
  %4482 = vmatprep.subr.mxu0 0.0
  %v4483 = vand.u32 %v33, 4294901760
  %v4484 = vsub.f32 %v33, %v4483
  %v4485 = vand.u32 %v4484, 4294901760
  %v4486 = vsub.f32 %v4484, %v4485
  %v4487 = vand.u32 %v4486, 4294901760
  %4488 = vmatpush1.msra.mxu0 %v4487
  %4489 = vmatprep.subr.mxu0 0.0
  %v4490 = vand.u32 %v34, 4294901760
  %v4491 = vsub.f32 %v34, %v4490
  %v4492 = vand.u32 %v4491, 4294901760
  %v4493 = vsub.f32 %v4491, %v4492
  %v4494 = vand.u32 %v4493, 4294901760
  %4495 = vmatpush1.msra.mxu0 %v4494
  %4496 = vmatprep.subr.mxu0 0.0
  %v4497 = vand.u32 %v35, 4294901760
  %v4498 = vsub.f32 %v35, %v4497
  %v4499 = vand.u32 %v4498, 4294901760
  %v4500 = vsub.f32 %v4498, %v4499
  %v4501 = vand.u32 %v4500, 4294901760
  %4502 = vmatpush1.msra.mxu0 %v4501
  %4503 = vmatprep.subr.mxu0 0.0
  %4504 = vmatpush1.msra.mxu0 0.0
  %4505 = vmatprep.subr.mxu0 0.0
  %4506 = vmatpush1.msra.mxu0 0.0
  %4507 = vmatprep.subr.mxu0 0.0
  %4508 = vmatpush1.msra.mxu0 0.0
  %4509 = vmatprep.subr.mxu0 0.0
  %4510 = vmatpush1.msra.mxu0 0.0
  %4511 = vmatprep.subr.mxu0 0.0
  %4512 = vmatpush1.msra.mxu0 0.0
  %4513 = vmatprep.subr.mxu0 0.0
  %4514 = vmatpush1.msra.mxu0 0.0
  %4515 = vmatprep.subr.mxu0 0.0
  %4516 = vmatpush1.msra.mxu0 0.0
  %4517 = vmatprep.subr.mxu0 0.0
  %4518 = vmatpush1.msra.mxu0 0.0
  %4519 = vmatprep.subr.mxu0 0.0
  %4520 = vmatpush1.msra.mxu0 0.0
  %4521 = vmatprep.subr.mxu0 0.0
  %4522 = vmatpush1.msra.mxu0 0.0
  %4523 = vmatprep.subr.mxu0 0.0
  %4524 = vmatpush1.msra.mxu0 0.0
  %4525 = vmatprep.subr.mxu0 0.0
  %4526 = vmatpush1.msra.mxu0 0.0
  %4527 = vmatprep.subr.mxu0 0.0
  %4528 = vmatpush1.msra.mxu0 0.0
  %4529 = vmatprep.subr.mxu0 0.0
  %4530 = vmatpush1.msra.mxu0 0.0
  %4531 = vmatprep.subr.mxu0 0.0
  %4532 = vmatpush1.msra.mxu0 0.0
  %4533 = vmatprep.subr.mxu0 0.0
  %4534 = vmatpush1.msra.mxu0 0.0
  %4535 = vmatprep.subr.mxu0 0.0
  %4536 = vmatpush1.msra.mxu0 0.0
  %4537 = vmatprep.subr.mxu0 0.0
  %4538 = vmatpush1.msra.mxu0 0.0
  %4539 = vmatprep.subr.mxu0 0.0
  %4540 = vmatpush1.msra.mxu0 0.0
  %4541 = vmatprep.subr.mxu0 0.0
  %4542 = vmatpush1.msra.mxu0 0.0
  %4543 = vmatprep.subr.mxu0 0.0
  %4544 = vmatpush1.msra.mxu0 0.0
  %4545 = vmatprep.subr.mxu0 0.0
  %4546 = vmatpush1.msra.mxu0 0.0
  %4547 = vmatprep.subr.mxu0 0.0
  %4548 = vmatpush1.msra.mxu0 0.0
  %4549 = vmatprep.subr.mxu0 0.0
  %4550 = vmatpush1.msra.mxu0 0.0
  %4551 = vmatprep.subr.mxu0 0.0
  %4552 = vmatpush1.msra.mxu0 0.0
  %4553 = vmatprep.subr.mxu0 0.0
  %4554 = vmatpush1.msra.mxu0 0.0
  %4555 = vmatprep.mubr.f32.mxu0 0.0
  %v4556 = vand.u32 %v4378, 4294901760
  %4557 = vmatmul.mubr.f32.gmra.mrb[0].mxu0 %v4556
  %v4558 = vpop.f32.mrb[0].mxu0
  %v4559 = vadd.f32 %v4458, %v4558
  %v4560 = vpop.f32.mrb[0].mxu0
  %4561 = vdwg.mxu0
  %4562 = vmatprep.subr.mxu0 0.0
  %v4563 = vand.u32 %v30, 4294901760
  %v4564 = vsub.f32 %v30, %v4563
  %4565 = vmatpush1.msra.mxu0 %v4564
  %4566 = vmatprep.subr.mxu0 0.0
  %v4567 = vand.u32 %v31, 4294901760
  %v4568 = vsub.f32 %v31, %v4567
  %4569 = vmatpush1.msra.mxu0 %v4568
  %4570 = vmatprep.subr.mxu0 0.0
  %v4571 = vand.u32 %v32, 4294901760
  %v4572 = vsub.f32 %v32, %v4571
  %4573 = vmatpush1.msra.mxu0 %v4572
  %4574 = vmatprep.subr.mxu0 0.0
  %v4575 = vand.u32 %v33, 4294901760
  %v4576 = vsub.f32 %v33, %v4575
  %4577 = vmatpush1.msra.mxu0 %v4576
  %4578 = vmatprep.subr.mxu0 0.0
  %v4579 = vand.u32 %v34, 4294901760
  %v4580 = vsub.f32 %v34, %v4579
  %4581 = vmatpush1.msra.mxu0 %v4580
  %4582 = vmatprep.subr.mxu0 0.0
  %v4583 = vand.u32 %v35, 4294901760
  %v4584 = vsub.f32 %v35, %v4583
  %4585 = vmatpush1.msra.mxu0 %v4584
  %4586 = vmatprep.subr.mxu0 0.0
  %4587 = vmatpush1.msra.mxu0 0.0
  %4588 = vmatprep.subr.mxu0 0.0
  %4589 = vmatpush1.msra.mxu0 0.0
  %4590 = vmatprep.subr.mxu0 0.0
  %4591 = vmatpush1.msra.mxu0 0.0
  %4592 = vmatprep.subr.mxu0 0.0
  %4593 = vmatpush1.msra.mxu0 0.0
  %4594 = vmatprep.subr.mxu0 0.0
  %4595 = vmatpush1.msra.mxu0 0.0
  %4596 = vmatprep.subr.mxu0 0.0
  %4597 = vmatpush1.msra.mxu0 0.0
  %4598 = vmatprep.subr.mxu0 0.0
  %4599 = vmatpush1.msra.mxu0 0.0
  %4600 = vmatprep.subr.mxu0 0.0
  %4601 = vmatpush1.msra.mxu0 0.0
  %4602 = vmatprep.subr.mxu0 0.0
  %4603 = vmatpush1.msra.mxu0 0.0
  %4604 = vmatprep.subr.mxu0 0.0
  %4605 = vmatpush1.msra.mxu0 0.0
  %4606 = vmatprep.subr.mxu0 0.0
  %4607 = vmatpush1.msra.mxu0 0.0
  %4608 = vmatprep.subr.mxu0 0.0
  %4609 = vmatpush1.msra.mxu0 0.0
  %4610 = vmatprep.subr.mxu0 0.0
  %4611 = vmatpush1.msra.mxu0 0.0
  %4612 = vmatprep.subr.mxu0 0.0
  %4613 = vmatpush1.msra.mxu0 0.0
  %4614 = vmatprep.subr.mxu0 0.0
  %4615 = vmatpush1.msra.mxu0 0.0
  %4616 = vmatprep.subr.mxu0 0.0
  %4617 = vmatpush1.msra.mxu0 0.0
  %4618 = vmatprep.subr.mxu0 0.0
  %4619 = vmatpush1.msra.mxu0 0.0
  %4620 = vmatprep.subr.mxu0 0.0
  %4621 = vmatpush1.msra.mxu0 0.0
  %4622 = vmatprep.subr.mxu0 0.0
  %4623 = vmatpush1.msra.mxu0 0.0
  %4624 = vmatprep.subr.mxu0 0.0
  %4625 = vmatpush1.msra.mxu0 0.0
  %4626 = vmatprep.subr.mxu0 0.0
  %4627 = vmatpush1.msra.mxu0 0.0
  %4628 = vmatprep.subr.mxu0 0.0
  %4629 = vmatpush1.msra.mxu0 0.0
  %4630 = vmatprep.subr.mxu0 0.0
  %4631 = vmatpush1.msra.mxu0 0.0
  %4632 = vmatprep.subr.mxu0 0.0
  %4633 = vmatpush1.msra.mxu0 0.0
  %4634 = vmatprep.subr.mxu0 0.0
  %4635 = vmatpush1.msra.mxu0 0.0
  %4636 = vmatprep.subr.mxu0 0.0
  %4637 = vmatpush1.msra.mxu0 0.0
  %4638 = vmatprep.mubr.f32.mxu0 0.0
  %v4639 = vand.u32 %v4378, 4294901760
  %v4640 = vsub.f32 %v4378, %v4639
  %4641 = vmatmul.mubr.f32.gmra.mrb[0].mxu0 %v4640
  %v4642 = vpop.f32.mrb[0].mxu0
  %v4643 = vadd.f32 %v4559, %v4642
  %v4644 = vpop.f32.mrb[0].mxu0
  %4645 = vdwg.mxu0
  %4646 = vmatprep.subr.mxu0 0.0
  %v4647 = vand.u32 %v30, 4294901760
  %4648 = vmatpush1.msra.mxu0 %v4647
  %4649 = vmatprep.subr.mxu0 0.0
  %v4650 = vand.u32 %v31, 4294901760
  %4651 = vmatpush1.msra.mxu0 %v4650
  %4652 = vmatprep.subr.mxu0 0.0
  %v4653 = vand.u32 %v32, 4294901760
  %4654 = vmatpush1.msra.mxu0 %v4653
  %4655 = vmatprep.subr.mxu0 0.0
  %v4656 = vand.u32 %v33, 4294901760
  %4657 = vmatpush1.msra.mxu0 %v4656
  %4658 = vmatprep.subr.mxu0 0.0
  %v4659 = vand.u32 %v34, 4294901760
  %4660 = vmatpush1.msra.mxu0 %v4659
  %4661 = vmatprep.subr.mxu0 0.0
  %v4662 = vand.u32 %v35, 4294901760
  %4663 = vmatpush1.msra.mxu0 %v4662
  %4664 = vmatprep.subr.mxu0 0.0
  %4665 = vmatpush1.msra.mxu0 0.0
  %4666 = vmatprep.subr.mxu0 0.0
  %4667 = vmatpush1.msra.mxu0 0.0
  %4668 = vmatprep.subr.mxu0 0.0
  %4669 = vmatpush1.msra.mxu0 0.0
  %4670 = vmatprep.subr.mxu0 0.0
  %4671 = vmatpush1.msra.mxu0 0.0
  %4672 = vmatprep.subr.mxu0 0.0
  %4673 = vmatpush1.msra.mxu0 0.0
  %4674 = vmatprep.subr.mxu0 0.0
  %4675 = vmatpush1.msra.mxu0 0.0
  %4676 = vmatprep.subr.mxu0 0.0
  %4677 = vmatpush1.msra.mxu0 0.0
  %4678 = vmatprep.subr.mxu0 0.0
  %4679 = vmatpush1.msra.mxu0 0.0
  %4680 = vmatprep.subr.mxu0 0.0
  %4681 = vmatpush1.msra.mxu0 0.0
  %4682 = vmatprep.subr.mxu0 0.0
  %4683 = vmatpush1.msra.mxu0 0.0
  %4684 = vmatprep.subr.mxu0 0.0
  %4685 = vmatpush1.msra.mxu0 0.0
  %4686 = vmatprep.subr.mxu0 0.0
  %4687 = vmatpush1.msra.mxu0 0.0
  %4688 = vmatprep.subr.mxu0 0.0
  %4689 = vmatpush1.msra.mxu0 0.0
  %4690 = vmatprep.subr.mxu0 0.0
  %4691 = vmatpush1.msra.mxu0 0.0
  %4692 = vmatprep.subr.mxu0 0.0
  %4693 = vmatpush1.msra.mxu0 0.0
  %4694 = vmatprep.subr.mxu0 0.0
  %4695 = vmatpush1.msra.mxu0 0.0
  %4696 = vmatprep.subr.mxu0 0.0
  %4697 = vmatpush1.msra.mxu0 0.0
  %4698 = vmatprep.subr.mxu0 0.0
  %4699 = vmatpush1.msra.mxu0 0.0
  %4700 = vmatprep.subr.mxu0 0.0
  %4701 = vmatpush1.msra.mxu0 0.0
  %4702 = vmatprep.subr.mxu0 0.0
  %4703 = vmatpush1.msra.mxu0 0.0
  %4704 = vmatprep.subr.mxu0 0.0
  %4705 = vmatpush1.msra.mxu0 0.0
  %4706 = vmatprep.subr.mxu0 0.0
  %4707 = vmatpush1.msra.mxu0 0.0
  %4708 = vmatprep.subr.mxu0 0.0
  %4709 = vmatpush1.msra.mxu0 0.0
  %4710 = vmatprep.subr.mxu0 0.0
  %4711 = vmatpush1.msra.mxu0 0.0
  %4712 = vmatprep.subr.mxu0 0.0
  %4713 = vmatpush1.msra.mxu0 0.0
  %4714 = vmatprep.subr.mxu0 0.0
  %4715 = vmatpush1.msra.mxu0 0.0
  %4716 = vmatprep.mubr.f32.mxu0 0.0
  %v4717 = vand.u32 %v4378, 4294901760
  %v4718 = vsub.f32 %v4378, %v4717
  %v4719 = vand.u32 %v4718, 4294901760
  %4720 = vmatmul.mubr.f32.gmra.mrb[0].mxu0 %v4719
  %v4721 = vpop.f32.mrb[0].mxu0
  %v4722 = vadd.f32 %v4643, %v4721
  %v4723 = vpop.f32.mrb[0].mxu0
  %4724 = vdwg.mxu0
  %4725 = vmatprep.subr.mxu0 0.0
  %v4726 = vand.u32 %v30, 4294901760
  %v4727 = vsub.f32 %v30, %v4726
  %v4728 = vand.u32 %v4727, 4294901760
  %4729 = vmatpush1.msra.mxu0 %v4728
  %4730 = vmatprep.subr.mxu0 0.0
  %v4731 = vand.u32 %v31, 4294901760
  %v4732 = vsub.f32 %v31, %v4731
  %v4733 = vand.u32 %v4732, 4294901760
  %4734 = vmatpush1.msra.mxu0 %v4733
  %4735 = vmatprep.subr.mxu0 0.0
  %v4736 = vand.u32 %v32, 4294901760
  %v4737 = vsub.f32 %v32, %v4736
  %v4738 = vand.u32 %v4737, 4294901760
  %4739 = vmatpush1.msra.mxu0 %v4738
  %4740 = vmatprep.subr.mxu0 0.0
  %v4741 = vand.u32 %v33, 4294901760
  %v4742 = vsub.f32 %v33, %v4741
  %v4743 = vand.u32 %v4742, 4294901760
  %4744 = vmatpush1.msra.mxu0 %v4743
  %4745 = vmatprep.subr.mxu0 0.0
  %v4746 = vand.u32 %v34, 4294901760
  %v4747 = vsub.f32 %v34, %v4746
  %v4748 = vand.u32 %v4747, 4294901760
  %4749 = vmatpush1.msra.mxu0 %v4748
  %4750 = vmatprep.subr.mxu0 0.0
  %v4751 = vand.u32 %v35, 4294901760
  %v4752 = vsub.f32 %v35, %v4751
  %v4753 = vand.u32 %v4752, 4294901760
  %4754 = vmatpush1.msra.mxu0 %v4753
  %4755 = vmatprep.subr.mxu0 0.0
  %4756 = vmatpush1.msra.mxu0 0.0
  %4757 = vmatprep.subr.mxu0 0.0
  %4758 = vmatpush1.msra.mxu0 0.0
  %4759 = vmatprep.subr.mxu0 0.0
  %4760 = vmatpush1.msra.mxu0 0.0
  %4761 = vmatprep.subr.mxu0 0.0
  %4762 = vmatpush1.msra.mxu0 0.0
  %4763 = vmatprep.subr.mxu0 0.0
  %4764 = vmatpush1.msra.mxu0 0.0
  %4765 = vmatprep.subr.mxu0 0.0
  %4766 = vmatpush1.msra.mxu0 0.0
  %4767 = vmatprep.subr.mxu0 0.0
  %4768 = vmatpush1.msra.mxu0 0.0
  %4769 = vmatprep.subr.mxu0 0.0
  %4770 = vmatpush1.msra.mxu0 0.0
  %4771 = vmatprep.subr.mxu0 0.0
  %4772 = vmatpush1.msra.mxu0 0.0
  %4773 = vmatprep.subr.mxu0 0.0
  %4774 = vmatpush1.msra.mxu0 0.0
  %4775 = vmatprep.subr.mxu0 0.0
  %4776 = vmatpush1.msra.mxu0 0.0
  %4777 = vmatprep.subr.mxu0 0.0
  %4778 = vmatpush1.msra.mxu0 0.0
  %4779 = vmatprep.subr.mxu0 0.0
  %4780 = vmatpush1.msra.mxu0 0.0
  %4781 = vmatprep.subr.mxu0 0.0
  %4782 = vmatpush1.msra.mxu0 0.0
  %4783 = vmatprep.subr.mxu0 0.0
  %4784 = vmatpush1.msra.mxu0 0.0
  %4785 = vmatprep.subr.mxu0 0.0
  %4786 = vmatpush1.msra.mxu0 0.0
  %4787 = vmatprep.subr.mxu0 0.0
  %4788 = vmatpush1.msra.mxu0 0.0
  %4789 = vmatprep.subr.mxu0 0.0
  %4790 = vmatpush1.msra.mxu0 0.0
  %4791 = vmatprep.subr.mxu0 0.0
  %4792 = vmatpush1.msra.mxu0 0.0
  %4793 = vmatprep.subr.mxu0 0.0
  %4794 = vmatpush1.msra.mxu0 0.0
  %4795 = vmatprep.subr.mxu0 0.0
  %4796 = vmatpush1.msra.mxu0 0.0
  %4797 = vmatprep.subr.mxu0 0.0
  %4798 = vmatpush1.msra.mxu0 0.0
  %4799 = vmatprep.subr.mxu0 0.0
  %4800 = vmatpush1.msra.mxu0 0.0
  %4801 = vmatprep.subr.mxu0 0.0
  %4802 = vmatpush1.msra.mxu0 0.0
  %4803 = vmatprep.subr.mxu0 0.0
  %4804 = vmatpush1.msra.mxu0 0.0
  %4805 = vmatprep.subr.mxu0 0.0
  %4806 = vmatpush1.msra.mxu0 0.0
  %4807 = vmatprep.mubr.f32.mxu0 0.0
  %v4808 = vand.u32 %v4378, 4294901760
  %4809 = vmatmul.mubr.f32.gmra.mrb[0].mxu0 %v4808
  %v4810 = vpop.f32.mrb[0].mxu0
  %v4811 = vadd.f32 %v4722, %v4810
  %v4812 = vpop.f32.mrb[0].mxu0
  %4813 = vdwg.mxu0
  %4814 = vmatprep.subr.mxu0 0.0
  %v4815 = vand.u32 %v30, 4294901760
  %4816 = vmatpush1.msra.mxu0 %v4815
  %4817 = vmatprep.subr.mxu0 0.0
  %v4818 = vand.u32 %v31, 4294901760
  %4819 = vmatpush1.msra.mxu0 %v4818
  %4820 = vmatprep.subr.mxu0 0.0
  %v4821 = vand.u32 %v32, 4294901760
  %4822 = vmatpush1.msra.mxu0 %v4821
  %4823 = vmatprep.subr.mxu0 0.0
  %v4824 = vand.u32 %v33, 4294901760
  %4825 = vmatpush1.msra.mxu0 %v4824
  %4826 = vmatprep.subr.mxu0 0.0
  %v4827 = vand.u32 %v34, 4294901760
  %4828 = vmatpush1.msra.mxu0 %v4827
  %4829 = vmatprep.subr.mxu0 0.0
  %v4830 = vand.u32 %v35, 4294901760
  %4831 = vmatpush1.msra.mxu0 %v4830
  %4832 = vmatprep.subr.mxu0 0.0
  %4833 = vmatpush1.msra.mxu0 0.0
  %4834 = vmatprep.subr.mxu0 0.0
  %4835 = vmatpush1.msra.mxu0 0.0
  %4836 = vmatprep.subr.mxu0 0.0
  %4837 = vmatpush1.msra.mxu0 0.0
  %4838 = vmatprep.subr.mxu0 0.0
  %4839 = vmatpush1.msra.mxu0 0.0
  %4840 = vmatprep.subr.mxu0 0.0
  %4841 = vmatpush1.msra.mxu0 0.0
  %4842 = vmatprep.subr.mxu0 0.0
  %4843 = vmatpush1.msra.mxu0 0.0
  %4844 = vmatprep.subr.mxu0 0.0
  %4845 = vmatpush1.msra.mxu0 0.0
  %4846 = vmatprep.subr.mxu0 0.0
  %4847 = vmatpush1.msra.mxu0 0.0
  %4848 = vmatprep.subr.mxu0 0.0
  %4849 = vmatpush1.msra.mxu0 0.0
  %4850 = vmatprep.subr.mxu0 0.0
  %4851 = vmatpush1.msra.mxu0 0.0
  %4852 = vmatprep.subr.mxu0 0.0
  %4853 = vmatpush1.msra.mxu0 0.0
  %4854 = vmatprep.subr.mxu0 0.0
  %4855 = vmatpush1.msra.mxu0 0.0
  %4856 = vmatprep.subr.mxu0 0.0
  %4857 = vmatpush1.msra.mxu0 0.0
  %4858 = vmatprep.subr.mxu0 0.0
  %4859 = vmatpush1.msra.mxu0 0.0
  %4860 = vmatprep.subr.mxu0 0.0
  %4861 = vmatpush1.msra.mxu0 0.0
  %4862 = vmatprep.subr.mxu0 0.0
  %4863 = vmatpush1.msra.mxu0 0.0
  %4864 = vmatprep.subr.mxu0 0.0
  %4865 = vmatpush1.msra.mxu0 0.0
  %4866 = vmatprep.subr.mxu0 0.0
  %4867 = vmatpush1.msra.mxu0 0.0
  %4868 = vmatprep.subr.mxu0 0.0
  %4869 = vmatpush1.msra.mxu0 0.0
  %4870 = vmatprep.subr.mxu0 0.0
  %4871 = vmatpush1.msra.mxu0 0.0
  %4872 = vmatprep.subr.mxu0 0.0
  %4873 = vmatpush1.msra.mxu0 0.0
  %4874 = vmatprep.subr.mxu0 0.0
  %4875 = vmatpush1.msra.mxu0 0.0
  %4876 = vmatprep.subr.mxu0 0.0
  %4877 = vmatpush1.msra.mxu0 0.0
  %4878 = vmatprep.subr.mxu0 0.0
  %4879 = vmatpush1.msra.mxu0 0.0
  %4880 = vmatprep.subr.mxu0 0.0
  %4881 = vmatpush1.msra.mxu0 0.0
  %4882 = vmatprep.subr.mxu0 0.0
  %4883 = vmatpush1.msra.mxu0 0.0
  %4884 = vmatprep.mubr.f32.mxu0 0.0
  %v4885 = vand.u32 %v4378, 4294901760
  %4886 = vmatmul.mubr.f32.gmra.mrb[0].mxu0 %v4885
  %v4887 = vpop.f32.mrb[0].mxu0
  %v4888 = vadd.f32 %v4811, %v4887
  %v4889 = vpop.f32.mrb[0].mxu0
  %4890 = vdwg.mxu0
  %v4892 = vsel %vm36, %v4888, 0
  %4894 = vmatprep.subr.mxu0 0.0
  %v4895 = vand.u32 %v28, 4294901760
  %4896 = vmatpush1.msra.mxu0 %v4895
  %4897 = vmatprep.subr.mxu0 0.0
  %4898 = vmatpush1.msra.mxu0 0.0
  %4899 = vmatprep.subr.mxu0 0.0
  %4900 = vmatpush1.msra.mxu0 0.0
  %4901 = vmatprep.subr.mxu0 0.0
  %4902 = vmatpush1.msra.mxu0 0.0
  %4903 = vmatprep.subr.mxu0 0.0
  %4904 = vmatpush1.msra.mxu0 0.0
  %4905 = vmatprep.subr.mxu0 0.0
  %4906 = vmatpush1.msra.mxu0 0.0
  %4907 = vmatprep.subr.mxu0 0.0
  %4908 = vmatpush1.msra.mxu0 0.0
  %4909 = vmatprep.subr.mxu0 0.0
  %4910 = vmatpush1.msra.mxu0 0.0
  %4911 = vmatprep.subr.mxu0 0.0
  %4912 = vmatpush1.msra.mxu0 0.0
  %4913 = vmatprep.subr.mxu0 0.0
  %4914 = vmatpush1.msra.mxu0 0.0
  %4915 = vmatprep.subr.mxu0 0.0
  %4916 = vmatpush1.msra.mxu0 0.0
  %4917 = vmatprep.subr.mxu0 0.0
  %4918 = vmatpush1.msra.mxu0 0.0
  %4919 = vmatprep.subr.mxu0 0.0
  %4920 = vmatpush1.msra.mxu0 0.0
  %4921 = vmatprep.subr.mxu0 0.0
  %4922 = vmatpush1.msra.mxu0 0.0
  %4923 = vmatprep.subr.mxu0 0.0
  %4924 = vmatpush1.msra.mxu0 0.0
  %4925 = vmatprep.subr.mxu0 0.0
  %4926 = vmatpush1.msra.mxu0 0.0
  %4927 = vmatprep.subr.mxu0 0.0
  %4928 = vmatpush1.msra.mxu0 0.0
  %4929 = vmatprep.subr.mxu0 0.0
  %4930 = vmatpush1.msra.mxu0 0.0
  %4931 = vmatprep.subr.mxu0 0.0
  %4932 = vmatpush1.msra.mxu0 0.0
  %4933 = vmatprep.subr.mxu0 0.0
  %4934 = vmatpush1.msra.mxu0 0.0
  %4935 = vmatprep.subr.mxu0 0.0
  %4936 = vmatpush1.msra.mxu0 0.0
  %4937 = vmatprep.subr.mxu0 0.0
  %4938 = vmatpush1.msra.mxu0 0.0
  %4939 = vmatprep.subr.mxu0 0.0
  %4940 = vmatpush1.msra.mxu0 0.0
  %4941 = vmatprep.subr.mxu0 0.0
  %4942 = vmatpush1.msra.mxu0 0.0
  %4943 = vmatprep.subr.mxu0 0.0
  %4944 = vmatpush1.msra.mxu0 0.0
  %4945 = vmatprep.subr.mxu0 0.0
  %4946 = vmatpush1.msra.mxu0 0.0
  %4947 = vmatprep.subr.mxu0 0.0
  %4948 = vmatpush1.msra.mxu0 0.0
  %4949 = vmatprep.subr.mxu0 0.0
  %4950 = vmatpush1.msra.mxu0 0.0
  %4951 = vmatprep.subr.mxu0 0.0
  %4952 = vmatpush1.msra.mxu0 0.0
  %4953 = vmatprep.subr.mxu0 0.0
  %4954 = vmatpush1.msra.mxu0 0.0
  %4955 = vmatprep.subr.mxu0 0.0
  %4956 = vmatpush1.msra.mxu0 0.0
  %4957 = vmatprep.subr.mxu0 0.0
  %4958 = vmatpush1.msra.mxu0 0.0
  %4959 = vmatprep.mubr.f32.mxu0 0.0
  %v4960 = vand.u32 %v4892, 4294901760
  %v4961 = vsub.f32 %v4892, %v4960
  %v4962 = vand.u32 %v4961, 4294901760
  %v4963 = vsub.f32 %v4961, %v4962
  %v4964 = vand.u32 %v4963, 4294901760
  %4965 = vmatmul.mubr.f32.gmra.mrb[0].mxu0 %v4964
  %v4966 = vpop.f32.mrb[0].mxu0
  %v4967 = vadd.f32 0.0, %v4966
  %v4968 = vpop.f32.mrb[0].mxu0
  %4969 = vdwg.mxu0
  %4970 = vmatprep.subr.mxu0 0.0
  %v4971 = vand.u32 %v28, 4294901760
  %v4972 = vsub.f32 %v28, %v4971
  %v4973 = vand.u32 %v4972, 4294901760
  %v4974 = vsub.f32 %v4972, %v4973
  %v4975 = vand.u32 %v4974, 4294901760
  %4976 = vmatpush1.msra.mxu0 %v4975
  %4977 = vmatprep.subr.mxu0 0.0
  %4978 = vmatpush1.msra.mxu0 0.0
  %4979 = vmatprep.subr.mxu0 0.0
  %4980 = vmatpush1.msra.mxu0 0.0
  %4981 = vmatprep.subr.mxu0 0.0
  %4982 = vmatpush1.msra.mxu0 0.0
  %4983 = vmatprep.subr.mxu0 0.0
  %4984 = vmatpush1.msra.mxu0 0.0
  %4985 = vmatprep.subr.mxu0 0.0
  %4986 = vmatpush1.msra.mxu0 0.0
  %4987 = vmatprep.subr.mxu0 0.0
  %4988 = vmatpush1.msra.mxu0 0.0
  %4989 = vmatprep.subr.mxu0 0.0
  %4990 = vmatpush1.msra.mxu0 0.0
  %4991 = vmatprep.subr.mxu0 0.0
  %4992 = vmatpush1.msra.mxu0 0.0
  %4993 = vmatprep.subr.mxu0 0.0
  %4994 = vmatpush1.msra.mxu0 0.0
  %4995 = vmatprep.subr.mxu0 0.0
  %4996 = vmatpush1.msra.mxu0 0.0
  %4997 = vmatprep.subr.mxu0 0.0
  %4998 = vmatpush1.msra.mxu0 0.0
  %4999 = vmatprep.subr.mxu0 0.0
  %5000 = vmatpush1.msra.mxu0 0.0
  %5001 = vmatprep.subr.mxu0 0.0
  %5002 = vmatpush1.msra.mxu0 0.0
  %5003 = vmatprep.subr.mxu0 0.0
  %5004 = vmatpush1.msra.mxu0 0.0
  %5005 = vmatprep.subr.mxu0 0.0
  %5006 = vmatpush1.msra.mxu0 0.0
  %5007 = vmatprep.subr.mxu0 0.0
  %5008 = vmatpush1.msra.mxu0 0.0
  %5009 = vmatprep.subr.mxu0 0.0
  %5010 = vmatpush1.msra.mxu0 0.0
  %5011 = vmatprep.subr.mxu0 0.0
  %5012 = vmatpush1.msra.mxu0 0.0
  %5013 = vmatprep.subr.mxu0 0.0
  %5014 = vmatpush1.msra.mxu0 0.0
  %5015 = vmatprep.subr.mxu0 0.0
  %5016 = vmatpush1.msra.mxu0 0.0
  %5017 = vmatprep.subr.mxu0 0.0
  %5018 = vmatpush1.msra.mxu0 0.0
  %5019 = vmatprep.subr.mxu0 0.0
  %5020 = vmatpush1.msra.mxu0 0.0
  %5021 = vmatprep.subr.mxu0 0.0
  %5022 = vmatpush1.msra.mxu0 0.0
  %5023 = vmatprep.subr.mxu0 0.0
  %5024 = vmatpush1.msra.mxu0 0.0
  %5025 = vmatprep.subr.mxu0 0.0
  %5026 = vmatpush1.msra.mxu0 0.0
  %5027 = vmatprep.subr.mxu0 0.0
  %5028 = vmatpush1.msra.mxu0 0.0
  %5029 = vmatprep.subr.mxu0 0.0
  %5030 = vmatpush1.msra.mxu0 0.0
  %5031 = vmatprep.subr.mxu0 0.0
  %5032 = vmatpush1.msra.mxu0 0.0
  %5033 = vmatprep.subr.mxu0 0.0
  %5034 = vmatpush1.msra.mxu0 0.0
  %5035 = vmatprep.subr.mxu0 0.0
  %5036 = vmatpush1.msra.mxu0 0.0
  %5037 = vmatprep.subr.mxu0 0.0
  %5038 = vmatpush1.msra.mxu0 0.0
  %5039 = vmatprep.mubr.f32.mxu0 0.0
  %v5040 = vand.u32 %v4892, 4294901760
  %5041 = vmatmul.mubr.f32.gmra.mrb[0].mxu0 %v5040
  %v5042 = vpop.f32.mrb[0].mxu0
  %v5043 = vadd.f32 %v4967, %v5042
  %v5044 = vpop.f32.mrb[0].mxu0
  %5045 = vdwg.mxu0
  %5046 = vmatprep.subr.mxu0 0.0
  %v5047 = vand.u32 %v28, 4294901760
  %v5048 = vsub.f32 %v28, %v5047
  %5049 = vmatpush1.msra.mxu0 %v5048
  %5050 = vmatprep.subr.mxu0 0.0
  %5051 = vmatpush1.msra.mxu0 0.0
  %5052 = vmatprep.subr.mxu0 0.0
  %5053 = vmatpush1.msra.mxu0 0.0
  %5054 = vmatprep.subr.mxu0 0.0
  %5055 = vmatpush1.msra.mxu0 0.0
  %5056 = vmatprep.subr.mxu0 0.0
  %5057 = vmatpush1.msra.mxu0 0.0
  %5058 = vmatprep.subr.mxu0 0.0
  %5059 = vmatpush1.msra.mxu0 0.0
  %5060 = vmatprep.subr.mxu0 0.0
  %5061 = vmatpush1.msra.mxu0 0.0
  %5062 = vmatprep.subr.mxu0 0.0
  %5063 = vmatpush1.msra.mxu0 0.0
  %5064 = vmatprep.subr.mxu0 0.0
  %5065 = vmatpush1.msra.mxu0 0.0
  %5066 = vmatprep.subr.mxu0 0.0
  %5067 = vmatpush1.msra.mxu0 0.0
  %5068 = vmatprep.subr.mxu0 0.0
  %5069 = vmatpush1.msra.mxu0 0.0
  %5070 = vmatprep.subr.mxu0 0.0
  %5071 = vmatpush1.msra.mxu0 0.0
  %5072 = vmatprep.subr.mxu0 0.0
  %5073 = vmatpush1.msra.mxu0 0.0
  %5074 = vmatprep.subr.mxu0 0.0
  %5075 = vmatpush1.msra.mxu0 0.0
  %5076 = vmatprep.subr.mxu0 0.0
  %5077 = vmatpush1.msra.mxu0 0.0
  %5078 = vmatprep.subr.mxu0 0.0
  %5079 = vmatpush1.msra.mxu0 0.0
  %5080 = vmatprep.subr.mxu0 0.0
  %5081 = vmatpush1.msra.mxu0 0.0
  %5082 = vmatprep.subr.mxu0 0.0
  %5083 = vmatpush1.msra.mxu0 0.0
  %5084 = vmatprep.subr.mxu0 0.0
  %5085 = vmatpush1.msra.mxu0 0.0
  %5086 = vmatprep.subr.mxu0 0.0
  %5087 = vmatpush1.msra.mxu0 0.0
  %5088 = vmatprep.subr.mxu0 0.0
  %5089 = vmatpush1.msra.mxu0 0.0
  %5090 = vmatprep.subr.mxu0 0.0
  %5091 = vmatpush1.msra.mxu0 0.0
  %5092 = vmatprep.subr.mxu0 0.0
  %5093 = vmatpush1.msra.mxu0 0.0
  %5094 = vmatprep.subr.mxu0 0.0
  %5095 = vmatpush1.msra.mxu0 0.0
  %5096 = vmatprep.subr.mxu0 0.0
  %5097 = vmatpush1.msra.mxu0 0.0
  %5098 = vmatprep.subr.mxu0 0.0
  %5099 = vmatpush1.msra.mxu0 0.0
  %5100 = vmatprep.subr.mxu0 0.0
  %5101 = vmatpush1.msra.mxu0 0.0
  %5102 = vmatprep.subr.mxu0 0.0
  %5103 = vmatpush1.msra.mxu0 0.0
  %5104 = vmatprep.subr.mxu0 0.0
  %5105 = vmatpush1.msra.mxu0 0.0
  %5106 = vmatprep.subr.mxu0 0.0
  %5107 = vmatpush1.msra.mxu0 0.0
  %5108 = vmatprep.subr.mxu0 0.0
  %5109 = vmatpush1.msra.mxu0 0.0
  %5110 = vmatprep.subr.mxu0 0.0
  %5111 = vmatpush1.msra.mxu0 0.0
  %5112 = vmatprep.mubr.f32.mxu0 0.0
  %v5113 = vand.u32 %v4892, 4294901760
  %v5114 = vsub.f32 %v4892, %v5113
  %5115 = vmatmul.mubr.f32.gmra.mrb[0].mxu0 %v5114
  %v5116 = vpop.f32.mrb[0].mxu0
  %v5117 = vadd.f32 %v5043, %v5116
  %v5118 = vpop.f32.mrb[0].mxu0
  %5119 = vdwg.mxu0
  %5120 = vmatprep.subr.mxu0 0.0
  %v5121 = vand.u32 %v28, 4294901760
  %5122 = vmatpush1.msra.mxu0 %v5121
  %5123 = vmatprep.subr.mxu0 0.0
  %5124 = vmatpush1.msra.mxu0 0.0
  %5125 = vmatprep.subr.mxu0 0.0
  %5126 = vmatpush1.msra.mxu0 0.0
  %5127 = vmatprep.subr.mxu0 0.0
  %5128 = vmatpush1.msra.mxu0 0.0
  %5129 = vmatprep.subr.mxu0 0.0
  %5130 = vmatpush1.msra.mxu0 0.0
  %5131 = vmatprep.subr.mxu0 0.0
  %5132 = vmatpush1.msra.mxu0 0.0
  %5133 = vmatprep.subr.mxu0 0.0
  %5134 = vmatpush1.msra.mxu0 0.0
  %5135 = vmatprep.subr.mxu0 0.0
  %5136 = vmatpush1.msra.mxu0 0.0
  %5137 = vmatprep.subr.mxu0 0.0
  %5138 = vmatpush1.msra.mxu0 0.0
  %5139 = vmatprep.subr.mxu0 0.0
  %5140 = vmatpush1.msra.mxu0 0.0
  %5141 = vmatprep.subr.mxu0 0.0
  %5142 = vmatpush1.msra.mxu0 0.0
  %5143 = vmatprep.subr.mxu0 0.0
  %5144 = vmatpush1.msra.mxu0 0.0
  %5145 = vmatprep.subr.mxu0 0.0
  %5146 = vmatpush1.msra.mxu0 0.0
  %5147 = vmatprep.subr.mxu0 0.0
  %5148 = vmatpush1.msra.mxu0 0.0
  %5149 = vmatprep.subr.mxu0 0.0
  %5150 = vmatpush1.msra.mxu0 0.0
  %5151 = vmatprep.subr.mxu0 0.0
  %5152 = vmatpush1.msra.mxu0 0.0
  %5153 = vmatprep.subr.mxu0 0.0
  %5154 = vmatpush1.msra.mxu0 0.0
  %5155 = vmatprep.subr.mxu0 0.0
  %5156 = vmatpush1.msra.mxu0 0.0
  %5157 = vmatprep.subr.mxu0 0.0
  %5158 = vmatpush1.msra.mxu0 0.0
  %5159 = vmatprep.subr.mxu0 0.0
  %5160 = vmatpush1.msra.mxu0 0.0
  %5161 = vmatprep.subr.mxu0 0.0
  %5162 = vmatpush1.msra.mxu0 0.0
  %5163 = vmatprep.subr.mxu0 0.0
  %5164 = vmatpush1.msra.mxu0 0.0
  %5165 = vmatprep.subr.mxu0 0.0
  %5166 = vmatpush1.msra.mxu0 0.0
  %5167 = vmatprep.subr.mxu0 0.0
  %5168 = vmatpush1.msra.mxu0 0.0
  %5169 = vmatprep.subr.mxu0 0.0
  %5170 = vmatpush1.msra.mxu0 0.0
  %5171 = vmatprep.subr.mxu0 0.0
  %5172 = vmatpush1.msra.mxu0 0.0
  %5173 = vmatprep.subr.mxu0 0.0
  %5174 = vmatpush1.msra.mxu0 0.0
  %5175 = vmatprep.subr.mxu0 0.0
  %5176 = vmatpush1.msra.mxu0 0.0
  %5177 = vmatprep.subr.mxu0 0.0
  %5178 = vmatpush1.msra.mxu0 0.0
  %5179 = vmatprep.subr.mxu0 0.0
  %5180 = vmatpush1.msra.mxu0 0.0
  %5181 = vmatprep.subr.mxu0 0.0
  %5182 = vmatpush1.msra.mxu0 0.0
  %5183 = vmatprep.subr.mxu0 0.0
  %5184 = vmatpush1.msra.mxu0 0.0
  %5185 = vmatprep.mubr.f32.mxu0 0.0
  %v5186 = vand.u32 %v4892, 4294901760
  %v5187 = vsub.f32 %v4892, %v5186
  %v5188 = vand.u32 %v5187, 4294901760
  %5189 = vmatmul.mubr.f32.gmra.mrb[0].mxu0 %v5188
  %v5190 = vpop.f32.mrb[0].mxu0
  %v5191 = vadd.f32 %v5117, %v5190
  %v5192 = vpop.f32.mrb[0].mxu0
  %5193 = vdwg.mxu0
  %5194 = vmatprep.subr.mxu0 0.0
  %v5195 = vand.u32 %v28, 4294901760
  %v5196 = vsub.f32 %v28, %v5195
  %v5197 = vand.u32 %v5196, 4294901760
  %5198 = vmatpush1.msra.mxu0 %v5197
  %5199 = vmatprep.subr.mxu0 0.0
  %5200 = vmatpush1.msra.mxu0 0.0
  %5201 = vmatprep.subr.mxu0 0.0
  %5202 = vmatpush1.msra.mxu0 0.0
  %5203 = vmatprep.subr.mxu0 0.0
  %5204 = vmatpush1.msra.mxu0 0.0
  %5205 = vmatprep.subr.mxu0 0.0
  %5206 = vmatpush1.msra.mxu0 0.0
  %5207 = vmatprep.subr.mxu0 0.0
  %5208 = vmatpush1.msra.mxu0 0.0
  %5209 = vmatprep.subr.mxu0 0.0
  %5210 = vmatpush1.msra.mxu0 0.0
  %5211 = vmatprep.subr.mxu0 0.0
  %5212 = vmatpush1.msra.mxu0 0.0
  %5213 = vmatprep.subr.mxu0 0.0
  %5214 = vmatpush1.msra.mxu0 0.0
  %5215 = vmatprep.subr.mxu0 0.0
  %5216 = vmatpush1.msra.mxu0 0.0
  %5217 = vmatprep.subr.mxu0 0.0
  %5218 = vmatpush1.msra.mxu0 0.0
  %5219 = vmatprep.subr.mxu0 0.0
  %5220 = vmatpush1.msra.mxu0 0.0
  %5221 = vmatprep.subr.mxu0 0.0
  %5222 = vmatpush1.msra.mxu0 0.0
  %5223 = vmatprep.subr.mxu0 0.0
  %5224 = vmatpush1.msra.mxu0 0.0
  %5225 = vmatprep.subr.mxu0 0.0
  %5226 = vmatpush1.msra.mxu0 0.0
  %5227 = vmatprep.subr.mxu0 0.0
  %5228 = vmatpush1.msra.mxu0 0.0
  %5229 = vmatprep.subr.mxu0 0.0
  %5230 = vmatpush1.msra.mxu0 0.0
  %5231 = vmatprep.subr.mxu0 0.0
  %5232 = vmatpush1.msra.mxu0 0.0
  %5233 = vmatprep.subr.mxu0 0.0
  %5234 = vmatpush1.msra.mxu0 0.0
  %5235 = vmatprep.subr.mxu0 0.0
  %5236 = vmatpush1.msra.mxu0 0.0
  %5237 = vmatprep.subr.mxu0 0.0
  %5238 = vmatpush1.msra.mxu0 0.0
  %5239 = vmatprep.subr.mxu0 0.0
  %5240 = vmatpush1.msra.mxu0 0.0
  %5241 = vmatprep.subr.mxu0 0.0
  %5242 = vmatpush1.msra.mxu0 0.0
  %5243 = vmatprep.subr.mxu0 0.0
  %5244 = vmatpush1.msra.mxu0 0.0
  %5245 = vmatprep.subr.mxu0 0.0
  %5246 = vmatpush1.msra.mxu0 0.0
  %5247 = vmatprep.subr.mxu0 0.0
  %5248 = vmatpush1.msra.mxu0 0.0
  %5249 = vmatprep.subr.mxu0 0.0
  %5250 = vmatpush1.msra.mxu0 0.0
  %5251 = vmatprep.subr.mxu0 0.0
  %5252 = vmatpush1.msra.mxu0 0.0
  %5253 = vmatprep.subr.mxu0 0.0
  %5254 = vmatpush1.msra.mxu0 0.0
  %5255 = vmatprep.subr.mxu0 0.0
  %5256 = vmatpush1.msra.mxu0 0.0
  %5257 = vmatprep.subr.mxu0 0.0
  %5258 = vmatpush1.msra.mxu0 0.0
  %5259 = vmatprep.subr.mxu0 0.0
  %5260 = vmatpush1.msra.mxu0 0.0
  %5261 = vmatprep.mubr.f32.mxu0 0.0
  %v5262 = vand.u32 %v4892, 4294901760
  %5263 = vmatmul.mubr.f32.gmra.mrb[0].mxu0 %v5262
  %v5264 = vpop.f32.mrb[0].mxu0
  %v5265 = vadd.f32 %v5191, %v5264
  %v5266 = vpop.f32.mrb[0].mxu0
  %5267 = vdwg.mxu0
  %5268 = vmatprep.subr.mxu0 0.0
  %v5269 = vand.u32 %v28, 4294901760
  %5270 = vmatpush1.msra.mxu0 %v5269
  %5271 = vmatprep.subr.mxu0 0.0
  %5272 = vmatpush1.msra.mxu0 0.0
  %5273 = vmatprep.subr.mxu0 0.0
  %5274 = vmatpush1.msra.mxu0 0.0
  %5275 = vmatprep.subr.mxu0 0.0
  %5276 = vmatpush1.msra.mxu0 0.0
  %5277 = vmatprep.subr.mxu0 0.0
  %5278 = vmatpush1.msra.mxu0 0.0
  %5279 = vmatprep.subr.mxu0 0.0
  %5280 = vmatpush1.msra.mxu0 0.0
  %5281 = vmatprep.subr.mxu0 0.0
  %5282 = vmatpush1.msra.mxu0 0.0
  %5283 = vmatprep.subr.mxu0 0.0
  %5284 = vmatpush1.msra.mxu0 0.0
  %5285 = vmatprep.subr.mxu0 0.0
  %5286 = vmatpush1.msra.mxu0 0.0
  %5287 = vmatprep.subr.mxu0 0.0
  %5288 = vmatpush1.msra.mxu0 0.0
  %5289 = vmatprep.subr.mxu0 0.0
  %5290 = vmatpush1.msra.mxu0 0.0
  %5291 = vmatprep.subr.mxu0 0.0
  %5292 = vmatpush1.msra.mxu0 0.0
  %5293 = vmatprep.subr.mxu0 0.0
  %5294 = vmatpush1.msra.mxu0 0.0
  %5295 = vmatprep.subr.mxu0 0.0
  %5296 = vmatpush1.msra.mxu0 0.0
  %5297 = vmatprep.subr.mxu0 0.0
  %5298 = vmatpush1.msra.mxu0 0.0
  %5299 = vmatprep.subr.mxu0 0.0
  %5300 = vmatpush1.msra.mxu0 0.0
  %5301 = vmatprep.subr.mxu0 0.0
  %5302 = vmatpush1.msra.mxu0 0.0
  %5303 = vmatprep.subr.mxu0 0.0
  %5304 = vmatpush1.msra.mxu0 0.0
  %5305 = vmatprep.subr.mxu0 0.0
  %5306 = vmatpush1.msra.mxu0 0.0
  %5307 = vmatprep.subr.mxu0 0.0
  %5308 = vmatpush1.msra.mxu0 0.0
  %5309 = vmatprep.subr.mxu0 0.0
  %5310 = vmatpush1.msra.mxu0 0.0
  %5311 = vmatprep.subr.mxu0 0.0
  %5312 = vmatpush1.msra.mxu0 0.0
  %5313 = vmatprep.subr.mxu0 0.0
  %5314 = vmatpush1.msra.mxu0 0.0
  %5315 = vmatprep.subr.mxu0 0.0
  %5316 = vmatpush1.msra.mxu0 0.0
  %5317 = vmatprep.subr.mxu0 0.0
  %5318 = vmatpush1.msra.mxu0 0.0
  %5319 = vmatprep.subr.mxu0 0.0
  %5320 = vmatpush1.msra.mxu0 0.0
  %5321 = vmatprep.subr.mxu0 0.0
  %5322 = vmatpush1.msra.mxu0 0.0
  %5323 = vmatprep.subr.mxu0 0.0
  %5324 = vmatpush1.msra.mxu0 0.0
  %5325 = vmatprep.subr.mxu0 0.0
  %5326 = vmatpush1.msra.mxu0 0.0
  %5327 = vmatprep.subr.mxu0 0.0
  %5328 = vmatpush1.msra.mxu0 0.0
  %5329 = vmatprep.subr.mxu0 0.0
  %5330 = vmatpush1.msra.mxu0 0.0
  %5331 = vmatprep.subr.mxu0 0.0
  %5332 = vmatpush1.msra.mxu0 0.0
  %5333 = vmatprep.mubr.f32.mxu0 0.0
  %v5334 = vand.u32 %v4892, 4294901760
  %5335 = vmatmul.mubr.f32.gmra.mrb[0].mxu0 %v5334
  %v5336 = vpop.f32.mrb[0].mxu0
  %v5337 = vadd.f32 %v5265, %v5336
  %v5338 = vpop.f32.mrb[0].mxu0
  %5339 = vdwg.mxu0
  %s5340 = scalar_lea.vmem %s1, 20
  %v5341 = vld [vmem:[%s5340] sm:$0xf]
  %5342 = vset.pattern.permute.xlu0 0
  %5343 = vperm.xlu0 %5342, %v5341
  %v5344 = vpop.permute.xlu0 %5343
  %vm5345 = vcmp.eq.s32.totalorder %v490, %v5344
  %v5346 = vsel %vm5345, %v5337, 0.0
  %v5348 = vsel %vm496, %v5346, 0
  %5350 = vmatprep.subr.mxu0 0.0
  %v5351 = vand.u32 %v30, 4294901760
  %5352 = vmatpush1.msra.mxu0 %v5351
  %5353 = vmatprep.subr.mxu0 0.0
  %v5354 = vand.u32 %v31, 4294901760
  %5355 = vmatpush1.msra.mxu0 %v5354
  %5356 = vmatprep.subr.mxu0 0.0
  %v5357 = vand.u32 %v32, 4294901760
  %5358 = vmatpush1.msra.mxu0 %v5357
  %5359 = vmatprep.subr.mxu0 0.0
  %v5360 = vand.u32 %v33, 4294901760
  %5361 = vmatpush1.msra.mxu0 %v5360
  %5362 = vmatprep.subr.mxu0 0.0
  %v5363 = vand.u32 %v34, 4294901760
  %5364 = vmatpush1.msra.mxu0 %v5363
  %5365 = vmatprep.subr.mxu0 0.0
  %v5366 = vand.u32 %v35, 4294901760
  %5367 = vmatpush1.msra.mxu0 %v5366
  %5368 = vmatprep.subr.mxu0 0.0
  %5369 = vmatpush1.msra.mxu0 0.0
  %5370 = vmatprep.subr.mxu0 0.0
  %5371 = vmatpush1.msra.mxu0 0.0
  %5372 = vmatprep.subr.mxu0 0.0
  %5373 = vmatpush1.msra.mxu0 0.0
  %5374 = vmatprep.subr.mxu0 0.0
  %5375 = vmatpush1.msra.mxu0 0.0
  %5376 = vmatprep.subr.mxu0 0.0
  %5377 = vmatpush1.msra.mxu0 0.0
  %5378 = vmatprep.subr.mxu0 0.0
  %5379 = vmatpush1.msra.mxu0 0.0
  %5380 = vmatprep.subr.mxu0 0.0
  %5381 = vmatpush1.msra.mxu0 0.0
  %5382 = vmatprep.subr.mxu0 0.0
  %5383 = vmatpush1.msra.mxu0 0.0
  %5384 = vmatprep.subr.mxu0 0.0
  %5385 = vmatpush1.msra.mxu0 0.0
  %5386 = vmatprep.subr.mxu0 0.0
  %5387 = vmatpush1.msra.mxu0 0.0
  %5388 = vmatprep.subr.mxu0 0.0
  %5389 = vmatpush1.msra.mxu0 0.0
  %5390 = vmatprep.subr.mxu0 0.0
  %5391 = vmatpush1.msra.mxu0 0.0
  %5392 = vmatprep.subr.mxu0 0.0
  %5393 = vmatpush1.msra.mxu0 0.0
  %5394 = vmatprep.subr.mxu0 0.0
  %5395 = vmatpush1.msra.mxu0 0.0
  %5396 = vmatprep.subr.mxu0 0.0
  %5397 = vmatpush1.msra.mxu0 0.0
  %5398 = vmatprep.subr.mxu0 0.0
  %5399 = vmatpush1.msra.mxu0 0.0
  %5400 = vmatprep.subr.mxu0 0.0
  %5401 = vmatpush1.msra.mxu0 0.0
  %5402 = vmatprep.subr.mxu0 0.0
  %5403 = vmatpush1.msra.mxu0 0.0
  %5404 = vmatprep.subr.mxu0 0.0
  %5405 = vmatpush1.msra.mxu0 0.0
  %5406 = vmatprep.subr.mxu0 0.0
  %5407 = vmatpush1.msra.mxu0 0.0
  %5408 = vmatprep.subr.mxu0 0.0
  %5409 = vmatpush1.msra.mxu0 0.0
  %5410 = vmatprep.subr.mxu0 0.0
  %5411 = vmatpush1.msra.mxu0 0.0
  %5412 = vmatprep.subr.mxu0 0.0
  %5413 = vmatpush1.msra.mxu0 0.0
  %5414 = vmatprep.subr.mxu0 0.0
  %5415 = vmatpush1.msra.mxu0 0.0
  %5416 = vmatprep.subr.mxu0 0.0
  %5417 = vmatpush1.msra.mxu0 0.0
  %5418 = vmatprep.subr.mxu0 0.0
  %5419 = vmatpush1.msra.mxu0 0.0
  %5420 = vmatprep.mubr.f32.mxu0 0.0
  %v5421 = vand.u32 %v5348, 4294901760
  %v5422 = vsub.f32 %v5348, %v5421
  %v5423 = vand.u32 %v5422, 4294901760
  %v5424 = vsub.f32 %v5422, %v5423
  %v5425 = vand.u32 %v5424, 4294901760
  %5426 = vmatmul.mubr.f32.gmra.mrb[0].mxu0 %v5425
  %v5427 = vpop.f32.mrb[0].mxu0
  %v5428 = vadd.f32 0.0, %v5427
  %v5429 = vpop.f32.mrb[0].mxu0
  %5430 = vdwg.mxu0
  %5431 = vmatprep.subr.mxu0 0.0
  %v5432 = vand.u32 %v30, 4294901760
  %v5433 = vsub.f32 %v30, %v5432
  %v5434 = vand.u32 %v5433, 4294901760
  %v5435 = vsub.f32 %v5433, %v5434
  %v5436 = vand.u32 %v5435, 4294901760
  %5437 = vmatpush1.msra.mxu0 %v5436
  %5438 = vmatprep.subr.mxu0 0.0
  %v5439 = vand.u32 %v31, 4294901760
  %v5440 = vsub.f32 %v31, %v5439
  %v5441 = vand.u32 %v5440, 4294901760
  %v5442 = vsub.f32 %v5440, %v5441
  %v5443 = vand.u32 %v5442, 4294901760
  %5444 = vmatpush1.msra.mxu0 %v5443
  %5445 = vmatprep.subr.mxu0 0.0
  %v5446 = vand.u32 %v32, 4294901760
  %v5447 = vsub.f32 %v32, %v5446
  %v5448 = vand.u32 %v5447, 4294901760
  %v5449 = vsub.f32 %v5447, %v5448
  %v5450 = vand.u32 %v5449, 4294901760
  %5451 = vmatpush1.msra.mxu0 %v5450
  %5452 = vmatprep.subr.mxu0 0.0
  %v5453 = vand.u32 %v33, 4294901760
  %v5454 = vsub.f32 %v33, %v5453
  %v5455 = vand.u32 %v5454, 4294901760
  %v5456 = vsub.f32 %v5454, %v5455
  %v5457 = vand.u32 %v5456, 4294901760
  %5458 = vmatpush1.msra.mxu0 %v5457
  %5459 = vmatprep.subr.mxu0 0.0
  %v5460 = vand.u32 %v34, 4294901760
  %v5461 = vsub.f32 %v34, %v5460
  %v5462 = vand.u32 %v5461, 4294901760
  %v5463 = vsub.f32 %v5461, %v5462
  %v5464 = vand.u32 %v5463, 4294901760
  %5465 = vmatpush1.msra.mxu0 %v5464
  %5466 = vmatprep.subr.mxu0 0.0
  %v5467 = vand.u32 %v35, 4294901760
  %v5468 = vsub.f32 %v35, %v5467
  %v5469 = vand.u32 %v5468, 4294901760
  %v5470 = vsub.f32 %v5468, %v5469
  %v5471 = vand.u32 %v5470, 4294901760
  %5472 = vmatpush1.msra.mxu0 %v5471
  %5473 = vmatprep.subr.mxu0 0.0
  %5474 = vmatpush1.msra.mxu0 0.0
  %5475 = vmatprep.subr.mxu0 0.0
  %5476 = vmatpush1.msra.mxu0 0.0
  %5477 = vmatprep.subr.mxu0 0.0
  %5478 = vmatpush1.msra.mxu0 0.0
  %5479 = vmatprep.subr.mxu0 0.0
  %5480 = vmatpush1.msra.mxu0 0.0
  %5481 = vmatprep.subr.mxu0 0.0
  %5482 = vmatpush1.msra.mxu0 0.0
  %5483 = vmatprep.subr.mxu0 0.0
  %5484 = vmatpush1.msra.mxu0 0.0
  %5485 = vmatprep.subr.mxu0 0.0
  %5486 = vmatpush1.msra.mxu0 0.0
  %5487 = vmatprep.subr.mxu0 0.0
  %5488 = vmatpush1.msra.mxu0 0.0
  %5489 = vmatprep.subr.mxu0 0.0
  %5490 = vmatpush1.msra.mxu0 0.0
  %5491 = vmatprep.subr.mxu0 0.0
  %5492 = vmatpush1.msra.mxu0 0.0
  %5493 = vmatprep.subr.mxu0 0.0
  %5494 = vmatpush1.msra.mxu0 0.0
  %5495 = vmatprep.subr.mxu0 0.0
  %5496 = vmatpush1.msra.mxu0 0.0
  %5497 = vmatprep.subr.mxu0 0.0
  %5498 = vmatpush1.msra.mxu0 0.0
  %5499 = vmatprep.subr.mxu0 0.0
  %5500 = vmatpush1.msra.mxu0 0.0
  %5501 = vmatprep.subr.mxu0 0.0
  %5502 = vmatpush1.msra.mxu0 0.0
  %5503 = vmatprep.subr.mxu0 0.0
  %5504 = vmatpush1.msra.mxu0 0.0
  %5505 = vmatprep.subr.mxu0 0.0
  %5506 = vmatpush1.msra.mxu0 0.0
  %5507 = vmatprep.subr.mxu0 0.0
  %5508 = vmatpush1.msra.mxu0 0.0
  %5509 = vmatprep.subr.mxu0 0.0
  %5510 = vmatpush1.msra.mxu0 0.0
  %5511 = vmatprep.subr.mxu0 0.0
  %5512 = vmatpush1.msra.mxu0 0.0
  %5513 = vmatprep.subr.mxu0 0.0
  %5514 = vmatpush1.msra.mxu0 0.0
  %5515 = vmatprep.subr.mxu0 0.0
  %5516 = vmatpush1.msra.mxu0 0.0
  %5517 = vmatprep.subr.mxu0 0.0
  %5518 = vmatpush1.msra.mxu0 0.0
  %5519 = vmatprep.subr.mxu0 0.0
  %5520 = vmatpush1.msra.mxu0 0.0
  %5521 = vmatprep.subr.mxu0 0.0
  %5522 = vmatpush1.msra.mxu0 0.0
  %5523 = vmatprep.subr.mxu0 0.0
  %5524 = vmatpush1.msra.mxu0 0.0
  %5525 = vmatprep.mubr.f32.mxu0 0.0
  %v5526 = vand.u32 %v5348, 4294901760
  %5527 = vmatmul.mubr.f32.gmra.mrb[0].mxu0 %v5526
  %v5528 = vpop.f32.mrb[0].mxu0
  %v5529 = vadd.f32 %v5428, %v5528
  %v5530 = vpop.f32.mrb[0].mxu0
  %5531 = vdwg.mxu0
  %5532 = vmatprep.subr.mxu0 0.0
  %v5533 = vand.u32 %v30, 4294901760
  %v5534 = vsub.f32 %v30, %v5533
  %5535 = vmatpush1.msra.mxu0 %v5534
  %5536 = vmatprep.subr.mxu0 0.0
  %v5537 = vand.u32 %v31, 4294901760
  %v5538 = vsub.f32 %v31, %v5537
  %5539 = vmatpush1.msra.mxu0 %v5538
  %5540 = vmatprep.subr.mxu0 0.0
  %v5541 = vand.u32 %v32, 4294901760
  %v5542 = vsub.f32 %v32, %v5541
  %5543 = vmatpush1.msra.mxu0 %v5542
  %5544 = vmatprep.subr.mxu0 0.0
  %v5545 = vand.u32 %v33, 4294901760
  %v5546 = vsub.f32 %v33, %v5545
  %5547 = vmatpush1.msra.mxu0 %v5546
  %5548 = vmatprep.subr.mxu0 0.0
  %v5549 = vand.u32 %v34, 4294901760
  %v5550 = vsub.f32 %v34, %v5549
  %5551 = vmatpush1.msra.mxu0 %v5550
  %5552 = vmatprep.subr.mxu0 0.0
  %v5553 = vand.u32 %v35, 4294901760
  %v5554 = vsub.f32 %v35, %v5553
  %5555 = vmatpush1.msra.mxu0 %v5554
  %5556 = vmatprep.subr.mxu0 0.0
  %5557 = vmatpush1.msra.mxu0 0.0
  %5558 = vmatprep.subr.mxu0 0.0
  %5559 = vmatpush1.msra.mxu0 0.0
  %5560 = vmatprep.subr.mxu0 0.0
  %5561 = vmatpush1.msra.mxu0 0.0
  %5562 = vmatprep.subr.mxu0 0.0
  %5563 = vmatpush1.msra.mxu0 0.0
  %5564 = vmatprep.subr.mxu0 0.0
  %5565 = vmatpush1.msra.mxu0 0.0
  %5566 = vmatprep.subr.mxu0 0.0
  %5567 = vmatpush1.msra.mxu0 0.0
  %5568 = vmatprep.subr.mxu0 0.0
  %5569 = vmatpush1.msra.mxu0 0.0
  %5570 = vmatprep.subr.mxu0 0.0
  %5571 = vmatpush1.msra.mxu0 0.0
  %5572 = vmatprep.subr.mxu0 0.0
  %5573 = vmatpush1.msra.mxu0 0.0
  %5574 = vmatprep.subr.mxu0 0.0
  %5575 = vmatpush1.msra.mxu0 0.0
  %5576 = vmatprep.subr.mxu0 0.0
  %5577 = vmatpush1.msra.mxu0 0.0
  %5578 = vmatprep.subr.mxu0 0.0
  %5579 = vmatpush1.msra.mxu0 0.0
  %5580 = vmatprep.subr.mxu0 0.0
  %5581 = vmatpush1.msra.mxu0 0.0
  %5582 = vmatprep.subr.mxu0 0.0
  %5583 = vmatpush1.msra.mxu0 0.0
  %5584 = vmatprep.subr.mxu0 0.0
  %5585 = vmatpush1.msra.mxu0 0.0
  %5586 = vmatprep.subr.mxu0 0.0
  %5587 = vmatpush1.msra.mxu0 0.0
  %5588 = vmatprep.subr.mxu0 0.0
  %5589 = vmatpush1.msra.mxu0 0.0
  %5590 = vmatprep.subr.mxu0 0.0
  %5591 = vmatpush1.msra.mxu0 0.0
  %5592 = vmatprep.subr.mxu0 0.0
  %5593 = vmatpush1.msra.mxu0 0.0
  %5594 = vmatprep.subr.mxu0 0.0
  %5595 = vmatpush1.msra.mxu0 0.0
  %5596 = vmatprep.subr.mxu0 0.0
  %5597 = vmatpush1.msra.mxu0 0.0
  %5598 = vmatprep.subr.mxu0 0.0
  %5599 = vmatpush1.msra.mxu0 0.0
  %5600 = vmatprep.subr.mxu0 0.0
  %5601 = vmatpush1.msra.mxu0 0.0
  %5602 = vmatprep.subr.mxu0 0.0
  %5603 = vmatpush1.msra.mxu0 0.0
  %5604 = vmatprep.subr.mxu0 0.0
  %5605 = vmatpush1.msra.mxu0 0.0
  %5606 = vmatprep.subr.mxu0 0.0
  %5607 = vmatpush1.msra.mxu0 0.0
  %5608 = vmatprep.mubr.f32.mxu0 0.0
  %v5609 = vand.u32 %v5348, 4294901760
  %v5610 = vsub.f32 %v5348, %v5609
  %5611 = vmatmul.mubr.f32.gmra.mrb[0].mxu0 %v5610
  %v5612 = vpop.f32.mrb[0].mxu0
  %v5613 = vadd.f32 %v5529, %v5612
  %v5614 = vpop.f32.mrb[0].mxu0
  %5615 = vdwg.mxu0
  %5616 = vmatprep.subr.mxu0 0.0
  %v5617 = vand.u32 %v30, 4294901760
  %5618 = vmatpush1.msra.mxu0 %v5617
  %5619 = vmatprep.subr.mxu0 0.0
  %v5620 = vand.u32 %v31, 4294901760
  %5621 = vmatpush1.msra.mxu0 %v5620
  %5622 = vmatprep.subr.mxu0 0.0
  %v5623 = vand.u32 %v32, 4294901760
  %5624 = vmatpush1.msra.mxu0 %v5623
  %5625 = vmatprep.subr.mxu0 0.0
  %v5626 = vand.u32 %v33, 4294901760
  %5627 = vmatpush1.msra.mxu0 %v5626
  %5628 = vmatprep.subr.mxu0 0.0
  %v5629 = vand.u32 %v34, 4294901760
  %5630 = vmatpush1.msra.mxu0 %v5629
  %5631 = vmatprep.subr.mxu0 0.0
  %v5632 = vand.u32 %v35, 4294901760
  %5633 = vmatpush1.msra.mxu0 %v5632
  %5634 = vmatprep.subr.mxu0 0.0
  %5635 = vmatpush1.msra.mxu0 0.0
  %5636 = vmatprep.subr.mxu0 0.0
  %5637 = vmatpush1.msra.mxu0 0.0
  %5638 = vmatprep.subr.mxu0 0.0
  %5639 = vmatpush1.msra.mxu0 0.0
  %5640 = vmatprep.subr.mxu0 0.0
  %5641 = vmatpush1.msra.mxu0 0.0
  %5642 = vmatprep.subr.mxu0 0.0
  %5643 = vmatpush1.msra.mxu0 0.0
  %5644 = vmatprep.subr.mxu0 0.0
  %5645 = vmatpush1.msra.mxu0 0.0
  %5646 = vmatprep.subr.mxu0 0.0
  %5647 = vmatpush1.msra.mxu0 0.0
  %5648 = vmatprep.subr.mxu0 0.0
  %5649 = vmatpush1.msra.mxu0 0.0
  %5650 = vmatprep.subr.mxu0 0.0
  %5651 = vmatpush1.msra.mxu0 0.0
  %5652 = vmatprep.subr.mxu0 0.0
  %5653 = vmatpush1.msra.mxu0 0.0
  %5654 = vmatprep.subr.mxu0 0.0
  %5655 = vmatpush1.msra.mxu0 0.0
  %5656 = vmatprep.subr.mxu0 0.0
  %5657 = vmatpush1.msra.mxu0 0.0
  %5658 = vmatprep.subr.mxu0 0.0
  %5659 = vmatpush1.msra.mxu0 0.0
  %5660 = vmatprep.subr.mxu0 0.0
  %5661 = vmatpush1.msra.mxu0 0.0
  %5662 = vmatprep.subr.mxu0 0.0
  %5663 = vmatpush1.msra.mxu0 0.0
  %5664 = vmatprep.subr.mxu0 0.0
  %5665 = vmatpush1.msra.mxu0 0.0
  %5666 = vmatprep.subr.mxu0 0.0
  %5667 = vmatpush1.msra.mxu0 0.0
  %5668 = vmatprep.subr.mxu0 0.0
  %5669 = vmatpush1.msra.mxu0 0.0
  %5670 = vmatprep.subr.mxu0 0.0
  %5671 = vmatpush1.msra.mxu0 0.0
  %5672 = vmatprep.subr.mxu0 0.0
  %5673 = vmatpush1.msra.mxu0 0.0
  %5674 = vmatprep.subr.mxu0 0.0
  %5675 = vmatpush1.msra.mxu0 0.0
  %5676 = vmatprep.subr.mxu0 0.0
  %5677 = vmatpush1.msra.mxu0 0.0
  %5678 = vmatprep.subr.mxu0 0.0
  %5679 = vmatpush1.msra.mxu0 0.0
  %5680 = vmatprep.subr.mxu0 0.0
  %5681 = vmatpush1.msra.mxu0 0.0
  %5682 = vmatprep.subr.mxu0 0.0
  %5683 = vmatpush1.msra.mxu0 0.0
  %5684 = vmatprep.subr.mxu0 0.0
  %5685 = vmatpush1.msra.mxu0 0.0
  %5686 = vmatprep.mubr.f32.mxu0 0.0
  %v5687 = vand.u32 %v5348, 4294901760
  %v5688 = vsub.f32 %v5348, %v5687
  %v5689 = vand.u32 %v5688, 4294901760
  %5690 = vmatmul.mubr.f32.gmra.mrb[0].mxu0 %v5689
  %v5691 = vpop.f32.mrb[0].mxu0
  %v5692 = vadd.f32 %v5613, %v5691
  %v5693 = vpop.f32.mrb[0].mxu0
  %5694 = vdwg.mxu0
  %5695 = vmatprep.subr.mxu0 0.0
  %v5696 = vand.u32 %v30, 4294901760
  %v5697 = vsub.f32 %v30, %v5696
  %v5698 = vand.u32 %v5697, 4294901760
  %5699 = vmatpush1.msra.mxu0 %v5698
  %5700 = vmatprep.subr.mxu0 0.0
  %v5701 = vand.u32 %v31, 4294901760
  %v5702 = vsub.f32 %v31, %v5701
  %v5703 = vand.u32 %v5702, 4294901760
  %5704 = vmatpush1.msra.mxu0 %v5703
  %5705 = vmatprep.subr.mxu0 0.0
  %v5706 = vand.u32 %v32, 4294901760
  %v5707 = vsub.f32 %v32, %v5706
  %v5708 = vand.u32 %v5707, 4294901760
  %5709 = vmatpush1.msra.mxu0 %v5708
  %5710 = vmatprep.subr.mxu0 0.0
  %v5711 = vand.u32 %v33, 4294901760
  %v5712 = vsub.f32 %v33, %v5711
  %v5713 = vand.u32 %v5712, 4294901760
  %5714 = vmatpush1.msra.mxu0 %v5713
  %5715 = vmatprep.subr.mxu0 0.0
  %v5716 = vand.u32 %v34, 4294901760
  %v5717 = vsub.f32 %v34, %v5716
  %v5718 = vand.u32 %v5717, 4294901760
  %5719 = vmatpush1.msra.mxu0 %v5718
  %5720 = vmatprep.subr.mxu0 0.0
  %v5721 = vand.u32 %v35, 4294901760
  %v5722 = vsub.f32 %v35, %v5721
  %v5723 = vand.u32 %v5722, 4294901760
  %5724 = vmatpush1.msra.mxu0 %v5723
  %5725 = vmatprep.subr.mxu0 0.0
  %5726 = vmatpush1.msra.mxu0 0.0
  %5727 = vmatprep.subr.mxu0 0.0
  %5728 = vmatpush1.msra.mxu0 0.0
  %5729 = vmatprep.subr.mxu0 0.0
  %5730 = vmatpush1.msra.mxu0 0.0
  %5731 = vmatprep.subr.mxu0 0.0
  %5732 = vmatpush1.msra.mxu0 0.0
  %5733 = vmatprep.subr.mxu0 0.0
  %5734 = vmatpush1.msra.mxu0 0.0
  %5735 = vmatprep.subr.mxu0 0.0
  %5736 = vmatpush1.msra.mxu0 0.0
  %5737 = vmatprep.subr.mxu0 0.0
  %5738 = vmatpush1.msra.mxu0 0.0
  %5739 = vmatprep.subr.mxu0 0.0
  %5740 = vmatpush1.msra.mxu0 0.0
  %5741 = vmatprep.subr.mxu0 0.0
  %5742 = vmatpush1.msra.mxu0 0.0
  %5743 = vmatprep.subr.mxu0 0.0
  %5744 = vmatpush1.msra.mxu0 0.0
  %5745 = vmatprep.subr.mxu0 0.0
  %5746 = vmatpush1.msra.mxu0 0.0
  %5747 = vmatprep.subr.mxu0 0.0
  %5748 = vmatpush1.msra.mxu0 0.0
  %5749 = vmatprep.subr.mxu0 0.0
  %5750 = vmatpush1.msra.mxu0 0.0
  %5751 = vmatprep.subr.mxu0 0.0
  %5752 = vmatpush1.msra.mxu0 0.0
  %5753 = vmatprep.subr.mxu0 0.0
  %5754 = vmatpush1.msra.mxu0 0.0
  %5755 = vmatprep.subr.mxu0 0.0
  %5756 = vmatpush1.msra.mxu0 0.0
  %5757 = vmatprep.subr.mxu0 0.0
  %5758 = vmatpush1.msra.mxu0 0.0
  %5759 = vmatprep.subr.mxu0 0.0
  %5760 = vmatpush1.msra.mxu0 0.0
  %5761 = vmatprep.subr.mxu0 0.0
  %5762 = vmatpush1.msra.mxu0 0.0
  %5763 = vmatprep.subr.mxu0 0.0
  %5764 = vmatpush1.msra.mxu0 0.0
  %5765 = vmatprep.subr.mxu0 0.0
  %5766 = vmatpush1.msra.mxu0 0.0
  %5767 = vmatprep.subr.mxu0 0.0
  %5768 = vmatpush1.msra.mxu0 0.0
  %5769 = vmatprep.subr.mxu0 0.0
  %5770 = vmatpush1.msra.mxu0 0.0
  %5771 = vmatprep.subr.mxu0 0.0
  %5772 = vmatpush1.msra.mxu0 0.0
  %5773 = vmatprep.subr.mxu0 0.0
  %5774 = vmatpush1.msra.mxu0 0.0
  %5775 = vmatprep.subr.mxu0 0.0
  %5776 = vmatpush1.msra.mxu0 0.0
  %5777 = vmatprep.mubr.f32.mxu0 0.0
  %v5778 = vand.u32 %v5348, 4294901760
  %5779 = vmatmul.mubr.f32.gmra.mrb[0].mxu0 %v5778
  %v5780 = vpop.f32.mrb[0].mxu0
  %v5781 = vadd.f32 %v5692, %v5780
  %v5782 = vpop.f32.mrb[0].mxu0
  %5783 = vdwg.mxu0
  %5784 = vmatprep.subr.mxu0 0.0
  %v5785 = vand.u32 %v30, 4294901760
  %5786 = vmatpush1.msra.mxu0 %v5785
  %5787 = vmatprep.subr.mxu0 0.0
  %v5788 = vand.u32 %v31, 4294901760
  %5789 = vmatpush1.msra.mxu0 %v5788
  %5790 = vmatprep.subr.mxu0 0.0
  %v5791 = vand.u32 %v32, 4294901760
  %5792 = vmatpush1.msra.mxu0 %v5791
  %5793 = vmatprep.subr.mxu0 0.0
  %v5794 = vand.u32 %v33, 4294901760
  %5795 = vmatpush1.msra.mxu0 %v5794
  %5796 = vmatprep.subr.mxu0 0.0
  %v5797 = vand.u32 %v34, 4294901760
  %5798 = vmatpush1.msra.mxu0 %v5797
  %5799 = vmatprep.subr.mxu0 0.0
  %v5800 = vand.u32 %v35, 4294901760
  %5801 = vmatpush1.msra.mxu0 %v5800
  %5802 = vmatprep.subr.mxu0 0.0
  %5803 = vmatpush1.msra.mxu0 0.0
  %5804 = vmatprep.subr.mxu0 0.0
  %5805 = vmatpush1.msra.mxu0 0.0
  %5806 = vmatprep.subr.mxu0 0.0
  %5807 = vmatpush1.msra.mxu0 0.0
  %5808 = vmatprep.subr.mxu0 0.0
  %5809 = vmatpush1.msra.mxu0 0.0
  %5810 = vmatprep.subr.mxu0 0.0
  %5811 = vmatpush1.msra.mxu0 0.0
  %5812 = vmatprep.subr.mxu0 0.0
  %5813 = vmatpush1.msra.mxu0 0.0
  %5814 = vmatprep.subr.mxu0 0.0
  %5815 = vmatpush1.msra.mxu0 0.0
  %5816 = vmatprep.subr.mxu0 0.0
  %5817 = vmatpush1.msra.mxu0 0.0
  %5818 = vmatprep.subr.mxu0 0.0
  %5819 = vmatpush1.msra.mxu0 0.0
  %5820 = vmatprep.subr.mxu0 0.0
  %5821 = vmatpush1.msra.mxu0 0.0
  %5822 = vmatprep.subr.mxu0 0.0
  %5823 = vmatpush1.msra.mxu0 0.0
  %5824 = vmatprep.subr.mxu0 0.0
  %5825 = vmatpush1.msra.mxu0 0.0
  %5826 = vmatprep.subr.mxu0 0.0
  %5827 = vmatpush1.msra.mxu0 0.0
  %5828 = vmatprep.subr.mxu0 0.0
  %5829 = vmatpush1.msra.mxu0 0.0
  %5830 = vmatprep.subr.mxu0 0.0
  %5831 = vmatpush1.msra.mxu0 0.0
  %5832 = vmatprep.subr.mxu0 0.0
  %5833 = vmatpush1.msra.mxu0 0.0
  %5834 = vmatprep.subr.mxu0 0.0
  %5835 = vmatpush1.msra.mxu0 0.0
  %5836 = vmatprep.subr.mxu0 0.0
  %5837 = vmatpush1.msra.mxu0 0.0
  %5838 = vmatprep.subr.mxu0 0.0
  %5839 = vmatpush1.msra.mxu0 0.0
  %5840 = vmatprep.subr.mxu0 0.0
  %5841 = vmatpush1.msra.mxu0 0.0
  %5842 = vmatprep.subr.mxu0 0.0
  %5843 = vmatpush1.msra.mxu0 0.0
  %5844 = vmatprep.subr.mxu0 0.0
  %5845 = vmatpush1.msra.mxu0 0.0
  %5846 = vmatprep.subr.mxu0 0.0
  %5847 = vmatpush1.msra.mxu0 0.0
  %5848 = vmatprep.subr.mxu0 0.0
  %5849 = vmatpush1.msra.mxu0 0.0
  %5850 = vmatprep.subr.mxu0 0.0
  %5851 = vmatpush1.msra.mxu0 0.0
  %5852 = vmatprep.subr.mxu0 0.0
  %5853 = vmatpush1.msra.mxu0 0.0
  %5854 = vmatprep.mubr.f32.mxu0 0.0
  %v5855 = vand.u32 %v5348, 4294901760
  %5856 = vmatmul.mubr.f32.gmra.mrb[0].mxu0 %v5855
  %v5857 = vpop.f32.mrb[0].mxu0
  %v5858 = vadd.f32 %v5781, %v5857
  %v5859 = vpop.f32.mrb[0].mxu0
  %5860 = vdwg.mxu0
  %v5862 = vsel %vm36, %v5858, 0
  %5864 = vmatprep.subr.mxu0 0.0
  %v5865 = vand.u32 %v28, 4294901760
  %5866 = vmatpush1.msra.mxu0 %v5865
  %5867 = vmatprep.subr.mxu0 0.0
  %5868 = vmatpush1.msra.mxu0 0.0
  %5869 = vmatprep.subr.mxu0 0.0
  %5870 = vmatpush1.msra.mxu0 0.0
  %5871 = vmatprep.subr.mxu0 0.0
  %5872 = vmatpush1.msra.mxu0 0.0
  %5873 = vmatprep.subr.mxu0 0.0
  %5874 = vmatpush1.msra.mxu0 0.0
  %5875 = vmatprep.subr.mxu0 0.0
  %5876 = vmatpush1.msra.mxu0 0.0
  %5877 = vmatprep.subr.mxu0 0.0
  %5878 = vmatpush1.msra.mxu0 0.0
  %5879 = vmatprep.subr.mxu0 0.0
  %5880 = vmatpush1.msra.mxu0 0.0
  %5881 = vmatprep.subr.mxu0 0.0
  %5882 = vmatpush1.msra.mxu0 0.0
  %5883 = vmatprep.subr.mxu0 0.0
  %5884 = vmatpush1.msra.mxu0 0.0
  %5885 = vmatprep.subr.mxu0 0.0
  %5886 = vmatpush1.msra.mxu0 0.0
  %5887 = vmatprep.subr.mxu0 0.0
  %5888 = vmatpush1.msra.mxu0 0.0
  %5889 = vmatprep.subr.mxu0 0.0
  %5890 = vmatpush1.msra.mxu0 0.0
  %5891 = vmatprep.subr.mxu0 0.0
  %5892 = vmatpush1.msra.mxu0 0.0
  %5893 = vmatprep.subr.mxu0 0.0
  %5894 = vmatpush1.msra.mxu0 0.0
  %5895 = vmatprep.subr.mxu0 0.0
  %5896 = vmatpush1.msra.mxu0 0.0
  %5897 = vmatprep.subr.mxu0 0.0
  %5898 = vmatpush1.msra.mxu0 0.0
  %5899 = vmatprep.subr.mxu0 0.0
  %5900 = vmatpush1.msra.mxu0 0.0
  %5901 = vmatprep.subr.mxu0 0.0
  %5902 = vmatpush1.msra.mxu0 0.0
  %5903 = vmatprep.subr.mxu0 0.0
  %5904 = vmatpush1.msra.mxu0 0.0
  %5905 = vmatprep.subr.mxu0 0.0
  %5906 = vmatpush1.msra.mxu0 0.0
  %5907 = vmatprep.subr.mxu0 0.0
  %5908 = vmatpush1.msra.mxu0 0.0
  %5909 = vmatprep.subr.mxu0 0.0
  %5910 = vmatpush1.msra.mxu0 0.0
  %5911 = vmatprep.subr.mxu0 0.0
  %5912 = vmatpush1.msra.mxu0 0.0
  %5913 = vmatprep.subr.mxu0 0.0
  %5914 = vmatpush1.msra.mxu0 0.0
  %5915 = vmatprep.subr.mxu0 0.0
  %5916 = vmatpush1.msra.mxu0 0.0
  %5917 = vmatprep.subr.mxu0 0.0
  %5918 = vmatpush1.msra.mxu0 0.0
  %5919 = vmatprep.subr.mxu0 0.0
  %5920 = vmatpush1.msra.mxu0 0.0
  %5921 = vmatprep.subr.mxu0 0.0
  %5922 = vmatpush1.msra.mxu0 0.0
  %5923 = vmatprep.subr.mxu0 0.0
  %5924 = vmatpush1.msra.mxu0 0.0
  %5925 = vmatprep.subr.mxu0 0.0
  %5926 = vmatpush1.msra.mxu0 0.0
  %5927 = vmatprep.subr.mxu0 0.0
  %5928 = vmatpush1.msra.mxu0 0.0
  %5929 = vmatprep.mubr.f32.mxu0 0.0
  %v5930 = vand.u32 %v5862, 4294901760
  %v5931 = vsub.f32 %v5862, %v5930
  %v5932 = vand.u32 %v5931, 4294901760
  %v5933 = vsub.f32 %v5931, %v5932
  %v5934 = vand.u32 %v5933, 4294901760
  %5935 = vmatmul.mubr.f32.gmra.mrb[0].mxu0 %v5934
  %v5936 = vpop.f32.mrb[0].mxu0
  %v5937 = vadd.f32 0.0, %v5936
  %v5938 = vpop.f32.mrb[0].mxu0
  %5939 = vdwg.mxu0
  %5940 = vmatprep.subr.mxu0 0.0
  %v5941 = vand.u32 %v28, 4294901760
  %v5942 = vsub.f32 %v28, %v5941
  %v5943 = vand.u32 %v5942, 4294901760
  %v5944 = vsub.f32 %v5942, %v5943
  %v5945 = vand.u32 %v5944, 4294901760
  %5946 = vmatpush1.msra.mxu0 %v5945
  %5947 = vmatprep.subr.mxu0 0.0
  %5948 = vmatpush1.msra.mxu0 0.0
  %5949 = vmatprep.subr.mxu0 0.0
  %5950 = vmatpush1.msra.mxu0 0.0
  %5951 = vmatprep.subr.mxu0 0.0
  %5952 = vmatpush1.msra.mxu0 0.0
  %5953 = vmatprep.subr.mxu0 0.0
  %5954 = vmatpush1.msra.mxu0 0.0
  %5955 = vmatprep.subr.mxu0 0.0
  %5956 = vmatpush1.msra.mxu0 0.0
  %5957 = vmatprep.subr.mxu0 0.0
  %5958 = vmatpush1.msra.mxu0 0.0
  %5959 = vmatprep.subr.mxu0 0.0
  %5960 = vmatpush1.msra.mxu0 0.0
  %5961 = vmatprep.subr.mxu0 0.0
  %5962 = vmatpush1.msra.mxu0 0.0
  %5963 = vmatprep.subr.mxu0 0.0
  %5964 = vmatpush1.msra.mxu0 0.0
  %5965 = vmatprep.subr.mxu0 0.0
  %5966 = vmatpush1.msra.mxu0 0.0
  %5967 = vmatprep.subr.mxu0 0.0
  %5968 = vmatpush1.msra.mxu0 0.0
  %5969 = vmatprep.subr.mxu0 0.0
  %5970 = vmatpush1.msra.mxu0 0.0
  %5971 = vmatprep.subr.mxu0 0.0
  %5972 = vmatpush1.msra.mxu0 0.0
  %5973 = vmatprep.subr.mxu0 0.0
  %5974 = vmatpush1.msra.mxu0 0.0
  %5975 = vmatprep.subr.mxu0 0.0
  %5976 = vmatpush1.msra.mxu0 0.0
  %5977 = vmatprep.subr.mxu0 0.0
  %5978 = vmatpush1.msra.mxu0 0.0
  %5979 = vmatprep.subr.mxu0 0.0
  %5980 = vmatpush1.msra.mxu0 0.0
  %5981 = vmatprep.subr.mxu0 0.0
  %5982 = vmatpush1.msra.mxu0 0.0
  %5983 = vmatprep.subr.mxu0 0.0
  %5984 = vmatpush1.msra.mxu0 0.0
  %5985 = vmatprep.subr.mxu0 0.0
  %5986 = vmatpush1.msra.mxu0 0.0
  %5987 = vmatprep.subr.mxu0 0.0
  %5988 = vmatpush1.msra.mxu0 0.0
  %5989 = vmatprep.subr.mxu0 0.0
  %5990 = vmatpush1.msra.mxu0 0.0
  %5991 = vmatprep.subr.mxu0 0.0
  %5992 = vmatpush1.msra.mxu0 0.0
  %5993 = vmatprep.subr.mxu0 0.0
  %5994 = vmatpush1.msra.mxu0 0.0
  %5995 = vmatprep.subr.mxu0 0.0
  %5996 = vmatpush1.msra.mxu0 0.0
  %5997 = vmatprep.subr.mxu0 0.0
  %5998 = vmatpush1.msra.mxu0 0.0
  %5999 = vmatprep.subr.mxu0 0.0
  %6000 = vmatpush1.msra.mxu0 0.0
  %6001 = vmatprep.subr.mxu0 0.0
  %6002 = vmatpush1.msra.mxu0 0.0
  %6003 = vmatprep.subr.mxu0 0.0
  %6004 = vmatpush1.msra.mxu0 0.0
  %6005 = vmatprep.subr.mxu0 0.0
  %6006 = vmatpush1.msra.mxu0 0.0
  %6007 = vmatprep.subr.mxu0 0.0
  %6008 = vmatpush1.msra.mxu0 0.0
  %6009 = vmatprep.mubr.f32.mxu0 0.0
  %v6010 = vand.u32 %v5862, 4294901760
  %6011 = vmatmul.mubr.f32.gmra.mrb[0].mxu0 %v6010
  %v6012 = vpop.f32.mrb[0].mxu0
  %v6013 = vadd.f32 %v5937, %v6012
  %v6014 = vpop.f32.mrb[0].mxu0
  %6015 = vdwg.mxu0
  %6016 = vmatprep.subr.mxu0 0.0
  %v6017 = vand.u32 %v28, 4294901760
  %v6018 = vsub.f32 %v28, %v6017
  %6019 = vmatpush1.msra.mxu0 %v6018
  %6020 = vmatprep.subr.mxu0 0.0
  %6021 = vmatpush1.msra.mxu0 0.0
  %6022 = vmatprep.subr.mxu0 0.0
  %6023 = vmatpush1.msra.mxu0 0.0
  %6024 = vmatprep.subr.mxu0 0.0
  %6025 = vmatpush1.msra.mxu0 0.0
  %6026 = vmatprep.subr.mxu0 0.0
  %6027 = vmatpush1.msra.mxu0 0.0
  %6028 = vmatprep.subr.mxu0 0.0
  %6029 = vmatpush1.msra.mxu0 0.0
  %6030 = vmatprep.subr.mxu0 0.0
  %6031 = vmatpush1.msra.mxu0 0.0
  %6032 = vmatprep.subr.mxu0 0.0
  %6033 = vmatpush1.msra.mxu0 0.0
  %6034 = vmatprep.subr.mxu0 0.0
  %6035 = vmatpush1.msra.mxu0 0.0
  %6036 = vmatprep.subr.mxu0 0.0
  %6037 = vmatpush1.msra.mxu0 0.0
  %6038 = vmatprep.subr.mxu0 0.0
  %6039 = vmatpush1.msra.mxu0 0.0
  %6040 = vmatprep.subr.mxu0 0.0
  %6041 = vmatpush1.msra.mxu0 0.0
  %6042 = vmatprep.subr.mxu0 0.0
  %6043 = vmatpush1.msra.mxu0 0.0
  %6044 = vmatprep.subr.mxu0 0.0
  %6045 = vmatpush1.msra.mxu0 0.0
  %6046 = vmatprep.subr.mxu0 0.0
  %6047 = vmatpush1.msra.mxu0 0.0
  %6048 = vmatprep.subr.mxu0 0.0
  %6049 = vmatpush1.msra.mxu0 0.0
  %6050 = vmatprep.subr.mxu0 0.0
  %6051 = vmatpush1.msra.mxu0 0.0
  %6052 = vmatprep.subr.mxu0 0.0
  %6053 = vmatpush1.msra.mxu0 0.0
  %6054 = vmatprep.subr.mxu0 0.0
  %6055 = vmatpush1.msra.mxu0 0.0
  %6056 = vmatprep.subr.mxu0 0.0
  %6057 = vmatpush1.msra.mxu0 0.0
  %6058 = vmatprep.subr.mxu0 0.0
  %6059 = vmatpush1.msra.mxu0 0.0
  %6060 = vmatprep.subr.mxu0 0.0
  %6061 = vmatpush1.msra.mxu0 0.0
  %6062 = vmatprep.subr.mxu0 0.0
  %6063 = vmatpush1.msra.mxu0 0.0
  %6064 = vmatprep.subr.mxu0 0.0
  %6065 = vmatpush1.msra.mxu0 0.0
  %6066 = vmatprep.subr.mxu0 0.0
  %6067 = vmatpush1.msra.mxu0 0.0
  %6068 = vmatprep.subr.mxu0 0.0
  %6069 = vmatpush1.msra.mxu0 0.0
  %6070 = vmatprep.subr.mxu0 0.0
  %6071 = vmatpush1.msra.mxu0 0.0
  %6072 = vmatprep.subr.mxu0 0.0
  %6073 = vmatpush1.msra.mxu0 0.0
  %6074 = vmatprep.subr.mxu0 0.0
  %6075 = vmatpush1.msra.mxu0 0.0
  %6076 = vmatprep.subr.mxu0 0.0
  %6077 = vmatpush1.msra.mxu0 0.0
  %6078 = vmatprep.subr.mxu0 0.0
  %6079 = vmatpush1.msra.mxu0 0.0
  %6080 = vmatprep.subr.mxu0 0.0
  %6081 = vmatpush1.msra.mxu0 0.0
  %6082 = vmatprep.mubr.f32.mxu0 0.0
  %v6083 = vand.u32 %v5862, 4294901760
  %v6084 = vsub.f32 %v5862, %v6083
  %6085 = vmatmul.mubr.f32.gmra.mrb[0].mxu0 %v6084
  %v6086 = vpop.f32.mrb[0].mxu0
  %v6087 = vadd.f32 %v6013, %v6086
  %v6088 = vpop.f32.mrb[0].mxu0
  %6089 = vdwg.mxu0
  %6090 = vmatprep.subr.mxu0 0.0
  %v6091 = vand.u32 %v28, 4294901760
  %6092 = vmatpush1.msra.mxu0 %v6091
  %6093 = vmatprep.subr.mxu0 0.0
  %6094 = vmatpush1.msra.mxu0 0.0
  %6095 = vmatprep.subr.mxu0 0.0
  %6096 = vmatpush1.msra.mxu0 0.0
  %6097 = vmatprep.subr.mxu0 0.0
  %6098 = vmatpush1.msra.mxu0 0.0
  %6099 = vmatprep.subr.mxu0 0.0
  %6100 = vmatpush1.msra.mxu0 0.0
  %6101 = vmatprep.subr.mxu0 0.0
  %6102 = vmatpush1.msra.mxu0 0.0
  %6103 = vmatprep.subr.mxu0 0.0
  %6104 = vmatpush1.msra.mxu0 0.0
  %6105 = vmatprep.subr.mxu0 0.0
  %6106 = vmatpush1.msra.mxu0 0.0
  %6107 = vmatprep.subr.mxu0 0.0
  %6108 = vmatpush1.msra.mxu0 0.0
  %6109 = vmatprep.subr.mxu0 0.0
  %6110 = vmatpush1.msra.mxu0 0.0
  %6111 = vmatprep.subr.mxu0 0.0
  %6112 = vmatpush1.msra.mxu0 0.0
  %6113 = vmatprep.subr.mxu0 0.0
  %6114 = vmatpush1.msra.mxu0 0.0
  %6115 = vmatprep.subr.mxu0 0.0
  %6116 = vmatpush1.msra.mxu0 0.0
  %6117 = vmatprep.subr.mxu0 0.0
  %6118 = vmatpush1.msra.mxu0 0.0
  %6119 = vmatprep.subr.mxu0 0.0
  %6120 = vmatpush1.msra.mxu0 0.0
  %6121 = vmatprep.subr.mxu0 0.0
  %6122 = vmatpush1.msra.mxu0 0.0
  %6123 = vmatprep.subr.mxu0 0.0
  %6124 = vmatpush1.msra.mxu0 0.0
  %6125 = vmatprep.subr.mxu0 0.0
  %6126 = vmatpush1.msra.mxu0 0.0
  %6127 = vmatprep.subr.mxu0 0.0
  %6128 = vmatpush1.msra.mxu0 0.0
  %6129 = vmatprep.subr.mxu0 0.0
  %6130 = vmatpush1.msra.mxu0 0.0
  %6131 = vmatprep.subr.mxu0 0.0
  %6132 = vmatpush1.msra.mxu0 0.0
  %6133 = vmatprep.subr.mxu0 0.0
  %6134 = vmatpush1.msra.mxu0 0.0
  %6135 = vmatprep.subr.mxu0 0.0
  %6136 = vmatpush1.msra.mxu0 0.0
  %6137 = vmatprep.subr.mxu0 0.0
  %6138 = vmatpush1.msra.mxu0 0.0
  %6139 = vmatprep.subr.mxu0 0.0
  %6140 = vmatpush1.msra.mxu0 0.0
  %6141 = vmatprep.subr.mxu0 0.0
  %6142 = vmatpush1.msra.mxu0 0.0
  %6143 = vmatprep.subr.mxu0 0.0
  %6144 = vmatpush1.msra.mxu0 0.0
  %6145 = vmatprep.subr.mxu0 0.0
  %6146 = vmatpush1.msra.mxu0 0.0
  %6147 = vmatprep.subr.mxu0 0.0
  %6148 = vmatpush1.msra.mxu0 0.0
  %6149 = vmatprep.subr.mxu0 0.0
  %6150 = vmatpush1.msra.mxu0 0.0
  %6151 = vmatprep.subr.mxu0 0.0
  %6152 = vmatpush1.msra.mxu0 0.0
  %6153 = vmatprep.subr.mxu0 0.0
  %6154 = vmatpush1.msra.mxu0 0.0
  %6155 = vmatprep.mubr.f32.mxu0 0.0
  %v6156 = vand.u32 %v5862, 4294901760
  %v6157 = vsub.f32 %v5862, %v6156
  %v6158 = vand.u32 %v6157, 4294901760
  %6159 = vmatmul.mubr.f32.gmra.mrb[0].mxu0 %v6158
  %v6160 = vpop.f32.mrb[0].mxu0
  %v6161 = vadd.f32 %v6087, %v6160
  %v6162 = vpop.f32.mrb[0].mxu0
  %6163 = vdwg.mxu0
  %6164 = vmatprep.subr.mxu0 0.0
  %v6165 = vand.u32 %v28, 4294901760
  %v6166 = vsub.f32 %v28, %v6165
  %v6167 = vand.u32 %v6166, 4294901760
  %6168 = vmatpush1.msra.mxu0 %v6167
  %6169 = vmatprep.subr.mxu0 0.0
  %6170 = vmatpush1.msra.mxu0 0.0
  %6171 = vmatprep.subr.mxu0 0.0
  %6172 = vmatpush1.msra.mxu0 0.0
  %6173 = vmatprep.subr.mxu0 0.0
  %6174 = vmatpush1.msra.mxu0 0.0
  %6175 = vmatprep.subr.mxu0 0.0
  %6176 = vmatpush1.msra.mxu0 0.0
  %6177 = vmatprep.subr.mxu0 0.0
  %6178 = vmatpush1.msra.mxu0 0.0
  %6179 = vmatprep.subr.mxu0 0.0
  %6180 = vmatpush1.msra.mxu0 0.0
  %6181 = vmatprep.subr.mxu0 0.0
  %6182 = vmatpush1.msra.mxu0 0.0
  %6183 = vmatprep.subr.mxu0 0.0
  %6184 = vmatpush1.msra.mxu0 0.0
  %6185 = vmatprep.subr.mxu0 0.0
  %6186 = vmatpush1.msra.mxu0 0.0
  %6187 = vmatprep.subr.mxu0 0.0
  %6188 = vmatpush1.msra.mxu0 0.0
  %6189 = vmatprep.subr.mxu0 0.0
  %6190 = vmatpush1.msra.mxu0 0.0
  %6191 = vmatprep.subr.mxu0 0.0
  %6192 = vmatpush1.msra.mxu0 0.0
  %6193 = vmatprep.subr.mxu0 0.0
  %6194 = vmatpush1.msra.mxu0 0.0
  %6195 = vmatprep.subr.mxu0 0.0
  %6196 = vmatpush1.msra.mxu0 0.0
  %6197 = vmatprep.subr.mxu0 0.0
  %6198 = vmatpush1.msra.mxu0 0.0
  %6199 = vmatprep.subr.mxu0 0.0
  %6200 = vmatpush1.msra.mxu0 0.0
  %6201 = vmatprep.subr.mxu0 0.0
  %6202 = vmatpush1.msra.mxu0 0.0
  %6203 = vmatprep.subr.mxu0 0.0
  %6204 = vmatpush1.msra.mxu0 0.0
  %6205 = vmatprep.subr.mxu0 0.0
  %6206 = vmatpush1.msra.mxu0 0.0
  %6207 = vmatprep.subr.mxu0 0.0
  %6208 = vmatpush1.msra.mxu0 0.0
  %6209 = vmatprep.subr.mxu0 0.0
  %6210 = vmatpush1.msra.mxu0 0.0
  %6211 = vmatprep.subr.mxu0 0.0
  %6212 = vmatpush1.msra.mxu0 0.0
  %6213 = vmatprep.subr.mxu0 0.0
  %6214 = vmatpush1.msra.mxu0 0.0
  %6215 = vmatprep.subr.mxu0 0.0
  %6216 = vmatpush1.msra.mxu0 0.0
  %6217 = vmatprep.subr.mxu0 0.0
  %6218 = vmatpush1.msra.mxu0 0.0
  %6219 = vmatprep.subr.mxu0 0.0
  %6220 = vmatpush1.msra.mxu0 0.0
  %6221 = vmatprep.subr.mxu0 0.0
  %6222 = vmatpush1.msra.mxu0 0.0
  %6223 = vmatprep.subr.mxu0 0.0
  %6224 = vmatpush1.msra.mxu0 0.0
  %6225 = vmatprep.subr.mxu0 0.0
  %6226 = vmatpush1.msra.mxu0 0.0
  %6227 = vmatprep.subr.mxu0 0.0
  %6228 = vmatpush1.msra.mxu0 0.0
  %6229 = vmatprep.subr.mxu0 0.0
  %6230 = vmatpush1.msra.mxu0 0.0
  %6231 = vmatprep.mubr.f32.mxu0 0.0
  %v6232 = vand.u32 %v5862, 4294901760
  %6233 = vmatmul.mubr.f32.gmra.mrb[0].mxu0 %v6232
  %v6234 = vpop.f32.mrb[0].mxu0
  %v6235 = vadd.f32 %v6161, %v6234
  %v6236 = vpop.f32.mrb[0].mxu0
  %6237 = vdwg.mxu0
  %6238 = vmatprep.subr.mxu0 0.0
  %v6239 = vand.u32 %v28, 4294901760
  %6240 = vmatpush1.msra.mxu0 %v6239
  %6241 = vmatprep.subr.mxu0 0.0
  %6242 = vmatpush1.msra.mxu0 0.0
  %6243 = vmatprep.subr.mxu0 0.0
  %6244 = vmatpush1.msra.mxu0 0.0
  %6245 = vmatprep.subr.mxu0 0.0
  %6246 = vmatpush1.msra.mxu0 0.0
  %6247 = vmatprep.subr.mxu0 0.0
  %6248 = vmatpush1.msra.mxu0 0.0
  %6249 = vmatprep.subr.mxu0 0.0
  %6250 = vmatpush1.msra.mxu0 0.0
  %6251 = vmatprep.subr.mxu0 0.0
  %6252 = vmatpush1.msra.mxu0 0.0
  %6253 = vmatprep.subr.mxu0 0.0
  %6254 = vmatpush1.msra.mxu0 0.0
  %6255 = vmatprep.subr.mxu0 0.0
  %6256 = vmatpush1.msra.mxu0 0.0
  %6257 = vmatprep.subr.mxu0 0.0
  %6258 = vmatpush1.msra.mxu0 0.0
  %6259 = vmatprep.subr.mxu0 0.0
  %6260 = vmatpush1.msra.mxu0 0.0
  %6261 = vmatprep.subr.mxu0 0.0
  %6262 = vmatpush1.msra.mxu0 0.0
  %6263 = vmatprep.subr.mxu0 0.0
  %6264 = vmatpush1.msra.mxu0 0.0
  %6265 = vmatprep.subr.mxu0 0.0
  %6266 = vmatpush1.msra.mxu0 0.0
  %6267 = vmatprep.subr.mxu0 0.0
  %6268 = vmatpush1.msra.mxu0 0.0
  %6269 = vmatprep.subr.mxu0 0.0
  %6270 = vmatpush1.msra.mxu0 0.0
  %6271 = vmatprep.subr.mxu0 0.0
  %6272 = vmatpush1.msra.mxu0 0.0
  %6273 = vmatprep.subr.mxu0 0.0
  %6274 = vmatpush1.msra.mxu0 0.0
  %6275 = vmatprep.subr.mxu0 0.0
  %6276 = vmatpush1.msra.mxu0 0.0
  %6277 = vmatprep.subr.mxu0 0.0
  %6278 = vmatpush1.msra.mxu0 0.0
  %6279 = vmatprep.subr.mxu0 0.0
  %6280 = vmatpush1.msra.mxu0 0.0
  %6281 = vmatprep.subr.mxu0 0.0
  %6282 = vmatpush1.msra.mxu0 0.0
  %6283 = vmatprep.subr.mxu0 0.0
  %6284 = vmatpush1.msra.mxu0 0.0
  %6285 = vmatprep.subr.mxu0 0.0
  %6286 = vmatpush1.msra.mxu0 0.0
  %6287 = vmatprep.subr.mxu0 0.0
  %6288 = vmatpush1.msra.mxu0 0.0
  %6289 = vmatprep.subr.mxu0 0.0
  %6290 = vmatpush1.msra.mxu0 0.0
  %6291 = vmatprep.subr.mxu0 0.0
  %6292 = vmatpush1.msra.mxu0 0.0
  %6293 = vmatprep.subr.mxu0 0.0
  %6294 = vmatpush1.msra.mxu0 0.0
  %6295 = vmatprep.subr.mxu0 0.0
  %6296 = vmatpush1.msra.mxu0 0.0
  %6297 = vmatprep.subr.mxu0 0.0
  %6298 = vmatpush1.msra.mxu0 0.0
  %6299 = vmatprep.subr.mxu0 0.0
  %6300 = vmatpush1.msra.mxu0 0.0
  %6301 = vmatprep.subr.mxu0 0.0
  %6302 = vmatpush1.msra.mxu0 0.0
  %6303 = vmatprep.mubr.f32.mxu0 0.0
  %v6304 = vand.u32 %v5862, 4294901760
  %6305 = vmatmul.mubr.f32.gmra.mrb[0].mxu0 %v6304
  %v6306 = vpop.f32.mrb[0].mxu0
  %v6307 = vadd.f32 %v6235, %v6306
  %v6308 = vpop.f32.mrb[0].mxu0
  %6309 = vdwg.mxu0
  %s6310 = scalar_lea.vmem %s1, 24
  %v6311 = vld [vmem:[%s6310] sm:$0xf]
  %6312 = vset.pattern.permute.xlu0 0
  %6313 = vperm.xlu0 %6312, %v6311
  %v6314 = vpop.permute.xlu0 %6313
  %vm6315 = vcmp.eq.s32.totalorder %v490, %v6314
  %v6316 = vsel %vm6315, %v6307, 0.0
  %v6318 = vsel %vm496, %v6316, 0
  %6320 = vmatprep.subr.mxu0 0.0
  %v6321 = vand.u32 %v30, 4294901760
  %6322 = vmatpush1.msra.mxu0 %v6321
  %6323 = vmatprep.subr.mxu0 0.0
  %v6324 = vand.u32 %v31, 4294901760
  %6325 = vmatpush1.msra.mxu0 %v6324
  %6326 = vmatprep.subr.mxu0 0.0
  %v6327 = vand.u32 %v32, 4294901760
  %6328 = vmatpush1.msra.mxu0 %v6327
  %6329 = vmatprep.subr.mxu0 0.0
  %v6330 = vand.u32 %v33, 4294901760
  %6331 = vmatpush1.msra.mxu0 %v6330
  %6332 = vmatprep.subr.mxu0 0.0
  %v6333 = vand.u32 %v34, 4294901760
  %6334 = vmatpush1.msra.mxu0 %v6333
  %6335 = vmatprep.subr.mxu0 0.0
  %v6336 = vand.u32 %v35, 4294901760
  %6337 = vmatpush1.msra.mxu0 %v6336
  %6338 = vmatprep.subr.mxu0 0.0
  %6339 = vmatpush1.msra.mxu0 0.0
  %6340 = vmatprep.subr.mxu0 0.0
  %6341 = vmatpush1.msra.mxu0 0.0
  %6342 = vmatprep.subr.mxu0 0.0
  %6343 = vmatpush1.msra.mxu0 0.0
  %6344 = vmatprep.subr.mxu0 0.0
  %6345 = vmatpush1.msra.mxu0 0.0
  %6346 = vmatprep.subr.mxu0 0.0
  %6347 = vmatpush1.msra.mxu0 0.0
  %6348 = vmatprep.subr.mxu0 0.0
  %6349 = vmatpush1.msra.mxu0 0.0
  %6350 = vmatprep.subr.mxu0 0.0
  %6351 = vmatpush1.msra.mxu0 0.0
  %6352 = vmatprep.subr.mxu0 0.0
  %6353 = vmatpush1.msra.mxu0 0.0
  %6354 = vmatprep.subr.mxu0 0.0
  %6355 = vmatpush1.msra.mxu0 0.0
  %6356 = vmatprep.subr.mxu0 0.0
  %6357 = vmatpush1.msra.mxu0 0.0
  %6358 = vmatprep.subr.mxu0 0.0
  %6359 = vmatpush1.msra.mxu0 0.0
  %6360 = vmatprep.subr.mxu0 0.0
  %6361 = vmatpush1.msra.mxu0 0.0
  %6362 = vmatprep.subr.mxu0 0.0
  %6363 = vmatpush1.msra.mxu0 0.0
  %6364 = vmatprep.subr.mxu0 0.0
  %6365 = vmatpush1.msra.mxu0 0.0
  %6366 = vmatprep.subr.mxu0 0.0
  %6367 = vmatpush1.msra.mxu0 0.0
  %6368 = vmatprep.subr.mxu0 0.0
  %6369 = vmatpush1.msra.mxu0 0.0
  %6370 = vmatprep.subr.mxu0 0.0
  %6371 = vmatpush1.msra.mxu0 0.0
  %6372 = vmatprep.subr.mxu0 0.0
  %6373 = vmatpush1.msra.mxu0 0.0
  %6374 = vmatprep.subr.mxu0 0.0
  %6375 = vmatpush1.msra.mxu0 0.0
  %6376 = vmatprep.subr.mxu0 0.0
  %6377 = vmatpush1.msra.mxu0 0.0
  %6378 = vmatprep.subr.mxu0 0.0
  %6379 = vmatpush1.msra.mxu0 0.0
  %6380 = vmatprep.subr.mxu0 0.0
  %6381 = vmatpush1.msra.mxu0 0.0
  %6382 = vmatprep.subr.mxu0 0.0
  %6383 = vmatpush1.msra.mxu0 0.0
  %6384 = vmatprep.subr.mxu0 0.0
  %6385 = vmatpush1.msra.mxu0 0.0
  %6386 = vmatprep.subr.mxu0 0.0
  %6387 = vmatpush1.msra.mxu0 0.0
  %6388 = vmatprep.subr.mxu0 0.0
  %6389 = vmatpush1.msra.mxu0 0.0
  %6390 = vmatprep.mubr.f32.mxu0 0.0
  %v6391 = vand.u32 %v6318, 4294901760
  %v6392 = vsub.f32 %v6318, %v6391
  %v6393 = vand.u32 %v6392, 4294901760
  %v6394 = vsub.f32 %v6392, %v6393
  %v6395 = vand.u32 %v6394, 4294901760
  %6396 = vmatmul.mubr.f32.gmra.mrb[0].mxu0 %v6395
  %v6397 = vpop.f32.mrb[0].mxu0
  %v6398 = vadd.f32 0.0, %v6397
  %v6399 = vpop.f32.mrb[0].mxu0
  %6400 = vdwg.mxu0
  %6401 = vmatprep.subr.mxu0 0.0
  %v6402 = vand.u32 %v30, 4294901760
  %v6403 = vsub.f32 %v30, %v6402
  %v6404 = vand.u32 %v6403, 4294901760
  %v6405 = vsub.f32 %v6403, %v6404
  %v6406 = vand.u32 %v6405, 4294901760
  %6407 = vmatpush1.msra.mxu0 %v6406
  %6408 = vmatprep.subr.mxu0 0.0
  %v6409 = vand.u32 %v31, 4294901760
  %v6410 = vsub.f32 %v31, %v6409
  %v6411 = vand.u32 %v6410, 4294901760
  %v6412 = vsub.f32 %v6410, %v6411
  %v6413 = vand.u32 %v6412, 4294901760
  %6414 = vmatpush1.msra.mxu0 %v6413
  %6415 = vmatprep.subr.mxu0 0.0
  %v6416 = vand.u32 %v32, 4294901760
  %v6417 = vsub.f32 %v32, %v6416
  %v6418 = vand.u32 %v6417, 4294901760
  %v6419 = vsub.f32 %v6417, %v6418
  %v6420 = vand.u32 %v6419, 4294901760
  %6421 = vmatpush1.msra.mxu0 %v6420
  %6422 = vmatprep.subr.mxu0 0.0
  %v6423 = vand.u32 %v33, 4294901760
  %v6424 = vsub.f32 %v33, %v6423
  %v6425 = vand.u32 %v6424, 4294901760
  %v6426 = vsub.f32 %v6424, %v6425
  %v6427 = vand.u32 %v6426, 4294901760
  %6428 = vmatpush1.msra.mxu0 %v6427
  %6429 = vmatprep.subr.mxu0 0.0
  %v6430 = vand.u32 %v34, 4294901760
  %v6431 = vsub.f32 %v34, %v6430
  %v6432 = vand.u32 %v6431, 4294901760
  %v6433 = vsub.f32 %v6431, %v6432
  %v6434 = vand.u32 %v6433, 4294901760
  %6435 = vmatpush1.msra.mxu0 %v6434
  %6436 = vmatprep.subr.mxu0 0.0
  %v6437 = vand.u32 %v35, 4294901760
  %v6438 = vsub.f32 %v35, %v6437
  %v6439 = vand.u32 %v6438, 4294901760
  %v6440 = vsub.f32 %v6438, %v6439
  %v6441 = vand.u32 %v6440, 4294901760
  %6442 = vmatpush1.msra.mxu0 %v6441
  %6443 = vmatprep.subr.mxu0 0.0
  %6444 = vmatpush1.msra.mxu0 0.0
  %6445 = vmatprep.subr.mxu0 0.0
  %6446 = vmatpush1.msra.mxu0 0.0
  %6447 = vmatprep.subr.mxu0 0.0
  %6448 = vmatpush1.msra.mxu0 0.0
  %6449 = vmatprep.subr.mxu0 0.0
  %6450 = vmatpush1.msra.mxu0 0.0
  %6451 = vmatprep.subr.mxu0 0.0
  %6452 = vmatpush1.msra.mxu0 0.0
  %6453 = vmatprep.subr.mxu0 0.0
  %6454 = vmatpush1.msra.mxu0 0.0
  %6455 = vmatprep.subr.mxu0 0.0
  %6456 = vmatpush1.msra.mxu0 0.0
  %6457 = vmatprep.subr.mxu0 0.0
  %6458 = vmatpush1.msra.mxu0 0.0
  %6459 = vmatprep.subr.mxu0 0.0
  %6460 = vmatpush1.msra.mxu0 0.0
  %6461 = vmatprep.subr.mxu0 0.0
  %6462 = vmatpush1.msra.mxu0 0.0
  %6463 = vmatprep.subr.mxu0 0.0
  %6464 = vmatpush1.msra.mxu0 0.0
  %6465 = vmatprep.subr.mxu0 0.0
  %6466 = vmatpush1.msra.mxu0 0.0
  %6467 = vmatprep.subr.mxu0 0.0
  %6468 = vmatpush1.msra.mxu0 0.0
  %6469 = vmatprep.subr.mxu0 0.0
  %6470 = vmatpush1.msra.mxu0 0.0
  %6471 = vmatprep.subr.mxu0 0.0
  %6472 = vmatpush1.msra.mxu0 0.0
  %6473 = vmatprep.subr.mxu0 0.0
  %6474 = vmatpush1.msra.mxu0 0.0
  %6475 = vmatprep.subr.mxu0 0.0
  %6476 = vmatpush1.msra.mxu0 0.0
  %6477 = vmatprep.subr.mxu0 0.0
  %6478 = vmatpush1.msra.mxu0 0.0
  %6479 = vmatprep.subr.mxu0 0.0
  %6480 = vmatpush1.msra.mxu0 0.0
  %6481 = vmatprep.subr.mxu0 0.0
  %6482 = vmatpush1.msra.mxu0 0.0
  %6483 = vmatprep.subr.mxu0 0.0
  %6484 = vmatpush1.msra.mxu0 0.0
  %6485 = vmatprep.subr.mxu0 0.0
  %6486 = vmatpush1.msra.mxu0 0.0
  %6487 = vmatprep.subr.mxu0 0.0
  %6488 = vmatpush1.msra.mxu0 0.0
  %6489 = vmatprep.subr.mxu0 0.0
  %6490 = vmatpush1.msra.mxu0 0.0
  %6491 = vmatprep.subr.mxu0 0.0
  %6492 = vmatpush1.msra.mxu0 0.0
  %6493 = vmatprep.subr.mxu0 0.0
  %6494 = vmatpush1.msra.mxu0 0.0
  %6495 = vmatprep.mubr.f32.mxu0 0.0
  %v6496 = vand.u32 %v6318, 4294901760
  %6497 = vmatmul.mubr.f32.gmra.mrb[0].mxu0 %v6496
  %v6498 = vpop.f32.mrb[0].mxu0
  %v6499 = vadd.f32 %v6398, %v6498
  %v6500 = vpop.f32.mrb[0].mxu0
  %6501 = vdwg.mxu0
  %6502 = vmatprep.subr.mxu0 0.0
  %v6503 = vand.u32 %v30, 4294901760
  %v6504 = vsub.f32 %v30, %v6503
  %6505 = vmatpush1.msra.mxu0 %v6504
  %6506 = vmatprep.subr.mxu0 0.0
  %v6507 = vand.u32 %v31, 4294901760
  %v6508 = vsub.f32 %v31, %v6507
  %6509 = vmatpush1.msra.mxu0 %v6508
  %6510 = vmatprep.subr.mxu0 0.0
  %v6511 = vand.u32 %v32, 4294901760
  %v6512 = vsub.f32 %v32, %v6511
  %6513 = vmatpush1.msra.mxu0 %v6512
  %6514 = vmatprep.subr.mxu0 0.0
  %v6515 = vand.u32 %v33, 4294901760
  %v6516 = vsub.f32 %v33, %v6515
  %6517 = vmatpush1.msra.mxu0 %v6516
  %6518 = vmatprep.subr.mxu0 0.0
  %v6519 = vand.u32 %v34, 4294901760
  %v6520 = vsub.f32 %v34, %v6519
  %6521 = vmatpush1.msra.mxu0 %v6520
  %6522 = vmatprep.subr.mxu0 0.0
  %v6523 = vand.u32 %v35, 4294901760
  %v6524 = vsub.f32 %v35, %v6523
  %6525 = vmatpush1.msra.mxu0 %v6524
  %6526 = vmatprep.subr.mxu0 0.0
  %6527 = vmatpush1.msra.mxu0 0.0
  %6528 = vmatprep.subr.mxu0 0.0
  %6529 = vmatpush1.msra.mxu0 0.0
  %6530 = vmatprep.subr.mxu0 0.0
  %6531 = vmatpush1.msra.mxu0 0.0
  %6532 = vmatprep.subr.mxu0 0.0
  %6533 = vmatpush1.msra.mxu0 0.0
  %6534 = vmatprep.subr.mxu0 0.0
  %6535 = vmatpush1.msra.mxu0 0.0
  %6536 = vmatprep.subr.mxu0 0.0
  %6537 = vmatpush1.msra.mxu0 0.0
  %6538 = vmatprep.subr.mxu0 0.0
  %6539 = vmatpush1.msra.mxu0 0.0
  %6540 = vmatprep.subr.mxu0 0.0
  %6541 = vmatpush1.msra.mxu0 0.0
  %6542 = vmatprep.subr.mxu0 0.0
  %6543 = vmatpush1.msra.mxu0 0.0
  %6544 = vmatprep.subr.mxu0 0.0
  %6545 = vmatpush1.msra.mxu0 0.0
  %6546 = vmatprep.subr.mxu0 0.0
  %6547 = vmatpush1.msra.mxu0 0.0
  %6548 = vmatprep.subr.mxu0 0.0
  %6549 = vmatpush1.msra.mxu0 0.0
  %6550 = vmatprep.subr.mxu0 0.0
  %6551 = vmatpush1.msra.mxu0 0.0
  %6552 = vmatprep.subr.mxu0 0.0
  %6553 = vmatpush1.msra.mxu0 0.0
  %6554 = vmatprep.subr.mxu0 0.0
  %6555 = vmatpush1.msra.mxu0 0.0
  %6556 = vmatprep.subr.mxu0 0.0
  %6557 = vmatpush1.msra.mxu0 0.0
  %6558 = vmatprep.subr.mxu0 0.0
  %6559 = vmatpush1.msra.mxu0 0.0
  %6560 = vmatprep.subr.mxu0 0.0
  %6561 = vmatpush1.msra.mxu0 0.0
  %6562 = vmatprep.subr.mxu0 0.0
  %6563 = vmatpush1.msra.mxu0 0.0
  %6564 = vmatprep.subr.mxu0 0.0
  %6565 = vmatpush1.msra.mxu0 0.0
  %6566 = vmatprep.subr.mxu0 0.0
  %6567 = vmatpush1.msra.mxu0 0.0
  %6568 = vmatprep.subr.mxu0 0.0
  %6569 = vmatpush1.msra.mxu0 0.0
  %6570 = vmatprep.subr.mxu0 0.0
  %6571 = vmatpush1.msra.mxu0 0.0
  %6572 = vmatprep.subr.mxu0 0.0
  %6573 = vmatpush1.msra.mxu0 0.0
  %6574 = vmatprep.subr.mxu0 0.0
  %6575 = vmatpush1.msra.mxu0 0.0
  %6576 = vmatprep.subr.mxu0 0.0
  %6577 = vmatpush1.msra.mxu0 0.0
  %6578 = vmatprep.mubr.f32.mxu0 0.0
  %v6579 = vand.u32 %v6318, 4294901760
  %v6580 = vsub.f32 %v6318, %v6579
  %6581 = vmatmul.mubr.f32.gmra.mrb[0].mxu0 %v6580
  %v6582 = vpop.f32.mrb[0].mxu0
  %v6583 = vadd.f32 %v6499, %v6582
  %v6584 = vpop.f32.mrb[0].mxu0
  %6585 = vdwg.mxu0
  %6586 = vmatprep.subr.mxu0 0.0
  %v6587 = vand.u32 %v30, 4294901760
  %6588 = vmatpush1.msra.mxu0 %v6587
  %6589 = vmatprep.subr.mxu0 0.0
  %v6590 = vand.u32 %v31, 4294901760
  %6591 = vmatpush1.msra.mxu0 %v6590
  %6592 = vmatprep.subr.mxu0 0.0
  %v6593 = vand.u32 %v32, 4294901760
  %6594 = vmatpush1.msra.mxu0 %v6593
  %6595 = vmatprep.subr.mxu0 0.0
  %v6596 = vand.u32 %v33, 4294901760
  %6597 = vmatpush1.msra.mxu0 %v6596
  %6598 = vmatprep.subr.mxu0 0.0
  %v6599 = vand.u32 %v34, 4294901760
  %6600 = vmatpush1.msra.mxu0 %v6599
  %6601 = vmatprep.subr.mxu0 0.0
  %v6602 = vand.u32 %v35, 4294901760
  %6603 = vmatpush1.msra.mxu0 %v6602
  %6604 = vmatprep.subr.mxu0 0.0
  %6605 = vmatpush1.msra.mxu0 0.0
  %6606 = vmatprep.subr.mxu0 0.0
  %6607 = vmatpush1.msra.mxu0 0.0
  %6608 = vmatprep.subr.mxu0 0.0
  %6609 = vmatpush1.msra.mxu0 0.0
  %6610 = vmatprep.subr.mxu0 0.0
  %6611 = vmatpush1.msra.mxu0 0.0
  %6612 = vmatprep.subr.mxu0 0.0
  %6613 = vmatpush1.msra.mxu0 0.0
  %6614 = vmatprep.subr.mxu0 0.0
  %6615 = vmatpush1.msra.mxu0 0.0
  %6616 = vmatprep.subr.mxu0 0.0
  %6617 = vmatpush1.msra.mxu0 0.0
  %6618 = vmatprep.subr.mxu0 0.0
  %6619 = vmatpush1.msra.mxu0 0.0
  %6620 = vmatprep.subr.mxu0 0.0
  %6621 = vmatpush1.msra.mxu0 0.0
  %6622 = vmatprep.subr.mxu0 0.0
  %6623 = vmatpush1.msra.mxu0 0.0
  %6624 = vmatprep.subr.mxu0 0.0
  %6625 = vmatpush1.msra.mxu0 0.0
  %6626 = vmatprep.subr.mxu0 0.0
  %6627 = vmatpush1.msra.mxu0 0.0
  %6628 = vmatprep.subr.mxu0 0.0
  %6629 = vmatpush1.msra.mxu0 0.0
  %6630 = vmatprep.subr.mxu0 0.0
  %6631 = vmatpush1.msra.mxu0 0.0
  %6632 = vmatprep.subr.mxu0 0.0
  %6633 = vmatpush1.msra.mxu0 0.0
  %6634 = vmatprep.subr.mxu0 0.0
  %6635 = vmatpush1.msra.mxu0 0.0
  %6636 = vmatprep.subr.mxu0 0.0
  %6637 = vmatpush1.msra.mxu0 0.0
  %6638 = vmatprep.subr.mxu0 0.0
  %6639 = vmatpush1.msra.mxu0 0.0
  %6640 = vmatprep.subr.mxu0 0.0
  %6641 = vmatpush1.msra.mxu0 0.0
  %6642 = vmatprep.subr.mxu0 0.0
  %6643 = vmatpush1.msra.mxu0 0.0
  %6644 = vmatprep.subr.mxu0 0.0
  %6645 = vmatpush1.msra.mxu0 0.0
  %6646 = vmatprep.subr.mxu0 0.0
  %6647 = vmatpush1.msra.mxu0 0.0
  %6648 = vmatprep.subr.mxu0 0.0
  %6649 = vmatpush1.msra.mxu0 0.0
  %6650 = vmatprep.subr.mxu0 0.0
  %6651 = vmatpush1.msra.mxu0 0.0
  %6652 = vmatprep.subr.mxu0 0.0
  %6653 = vmatpush1.msra.mxu0 0.0
  %6654 = vmatprep.subr.mxu0 0.0
  %6655 = vmatpush1.msra.mxu0 0.0
  %6656 = vmatprep.mubr.f32.mxu0 0.0
  %v6657 = vand.u32 %v6318, 4294901760
  %v6658 = vsub.f32 %v6318, %v6657
  %v6659 = vand.u32 %v6658, 4294901760
  %6660 = vmatmul.mubr.f32.gmra.mrb[0].mxu0 %v6659
  %v6661 = vpop.f32.mrb[0].mxu0
  %v6662 = vadd.f32 %v6583, %v6661
  %v6663 = vpop.f32.mrb[0].mxu0
  %6664 = vdwg.mxu0
  %6665 = vmatprep.subr.mxu0 0.0
  %v6666 = vand.u32 %v30, 4294901760
  %v6667 = vsub.f32 %v30, %v6666
  %v6668 = vand.u32 %v6667, 4294901760
  %6669 = vmatpush1.msra.mxu0 %v6668
  %6670 = vmatprep.subr.mxu0 0.0
  %v6671 = vand.u32 %v31, 4294901760
  %v6672 = vsub.f32 %v31, %v6671
  %v6673 = vand.u32 %v6672, 4294901760
  %6674 = vmatpush1.msra.mxu0 %v6673
  %6675 = vmatprep.subr.mxu0 0.0
  %v6676 = vand.u32 %v32, 4294901760
  %v6677 = vsub.f32 %v32, %v6676
  %v6678 = vand.u32 %v6677, 4294901760
  %6679 = vmatpush1.msra.mxu0 %v6678
  %6680 = vmatprep.subr.mxu0 0.0
  %v6681 = vand.u32 %v33, 4294901760
  %v6682 = vsub.f32 %v33, %v6681
  %v6683 = vand.u32 %v6682, 4294901760
  %6684 = vmatpush1.msra.mxu0 %v6683
  %6685 = vmatprep.subr.mxu0 0.0
  %v6686 = vand.u32 %v34, 4294901760
  %v6687 = vsub.f32 %v34, %v6686
  %v6688 = vand.u32 %v6687, 4294901760
  %6689 = vmatpush1.msra.mxu0 %v6688
  %6690 = vmatprep.subr.mxu0 0.0
  %v6691 = vand.u32 %v35, 4294901760
  %v6692 = vsub.f32 %v35, %v6691
  %v6693 = vand.u32 %v6692, 4294901760
  %6694 = vmatpush1.msra.mxu0 %v6693
  %6695 = vmatprep.subr.mxu0 0.0
  %6696 = vmatpush1.msra.mxu0 0.0
  %6697 = vmatprep.subr.mxu0 0.0
  %6698 = vmatpush1.msra.mxu0 0.0
  %6699 = vmatprep.subr.mxu0 0.0
  %6700 = vmatpush1.msra.mxu0 0.0
  %6701 = vmatprep.subr.mxu0 0.0
  %6702 = vmatpush1.msra.mxu0 0.0
  %6703 = vmatprep.subr.mxu0 0.0
  %6704 = vmatpush1.msra.mxu0 0.0
  %6705 = vmatprep.subr.mxu0 0.0
  %6706 = vmatpush1.msra.mxu0 0.0
  %6707 = vmatprep.subr.mxu0 0.0
  %6708 = vmatpush1.msra.mxu0 0.0
  %6709 = vmatprep.subr.mxu0 0.0
  %6710 = vmatpush1.msra.mxu0 0.0
  %6711 = vmatprep.subr.mxu0 0.0
  %6712 = vmatpush1.msra.mxu0 0.0
  %6713 = vmatprep.subr.mxu0 0.0
  %6714 = vmatpush1.msra.mxu0 0.0
  %6715 = vmatprep.subr.mxu0 0.0
  %6716 = vmatpush1.msra.mxu0 0.0
  %6717 = vmatprep.subr.mxu0 0.0
  %6718 = vmatpush1.msra.mxu0 0.0
  %6719 = vmatprep.subr.mxu0 0.0
  %6720 = vmatpush1.msra.mxu0 0.0
  %6721 = vmatprep.subr.mxu0 0.0
  %6722 = vmatpush1.msra.mxu0 0.0
  %6723 = vmatprep.subr.mxu0 0.0
  %6724 = vmatpush1.msra.mxu0 0.0
  %6725 = vmatprep.subr.mxu0 0.0
  %6726 = vmatpush1.msra.mxu0 0.0
  %6727 = vmatprep.subr.mxu0 0.0
  %6728 = vmatpush1.msra.mxu0 0.0
  %6729 = vmatprep.subr.mxu0 0.0
  %6730 = vmatpush1.msra.mxu0 0.0
  %6731 = vmatprep.subr.mxu0 0.0
  %6732 = vmatpush1.msra.mxu0 0.0
  %6733 = vmatprep.subr.mxu0 0.0
  %6734 = vmatpush1.msra.mxu0 0.0
  %6735 = vmatprep.subr.mxu0 0.0
  %6736 = vmatpush1.msra.mxu0 0.0
  %6737 = vmatprep.subr.mxu0 0.0
  %6738 = vmatpush1.msra.mxu0 0.0
  %6739 = vmatprep.subr.mxu0 0.0
  %6740 = vmatpush1.msra.mxu0 0.0
  %6741 = vmatprep.subr.mxu0 0.0
  %6742 = vmatpush1.msra.mxu0 0.0
  %6743 = vmatprep.subr.mxu0 0.0
  %6744 = vmatpush1.msra.mxu0 0.0
  %6745 = vmatprep.subr.mxu0 0.0
  %6746 = vmatpush1.msra.mxu0 0.0
  %6747 = vmatprep.mubr.f32.mxu0 0.0
  %v6748 = vand.u32 %v6318, 4294901760
  %6749 = vmatmul.mubr.f32.gmra.mrb[0].mxu0 %v6748
  %v6750 = vpop.f32.mrb[0].mxu0
  %v6751 = vadd.f32 %v6662, %v6750
  %v6752 = vpop.f32.mrb[0].mxu0
  %6753 = vdwg.mxu0
  %6754 = vmatprep.subr.mxu0 0.0
  %v6755 = vand.u32 %v30, 4294901760
  %6756 = vmatpush1.msra.mxu0 %v6755
  %6757 = vmatprep.subr.mxu0 0.0
  %v6758 = vand.u32 %v31, 4294901760
  %6759 = vmatpush1.msra.mxu0 %v6758
  %6760 = vmatprep.subr.mxu0 0.0
  %v6761 = vand.u32 %v32, 4294901760
  %6762 = vmatpush1.msra.mxu0 %v6761
  %6763 = vmatprep.subr.mxu0 0.0
  %v6764 = vand.u32 %v33, 4294901760
  %6765 = vmatpush1.msra.mxu0 %v6764
  %6766 = vmatprep.subr.mxu0 0.0
  %v6767 = vand.u32 %v34, 4294901760
  %6768 = vmatpush1.msra.mxu0 %v6767
  %6769 = vmatprep.subr.mxu0 0.0
  %v6770 = vand.u32 %v35, 4294901760
  %6771 = vmatpush1.msra.mxu0 %v6770
  %6772 = vmatprep.subr.mxu0 0.0
  %6773 = vmatpush1.msra.mxu0 0.0
  %6774 = vmatprep.subr.mxu0 0.0
  %6775 = vmatpush1.msra.mxu0 0.0
  %6776 = vmatprep.subr.mxu0 0.0
  %6777 = vmatpush1.msra.mxu0 0.0
  %6778 = vmatprep.subr.mxu0 0.0
  %6779 = vmatpush1.msra.mxu0 0.0
  %6780 = vmatprep.subr.mxu0 0.0
  %6781 = vmatpush1.msra.mxu0 0.0
  %6782 = vmatprep.subr.mxu0 0.0
  %6783 = vmatpush1.msra.mxu0 0.0
  %6784 = vmatprep.subr.mxu0 0.0
  %6785 = vmatpush1.msra.mxu0 0.0
  %6786 = vmatprep.subr.mxu0 0.0
  %6787 = vmatpush1.msra.mxu0 0.0
  %6788 = vmatprep.subr.mxu0 0.0
  %6789 = vmatpush1.msra.mxu0 0.0
  %6790 = vmatprep.subr.mxu0 0.0
  %6791 = vmatpush1.msra.mxu0 0.0
  %6792 = vmatprep.subr.mxu0 0.0
  %6793 = vmatpush1.msra.mxu0 0.0
  %6794 = vmatprep.subr.mxu0 0.0
  %6795 = vmatpush1.msra.mxu0 0.0
  %6796 = vmatprep.subr.mxu0 0.0
  %6797 = vmatpush1.msra.mxu0 0.0
  %6798 = vmatprep.subr.mxu0 0.0
  %6799 = vmatpush1.msra.mxu0 0.0
  %6800 = vmatprep.subr.mxu0 0.0
  %6801 = vmatpush1.msra.mxu0 0.0
  %6802 = vmatprep.subr.mxu0 0.0
  %6803 = vmatpush1.msra.mxu0 0.0
  %6804 = vmatprep.subr.mxu0 0.0
  %6805 = vmatpush1.msra.mxu0 0.0
  %6806 = vmatprep.subr.mxu0 0.0
  %6807 = vmatpush1.msra.mxu0 0.0
  %6808 = vmatprep.subr.mxu0 0.0
  %6809 = vmatpush1.msra.mxu0 0.0
  %6810 = vmatprep.subr.mxu0 0.0
  %6811 = vmatpush1.msra.mxu0 0.0
  %6812 = vmatprep.subr.mxu0 0.0
  %6813 = vmatpush1.msra.mxu0 0.0
  %6814 = vmatprep.subr.mxu0 0.0
  %6815 = vmatpush1.msra.mxu0 0.0
  %6816 = vmatprep.subr.mxu0 0.0
  %6817 = vmatpush1.msra.mxu0 0.0
  %6818 = vmatprep.subr.mxu0 0.0
  %6819 = vmatpush1.msra.mxu0 0.0
  %6820 = vmatprep.subr.mxu0 0.0
  %6821 = vmatpush1.msra.mxu0 0.0
  %6822 = vmatprep.subr.mxu0 0.0
  %6823 = vmatpush1.msra.mxu0 0.0
  %6824 = vmatprep.mubr.f32.mxu0 0.0
  %v6825 = vand.u32 %v6318, 4294901760
  %6826 = vmatmul.mubr.f32.gmra.mrb[0].mxu0 %v6825
  %v6827 = vpop.f32.mrb[0].mxu0
  %v6828 = vadd.f32 %v6751, %v6827
  %v6829 = vpop.f32.mrb[0].mxu0
  %6830 = vdwg.mxu0
  %v6832 = vsel %vm36, %v6828, 0
  %6834 = vmatprep.subr.mxu0 0.0
  %v6835 = vand.u32 %v28, 4294901760
  %6836 = vmatpush1.msra.mxu0 %v6835
  %6837 = vmatprep.subr.mxu0 0.0
  %6838 = vmatpush1.msra.mxu0 0.0
  %6839 = vmatprep.subr.mxu0 0.0
  %6840 = vmatpush1.msra.mxu0 0.0
  %6841 = vmatprep.subr.mxu0 0.0
  %6842 = vmatpush1.msra.mxu0 0.0
  %6843 = vmatprep.subr.mxu0 0.0
  %6844 = vmatpush1.msra.mxu0 0.0
  %6845 = vmatprep.subr.mxu0 0.0
  %6846 = vmatpush1.msra.mxu0 0.0
  %6847 = vmatprep.subr.mxu0 0.0
  %6848 = vmatpush1.msra.mxu0 0.0
  %6849 = vmatprep.subr.mxu0 0.0
  %6850 = vmatpush1.msra.mxu0 0.0
  %6851 = vmatprep.subr.mxu0 0.0
  %6852 = vmatpush1.msra.mxu0 0.0
  %6853 = vmatprep.subr.mxu0 0.0
  %6854 = vmatpush1.msra.mxu0 0.0
  %6855 = vmatprep.subr.mxu0 0.0
  %6856 = vmatpush1.msra.mxu0 0.0
  %6857 = vmatprep.subr.mxu0 0.0
  %6858 = vmatpush1.msra.mxu0 0.0
  %6859 = vmatprep.subr.mxu0 0.0
  %6860 = vmatpush1.msra.mxu0 0.0
  %6861 = vmatprep.subr.mxu0 0.0
  %6862 = vmatpush1.msra.mxu0 0.0
  %6863 = vmatprep.subr.mxu0 0.0
  %6864 = vmatpush1.msra.mxu0 0.0
  %6865 = vmatprep.subr.mxu0 0.0
  %6866 = vmatpush1.msra.mxu0 0.0
  %6867 = vmatprep.subr.mxu0 0.0
  %6868 = vmatpush1.msra.mxu0 0.0
  %6869 = vmatprep.subr.mxu0 0.0
  %6870 = vmatpush1.msra.mxu0 0.0
  %6871 = vmatprep.subr.mxu0 0.0
  %6872 = vmatpush1.msra.mxu0 0.0
  %6873 = vmatprep.subr.mxu0 0.0
  %6874 = vmatpush1.msra.mxu0 0.0
  %6875 = vmatprep.subr.mxu0 0.0
  %6876 = vmatpush1.msra.mxu0 0.0
  %6877 = vmatprep.subr.mxu0 0.0
  %6878 = vmatpush1.msra.mxu0 0.0
  %6879 = vmatprep.subr.mxu0 0.0
  %6880 = vmatpush1.msra.mxu0 0.0
  %6881 = vmatprep.subr.mxu0 0.0
  %6882 = vmatpush1.msra.mxu0 0.0
  %6883 = vmatprep.subr.mxu0 0.0
  %6884 = vmatpush1.msra.mxu0 0.0
  %6885 = vmatprep.subr.mxu0 0.0
  %6886 = vmatpush1.msra.mxu0 0.0
  %6887 = vmatprep.subr.mxu0 0.0
  %6888 = vmatpush1.msra.mxu0 0.0
  %6889 = vmatprep.subr.mxu0 0.0
  %6890 = vmatpush1.msra.mxu0 0.0
  %6891 = vmatprep.subr.mxu0 0.0
  %6892 = vmatpush1.msra.mxu0 0.0
  %6893 = vmatprep.subr.mxu0 0.0
  %6894 = vmatpush1.msra.mxu0 0.0
  %6895 = vmatprep.subr.mxu0 0.0
  %6896 = vmatpush1.msra.mxu0 0.0
  %6897 = vmatprep.subr.mxu0 0.0
  %6898 = vmatpush1.msra.mxu0 0.0
  %6899 = vmatprep.mubr.f32.mxu0 0.0
  %v6900 = vand.u32 %v6832, 4294901760
  %v6901 = vsub.f32 %v6832, %v6900
  %v6902 = vand.u32 %v6901, 4294901760
  %v6903 = vsub.f32 %v6901, %v6902
  %v6904 = vand.u32 %v6903, 4294901760
  %6905 = vmatmul.mubr.f32.gmra.mrb[0].mxu0 %v6904
  %v6906 = vpop.f32.mrb[0].mxu0
  %v6907 = vadd.f32 0.0, %v6906
  %v6908 = vpop.f32.mrb[0].mxu0
  %6909 = vdwg.mxu0
  %6910 = vmatprep.subr.mxu0 0.0
  %v6911 = vand.u32 %v28, 4294901760
  %v6912 = vsub.f32 %v28, %v6911
  %v6913 = vand.u32 %v6912, 4294901760
  %v6914 = vsub.f32 %v6912, %v6913
  %v6915 = vand.u32 %v6914, 4294901760
  %6916 = vmatpush1.msra.mxu0 %v6915
  %6917 = vmatprep.subr.mxu0 0.0
  %6918 = vmatpush1.msra.mxu0 0.0
  %6919 = vmatprep.subr.mxu0 0.0
  %6920 = vmatpush1.msra.mxu0 0.0
  %6921 = vmatprep.subr.mxu0 0.0
  %6922 = vmatpush1.msra.mxu0 0.0
  %6923 = vmatprep.subr.mxu0 0.0
  %6924 = vmatpush1.msra.mxu0 0.0
  %6925 = vmatprep.subr.mxu0 0.0
  %6926 = vmatpush1.msra.mxu0 0.0
  %6927 = vmatprep.subr.mxu0 0.0
  %6928 = vmatpush1.msra.mxu0 0.0
  %6929 = vmatprep.subr.mxu0 0.0
  %6930 = vmatpush1.msra.mxu0 0.0
  %6931 = vmatprep.subr.mxu0 0.0
  %6932 = vmatpush1.msra.mxu0 0.0
  %6933 = vmatprep.subr.mxu0 0.0
  %6934 = vmatpush1.msra.mxu0 0.0
  %6935 = vmatprep.subr.mxu0 0.0
  %6936 = vmatpush1.msra.mxu0 0.0
  %6937 = vmatprep.subr.mxu0 0.0
  %6938 = vmatpush1.msra.mxu0 0.0
  %6939 = vmatprep.subr.mxu0 0.0
  %6940 = vmatpush1.msra.mxu0 0.0
  %6941 = vmatprep.subr.mxu0 0.0
  %6942 = vmatpush1.msra.mxu0 0.0
  %6943 = vmatprep.subr.mxu0 0.0
  %6944 = vmatpush1.msra.mxu0 0.0
  %6945 = vmatprep.subr.mxu0 0.0
  %6946 = vmatpush1.msra.mxu0 0.0
  %6947 = vmatprep.subr.mxu0 0.0
  %6948 = vmatpush1.msra.mxu0 0.0
  %6949 = vmatprep.subr.mxu0 0.0
  %6950 = vmatpush1.msra.mxu0 0.0
  %6951 = vmatprep.subr.mxu0 0.0
  %6952 = vmatpush1.msra.mxu0 0.0
  %6953 = vmatprep.subr.mxu0 0.0
  %6954 = vmatpush1.msra.mxu0 0.0
  %6955 = vmatprep.subr.mxu0 0.0
  %6956 = vmatpush1.msra.mxu0 0.0
  %6957 = vmatprep.subr.mxu0 0.0
  %6958 = vmatpush1.msra.mxu0 0.0
  %6959 = vmatprep.subr.mxu0 0.0
  %6960 = vmatpush1.msra.mxu0 0.0
  %6961 = vmatprep.subr.mxu0 0.0
  %6962 = vmatpush1.msra.mxu0 0.0
  %6963 = vmatprep.subr.mxu0 0.0
  %6964 = vmatpush1.msra.mxu0 0.0
  %6965 = vmatprep.subr.mxu0 0.0
  %6966 = vmatpush1.msra.mxu0 0.0
  %6967 = vmatprep.subr.mxu0 0.0
  %6968 = vmatpush1.msra.mxu0 0.0
  %6969 = vmatprep.subr.mxu0 0.0
  %6970 = vmatpush1.msra.mxu0 0.0
  %6971 = vmatprep.subr.mxu0 0.0
  %6972 = vmatpush1.msra.mxu0 0.0
  %6973 = vmatprep.subr.mxu0 0.0
  %6974 = vmatpush1.msra.mxu0 0.0
  %6975 = vmatprep.subr.mxu0 0.0
  %6976 = vmatpush1.msra.mxu0 0.0
  %6977 = vmatprep.subr.mxu0 0.0
  %6978 = vmatpush1.msra.mxu0 0.0
  %6979 = vmatprep.mubr.f32.mxu0 0.0
  %v6980 = vand.u32 %v6832, 4294901760
  %6981 = vmatmul.mubr.f32.gmra.mrb[0].mxu0 %v6980
  %v6982 = vpop.f32.mrb[0].mxu0
  %v6983 = vadd.f32 %v6907, %v6982
  %v6984 = vpop.f32.mrb[0].mxu0
  %6985 = vdwg.mxu0
  %6986 = vmatprep.subr.mxu0 0.0
  %v6987 = vand.u32 %v28, 4294901760
  %v6988 = vsub.f32 %v28, %v6987
  %6989 = vmatpush1.msra.mxu0 %v6988
  %6990 = vmatprep.subr.mxu0 0.0
  %6991 = vmatpush1.msra.mxu0 0.0
  %6992 = vmatprep.subr.mxu0 0.0
  %6993 = vmatpush1.msra.mxu0 0.0
  %6994 = vmatprep.subr.mxu0 0.0
  %6995 = vmatpush1.msra.mxu0 0.0
  %6996 = vmatprep.subr.mxu0 0.0
  %6997 = vmatpush1.msra.mxu0 0.0
  %6998 = vmatprep.subr.mxu0 0.0
  %6999 = vmatpush1.msra.mxu0 0.0
  %7000 = vmatprep.subr.mxu0 0.0
  %7001 = vmatpush1.msra.mxu0 0.0
  %7002 = vmatprep.subr.mxu0 0.0
  %7003 = vmatpush1.msra.mxu0 0.0
  %7004 = vmatprep.subr.mxu0 0.0
  %7005 = vmatpush1.msra.mxu0 0.0
  %7006 = vmatprep.subr.mxu0 0.0
  %7007 = vmatpush1.msra.mxu0 0.0
  %7008 = vmatprep.subr.mxu0 0.0
  %7009 = vmatpush1.msra.mxu0 0.0
  %7010 = vmatprep.subr.mxu0 0.0
  %7011 = vmatpush1.msra.mxu0 0.0
  %7012 = vmatprep.subr.mxu0 0.0
  %7013 = vmatpush1.msra.mxu0 0.0
  %7014 = vmatprep.subr.mxu0 0.0
  %7015 = vmatpush1.msra.mxu0 0.0
  %7016 = vmatprep.subr.mxu0 0.0
  %7017 = vmatpush1.msra.mxu0 0.0
  %7018 = vmatprep.subr.mxu0 0.0
  %7019 = vmatpush1.msra.mxu0 0.0
  %7020 = vmatprep.subr.mxu0 0.0
  %7021 = vmatpush1.msra.mxu0 0.0
  %7022 = vmatprep.subr.mxu0 0.0
  %7023 = vmatpush1.msra.mxu0 0.0
  %7024 = vmatprep.subr.mxu0 0.0
  %7025 = vmatpush1.msra.mxu0 0.0
  %7026 = vmatprep.subr.mxu0 0.0
  %7027 = vmatpush1.msra.mxu0 0.0
  %7028 = vmatprep.subr.mxu0 0.0
  %7029 = vmatpush1.msra.mxu0 0.0
  %7030 = vmatprep.subr.mxu0 0.0
  %7031 = vmatpush1.msra.mxu0 0.0
  %7032 = vmatprep.subr.mxu0 0.0
  %7033 = vmatpush1.msra.mxu0 0.0
  %7034 = vmatprep.subr.mxu0 0.0
  %7035 = vmatpush1.msra.mxu0 0.0
  %7036 = vmatprep.subr.mxu0 0.0
  %7037 = vmatpush1.msra.mxu0 0.0
  %7038 = vmatprep.subr.mxu0 0.0
  %7039 = vmatpush1.msra.mxu0 0.0
  %7040 = vmatprep.subr.mxu0 0.0
  %7041 = vmatpush1.msra.mxu0 0.0
  %7042 = vmatprep.subr.mxu0 0.0
  %7043 = vmatpush1.msra.mxu0 0.0
  %7044 = vmatprep.subr.mxu0 0.0
  %7045 = vmatpush1.msra.mxu0 0.0
  %7046 = vmatprep.subr.mxu0 0.0
  %7047 = vmatpush1.msra.mxu0 0.0
  %7048 = vmatprep.subr.mxu0 0.0
  %7049 = vmatpush1.msra.mxu0 0.0
  %7050 = vmatprep.subr.mxu0 0.0
  %7051 = vmatpush1.msra.mxu0 0.0
  %7052 = vmatprep.mubr.f32.mxu0 0.0
  %v7053 = vand.u32 %v6832, 4294901760
  %v7054 = vsub.f32 %v6832, %v7053
  %7055 = vmatmul.mubr.f32.gmra.mrb[0].mxu0 %v7054
  %v7056 = vpop.f32.mrb[0].mxu0
  %v7057 = vadd.f32 %v6983, %v7056
  %v7058 = vpop.f32.mrb[0].mxu0
  %7059 = vdwg.mxu0
  %7060 = vmatprep.subr.mxu0 0.0
  %v7061 = vand.u32 %v28, 4294901760
  %7062 = vmatpush1.msra.mxu0 %v7061
  %7063 = vmatprep.subr.mxu0 0.0
  %7064 = vmatpush1.msra.mxu0 0.0
  %7065 = vmatprep.subr.mxu0 0.0
  %7066 = vmatpush1.msra.mxu0 0.0
  %7067 = vmatprep.subr.mxu0 0.0
  %7068 = vmatpush1.msra.mxu0 0.0
  %7069 = vmatprep.subr.mxu0 0.0
  %7070 = vmatpush1.msra.mxu0 0.0
  %7071 = vmatprep.subr.mxu0 0.0
  %7072 = vmatpush1.msra.mxu0 0.0
  %7073 = vmatprep.subr.mxu0 0.0
  %7074 = vmatpush1.msra.mxu0 0.0
  %7075 = vmatprep.subr.mxu0 0.0
  %7076 = vmatpush1.msra.mxu0 0.0
  %7077 = vmatprep.subr.mxu0 0.0
  %7078 = vmatpush1.msra.mxu0 0.0
  %7079 = vmatprep.subr.mxu0 0.0
  %7080 = vmatpush1.msra.mxu0 0.0
  %7081 = vmatprep.subr.mxu0 0.0
  %7082 = vmatpush1.msra.mxu0 0.0
  %7083 = vmatprep.subr.mxu0 0.0
  %7084 = vmatpush1.msra.mxu0 0.0
  %7085 = vmatprep.subr.mxu0 0.0
  %7086 = vmatpush1.msra.mxu0 0.0
  %7087 = vmatprep.subr.mxu0 0.0
  %7088 = vmatpush1.msra.mxu0 0.0
  %7089 = vmatprep.subr.mxu0 0.0
  %7090 = vmatpush1.msra.mxu0 0.0
  %7091 = vmatprep.subr.mxu0 0.0
  %7092 = vmatpush1.msra.mxu0 0.0
  %7093 = vmatprep.subr.mxu0 0.0
  %7094 = vmatpush1.msra.mxu0 0.0
  %7095 = vmatprep.subr.mxu0 0.0
  %7096 = vmatpush1.msra.mxu0 0.0
  %7097 = vmatprep.subr.mxu0 0.0
  %7098 = vmatpush1.msra.mxu0 0.0
  %7099 = vmatprep.subr.mxu0 0.0
  %7100 = vmatpush1.msra.mxu0 0.0
  %7101 = vmatprep.subr.mxu0 0.0
  %7102 = vmatpush1.msra.mxu0 0.0
  %7103 = vmatprep.subr.mxu0 0.0
  %7104 = vmatpush1.msra.mxu0 0.0
  %7105 = vmatprep.subr.mxu0 0.0
  %7106 = vmatpush1.msra.mxu0 0.0
  %7107 = vmatprep.subr.mxu0 0.0
  %7108 = vmatpush1.msra.mxu0 0.0
  %7109 = vmatprep.subr.mxu0 0.0
  %7110 = vmatpush1.msra.mxu0 0.0
  %7111 = vmatprep.subr.mxu0 0.0
  %7112 = vmatpush1.msra.mxu0 0.0
  %7113 = vmatprep.subr.mxu0 0.0
  %7114 = vmatpush1.msra.mxu0 0.0
  %7115 = vmatprep.subr.mxu0 0.0
  %7116 = vmatpush1.msra.mxu0 0.0
  %7117 = vmatprep.subr.mxu0 0.0
  %7118 = vmatpush1.msra.mxu0 0.0
  %7119 = vmatprep.subr.mxu0 0.0
  %7120 = vmatpush1.msra.mxu0 0.0
  %7121 = vmatprep.subr.mxu0 0.0
  %7122 = vmatpush1.msra.mxu0 0.0
  %7123 = vmatprep.subr.mxu0 0.0
  %7124 = vmatpush1.msra.mxu0 0.0
  %7125 = vmatprep.mubr.f32.mxu0 0.0
  %v7126 = vand.u32 %v6832, 4294901760
  %v7127 = vsub.f32 %v6832, %v7126
  %v7128 = vand.u32 %v7127, 4294901760
  %7129 = vmatmul.mubr.f32.gmra.mrb[0].mxu0 %v7128
  %v7130 = vpop.f32.mrb[0].mxu0
  %v7131 = vadd.f32 %v7057, %v7130
  %v7132 = vpop.f32.mrb[0].mxu0
  %7133 = vdwg.mxu0
  %7134 = vmatprep.subr.mxu0 0.0
  %v7135 = vand.u32 %v28, 4294901760
  %v7136 = vsub.f32 %v28, %v7135
  %v7137 = vand.u32 %v7136, 4294901760
  %7138 = vmatpush1.msra.mxu0 %v7137
  %7139 = vmatprep.subr.mxu0 0.0
  %7140 = vmatpush1.msra.mxu0 0.0
  %7141 = vmatprep.subr.mxu0 0.0
  %7142 = vmatpush1.msra.mxu0 0.0
  %7143 = vmatprep.subr.mxu0 0.0
  %7144 = vmatpush1.msra.mxu0 0.0
  %7145 = vmatprep.subr.mxu0 0.0
  %7146 = vmatpush1.msra.mxu0 0.0
  %7147 = vmatprep.subr.mxu0 0.0
  %7148 = vmatpush1.msra.mxu0 0.0
  %7149 = vmatprep.subr.mxu0 0.0
  %7150 = vmatpush1.msra.mxu0 0.0
  %7151 = vmatprep.subr.mxu0 0.0
  %7152 = vmatpush1.msra.mxu0 0.0
  %7153 = vmatprep.subr.mxu0 0.0
  %7154 = vmatpush1.msra.mxu0 0.0
  %7155 = vmatprep.subr.mxu0 0.0
  %7156 = vmatpush1.msra.mxu0 0.0
  %7157 = vmatprep.subr.mxu0 0.0
  %7158 = vmatpush1.msra.mxu0 0.0
  %7159 = vmatprep.subr.mxu0 0.0
  %7160 = vmatpush1.msra.mxu0 0.0
  %7161 = vmatprep.subr.mxu0 0.0
  %7162 = vmatpush1.msra.mxu0 0.0
  %7163 = vmatprep.subr.mxu0 0.0
  %7164 = vmatpush1.msra.mxu0 0.0
  %7165 = vmatprep.subr.mxu0 0.0
  %7166 = vmatpush1.msra.mxu0 0.0
  %7167 = vmatprep.subr.mxu0 0.0
  %7168 = vmatpush1.msra.mxu0 0.0
  %7169 = vmatprep.subr.mxu0 0.0
  %7170 = vmatpush1.msra.mxu0 0.0
  %7171 = vmatprep.subr.mxu0 0.0
  %7172 = vmatpush1.msra.mxu0 0.0
  %7173 = vmatprep.subr.mxu0 0.0
  %7174 = vmatpush1.msra.mxu0 0.0
  %7175 = vmatprep.subr.mxu0 0.0
  %7176 = vmatpush1.msra.mxu0 0.0
  %7177 = vmatprep.subr.mxu0 0.0
  %7178 = vmatpush1.msra.mxu0 0.0
  %7179 = vmatprep.subr.mxu0 0.0
  %7180 = vmatpush1.msra.mxu0 0.0
  %7181 = vmatprep.subr.mxu0 0.0
  %7182 = vmatpush1.msra.mxu0 0.0
  %7183 = vmatprep.subr.mxu0 0.0
  %7184 = vmatpush1.msra.mxu0 0.0
  %7185 = vmatprep.subr.mxu0 0.0
  %7186 = vmatpush1.msra.mxu0 0.0
  %7187 = vmatprep.subr.mxu0 0.0
  %7188 = vmatpush1.msra.mxu0 0.0
  %7189 = vmatprep.subr.mxu0 0.0
  %7190 = vmatpush1.msra.mxu0 0.0
  %7191 = vmatprep.subr.mxu0 0.0
  %7192 = vmatpush1.msra.mxu0 0.0
  %7193 = vmatprep.subr.mxu0 0.0
  %7194 = vmatpush1.msra.mxu0 0.0
  %7195 = vmatprep.subr.mxu0 0.0
  %7196 = vmatpush1.msra.mxu0 0.0
  %7197 = vmatprep.subr.mxu0 0.0
  %7198 = vmatpush1.msra.mxu0 0.0
  %7199 = vmatprep.subr.mxu0 0.0
  %7200 = vmatpush1.msra.mxu0 0.0
  %7201 = vmatprep.mubr.f32.mxu0 0.0
  %v7202 = vand.u32 %v6832, 4294901760
  %7203 = vmatmul.mubr.f32.gmra.mrb[0].mxu0 %v7202
  %v7204 = vpop.f32.mrb[0].mxu0
  %v7205 = vadd.f32 %v7131, %v7204
  %v7206 = vpop.f32.mrb[0].mxu0
  %7207 = vdwg.mxu0
  %7208 = vmatprep.subr.mxu0 0.0
  %v7209 = vand.u32 %v28, 4294901760
  %7210 = vmatpush1.msra.mxu0 %v7209
  %7211 = vmatprep.subr.mxu0 0.0
  %7212 = vmatpush1.msra.mxu0 0.0
  %7213 = vmatprep.subr.mxu0 0.0
  %7214 = vmatpush1.msra.mxu0 0.0
  %7215 = vmatprep.subr.mxu0 0.0
  %7216 = vmatpush1.msra.mxu0 0.0
  %7217 = vmatprep.subr.mxu0 0.0
  %7218 = vmatpush1.msra.mxu0 0.0
  %7219 = vmatprep.subr.mxu0 0.0
  %7220 = vmatpush1.msra.mxu0 0.0
  %7221 = vmatprep.subr.mxu0 0.0
  %7222 = vmatpush1.msra.mxu0 0.0
  %7223 = vmatprep.subr.mxu0 0.0
  %7224 = vmatpush1.msra.mxu0 0.0
  %7225 = vmatprep.subr.mxu0 0.0
  %7226 = vmatpush1.msra.mxu0 0.0
  %7227 = vmatprep.subr.mxu0 0.0
  %7228 = vmatpush1.msra.mxu0 0.0
  %7229 = vmatprep.subr.mxu0 0.0
  %7230 = vmatpush1.msra.mxu0 0.0
  %7231 = vmatprep.subr.mxu0 0.0
  %7232 = vmatpush1.msra.mxu0 0.0
  %7233 = vmatprep.subr.mxu0 0.0
  %7234 = vmatpush1.msra.mxu0 0.0
  %7235 = vmatprep.subr.mxu0 0.0
  %7236 = vmatpush1.msra.mxu0 0.0
  %7237 = vmatprep.subr.mxu0 0.0
  %7238 = vmatpush1.msra.mxu0 0.0
  %7239 = vmatprep.subr.mxu0 0.0
  %7240 = vmatpush1.msra.mxu0 0.0
  %7241 = vmatprep.subr.mxu0 0.0
  %7242 = vmatpush1.msra.mxu0 0.0
  %7243 = vmatprep.subr.mxu0 0.0
  %7244 = vmatpush1.msra.mxu0 0.0
  %7245 = vmatprep.subr.mxu0 0.0
  %7246 = vmatpush1.msra.mxu0 0.0
  %7247 = vmatprep.subr.mxu0 0.0
  %7248 = vmatpush1.msra.mxu0 0.0
  %7249 = vmatprep.subr.mxu0 0.0
  %7250 = vmatpush1.msra.mxu0 0.0
  %7251 = vmatprep.subr.mxu0 0.0
  %7252 = vmatpush1.msra.mxu0 0.0
  %7253 = vmatprep.subr.mxu0 0.0
  %7254 = vmatpush1.msra.mxu0 0.0
  %7255 = vmatprep.subr.mxu0 0.0
  %7256 = vmatpush1.msra.mxu0 0.0
  %7257 = vmatprep.subr.mxu0 0.0
  %7258 = vmatpush1.msra.mxu0 0.0
  %7259 = vmatprep.subr.mxu0 0.0
  %7260 = vmatpush1.msra.mxu0 0.0
  %7261 = vmatprep.subr.mxu0 0.0
  %7262 = vmatpush1.msra.mxu0 0.0
  %7263 = vmatprep.subr.mxu0 0.0
  %7264 = vmatpush1.msra.mxu0 0.0
  %7265 = vmatprep.subr.mxu0 0.0
  %7266 = vmatpush1.msra.mxu0 0.0
  %7267 = vmatprep.subr.mxu0 0.0
  %7268 = vmatpush1.msra.mxu0 0.0
  %7269 = vmatprep.subr.mxu0 0.0
  %7270 = vmatpush1.msra.mxu0 0.0
  %7271 = vmatprep.subr.mxu0 0.0
  %7272 = vmatpush1.msra.mxu0 0.0
  %7273 = vmatprep.mubr.f32.mxu0 0.0
  %v7274 = vand.u32 %v6832, 4294901760
  %7275 = vmatmul.mubr.f32.gmra.mrb[0].mxu0 %v7274
  %v7276 = vpop.f32.mrb[0].mxu0
  %v7277 = vadd.f32 %v7205, %v7276
  %v7278 = vpop.f32.mrb[0].mxu0
  %7279 = vdwg.mxu0
  %s7280 = scalar_lea.vmem %s1, 28
  %v7281 = vld [vmem:[%s7280] sm:$0xf]
  %7282 = vset.pattern.permute.xlu0 0
  %7283 = vperm.xlu0 %7282, %v7281
  %v7284 = vpop.permute.xlu0 %7283
  %vm7285 = vcmp.eq.s32.totalorder %v490, %v7284
  %v7286 = vsel %vm7285, %v7277, 0.0
  %v7288 = vsel %vm496, %v7286, 0
  %7290 = vmatprep.subr.mxu0 0.0
  %v7291 = vand.u32 %v30, 4294901760
  %7292 = vmatpush1.msra.mxu0 %v7291
  %7293 = vmatprep.subr.mxu0 0.0
  %v7294 = vand.u32 %v31, 4294901760
  %7295 = vmatpush1.msra.mxu0 %v7294
  %7296 = vmatprep.subr.mxu0 0.0
  %v7297 = vand.u32 %v32, 4294901760
  %7298 = vmatpush1.msra.mxu0 %v7297
  %7299 = vmatprep.subr.mxu0 0.0
  %v7300 = vand.u32 %v33, 4294901760
  %7301 = vmatpush1.msra.mxu0 %v7300
  %7302 = vmatprep.subr.mxu0 0.0
  %v7303 = vand.u32 %v34, 4294901760
  %7304 = vmatpush1.msra.mxu0 %v7303
  %7305 = vmatprep.subr.mxu0 0.0
  %v7306 = vand.u32 %v35, 4294901760
  %7307 = vmatpush1.msra.mxu0 %v7306
  %7308 = vmatprep.subr.mxu0 0.0
  %7309 = vmatpush1.msra.mxu0 0.0
  %7310 = vmatprep.subr.mxu0 0.0
  %7311 = vmatpush1.msra.mxu0 0.0
  %7312 = vmatprep.subr.mxu0 0.0
  %7313 = vmatpush1.msra.mxu0 0.0
  %7314 = vmatprep.subr.mxu0 0.0
  %7315 = vmatpush1.msra.mxu0 0.0
  %7316 = vmatprep.subr.mxu0 0.0
  %7317 = vmatpush1.msra.mxu0 0.0
  %7318 = vmatprep.subr.mxu0 0.0
  %7319 = vmatpush1.msra.mxu0 0.0
  %7320 = vmatprep.subr.mxu0 0.0
  %7321 = vmatpush1.msra.mxu0 0.0
  %7322 = vmatprep.subr.mxu0 0.0
  %7323 = vmatpush1.msra.mxu0 0.0
  %7324 = vmatprep.subr.mxu0 0.0
  %7325 = vmatpush1.msra.mxu0 0.0
  %7326 = vmatprep.subr.mxu0 0.0
  %7327 = vmatpush1.msra.mxu0 0.0
  %7328 = vmatprep.subr.mxu0 0.0
  %7329 = vmatpush1.msra.mxu0 0.0
  %7330 = vmatprep.subr.mxu0 0.0
  %7331 = vmatpush1.msra.mxu0 0.0
  %7332 = vmatprep.subr.mxu0 0.0
  %7333 = vmatpush1.msra.mxu0 0.0
  %7334 = vmatprep.subr.mxu0 0.0
  %7335 = vmatpush1.msra.mxu0 0.0
  %7336 = vmatprep.subr.mxu0 0.0
  %7337 = vmatpush1.msra.mxu0 0.0
  %7338 = vmatprep.subr.mxu0 0.0
  %7339 = vmatpush1.msra.mxu0 0.0
  %7340 = vmatprep.subr.mxu0 0.0
  %7341 = vmatpush1.msra.mxu0 0.0
  %7342 = vmatprep.subr.mxu0 0.0
  %7343 = vmatpush1.msra.mxu0 0.0
  %7344 = vmatprep.subr.mxu0 0.0
  %7345 = vmatpush1.msra.mxu0 0.0
  %7346 = vmatprep.subr.mxu0 0.0
  %7347 = vmatpush1.msra.mxu0 0.0
  %7348 = vmatprep.subr.mxu0 0.0
  %7349 = vmatpush1.msra.mxu0 0.0
  %7350 = vmatprep.subr.mxu0 0.0
  %7351 = vmatpush1.msra.mxu0 0.0
  %7352 = vmatprep.subr.mxu0 0.0
  %7353 = vmatpush1.msra.mxu0 0.0
  %7354 = vmatprep.subr.mxu0 0.0
  %7355 = vmatpush1.msra.mxu0 0.0
  %7356 = vmatprep.subr.mxu0 0.0
  %7357 = vmatpush1.msra.mxu0 0.0
  %7358 = vmatprep.subr.mxu0 0.0
  %7359 = vmatpush1.msra.mxu0 0.0
  %7360 = vmatprep.mubr.f32.mxu0 0.0
  %v7361 = vand.u32 %v7288, 4294901760
  %v7362 = vsub.f32 %v7288, %v7361
  %v7363 = vand.u32 %v7362, 4294901760
  %v7364 = vsub.f32 %v7362, %v7363
  %v7365 = vand.u32 %v7364, 4294901760
  %7366 = vmatmul.mubr.f32.gmra.mrb[0].mxu0 %v7365
  %v7367 = vpop.f32.mrb[0].mxu0
  %v7368 = vadd.f32 0.0, %v7367
  %v7369 = vpop.f32.mrb[0].mxu0
  %7370 = vdwg.mxu0
  %7371 = vmatprep.subr.mxu0 0.0
  %v7372 = vand.u32 %v30, 4294901760
  %v7373 = vsub.f32 %v30, %v7372
  %v7374 = vand.u32 %v7373, 4294901760
  %v7375 = vsub.f32 %v7373, %v7374
  %v7376 = vand.u32 %v7375, 4294901760
  %7377 = vmatpush1.msra.mxu0 %v7376
  %7378 = vmatprep.subr.mxu0 0.0
  %v7379 = vand.u32 %v31, 4294901760
  %v7380 = vsub.f32 %v31, %v7379
  %v7381 = vand.u32 %v7380, 4294901760
  %v7382 = vsub.f32 %v7380, %v7381
  %v7383 = vand.u32 %v7382, 4294901760
  %7384 = vmatpush1.msra.mxu0 %v7383
  %7385 = vmatprep.subr.mxu0 0.0
  %v7386 = vand.u32 %v32, 4294901760
  %v7387 = vsub.f32 %v32, %v7386
  %v7388 = vand.u32 %v7387, 4294901760
  %v7389 = vsub.f32 %v7387, %v7388
  %v7390 = vand.u32 %v7389, 4294901760
  %7391 = vmatpush1.msra.mxu0 %v7390
  %7392 = vmatprep.subr.mxu0 0.0
  %v7393 = vand.u32 %v33, 4294901760
  %v7394 = vsub.f32 %v33, %v7393
  %v7395 = vand.u32 %v7394, 4294901760
  %v7396 = vsub.f32 %v7394, %v7395
  %v7397 = vand.u32 %v7396, 4294901760
  %7398 = vmatpush1.msra.mxu0 %v7397
  %7399 = vmatprep.subr.mxu0 0.0
  %v7400 = vand.u32 %v34, 4294901760
  %v7401 = vsub.f32 %v34, %v7400
  %v7402 = vand.u32 %v7401, 4294901760
  %v7403 = vsub.f32 %v7401, %v7402
  %v7404 = vand.u32 %v7403, 4294901760
  %7405 = vmatpush1.msra.mxu0 %v7404
  %7406 = vmatprep.subr.mxu0 0.0
  %v7407 = vand.u32 %v35, 4294901760
  %v7408 = vsub.f32 %v35, %v7407
  %v7409 = vand.u32 %v7408, 4294901760
  %v7410 = vsub.f32 %v7408, %v7409
  %v7411 = vand.u32 %v7410, 4294901760
  %7412 = vmatpush1.msra.mxu0 %v7411
  %7413 = vmatprep.subr.mxu0 0.0
  %7414 = vmatpush1.msra.mxu0 0.0
  %7415 = vmatprep.subr.mxu0 0.0
  %7416 = vmatpush1.msra.mxu0 0.0
  %7417 = vmatprep.subr.mxu0 0.0
  %7418 = vmatpush1.msra.mxu0 0.0
  %7419 = vmatprep.subr.mxu0 0.0
  %7420 = vmatpush1.msra.mxu0 0.0
  %7421 = vmatprep.subr.mxu0 0.0
  %7422 = vmatpush1.msra.mxu0 0.0
  %7423 = vmatprep.subr.mxu0 0.0
  %7424 = vmatpush1.msra.mxu0 0.0
  %7425 = vmatprep.subr.mxu0 0.0
  %7426 = vmatpush1.msra.mxu0 0.0
  %7427 = vmatprep.subr.mxu0 0.0
  %7428 = vmatpush1.msra.mxu0 0.0
  %7429 = vmatprep.subr.mxu0 0.0
  %7430 = vmatpush1.msra.mxu0 0.0
  %7431 = vmatprep.subr.mxu0 0.0
  %7432 = vmatpush1.msra.mxu0 0.0
  %7433 = vmatprep.subr.mxu0 0.0
  %7434 = vmatpush1.msra.mxu0 0.0
  %7435 = vmatprep.subr.mxu0 0.0
  %7436 = vmatpush1.msra.mxu0 0.0
  %7437 = vmatprep.subr.mxu0 0.0
  %7438 = vmatpush1.msra.mxu0 0.0
  %7439 = vmatprep.subr.mxu0 0.0
  %7440 = vmatpush1.msra.mxu0 0.0
  %7441 = vmatprep.subr.mxu0 0.0
  %7442 = vmatpush1.msra.mxu0 0.0
  %7443 = vmatprep.subr.mxu0 0.0
  %7444 = vmatpush1.msra.mxu0 0.0
  %7445 = vmatprep.subr.mxu0 0.0
  %7446 = vmatpush1.msra.mxu0 0.0
  %7447 = vmatprep.subr.mxu0 0.0
  %7448 = vmatpush1.msra.mxu0 0.0
  %7449 = vmatprep.subr.mxu0 0.0
  %7450 = vmatpush1.msra.mxu0 0.0
  %7451 = vmatprep.subr.mxu0 0.0
  %7452 = vmatpush1.msra.mxu0 0.0
  %7453 = vmatprep.subr.mxu0 0.0
  %7454 = vmatpush1.msra.mxu0 0.0
  %7455 = vmatprep.subr.mxu0 0.0
  %7456 = vmatpush1.msra.mxu0 0.0
  %7457 = vmatprep.subr.mxu0 0.0
  %7458 = vmatpush1.msra.mxu0 0.0
  %7459 = vmatprep.subr.mxu0 0.0
  %7460 = vmatpush1.msra.mxu0 0.0
  %7461 = vmatprep.subr.mxu0 0.0
  %7462 = vmatpush1.msra.mxu0 0.0
  %7463 = vmatprep.subr.mxu0 0.0
  %7464 = vmatpush1.msra.mxu0 0.0
  %7465 = vmatprep.mubr.f32.mxu0 0.0
  %v7466 = vand.u32 %v7288, 4294901760
  %7467 = vmatmul.mubr.f32.gmra.mrb[0].mxu0 %v7466
  %v7468 = vpop.f32.mrb[0].mxu0
  %v7469 = vadd.f32 %v7368, %v7468
  %v7470 = vpop.f32.mrb[0].mxu0
  %7471 = vdwg.mxu0
  %7472 = vmatprep.subr.mxu0 0.0
  %v7473 = vand.u32 %v30, 4294901760
  %v7474 = vsub.f32 %v30, %v7473
  %7475 = vmatpush1.msra.mxu0 %v7474
  %7476 = vmatprep.subr.mxu0 0.0
  %v7477 = vand.u32 %v31, 4294901760
  %v7478 = vsub.f32 %v31, %v7477
  %7479 = vmatpush1.msra.mxu0 %v7478
  %7480 = vmatprep.subr.mxu0 0.0
  %v7481 = vand.u32 %v32, 4294901760
  %v7482 = vsub.f32 %v32, %v7481
  %7483 = vmatpush1.msra.mxu0 %v7482
  %7484 = vmatprep.subr.mxu0 0.0
  %v7485 = vand.u32 %v33, 4294901760
  %v7486 = vsub.f32 %v33, %v7485
  %7487 = vmatpush1.msra.mxu0 %v7486
  %7488 = vmatprep.subr.mxu0 0.0
  %v7489 = vand.u32 %v34, 4294901760
  %v7490 = vsub.f32 %v34, %v7489
  %7491 = vmatpush1.msra.mxu0 %v7490
  %7492 = vmatprep.subr.mxu0 0.0
  %v7493 = vand.u32 %v35, 4294901760
  %v7494 = vsub.f32 %v35, %v7493
  %7495 = vmatpush1.msra.mxu0 %v7494
  %7496 = vmatprep.subr.mxu0 0.0
  %7497 = vmatpush1.msra.mxu0 0.0
  %7498 = vmatprep.subr.mxu0 0.0
  %7499 = vmatpush1.msra.mxu0 0.0
  %7500 = vmatprep.subr.mxu0 0.0
  %7501 = vmatpush1.msra.mxu0 0.0
  %7502 = vmatprep.subr.mxu0 0.0
  %7503 = vmatpush1.msra.mxu0 0.0
  %7504 = vmatprep.subr.mxu0 0.0
  %7505 = vmatpush1.msra.mxu0 0.0
  %7506 = vmatprep.subr.mxu0 0.0
  %7507 = vmatpush1.msra.mxu0 0.0
  %7508 = vmatprep.subr.mxu0 0.0
  %7509 = vmatpush1.msra.mxu0 0.0
  %7510 = vmatprep.subr.mxu0 0.0
  %7511 = vmatpush1.msra.mxu0 0.0
  %7512 = vmatprep.subr.mxu0 0.0
  %7513 = vmatpush1.msra.mxu0 0.0
  %7514 = vmatprep.subr.mxu0 0.0
  %7515 = vmatpush1.msra.mxu0 0.0
  %7516 = vmatprep.subr.mxu0 0.0
  %7517 = vmatpush1.msra.mxu0 0.0
  %7518 = vmatprep.subr.mxu0 0.0
  %7519 = vmatpush1.msra.mxu0 0.0
  %7520 = vmatprep.subr.mxu0 0.0
  %7521 = vmatpush1.msra.mxu0 0.0
  %7522 = vmatprep.subr.mxu0 0.0
  %7523 = vmatpush1.msra.mxu0 0.0
  %7524 = vmatprep.subr.mxu0 0.0
  %7525 = vmatpush1.msra.mxu0 0.0
  %7526 = vmatprep.subr.mxu0 0.0
  %7527 = vmatpush1.msra.mxu0 0.0
  %7528 = vmatprep.subr.mxu0 0.0
  %7529 = vmatpush1.msra.mxu0 0.0
  %7530 = vmatprep.subr.mxu0 0.0
  %7531 = vmatpush1.msra.mxu0 0.0
  %7532 = vmatprep.subr.mxu0 0.0
  %7533 = vmatpush1.msra.mxu0 0.0
  %7534 = vmatprep.subr.mxu0 0.0
  %7535 = vmatpush1.msra.mxu0 0.0
  %7536 = vmatprep.subr.mxu0 0.0
  %7537 = vmatpush1.msra.mxu0 0.0
  %7538 = vmatprep.subr.mxu0 0.0
  %7539 = vmatpush1.msra.mxu0 0.0
  %7540 = vmatprep.subr.mxu0 0.0
  %7541 = vmatpush1.msra.mxu0 0.0
  %7542 = vmatprep.subr.mxu0 0.0
  %7543 = vmatpush1.msra.mxu0 0.0
  %7544 = vmatprep.subr.mxu0 0.0
  %7545 = vmatpush1.msra.mxu0 0.0
  %7546 = vmatprep.subr.mxu0 0.0
  %7547 = vmatpush1.msra.mxu0 0.0
  %7548 = vmatprep.mubr.f32.mxu0 0.0
  %v7549 = vand.u32 %v7288, 4294901760
  %v7550 = vsub.f32 %v7288, %v7549
  %7551 = vmatmul.mubr.f32.gmra.mrb[0].mxu0 %v7550
  %v7552 = vpop.f32.mrb[0].mxu0
  %v7553 = vadd.f32 %v7469, %v7552
  %v7554 = vpop.f32.mrb[0].mxu0
  %7555 = vdwg.mxu0
  %7556 = vmatprep.subr.mxu0 0.0
  %v7557 = vand.u32 %v30, 4294901760
  %7558 = vmatpush1.msra.mxu0 %v7557
  %7559 = vmatprep.subr.mxu0 0.0
  %v7560 = vand.u32 %v31, 4294901760
  %7561 = vmatpush1.msra.mxu0 %v7560
  %7562 = vmatprep.subr.mxu0 0.0
  %v7563 = vand.u32 %v32, 4294901760
  %7564 = vmatpush1.msra.mxu0 %v7563
  %7565 = vmatprep.subr.mxu0 0.0
  %v7566 = vand.u32 %v33, 4294901760
  %7567 = vmatpush1.msra.mxu0 %v7566
  %7568 = vmatprep.subr.mxu0 0.0
  %v7569 = vand.u32 %v34, 4294901760
  %7570 = vmatpush1.msra.mxu0 %v7569
  %7571 = vmatprep.subr.mxu0 0.0
  %v7572 = vand.u32 %v35, 4294901760
  %7573 = vmatpush1.msra.mxu0 %v7572
  %7574 = vmatprep.subr.mxu0 0.0
  %7575 = vmatpush1.msra.mxu0 0.0
  %7576 = vmatprep.subr.mxu0 0.0
  %7577 = vmatpush1.msra.mxu0 0.0
  %7578 = vmatprep.subr.mxu0 0.0
  %7579 = vmatpush1.msra.mxu0 0.0
  %7580 = vmatprep.subr.mxu0 0.0
  %7581 = vmatpush1.msra.mxu0 0.0
  %7582 = vmatprep.subr.mxu0 0.0
  %7583 = vmatpush1.msra.mxu0 0.0
  %7584 = vmatprep.subr.mxu0 0.0
  %7585 = vmatpush1.msra.mxu0 0.0
  %7586 = vmatprep.subr.mxu0 0.0
  %7587 = vmatpush1.msra.mxu0 0.0
  %7588 = vmatprep.subr.mxu0 0.0
  %7589 = vmatpush1.msra.mxu0 0.0
  %7590 = vmatprep.subr.mxu0 0.0
  %7591 = vmatpush1.msra.mxu0 0.0
  %7592 = vmatprep.subr.mxu0 0.0
  %7593 = vmatpush1.msra.mxu0 0.0
  %7594 = vmatprep.subr.mxu0 0.0
  %7595 = vmatpush1.msra.mxu0 0.0
  %7596 = vmatprep.subr.mxu0 0.0
  %7597 = vmatpush1.msra.mxu0 0.0
  %7598 = vmatprep.subr.mxu0 0.0
  %7599 = vmatpush1.msra.mxu0 0.0
  %7600 = vmatprep.subr.mxu0 0.0
  %7601 = vmatpush1.msra.mxu0 0.0
  %7602 = vmatprep.subr.mxu0 0.0
  %7603 = vmatpush1.msra.mxu0 0.0
  %7604 = vmatprep.subr.mxu0 0.0
  %7605 = vmatpush1.msra.mxu0 0.0
  %7606 = vmatprep.subr.mxu0 0.0
  %7607 = vmatpush1.msra.mxu0 0.0
  %7608 = vmatprep.subr.mxu0 0.0
  %7609 = vmatpush1.msra.mxu0 0.0
  %7610 = vmatprep.subr.mxu0 0.0
  %7611 = vmatpush1.msra.mxu0 0.0
  %7612 = vmatprep.subr.mxu0 0.0
  %7613 = vmatpush1.msra.mxu0 0.0
  %7614 = vmatprep.subr.mxu0 0.0
  %7615 = vmatpush1.msra.mxu0 0.0
  %7616 = vmatprep.subr.mxu0 0.0
  %7617 = vmatpush1.msra.mxu0 0.0
  %7618 = vmatprep.subr.mxu0 0.0
  %7619 = vmatpush1.msra.mxu0 0.0
  %7620 = vmatprep.subr.mxu0 0.0
  %7621 = vmatpush1.msra.mxu0 0.0
  %7622 = vmatprep.subr.mxu0 0.0
  %7623 = vmatpush1.msra.mxu0 0.0
  %7624 = vmatprep.subr.mxu0 0.0
  %7625 = vmatpush1.msra.mxu0 0.0
  %7626 = vmatprep.mubr.f32.mxu0 0.0
  %v7627 = vand.u32 %v7288, 4294901760
  %v7628 = vsub.f32 %v7288, %v7627
  %v7629 = vand.u32 %v7628, 4294901760
  %7630 = vmatmul.mubr.f32.gmra.mrb[0].mxu0 %v7629
  %v7631 = vpop.f32.mrb[0].mxu0
  %v7632 = vadd.f32 %v7553, %v7631
  %v7633 = vpop.f32.mrb[0].mxu0
  %7634 = vdwg.mxu0
  %7635 = vmatprep.subr.mxu0 0.0
  %v7636 = vand.u32 %v30, 4294901760
  %v7637 = vsub.f32 %v30, %v7636
  %v7638 = vand.u32 %v7637, 4294901760
  %7639 = vmatpush1.msra.mxu0 %v7638
  %7640 = vmatprep.subr.mxu0 0.0
  %v7641 = vand.u32 %v31, 4294901760
  %v7642 = vsub.f32 %v31, %v7641
  %v7643 = vand.u32 %v7642, 4294901760
  %7644 = vmatpush1.msra.mxu0 %v7643
  %7645 = vmatprep.subr.mxu0 0.0
  %v7646 = vand.u32 %v32, 4294901760
  %v7647 = vsub.f32 %v32, %v7646
  %v7648 = vand.u32 %v7647, 4294901760
  %7649 = vmatpush1.msra.mxu0 %v7648
  %7650 = vmatprep.subr.mxu0 0.0
  %v7651 = vand.u32 %v33, 4294901760
  %v7652 = vsub.f32 %v33, %v7651
  %v7653 = vand.u32 %v7652, 4294901760
  %7654 = vmatpush1.msra.mxu0 %v7653
  %7655 = vmatprep.subr.mxu0 0.0
  %v7656 = vand.u32 %v34, 4294901760
  %v7657 = vsub.f32 %v34, %v7656
  %v7658 = vand.u32 %v7657, 4294901760
  %7659 = vmatpush1.msra.mxu0 %v7658
  %7660 = vmatprep.subr.mxu0 0.0
  %v7661 = vand.u32 %v35, 4294901760
  %v7662 = vsub.f32 %v35, %v7661
  %v7663 = vand.u32 %v7662, 4294901760
  %7664 = vmatpush1.msra.mxu0 %v7663
  %7665 = vmatprep.subr.mxu0 0.0
  %7666 = vmatpush1.msra.mxu0 0.0
  %7667 = vmatprep.subr.mxu0 0.0
  %7668 = vmatpush1.msra.mxu0 0.0
  %7669 = vmatprep.subr.mxu0 0.0
  %7670 = vmatpush1.msra.mxu0 0.0
  %7671 = vmatprep.subr.mxu0 0.0
  %7672 = vmatpush1.msra.mxu0 0.0
  %7673 = vmatprep.subr.mxu0 0.0
  %7674 = vmatpush1.msra.mxu0 0.0
  %7675 = vmatprep.subr.mxu0 0.0
  %7676 = vmatpush1.msra.mxu0 0.0
  %7677 = vmatprep.subr.mxu0 0.0
  %7678 = vmatpush1.msra.mxu0 0.0
  %7679 = vmatprep.subr.mxu0 0.0
  %7680 = vmatpush1.msra.mxu0 0.0
  %7681 = vmatprep.subr.mxu0 0.0
  %7682 = vmatpush1.msra.mxu0 0.0
  %7683 = vmatprep.subr.mxu0 0.0
  %7684 = vmatpush1.msra.mxu0 0.0
  %7685 = vmatprep.subr.mxu0 0.0
  %7686 = vmatpush1.msra.mxu0 0.0
  %7687 = vmatprep.subr.mxu0 0.0
  %7688 = vmatpush1.msra.mxu0 0.0
  %7689 = vmatprep.subr.mxu0 0.0
  %7690 = vmatpush1.msra.mxu0 0.0
  %7691 = vmatprep.subr.mxu0 0.0
  %7692 = vmatpush1.msra.mxu0 0.0
  %7693 = vmatprep.subr.mxu0 0.0
  %7694 = vmatpush1.msra.mxu0 0.0
  %7695 = vmatprep.subr.mxu0 0.0
  %7696 = vmatpush1.msra.mxu0 0.0
  %7697 = vmatprep.subr.mxu0 0.0
  %7698 = vmatpush1.msra.mxu0 0.0
  %7699 = vmatprep.subr.mxu0 0.0
  %7700 = vmatpush1.msra.mxu0 0.0
  %7701 = vmatprep.subr.mxu0 0.0
  %7702 = vmatpush1.msra.mxu0 0.0
  %7703 = vmatprep.subr.mxu0 0.0
  %7704 = vmatpush1.msra.mxu0 0.0
  %7705 = vmatprep.subr.mxu0 0.0
  %7706 = vmatpush1.msra.mxu0 0.0
  %7707 = vmatprep.subr.mxu0 0.0
  %7708 = vmatpush1.msra.mxu0 0.0
  %7709 = vmatprep.subr.mxu0 0.0
  %7710 = vmatpush1.msra.mxu0 0.0
  %7711 = vmatprep.subr.mxu0 0.0
  %7712 = vmatpush1.msra.mxu0 0.0
  %7713 = vmatprep.subr.mxu0 0.0
  %7714 = vmatpush1.msra.mxu0 0.0
  %7715 = vmatprep.subr.mxu0 0.0
  %7716 = vmatpush1.msra.mxu0 0.0
  %7717 = vmatprep.mubr.f32.mxu0 0.0
  %v7718 = vand.u32 %v7288, 4294901760
  %7719 = vmatmul.mubr.f32.gmra.mrb[0].mxu0 %v7718
  %v7720 = vpop.f32.mrb[0].mxu0
  %v7721 = vadd.f32 %v7632, %v7720
  %v7722 = vpop.f32.mrb[0].mxu0
  %7723 = vdwg.mxu0
  %7724 = vmatprep.subr.mxu0 0.0
  %v7725 = vand.u32 %v30, 4294901760
  %7726 = vmatpush1.msra.mxu0 %v7725
  %7727 = vmatprep.subr.mxu0 0.0
  %v7728 = vand.u32 %v31, 4294901760
  %7729 = vmatpush1.msra.mxu0 %v7728
  %7730 = vmatprep.subr.mxu0 0.0
  %v7731 = vand.u32 %v32, 4294901760
  %7732 = vmatpush1.msra.mxu0 %v7731
  %7733 = vmatprep.subr.mxu0 0.0
  %v7734 = vand.u32 %v33, 4294901760
  %7735 = vmatpush1.msra.mxu0 %v7734
  %7736 = vmatprep.subr.mxu0 0.0
  %v7737 = vand.u32 %v34, 4294901760
  %7738 = vmatpush1.msra.mxu0 %v7737
  %7739 = vmatprep.subr.mxu0 0.0
  %v7740 = vand.u32 %v35, 4294901760
  %7741 = vmatpush1.msra.mxu0 %v7740
  %7742 = vmatprep.subr.mxu0 0.0
  %7743 = vmatpush1.msra.mxu0 0.0
  %7744 = vmatprep.subr.mxu0 0.0
  %7745 = vmatpush1.msra.mxu0 0.0
  %7746 = vmatprep.subr.mxu0 0.0
  %7747 = vmatpush1.msra.mxu0 0.0
  %7748 = vmatprep.subr.mxu0 0.0
  %7749 = vmatpush1.msra.mxu0 0.0
  %7750 = vmatprep.subr.mxu0 0.0
  %7751 = vmatpush1.msra.mxu0 0.0
  %7752 = vmatprep.subr.mxu0 0.0
  %7753 = vmatpush1.msra.mxu0 0.0
  %7754 = vmatprep.subr.mxu0 0.0
  %7755 = vmatpush1.msra.mxu0 0.0
  %7756 = vmatprep.subr.mxu0 0.0
  %7757 = vmatpush1.msra.mxu0 0.0
  %7758 = vmatprep.subr.mxu0 0.0
  %7759 = vmatpush1.msra.mxu0 0.0
  %7760 = vmatprep.subr.mxu0 0.0
  %7761 = vmatpush1.msra.mxu0 0.0
  %7762 = vmatprep.subr.mxu0 0.0
  %7763 = vmatpush1.msra.mxu0 0.0
  %7764 = vmatprep.subr.mxu0 0.0
  %7765 = vmatpush1.msra.mxu0 0.0
  %7766 = vmatprep.subr.mxu0 0.0
  %7767 = vmatpush1.msra.mxu0 0.0
  %7768 = vmatprep.subr.mxu0 0.0
  %7769 = vmatpush1.msra.mxu0 0.0
  %7770 = vmatprep.subr.mxu0 0.0
  %7771 = vmatpush1.msra.mxu0 0.0
  %7772 = vmatprep.subr.mxu0 0.0
  %7773 = vmatpush1.msra.mxu0 0.0
  %7774 = vmatprep.subr.mxu0 0.0
  %7775 = vmatpush1.msra.mxu0 0.0
  %7776 = vmatprep.subr.mxu0 0.0
  %7777 = vmatpush1.msra.mxu0 0.0
  %7778 = vmatprep.subr.mxu0 0.0
  %7779 = vmatpush1.msra.mxu0 0.0
  %7780 = vmatprep.subr.mxu0 0.0
  %7781 = vmatpush1.msra.mxu0 0.0
  %7782 = vmatprep.subr.mxu0 0.0
  %7783 = vmatpush1.msra.mxu0 0.0
  %7784 = vmatprep.subr.mxu0 0.0
  %7785 = vmatpush1.msra.mxu0 0.0
  %7786 = vmatprep.subr.mxu0 0.0
  %7787 = vmatpush1.msra.mxu0 0.0
  %7788 = vmatprep.subr.mxu0 0.0
  %7789 = vmatpush1.msra.mxu0 0.0
  %7790 = vmatprep.subr.mxu0 0.0
  %7791 = vmatpush1.msra.mxu0 0.0
  %7792 = vmatprep.subr.mxu0 0.0
  %7793 = vmatpush1.msra.mxu0 0.0
  %7794 = vmatprep.mubr.f32.mxu0 0.0
  %v7795 = vand.u32 %v7288, 4294901760
  %7796 = vmatmul.mubr.f32.gmra.mrb[0].mxu0 %v7795
  %v7797 = vpop.f32.mrb[0].mxu0
  %v7798 = vadd.f32 %v7721, %v7797
  %v7799 = vpop.f32.mrb[0].mxu0
  %7800 = vdwg.mxu0
  %v7802 = vsel %vm36, %v7798, 0
  %7804 = vmatprep.subr.mxu0 0.0
  %v7805 = vand.u32 %v28, 4294901760
  %7806 = vmatpush1.msra.mxu0 %v7805
  %7807 = vmatprep.subr.mxu0 0.0
  %7808 = vmatpush1.msra.mxu0 0.0
  %7809 = vmatprep.subr.mxu0 0.0
  %7810 = vmatpush1.msra.mxu0 0.0
  %7811 = vmatprep.subr.mxu0 0.0
  %7812 = vmatpush1.msra.mxu0 0.0
  %7813 = vmatprep.subr.mxu0 0.0
  %7814 = vmatpush1.msra.mxu0 0.0
  %7815 = vmatprep.subr.mxu0 0.0
  %7816 = vmatpush1.msra.mxu0 0.0
  %7817 = vmatprep.subr.mxu0 0.0
  %7818 = vmatpush1.msra.mxu0 0.0
  %7819 = vmatprep.subr.mxu0 0.0
  %7820 = vmatpush1.msra.mxu0 0.0
  %7821 = vmatprep.subr.mxu0 0.0
  %7822 = vmatpush1.msra.mxu0 0.0
  %7823 = vmatprep.subr.mxu0 0.0
  %7824 = vmatpush1.msra.mxu0 0.0
  %7825 = vmatprep.subr.mxu0 0.0
  %7826 = vmatpush1.msra.mxu0 0.0
  %7827 = vmatprep.subr.mxu0 0.0
  %7828 = vmatpush1.msra.mxu0 0.0
  %7829 = vmatprep.subr.mxu0 0.0
  %7830 = vmatpush1.msra.mxu0 0.0
  %7831 = vmatprep.subr.mxu0 0.0
  %7832 = vmatpush1.msra.mxu0 0.0
  %7833 = vmatprep.subr.mxu0 0.0
  %7834 = vmatpush1.msra.mxu0 0.0
  %7835 = vmatprep.subr.mxu0 0.0
  %7836 = vmatpush1.msra.mxu0 0.0
  %7837 = vmatprep.subr.mxu0 0.0
  %7838 = vmatpush1.msra.mxu0 0.0
  %7839 = vmatprep.subr.mxu0 0.0
  %7840 = vmatpush1.msra.mxu0 0.0
  %7841 = vmatprep.subr.mxu0 0.0
  %7842 = vmatpush1.msra.mxu0 0.0
  %7843 = vmatprep.subr.mxu0 0.0
  %7844 = vmatpush1.msra.mxu0 0.0
  %7845 = vmatprep.subr.mxu0 0.0
  %7846 = vmatpush1.msra.mxu0 0.0
  %7847 = vmatprep.subr.mxu0 0.0
  %7848 = vmatpush1.msra.mxu0 0.0
  %7849 = vmatprep.subr.mxu0 0.0
  %7850 = vmatpush1.msra.mxu0 0.0
  %7851 = vmatprep.subr.mxu0 0.0
  %7852 = vmatpush1.msra.mxu0 0.0
  %7853 = vmatprep.subr.mxu0 0.0
  %7854 = vmatpush1.msra.mxu0 0.0
  %7855 = vmatprep.subr.mxu0 0.0
  %7856 = vmatpush1.msra.mxu0 0.0
  %7857 = vmatprep.subr.mxu0 0.0
  %7858 = vmatpush1.msra.mxu0 0.0
  %7859 = vmatprep.subr.mxu0 0.0
  %7860 = vmatpush1.msra.mxu0 0.0
  %7861 = vmatprep.subr.mxu0 0.0
  %7862 = vmatpush1.msra.mxu0 0.0
  %7863 = vmatprep.subr.mxu0 0.0
  %7864 = vmatpush1.msra.mxu0 0.0
  %7865 = vmatprep.subr.mxu0 0.0
  %7866 = vmatpush1.msra.mxu0 0.0
  %7867 = vmatprep.subr.mxu0 0.0
  %7868 = vmatpush1.msra.mxu0 0.0
  %7869 = vmatprep.mubr.f32.mxu0 0.0
  %v7870 = vand.u32 %v7802, 4294901760
  %v7871 = vsub.f32 %v7802, %v7870
  %v7872 = vand.u32 %v7871, 4294901760
  %v7873 = vsub.f32 %v7871, %v7872
  %v7874 = vand.u32 %v7873, 4294901760
  %7875 = vmatmul.mubr.f32.gmra.mrb[0].mxu0 %v7874
  %v7876 = vpop.f32.mrb[0].mxu0
  %v7877 = vadd.f32 0.0, %v7876
  %v7878 = vpop.f32.mrb[0].mxu0
  %7879 = vdwg.mxu0
  %7880 = vmatprep.subr.mxu0 0.0
  %v7881 = vand.u32 %v28, 4294901760
  %v7882 = vsub.f32 %v28, %v7881
  %v7883 = vand.u32 %v7882, 4294901760
  %v7884 = vsub.f32 %v7882, %v7883
  %v7885 = vand.u32 %v7884, 4294901760
  %7886 = vmatpush1.msra.mxu0 %v7885
  %7887 = vmatprep.subr.mxu0 0.0
  %7888 = vmatpush1.msra.mxu0 0.0
  %7889 = vmatprep.subr.mxu0 0.0
  %7890 = vmatpush1.msra.mxu0 0.0
  %7891 = vmatprep.subr.mxu0 0.0
  %7892 = vmatpush1.msra.mxu0 0.0
  %7893 = vmatprep.subr.mxu0 0.0
  %7894 = vmatpush1.msra.mxu0 0.0
  %7895 = vmatprep.subr.mxu0 0.0
  %7896 = vmatpush1.msra.mxu0 0.0
  %7897 = vmatprep.subr.mxu0 0.0
  %7898 = vmatpush1.msra.mxu0 0.0
  %7899 = vmatprep.subr.mxu0 0.0
  %7900 = vmatpush1.msra.mxu0 0.0
  %7901 = vmatprep.subr.mxu0 0.0
  %7902 = vmatpush1.msra.mxu0 0.0
  %7903 = vmatprep.subr.mxu0 0.0
  %7904 = vmatpush1.msra.mxu0 0.0
  %7905 = vmatprep.subr.mxu0 0.0
  %7906 = vmatpush1.msra.mxu0 0.0
  %7907 = vmatprep.subr.mxu0 0.0
  %7908 = vmatpush1.msra.mxu0 0.0
  %7909 = vmatprep.subr.mxu0 0.0
  %7910 = vmatpush1.msra.mxu0 0.0
  %7911 = vmatprep.subr.mxu0 0.0
  %7912 = vmatpush1.msra.mxu0 0.0
  %7913 = vmatprep.subr.mxu0 0.0
  %7914 = vmatpush1.msra.mxu0 0.0
  %7915 = vmatprep.subr.mxu0 0.0
  %7916 = vmatpush1.msra.mxu0 0.0
  %7917 = vmatprep.subr.mxu0 0.0
  %7918 = vmatpush1.msra.mxu0 0.0
  %7919 = vmatprep.subr.mxu0 0.0
  %7920 = vmatpush1.msra.mxu0 0.0
  %7921 = vmatprep.subr.mxu0 0.0
  %7922 = vmatpush1.msra.mxu0 0.0
  %7923 = vmatprep.subr.mxu0 0.0
  %7924 = vmatpush1.msra.mxu0 0.0
  %7925 = vmatprep.subr.mxu0 0.0
  %7926 = vmatpush1.msra.mxu0 0.0
  %7927 = vmatprep.subr.mxu0 0.0
  %7928 = vmatpush1.msra.mxu0 0.0
  %7929 = vmatprep.subr.mxu0 0.0
  %7930 = vmatpush1.msra.mxu0 0.0
  %7931 = vmatprep.subr.mxu0 0.0
  %7932 = vmatpush1.msra.mxu0 0.0
  %7933 = vmatprep.subr.mxu0 0.0
  %7934 = vmatpush1.msra.mxu0 0.0
  %7935 = vmatprep.subr.mxu0 0.0
  %7936 = vmatpush1.msra.mxu0 0.0
  %7937 = vmatprep.subr.mxu0 0.0
  %7938 = vmatpush1.msra.mxu0 0.0
  %7939 = vmatprep.subr.mxu0 0.0
  %7940 = vmatpush1.msra.mxu0 0.0
  %7941 = vmatprep.subr.mxu0 0.0
  %7942 = vmatpush1.msra.mxu0 0.0
  %7943 = vmatprep.subr.mxu0 0.0
  %7944 = vmatpush1.msra.mxu0 0.0
  %7945 = vmatprep.subr.mxu0 0.0
  %7946 = vmatpush1.msra.mxu0 0.0
  %7947 = vmatprep.subr.mxu0 0.0
  %7948 = vmatpush1.msra.mxu0 0.0
  %7949 = vmatprep.mubr.f32.mxu0 0.0
  %v7950 = vand.u32 %v7802, 4294901760
  %7951 = vmatmul.mubr.f32.gmra.mrb[0].mxu0 %v7950
  %v7952 = vpop.f32.mrb[0].mxu0
  %v7953 = vadd.f32 %v7877, %v7952
  %v7954 = vpop.f32.mrb[0].mxu0
  %7955 = vdwg.mxu0
  %7956 = vmatprep.subr.mxu0 0.0
  %v7957 = vand.u32 %v28, 4294901760
  %v7958 = vsub.f32 %v28, %v7957
  %7959 = vmatpush1.msra.mxu0 %v7958
  %7960 = vmatprep.subr.mxu0 0.0
  %7961 = vmatpush1.msra.mxu0 0.0
  %7962 = vmatprep.subr.mxu0 0.0
  %7963 = vmatpush1.msra.mxu0 0.0
  %7964 = vmatprep.subr.mxu0 0.0
  %7965 = vmatpush1.msra.mxu0 0.0
  %7966 = vmatprep.subr.mxu0 0.0
  %7967 = vmatpush1.msra.mxu0 0.0
  %7968 = vmatprep.subr.mxu0 0.0
  %7969 = vmatpush1.msra.mxu0 0.0
  %7970 = vmatprep.subr.mxu0 0.0
  %7971 = vmatpush1.msra.mxu0 0.0
  %7972 = vmatprep.subr.mxu0 0.0
  %7973 = vmatpush1.msra.mxu0 0.0
  %7974 = vmatprep.subr.mxu0 0.0
  %7975 = vmatpush1.msra.mxu0 0.0
  %7976 = vmatprep.subr.mxu0 0.0
  %7977 = vmatpush1.msra.mxu0 0.0
  %7978 = vmatprep.subr.mxu0 0.0
  %7979 = vmatpush1.msra.mxu0 0.0
  %7980 = vmatprep.subr.mxu0 0.0
  %7981 = vmatpush1.msra.mxu0 0.0
  %7982 = vmatprep.subr.mxu0 0.0
  %7983 = vmatpush1.msra.mxu0 0.0
  %7984 = vmatprep.subr.mxu0 0.0
  %7985 = vmatpush1.msra.mxu0 0.0
  %7986 = vmatprep.subr.mxu0 0.0
  %7987 = vmatpush1.msra.mxu0 0.0
  %7988 = vmatprep.subr.mxu0 0.0
  %7989 = vmatpush1.msra.mxu0 0.0
  %7990 = vmatprep.subr.mxu0 0.0
  %7991 = vmatpush1.msra.mxu0 0.0
  %7992 = vmatprep.subr.mxu0 0.0
  %7993 = vmatpush1.msra.mxu0 0.0
  %7994 = vmatprep.subr.mxu0 0.0
  %7995 = vmatpush1.msra.mxu0 0.0
  %7996 = vmatprep.subr.mxu0 0.0
  %7997 = vmatpush1.msra.mxu0 0.0
  %7998 = vmatprep.subr.mxu0 0.0
  %7999 = vmatpush1.msra.mxu0 0.0
  %8000 = vmatprep.subr.mxu0 0.0
  %8001 = vmatpush1.msra.mxu0 0.0
  %8002 = vmatprep.subr.mxu0 0.0
  %8003 = vmatpush1.msra.mxu0 0.0
  %8004 = vmatprep.subr.mxu0 0.0
  %8005 = vmatpush1.msra.mxu0 0.0
  %8006 = vmatprep.subr.mxu0 0.0
  %8007 = vmatpush1.msra.mxu0 0.0
  %8008 = vmatprep.subr.mxu0 0.0
  %8009 = vmatpush1.msra.mxu0 0.0
  %8010 = vmatprep.subr.mxu0 0.0
  %8011 = vmatpush1.msra.mxu0 0.0
  %8012 = vmatprep.subr.mxu0 0.0
  %8013 = vmatpush1.msra.mxu0 0.0
  %8014 = vmatprep.subr.mxu0 0.0
  %8015 = vmatpush1.msra.mxu0 0.0
  %8016 = vmatprep.subr.mxu0 0.0
  %8017 = vmatpush1.msra.mxu0 0.0
  %8018 = vmatprep.subr.mxu0 0.0
  %8019 = vmatpush1.msra.mxu0 0.0
  %8020 = vmatprep.subr.mxu0 0.0
  %8021 = vmatpush1.msra.mxu0 0.0
  %8022 = vmatprep.mubr.f32.mxu0 0.0
  %v8023 = vand.u32 %v7802, 4294901760
  %v8024 = vsub.f32 %v7802, %v8023
  %8025 = vmatmul.mubr.f32.gmra.mrb[0].mxu0 %v8024
  %v8026 = vpop.f32.mrb[0].mxu0
  %v8027 = vadd.f32 %v7953, %v8026
  %v8028 = vpop.f32.mrb[0].mxu0
  %8029 = vdwg.mxu0
  %8030 = vmatprep.subr.mxu0 0.0
  %v8031 = vand.u32 %v28, 4294901760
  %8032 = vmatpush1.msra.mxu0 %v8031
  %8033 = vmatprep.subr.mxu0 0.0
  %8034 = vmatpush1.msra.mxu0 0.0
  %8035 = vmatprep.subr.mxu0 0.0
  %8036 = vmatpush1.msra.mxu0 0.0
  %8037 = vmatprep.subr.mxu0 0.0
  %8038 = vmatpush1.msra.mxu0 0.0
  %8039 = vmatprep.subr.mxu0 0.0
  %8040 = vmatpush1.msra.mxu0 0.0
  %8041 = vmatprep.subr.mxu0 0.0
  %8042 = vmatpush1.msra.mxu0 0.0
  %8043 = vmatprep.subr.mxu0 0.0
  %8044 = vmatpush1.msra.mxu0 0.0
  %8045 = vmatprep.subr.mxu0 0.0
  %8046 = vmatpush1.msra.mxu0 0.0
  %8047 = vmatprep.subr.mxu0 0.0
  %8048 = vmatpush1.msra.mxu0 0.0
  %8049 = vmatprep.subr.mxu0 0.0
  %8050 = vmatpush1.msra.mxu0 0.0
  %8051 = vmatprep.subr.mxu0 0.0
  %8052 = vmatpush1.msra.mxu0 0.0
  %8053 = vmatprep.subr.mxu0 0.0
  %8054 = vmatpush1.msra.mxu0 0.0
  %8055 = vmatprep.subr.mxu0 0.0
  %8056 = vmatpush1.msra.mxu0 0.0
  %8057 = vmatprep.subr.mxu0 0.0
  %8058 = vmatpush1.msra.mxu0 0.0
  %8059 = vmatprep.subr.mxu0 0.0
  %8060 = vmatpush1.msra.mxu0 0.0
  %8061 = vmatprep.subr.mxu0 0.0
  %8062 = vmatpush1.msra.mxu0 0.0
  %8063 = vmatprep.subr.mxu0 0.0
  %8064 = vmatpush1.msra.mxu0 0.0
  %8065 = vmatprep.subr.mxu0 0.0
  %8066 = vmatpush1.msra.mxu0 0.0
  %8067 = vmatprep.subr.mxu0 0.0
  %8068 = vmatpush1.msra.mxu0 0.0
  %8069 = vmatprep.subr.mxu0 0.0
  %8070 = vmatpush1.msra.mxu0 0.0
  %8071 = vmatprep.subr.mxu0 0.0
  %8072 = vmatpush1.msra.mxu0 0.0
  %8073 = vmatprep.subr.mxu0 0.0
  %8074 = vmatpush1.msra.mxu0 0.0
  %8075 = vmatprep.subr.mxu0 0.0
  %8076 = vmatpush1.msra.mxu0 0.0
  %8077 = vmatprep.subr.mxu0 0.0
  %8078 = vmatpush1.msra.mxu0 0.0
  %8079 = vmatprep.subr.mxu0 0.0
  %8080 = vmatpush1.msra.mxu0 0.0
  %8081 = vmatprep.subr.mxu0 0.0
  %8082 = vmatpush1.msra.mxu0 0.0
  %8083 = vmatprep.subr.mxu0 0.0
  %8084 = vmatpush1.msra.mxu0 0.0
  %8085 = vmatprep.subr.mxu0 0.0
  %8086 = vmatpush1.msra.mxu0 0.0
  %8087 = vmatprep.subr.mxu0 0.0
  %8088 = vmatpush1.msra.mxu0 0.0
  %8089 = vmatprep.subr.mxu0 0.0
  %8090 = vmatpush1.msra.mxu0 0.0
  %8091 = vmatprep.subr.mxu0 0.0
  %8092 = vmatpush1.msra.mxu0 0.0
  %8093 = vmatprep.subr.mxu0 0.0
  %8094 = vmatpush1.msra.mxu0 0.0
  %8095 = vmatprep.mubr.f32.mxu0 0.0
  %v8096 = vand.u32 %v7802, 4294901760
  %v8097 = vsub.f32 %v7802, %v8096
  %v8098 = vand.u32 %v8097, 4294901760
  %8099 = vmatmul.mubr.f32.gmra.mrb[0].mxu0 %v8098
  %v8100 = vpop.f32.mrb[0].mxu0
  %v8101 = vadd.f32 %v8027, %v8100
  %v8102 = vpop.f32.mrb[0].mxu0
  %8103 = vdwg.mxu0
  %8104 = vmatprep.subr.mxu0 0.0
  %v8105 = vand.u32 %v28, 4294901760
  %v8106 = vsub.f32 %v28, %v8105
  %v8107 = vand.u32 %v8106, 4294901760
  %8108 = vmatpush1.msra.mxu0 %v8107
  %8109 = vmatprep.subr.mxu0 0.0
  %8110 = vmatpush1.msra.mxu0 0.0
  %8111 = vmatprep.subr.mxu0 0.0
  %8112 = vmatpush1.msra.mxu0 0.0
  %8113 = vmatprep.subr.mxu0 0.0
  %8114 = vmatpush1.msra.mxu0 0.0
  %8115 = vmatprep.subr.mxu0 0.0
  %8116 = vmatpush1.msra.mxu0 0.0
  %8117 = vmatprep.subr.mxu0 0.0
  %8118 = vmatpush1.msra.mxu0 0.0
  %8119 = vmatprep.subr.mxu0 0.0
  %8120 = vmatpush1.msra.mxu0 0.0
  %8121 = vmatprep.subr.mxu0 0.0
  %8122 = vmatpush1.msra.mxu0 0.0
  %8123 = vmatprep.subr.mxu0 0.0
  %8124 = vmatpush1.msra.mxu0 0.0
  %8125 = vmatprep.subr.mxu0 0.0
  %8126 = vmatpush1.msra.mxu0 0.0
  %8127 = vmatprep.subr.mxu0 0.0
  %8128 = vmatpush1.msra.mxu0 0.0
  %8129 = vmatprep.subr.mxu0 0.0
  %8130 = vmatpush1.msra.mxu0 0.0
  %8131 = vmatprep.subr.mxu0 0.0
  %8132 = vmatpush1.msra.mxu0 0.0
  %8133 = vmatprep.subr.mxu0 0.0
  %8134 = vmatpush1.msra.mxu0 0.0
  %8135 = vmatprep.subr.mxu0 0.0
  %8136 = vmatpush1.msra.mxu0 0.0
  %8137 = vmatprep.subr.mxu0 0.0
  %8138 = vmatpush1.msra.mxu0 0.0
  %8139 = vmatprep.subr.mxu0 0.0
  %8140 = vmatpush1.msra.mxu0 0.0
  %8141 = vmatprep.subr.mxu0 0.0
  %8142 = vmatpush1.msra.mxu0 0.0
  %8143 = vmatprep.subr.mxu0 0.0
  %8144 = vmatpush1.msra.mxu0 0.0
  %8145 = vmatprep.subr.mxu0 0.0
  %8146 = vmatpush1.msra.mxu0 0.0
  %8147 = vmatprep.subr.mxu0 0.0
  %8148 = vmatpush1.msra.mxu0 0.0
  %8149 = vmatprep.subr.mxu0 0.0
  %8150 = vmatpush1.msra.mxu0 0.0
  %8151 = vmatprep.subr.mxu0 0.0
  %8152 = vmatpush1.msra.mxu0 0.0
  %8153 = vmatprep.subr.mxu0 0.0
  %8154 = vmatpush1.msra.mxu0 0.0
  %8155 = vmatprep.subr.mxu0 0.0
  %8156 = vmatpush1.msra.mxu0 0.0
  %8157 = vmatprep.subr.mxu0 0.0
  %8158 = vmatpush1.msra.mxu0 0.0
  %8159 = vmatprep.subr.mxu0 0.0
  %8160 = vmatpush1.msra.mxu0 0.0
  %8161 = vmatprep.subr.mxu0 0.0
  %8162 = vmatpush1.msra.mxu0 0.0
  %8163 = vmatprep.subr.mxu0 0.0
  %8164 = vmatpush1.msra.mxu0 0.0
  %8165 = vmatprep.subr.mxu0 0.0
  %8166 = vmatpush1.msra.mxu0 0.0
  %8167 = vmatprep.subr.mxu0 0.0
  %8168 = vmatpush1.msra.mxu0 0.0
  %8169 = vmatprep.subr.mxu0 0.0
  %8170 = vmatpush1.msra.mxu0 0.0
  %8171 = vmatprep.mubr.f32.mxu0 0.0
  %v8172 = vand.u32 %v7802, 4294901760
  %8173 = vmatmul.mubr.f32.gmra.mrb[0].mxu0 %v8172
  %v8174 = vpop.f32.mrb[0].mxu0
  %v8175 = vadd.f32 %v8101, %v8174
  %v8176 = vpop.f32.mrb[0].mxu0
  %8177 = vdwg.mxu0
  %8178 = vmatprep.subr.mxu0 0.0
  %v8179 = vand.u32 %v28, 4294901760
  %8180 = vmatpush1.msra.mxu0 %v8179
  %8181 = vmatprep.subr.mxu0 0.0
  %8182 = vmatpush1.msra.mxu0 0.0
  %8183 = vmatprep.subr.mxu0 0.0
  %8184 = vmatpush1.msra.mxu0 0.0
  %8185 = vmatprep.subr.mxu0 0.0
  %8186 = vmatpush1.msra.mxu0 0.0
  %8187 = vmatprep.subr.mxu0 0.0
  %8188 = vmatpush1.msra.mxu0 0.0
  %8189 = vmatprep.subr.mxu0 0.0
  %8190 = vmatpush1.msra.mxu0 0.0
  %8191 = vmatprep.subr.mxu0 0.0
  %8192 = vmatpush1.msra.mxu0 0.0
  %8193 = vmatprep.subr.mxu0 0.0
  %8194 = vmatpush1.msra.mxu0 0.0
  %8195 = vmatprep.subr.mxu0 0.0
  %8196 = vmatpush1.msra.mxu0 0.0
  %8197 = vmatprep.subr.mxu0 0.0
  %8198 = vmatpush1.msra.mxu0 0.0
  %8199 = vmatprep.subr.mxu0 0.0
  %8200 = vmatpush1.msra.mxu0 0.0
  %8201 = vmatprep.subr.mxu0 0.0
  %8202 = vmatpush1.msra.mxu0 0.0
  %8203 = vmatprep.subr.mxu0 0.0
  %8204 = vmatpush1.msra.mxu0 0.0
  %8205 = vmatprep.subr.mxu0 0.0
  %8206 = vmatpush1.msra.mxu0 0.0
  %8207 = vmatprep.subr.mxu0 0.0
  %8208 = vmatpush1.msra.mxu0 0.0
  %8209 = vmatprep.subr.mxu0 0.0
  %8210 = vmatpush1.msra.mxu0 0.0
  %8211 = vmatprep.subr.mxu0 0.0
  %8212 = vmatpush1.msra.mxu0 0.0
  %8213 = vmatprep.subr.mxu0 0.0
  %8214 = vmatpush1.msra.mxu0 0.0
  %8215 = vmatprep.subr.mxu0 0.0
  %8216 = vmatpush1.msra.mxu0 0.0
  %8217 = vmatprep.subr.mxu0 0.0
  %8218 = vmatpush1.msra.mxu0 0.0
  %8219 = vmatprep.subr.mxu0 0.0
  %8220 = vmatpush1.msra.mxu0 0.0
  %8221 = vmatprep.subr.mxu0 0.0
  %8222 = vmatpush1.msra.mxu0 0.0
  %8223 = vmatprep.subr.mxu0 0.0
  %8224 = vmatpush1.msra.mxu0 0.0
  %8225 = vmatprep.subr.mxu0 0.0
  %8226 = vmatpush1.msra.mxu0 0.0
  %8227 = vmatprep.subr.mxu0 0.0
  %8228 = vmatpush1.msra.mxu0 0.0
  %8229 = vmatprep.subr.mxu0 0.0
  %8230 = vmatpush1.msra.mxu0 0.0
  %8231 = vmatprep.subr.mxu0 0.0
  %8232 = vmatpush1.msra.mxu0 0.0
  %8233 = vmatprep.subr.mxu0 0.0
  %8234 = vmatpush1.msra.mxu0 0.0
  %8235 = vmatprep.subr.mxu0 0.0
  %8236 = vmatpush1.msra.mxu0 0.0
  %8237 = vmatprep.subr.mxu0 0.0
  %8238 = vmatpush1.msra.mxu0 0.0
  %8239 = vmatprep.subr.mxu0 0.0
  %8240 = vmatpush1.msra.mxu0 0.0
  %8241 = vmatprep.subr.mxu0 0.0
  %8242 = vmatpush1.msra.mxu0 0.0
  %8243 = vmatprep.mubr.f32.mxu0 0.0
  %v8244 = vand.u32 %v7802, 4294901760
  %8245 = vmatmul.mubr.f32.gmra.mrb[0].mxu0 %v8244
  %v8246 = vpop.f32.mrb[0].mxu0
  %v8247 = vadd.f32 %v8175, %v8246
  %v8248 = vpop.f32.mrb[0].mxu0
  %8249 = vdwg.mxu0
  %s8250 = scalar_lea.vmem %s1, 32
  %v8251 = vld [vmem:[%s8250] sm:$0xf]
  %8252 = vset.pattern.permute.xlu0 0
  %8253 = vperm.xlu0 %8252, %v8251
  %v8254 = vpop.permute.xlu0 %8253
  %vm8255 = vcmp.eq.s32.totalorder %v490, %v8254
  %v8256 = vsel %vm8255, %v8247, 0.0
  %v8258 = vsel %vm496, %v8256, 0
  %8260 = vmatprep.subr.mxu0 0.0
  %v8261 = vand.u32 %v30, 4294901760
  %8262 = vmatpush1.msra.mxu0 %v8261
  %8263 = vmatprep.subr.mxu0 0.0
  %v8264 = vand.u32 %v31, 4294901760
  %8265 = vmatpush1.msra.mxu0 %v8264
  %8266 = vmatprep.subr.mxu0 0.0
  %v8267 = vand.u32 %v32, 4294901760
  %8268 = vmatpush1.msra.mxu0 %v8267
  %8269 = vmatprep.subr.mxu0 0.0
  %v8270 = vand.u32 %v33, 4294901760
  %8271 = vmatpush1.msra.mxu0 %v8270
  %8272 = vmatprep.subr.mxu0 0.0
  %v8273 = vand.u32 %v34, 4294901760
  %8274 = vmatpush1.msra.mxu0 %v8273
  %8275 = vmatprep.subr.mxu0 0.0
  %v8276 = vand.u32 %v35, 4294901760
  %8277 = vmatpush1.msra.mxu0 %v8276
  %8278 = vmatprep.subr.mxu0 0.0
  %8279 = vmatpush1.msra.mxu0 0.0
  %8280 = vmatprep.subr.mxu0 0.0
  %8281 = vmatpush1.msra.mxu0 0.0
  %8282 = vmatprep.subr.mxu0 0.0
  %8283 = vmatpush1.msra.mxu0 0.0
  %8284 = vmatprep.subr.mxu0 0.0
  %8285 = vmatpush1.msra.mxu0 0.0
  %8286 = vmatprep.subr.mxu0 0.0
  %8287 = vmatpush1.msra.mxu0 0.0
  %8288 = vmatprep.subr.mxu0 0.0
  %8289 = vmatpush1.msra.mxu0 0.0
  %8290 = vmatprep.subr.mxu0 0.0
  %8291 = vmatpush1.msra.mxu0 0.0
  %8292 = vmatprep.subr.mxu0 0.0
  %8293 = vmatpush1.msra.mxu0 0.0
  %8294 = vmatprep.subr.mxu0 0.0
  %8295 = vmatpush1.msra.mxu0 0.0
  %8296 = vmatprep.subr.mxu0 0.0
  %8297 = vmatpush1.msra.mxu0 0.0
  %8298 = vmatprep.subr.mxu0 0.0
  %8299 = vmatpush1.msra.mxu0 0.0
  %8300 = vmatprep.subr.mxu0 0.0
  %8301 = vmatpush1.msra.mxu0 0.0
  %8302 = vmatprep.subr.mxu0 0.0
  %8303 = vmatpush1.msra.mxu0 0.0
  %8304 = vmatprep.subr.mxu0 0.0
  %8305 = vmatpush1.msra.mxu0 0.0
  %8306 = vmatprep.subr.mxu0 0.0
  %8307 = vmatpush1.msra.mxu0 0.0
  %8308 = vmatprep.subr.mxu0 0.0
  %8309 = vmatpush1.msra.mxu0 0.0
  %8310 = vmatprep.subr.mxu0 0.0
  %8311 = vmatpush1.msra.mxu0 0.0
  %8312 = vmatprep.subr.mxu0 0.0
  %8313 = vmatpush1.msra.mxu0 0.0
  %8314 = vmatprep.subr.mxu0 0.0
  %8315 = vmatpush1.msra.mxu0 0.0
  %8316 = vmatprep.subr.mxu0 0.0
  %8317 = vmatpush1.msra.mxu0 0.0
  %8318 = vmatprep.subr.mxu0 0.0
  %8319 = vmatpush1.msra.mxu0 0.0
  %8320 = vmatprep.subr.mxu0 0.0
  %8321 = vmatpush1.msra.mxu0 0.0
  %8322 = vmatprep.subr.mxu0 0.0
  %8323 = vmatpush1.msra.mxu0 0.0
  %8324 = vmatprep.subr.mxu0 0.0
  %8325 = vmatpush1.msra.mxu0 0.0
  %8326 = vmatprep.subr.mxu0 0.0
  %8327 = vmatpush1.msra.mxu0 0.0
  %8328 = vmatprep.subr.mxu0 0.0
  %8329 = vmatpush1.msra.mxu0 0.0
  %8330 = vmatprep.mubr.f32.mxu0 0.0
  %v8331 = vand.u32 %v8258, 4294901760
  %v8332 = vsub.f32 %v8258, %v8331
  %v8333 = vand.u32 %v8332, 4294901760
  %v8334 = vsub.f32 %v8332, %v8333
  %v8335 = vand.u32 %v8334, 4294901760
  %8336 = vmatmul.mubr.f32.gmra.mrb[0].mxu0 %v8335
  %v8337 = vpop.f32.mrb[0].mxu0
  %v8338 = vadd.f32 0.0, %v8337
  %v8339 = vpop.f32.mrb[0].mxu0
  %8340 = vdwg.mxu0
  %8341 = vmatprep.subr.mxu0 0.0
  %v8342 = vand.u32 %v30, 4294901760
  %v8343 = vsub.f32 %v30, %v8342
  %v8344 = vand.u32 %v8343, 4294901760
  %v8345 = vsub.f32 %v8343, %v8344
  %v8346 = vand.u32 %v8345, 4294901760
  %8347 = vmatpush1.msra.mxu0 %v8346
  %8348 = vmatprep.subr.mxu0 0.0
  %v8349 = vand.u32 %v31, 4294901760
  %v8350 = vsub.f32 %v31, %v8349
  %v8351 = vand.u32 %v8350, 4294901760
  %v8352 = vsub.f32 %v8350, %v8351
  %v8353 = vand.u32 %v8352, 4294901760
  %8354 = vmatpush1.msra.mxu0 %v8353
  %8355 = vmatprep.subr.mxu0 0.0
  %v8356 = vand.u32 %v32, 4294901760
  %v8357 = vsub.f32 %v32, %v8356
  %v8358 = vand.u32 %v8357, 4294901760
  %v8359 = vsub.f32 %v8357, %v8358
  %v8360 = vand.u32 %v8359, 4294901760
  %8361 = vmatpush1.msra.mxu0 %v8360
  %8362 = vmatprep.subr.mxu0 0.0
  %v8363 = vand.u32 %v33, 4294901760
  %v8364 = vsub.f32 %v33, %v8363
  %v8365 = vand.u32 %v8364, 4294901760
  %v8366 = vsub.f32 %v8364, %v8365
  %v8367 = vand.u32 %v8366, 4294901760
  %8368 = vmatpush1.msra.mxu0 %v8367
  %8369 = vmatprep.subr.mxu0 0.0
  %v8370 = vand.u32 %v34, 4294901760
  %v8371 = vsub.f32 %v34, %v8370
  %v8372 = vand.u32 %v8371, 4294901760
  %v8373 = vsub.f32 %v8371, %v8372
  %v8374 = vand.u32 %v8373, 4294901760
  %8375 = vmatpush1.msra.mxu0 %v8374
  %8376 = vmatprep.subr.mxu0 0.0
  %v8377 = vand.u32 %v35, 4294901760
  %v8378 = vsub.f32 %v35, %v8377
  %v8379 = vand.u32 %v8378, 4294901760
  %v8380 = vsub.f32 %v8378, %v8379
  %v8381 = vand.u32 %v8380, 4294901760
  %8382 = vmatpush1.msra.mxu0 %v8381
  %8383 = vmatprep.subr.mxu0 0.0
  %8384 = vmatpush1.msra.mxu0 0.0
  %8385 = vmatprep.subr.mxu0 0.0
  %8386 = vmatpush1.msra.mxu0 0.0
  %8387 = vmatprep.subr.mxu0 0.0
  %8388 = vmatpush1.msra.mxu0 0.0
  %8389 = vmatprep.subr.mxu0 0.0
  %8390 = vmatpush1.msra.mxu0 0.0
  %8391 = vmatprep.subr.mxu0 0.0
  %8392 = vmatpush1.msra.mxu0 0.0
  %8393 = vmatprep.subr.mxu0 0.0
  %8394 = vmatpush1.msra.mxu0 0.0
  %8395 = vmatprep.subr.mxu0 0.0
  %8396 = vmatpush1.msra.mxu0 0.0
  %8397 = vmatprep.subr.mxu0 0.0
  %8398 = vmatpush1.msra.mxu0 0.0
  %8399 = vmatprep.subr.mxu0 0.0
  %8400 = vmatpush1.msra.mxu0 0.0
  %8401 = vmatprep.subr.mxu0 0.0
  %8402 = vmatpush1.msra.mxu0 0.0
  %8403 = vmatprep.subr.mxu0 0.0
  %8404 = vmatpush1.msra.mxu0 0.0
  %8405 = vmatprep.subr.mxu0 0.0
  %8406 = vmatpush1.msra.mxu0 0.0
  %8407 = vmatprep.subr.mxu0 0.0
  %8408 = vmatpush1.msra.mxu0 0.0
  %8409 = vmatprep.subr.mxu0 0.0
  %8410 = vmatpush1.msra.mxu0 0.0
  %8411 = vmatprep.subr.mxu0 0.0
  %8412 = vmatpush1.msra.mxu0 0.0
  %8413 = vmatprep.subr.mxu0 0.0
  %8414 = vmatpush1.msra.mxu0 0.0
  %8415 = vmatprep.subr.mxu0 0.0
  %8416 = vmatpush1.msra.mxu0 0.0
  %8417 = vmatprep.subr.mxu0 0.0
  %8418 = vmatpush1.msra.mxu0 0.0
  %8419 = vmatprep.subr.mxu0 0.0
  %8420 = vmatpush1.msra.mxu0 0.0
  %8421 = vmatprep.subr.mxu0 0.0
  %8422 = vmatpush1.msra.mxu0 0.0
  %8423 = vmatprep.subr.mxu0 0.0
  %8424 = vmatpush1.msra.mxu0 0.0
  %8425 = vmatprep.subr.mxu0 0.0
  %8426 = vmatpush1.msra.mxu0 0.0
  %8427 = vmatprep.subr.mxu0 0.0
  %8428 = vmatpush1.msra.mxu0 0.0
  %8429 = vmatprep.subr.mxu0 0.0
  %8430 = vmatpush1.msra.mxu0 0.0
  %8431 = vmatprep.subr.mxu0 0.0
  %8432 = vmatpush1.msra.mxu0 0.0
  %8433 = vmatprep.subr.mxu0 0.0
  %8434 = vmatpush1.msra.mxu0 0.0
  %8435 = vmatprep.mubr.f32.mxu0 0.0
  %v8436 = vand.u32 %v8258, 4294901760
  %8437 = vmatmul.mubr.f32.gmra.mrb[0].mxu0 %v8436
  %v8438 = vpop.f32.mrb[0].mxu0
  %v8439 = vadd.f32 %v8338, %v8438
  %v8440 = vpop.f32.mrb[0].mxu0
  %8441 = vdwg.mxu0
  %8442 = vmatprep.subr.mxu0 0.0
  %v8443 = vand.u32 %v30, 4294901760
  %v8444 = vsub.f32 %v30, %v8443
  %8445 = vmatpush1.msra.mxu0 %v8444
  %8446 = vmatprep.subr.mxu0 0.0
  %v8447 = vand.u32 %v31, 4294901760
  %v8448 = vsub.f32 %v31, %v8447
  %8449 = vmatpush1.msra.mxu0 %v8448
  %8450 = vmatprep.subr.mxu0 0.0
  %v8451 = vand.u32 %v32, 4294901760
  %v8452 = vsub.f32 %v32, %v8451
  %8453 = vmatpush1.msra.mxu0 %v8452
  %8454 = vmatprep.subr.mxu0 0.0
  %v8455 = vand.u32 %v33, 4294901760
  %v8456 = vsub.f32 %v33, %v8455
  %8457 = vmatpush1.msra.mxu0 %v8456
  %8458 = vmatprep.subr.mxu0 0.0
  %v8459 = vand.u32 %v34, 4294901760
  %v8460 = vsub.f32 %v34, %v8459
  %8461 = vmatpush1.msra.mxu0 %v8460
  %8462 = vmatprep.subr.mxu0 0.0
  %v8463 = vand.u32 %v35, 4294901760
  %v8464 = vsub.f32 %v35, %v8463
  %8465 = vmatpush1.msra.mxu0 %v8464
  %8466 = vmatprep.subr.mxu0 0.0
  %8467 = vmatpush1.msra.mxu0 0.0
  %8468 = vmatprep.subr.mxu0 0.0
  %8469 = vmatpush1.msra.mxu0 0.0
  %8470 = vmatprep.subr.mxu0 0.0
  %8471 = vmatpush1.msra.mxu0 0.0
  %8472 = vmatprep.subr.mxu0 0.0
  %8473 = vmatpush1.msra.mxu0 0.0
  %8474 = vmatprep.subr.mxu0 0.0
  %8475 = vmatpush1.msra.mxu0 0.0
  %8476 = vmatprep.subr.mxu0 0.0
  %8477 = vmatpush1.msra.mxu0 0.0
  %8478 = vmatprep.subr.mxu0 0.0
  %8479 = vmatpush1.msra.mxu0 0.0
  %8480 = vmatprep.subr.mxu0 0.0
  %8481 = vmatpush1.msra.mxu0 0.0
  %8482 = vmatprep.subr.mxu0 0.0
  %8483 = vmatpush1.msra.mxu0 0.0
  %8484 = vmatprep.subr.mxu0 0.0
  %8485 = vmatpush1.msra.mxu0 0.0
  %8486 = vmatprep.subr.mxu0 0.0
  %8487 = vmatpush1.msra.mxu0 0.0
  %8488 = vmatprep.subr.mxu0 0.0
  %8489 = vmatpush1.msra.mxu0 0.0
  %8490 = vmatprep.subr.mxu0 0.0
  %8491 = vmatpush1.msra.mxu0 0.0
  %8492 = vmatprep.subr.mxu0 0.0
  %8493 = vmatpush1.msra.mxu0 0.0
  %8494 = vmatprep.subr.mxu0 0.0
  %8495 = vmatpush1.msra.mxu0 0.0
  %8496 = vmatprep.subr.mxu0 0.0
  %8497 = vmatpush1.msra.mxu0 0.0
  %8498 = vmatprep.subr.mxu0 0.0
  %8499 = vmatpush1.msra.mxu0 0.0
  %8500 = vmatprep.subr.mxu0 0.0
  %8501 = vmatpush1.msra.mxu0 0.0
  %8502 = vmatprep.subr.mxu0 0.0
  %8503 = vmatpush1.msra.mxu0 0.0
  %8504 = vmatprep.subr.mxu0 0.0
  %8505 = vmatpush1.msra.mxu0 0.0
  %8506 = vmatprep.subr.mxu0 0.0
  %8507 = vmatpush1.msra.mxu0 0.0
  %8508 = vmatprep.subr.mxu0 0.0
  %8509 = vmatpush1.msra.mxu0 0.0
  %8510 = vmatprep.subr.mxu0 0.0
  %8511 = vmatpush1.msra.mxu0 0.0
  %8512 = vmatprep.subr.mxu0 0.0
  %8513 = vmatpush1.msra.mxu0 0.0
  %8514 = vmatprep.subr.mxu0 0.0
  %8515 = vmatpush1.msra.mxu0 0.0
  %8516 = vmatprep.subr.mxu0 0.0
  %8517 = vmatpush1.msra.mxu0 0.0
  %8518 = vmatprep.mubr.f32.mxu0 0.0
  %v8519 = vand.u32 %v8258, 4294901760
  %v8520 = vsub.f32 %v8258, %v8519
  %8521 = vmatmul.mubr.f32.gmra.mrb[0].mxu0 %v8520
  %v8522 = vpop.f32.mrb[0].mxu0
  %v8523 = vadd.f32 %v8439, %v8522
  %v8524 = vpop.f32.mrb[0].mxu0
  %8525 = vdwg.mxu0
  %8526 = vmatprep.subr.mxu0 0.0
  %v8527 = vand.u32 %v30, 4294901760
  %8528 = vmatpush1.msra.mxu0 %v8527
  %8529 = vmatprep.subr.mxu0 0.0
  %v8530 = vand.u32 %v31, 4294901760
  %8531 = vmatpush1.msra.mxu0 %v8530
  %8532 = vmatprep.subr.mxu0 0.0
  %v8533 = vand.u32 %v32, 4294901760
  %8534 = vmatpush1.msra.mxu0 %v8533
  %8535 = vmatprep.subr.mxu0 0.0
  %v8536 = vand.u32 %v33, 4294901760
  %8537 = vmatpush1.msra.mxu0 %v8536
  %8538 = vmatprep.subr.mxu0 0.0
  %v8539 = vand.u32 %v34, 4294901760
  %8540 = vmatpush1.msra.mxu0 %v8539
  %8541 = vmatprep.subr.mxu0 0.0
  %v8542 = vand.u32 %v35, 4294901760
  %8543 = vmatpush1.msra.mxu0 %v8542
  %8544 = vmatprep.subr.mxu0 0.0
  %8545 = vmatpush1.msra.mxu0 0.0
  %8546 = vmatprep.subr.mxu0 0.0
  %8547 = vmatpush1.msra.mxu0 0.0
  %8548 = vmatprep.subr.mxu0 0.0
  %8549 = vmatpush1.msra.mxu0 0.0
  %8550 = vmatprep.subr.mxu0 0.0
  %8551 = vmatpush1.msra.mxu0 0.0
  %8552 = vmatprep.subr.mxu0 0.0
  %8553 = vmatpush1.msra.mxu0 0.0
  %8554 = vmatprep.subr.mxu0 0.0
  %8555 = vmatpush1.msra.mxu0 0.0
  %8556 = vmatprep.subr.mxu0 0.0
  %8557 = vmatpush1.msra.mxu0 0.0
  %8558 = vmatprep.subr.mxu0 0.0
  %8559 = vmatpush1.msra.mxu0 0.0
  %8560 = vmatprep.subr.mxu0 0.0
  %8561 = vmatpush1.msra.mxu0 0.0
  %8562 = vmatprep.subr.mxu0 0.0
  %8563 = vmatpush1.msra.mxu0 0.0
  %8564 = vmatprep.subr.mxu0 0.0
  %8565 = vmatpush1.msra.mxu0 0.0
  %8566 = vmatprep.subr.mxu0 0.0
  %8567 = vmatpush1.msra.mxu0 0.0
  %8568 = vmatprep.subr.mxu0 0.0
  %8569 = vmatpush1.msra.mxu0 0.0
  %8570 = vmatprep.subr.mxu0 0.0
  %8571 = vmatpush1.msra.mxu0 0.0
  %8572 = vmatprep.subr.mxu0 0.0
  %8573 = vmatpush1.msra.mxu0 0.0
  %8574 = vmatprep.subr.mxu0 0.0
  %8575 = vmatpush1.msra.mxu0 0.0
  %8576 = vmatprep.subr.mxu0 0.0
  %8577 = vmatpush1.msra.mxu0 0.0
  %8578 = vmatprep.subr.mxu0 0.0
  %8579 = vmatpush1.msra.mxu0 0.0
  %8580 = vmatprep.subr.mxu0 0.0
  %8581 = vmatpush1.msra.mxu0 0.0
  %8582 = vmatprep.subr.mxu0 0.0
  %8583 = vmatpush1.msra.mxu0 0.0
  %8584 = vmatprep.subr.mxu0 0.0
  %8585 = vmatpush1.msra.mxu0 0.0
  %8586 = vmatprep.subr.mxu0 0.0
  %8587 = vmatpush1.msra.mxu0 0.0
  %8588 = vmatprep.subr.mxu0 0.0
  %8589 = vmatpush1.msra.mxu0 0.0
  %8590 = vmatprep.subr.mxu0 0.0
  %8591 = vmatpush1.msra.mxu0 0.0
  %8592 = vmatprep.subr.mxu0 0.0
  %8593 = vmatpush1.msra.mxu0 0.0
  %8594 = vmatprep.subr.mxu0 0.0
  %8595 = vmatpush1.msra.mxu0 0.0
  %8596 = vmatprep.mubr.f32.mxu0 0.0
  %v8597 = vand.u32 %v8258, 4294901760
  %v8598 = vsub.f32 %v8258, %v8597
  %v8599 = vand.u32 %v8598, 4294901760
  %8600 = vmatmul.mubr.f32.gmra.mrb[0].mxu0 %v8599
  %v8601 = vpop.f32.mrb[0].mxu0
  %v8602 = vadd.f32 %v8523, %v8601
  %v8603 = vpop.f32.mrb[0].mxu0
  %8604 = vdwg.mxu0
  %8605 = vmatprep.subr.mxu0 0.0
  %v8606 = vand.u32 %v30, 4294901760
  %v8607 = vsub.f32 %v30, %v8606
  %v8608 = vand.u32 %v8607, 4294901760
  %8609 = vmatpush1.msra.mxu0 %v8608
  %8610 = vmatprep.subr.mxu0 0.0
  %v8611 = vand.u32 %v31, 4294901760
  %v8612 = vsub.f32 %v31, %v8611
  %v8613 = vand.u32 %v8612, 4294901760
  %8614 = vmatpush1.msra.mxu0 %v8613
  %8615 = vmatprep.subr.mxu0 0.0
  %v8616 = vand.u32 %v32, 4294901760
  %v8617 = vsub.f32 %v32, %v8616
  %v8618 = vand.u32 %v8617, 4294901760
  %8619 = vmatpush1.msra.mxu0 %v8618
  %8620 = vmatprep.subr.mxu0 0.0
  %v8621 = vand.u32 %v33, 4294901760
  %v8622 = vsub.f32 %v33, %v8621
  %v8623 = vand.u32 %v8622, 4294901760
  %8624 = vmatpush1.msra.mxu0 %v8623
  %8625 = vmatprep.subr.mxu0 0.0
  %v8626 = vand.u32 %v34, 4294901760
  %v8627 = vsub.f32 %v34, %v8626
  %v8628 = vand.u32 %v8627, 4294901760
  %8629 = vmatpush1.msra.mxu0 %v8628
  %8630 = vmatprep.subr.mxu0 0.0
  %v8631 = vand.u32 %v35, 4294901760
  %v8632 = vsub.f32 %v35, %v8631
  %v8633 = vand.u32 %v8632, 4294901760
  %8634 = vmatpush1.msra.mxu0 %v8633
  %8635 = vmatprep.subr.mxu0 0.0
  %8636 = vmatpush1.msra.mxu0 0.0
  %8637 = vmatprep.subr.mxu0 0.0
  %8638 = vmatpush1.msra.mxu0 0.0
  %8639 = vmatprep.subr.mxu0 0.0
  %8640 = vmatpush1.msra.mxu0 0.0
  %8641 = vmatprep.subr.mxu0 0.0
  %8642 = vmatpush1.msra.mxu0 0.0
  %8643 = vmatprep.subr.mxu0 0.0
  %8644 = vmatpush1.msra.mxu0 0.0
  %8645 = vmatprep.subr.mxu0 0.0
  %8646 = vmatpush1.msra.mxu0 0.0
  %8647 = vmatprep.subr.mxu0 0.0
  %8648 = vmatpush1.msra.mxu0 0.0
  %8649 = vmatprep.subr.mxu0 0.0
  %8650 = vmatpush1.msra.mxu0 0.0
  %8651 = vmatprep.subr.mxu0 0.0
  %8652 = vmatpush1.msra.mxu0 0.0
  %8653 = vmatprep.subr.mxu0 0.0
  %8654 = vmatpush1.msra.mxu0 0.0
  %8655 = vmatprep.subr.mxu0 0.0
  %8656 = vmatpush1.msra.mxu0 0.0
  %8657 = vmatprep.subr.mxu0 0.0
  %8658 = vmatpush1.msra.mxu0 0.0
  %8659 = vmatprep.subr.mxu0 0.0
  %8660 = vmatpush1.msra.mxu0 0.0
  %8661 = vmatprep.subr.mxu0 0.0
  %8662 = vmatpush1.msra.mxu0 0.0
  %8663 = vmatprep.subr.mxu0 0.0
  %8664 = vmatpush1.msra.mxu0 0.0
  %8665 = vmatprep.subr.mxu0 0.0
  %8666 = vmatpush1.msra.mxu0 0.0
  %8667 = vmatprep.subr.mxu0 0.0
  %8668 = vmatpush1.msra.mxu0 0.0
  %8669 = vmatprep.subr.mxu0 0.0
  %8670 = vmatpush1.msra.mxu0 0.0
  %8671 = vmatprep.subr.mxu0 0.0
  %8672 = vmatpush1.msra.mxu0 0.0
  %8673 = vmatprep.subr.mxu0 0.0
  %8674 = vmatpush1.msra.mxu0 0.0
  %8675 = vmatprep.subr.mxu0 0.0
  %8676 = vmatpush1.msra.mxu0 0.0
  %8677 = vmatprep.subr.mxu0 0.0
  %8678 = vmatpush1.msra.mxu0 0.0
  %8679 = vmatprep.subr.mxu0 0.0
  %8680 = vmatpush1.msra.mxu0 0.0
  %8681 = vmatprep.subr.mxu0 0.0
  %8682 = vmatpush1.msra.mxu0 0.0
  %8683 = vmatprep.subr.mxu0 0.0
  %8684 = vmatpush1.msra.mxu0 0.0
  %8685 = vmatprep.subr.mxu0 0.0
  %8686 = vmatpush1.msra.mxu0 0.0
  %8687 = vmatprep.mubr.f32.mxu0 0.0
  %v8688 = vand.u32 %v8258, 4294901760
  %8689 = vmatmul.mubr.f32.gmra.mrb[0].mxu0 %v8688
  %v8690 = vpop.f32.mrb[0].mxu0
  %v8691 = vadd.f32 %v8602, %v8690
  %v8692 = vpop.f32.mrb[0].mxu0
  %8693 = vdwg.mxu0
  %8694 = vmatprep.subr.mxu0 0.0
  %v8695 = vand.u32 %v30, 4294901760
  %8696 = vmatpush1.msra.mxu0 %v8695
  %8697 = vmatprep.subr.mxu0 0.0
  %v8698 = vand.u32 %v31, 4294901760
  %8699 = vmatpush1.msra.mxu0 %v8698
  %8700 = vmatprep.subr.mxu0 0.0
  %v8701 = vand.u32 %v32, 4294901760
  %8702 = vmatpush1.msra.mxu0 %v8701
  %8703 = vmatprep.subr.mxu0 0.0
  %v8704 = vand.u32 %v33, 4294901760
  %8705 = vmatpush1.msra.mxu0 %v8704
  %8706 = vmatprep.subr.mxu0 0.0
  %v8707 = vand.u32 %v34, 4294901760
  %8708 = vmatpush1.msra.mxu0 %v8707
  %8709 = vmatprep.subr.mxu0 0.0
  %v8710 = vand.u32 %v35, 4294901760
  %8711 = vmatpush1.msra.mxu0 %v8710
  %8712 = vmatprep.subr.mxu0 0.0
  %8713 = vmatpush1.msra.mxu0 0.0
  %8714 = vmatprep.subr.mxu0 0.0
  %8715 = vmatpush1.msra.mxu0 0.0
  %8716 = vmatprep.subr.mxu0 0.0
  %8717 = vmatpush1.msra.mxu0 0.0
  %8718 = vmatprep.subr.mxu0 0.0
  %8719 = vmatpush1.msra.mxu0 0.0
  %8720 = vmatprep.subr.mxu0 0.0
  %8721 = vmatpush1.msra.mxu0 0.0
  %8722 = vmatprep.subr.mxu0 0.0
  %8723 = vmatpush1.msra.mxu0 0.0
  %8724 = vmatprep.subr.mxu0 0.0
  %8725 = vmatpush1.msra.mxu0 0.0
  %8726 = vmatprep.subr.mxu0 0.0
  %8727 = vmatpush1.msra.mxu0 0.0
  %8728 = vmatprep.subr.mxu0 0.0
  %8729 = vmatpush1.msra.mxu0 0.0
  %8730 = vmatprep.subr.mxu0 0.0
  %8731 = vmatpush1.msra.mxu0 0.0
  %8732 = vmatprep.subr.mxu0 0.0
  %8733 = vmatpush1.msra.mxu0 0.0
  %8734 = vmatprep.subr.mxu0 0.0
  %8735 = vmatpush1.msra.mxu0 0.0
  %8736 = vmatprep.subr.mxu0 0.0
  %8737 = vmatpush1.msra.mxu0 0.0
  %8738 = vmatprep.subr.mxu0 0.0
  %8739 = vmatpush1.msra.mxu0 0.0
  %8740 = vmatprep.subr.mxu0 0.0
  %8741 = vmatpush1.msra.mxu0 0.0
  %8742 = vmatprep.subr.mxu0 0.0
  %8743 = vmatpush1.msra.mxu0 0.0
  %8744 = vmatprep.subr.mxu0 0.0
  %8745 = vmatpush1.msra.mxu0 0.0
  %8746 = vmatprep.subr.mxu0 0.0
  %8747 = vmatpush1.msra.mxu0 0.0
  %8748 = vmatprep.subr.mxu0 0.0
  %8749 = vmatpush1.msra.mxu0 0.0
  %8750 = vmatprep.subr.mxu0 0.0
  %8751 = vmatpush1.msra.mxu0 0.0
  %8752 = vmatprep.subr.mxu0 0.0
  %8753 = vmatpush1.msra.mxu0 0.0
  %8754 = vmatprep.subr.mxu0 0.0
  %8755 = vmatpush1.msra.mxu0 0.0
  %8756 = vmatprep.subr.mxu0 0.0
  %8757 = vmatpush1.msra.mxu0 0.0
  %8758 = vmatprep.subr.mxu0 0.0
  %8759 = vmatpush1.msra.mxu0 0.0
  %8760 = vmatprep.subr.mxu0 0.0
  %8761 = vmatpush1.msra.mxu0 0.0
  %8762 = vmatprep.subr.mxu0 0.0
  %8763 = vmatpush1.msra.mxu0 0.0
  %8764 = vmatprep.mubr.f32.mxu0 0.0
  %v8765 = vand.u32 %v8258, 4294901760
  %8766 = vmatmul.mubr.f32.gmra.mrb[0].mxu0 %v8765
  %v8767 = vpop.f32.mrb[0].mxu0
  %v8768 = vadd.f32 %v8691, %v8767
  %v8769 = vpop.f32.mrb[0].mxu0
  %8770 = vdwg.mxu0
  %v8772 = vsel %vm36, %v8768, 0
  %8774 = vmatprep.subr.mxu0 0.0
  %v8775 = vand.u32 %v28, 4294901760
  %8776 = vmatpush1.msra.mxu0 %v8775
  %8777 = vmatprep.subr.mxu0 0.0
  %8778 = vmatpush1.msra.mxu0 0.0
  %8779 = vmatprep.subr.mxu0 0.0
  %8780 = vmatpush1.msra.mxu0 0.0
  %8781 = vmatprep.subr.mxu0 0.0
  %8782 = vmatpush1.msra.mxu0 0.0
  %8783 = vmatprep.subr.mxu0 0.0
  %8784 = vmatpush1.msra.mxu0 0.0
  %8785 = vmatprep.subr.mxu0 0.0
  %8786 = vmatpush1.msra.mxu0 0.0
  %8787 = vmatprep.subr.mxu0 0.0
  %8788 = vmatpush1.msra.mxu0 0.0
  %8789 = vmatprep.subr.mxu0 0.0
  %8790 = vmatpush1.msra.mxu0 0.0
  %8791 = vmatprep.subr.mxu0 0.0
  %8792 = vmatpush1.msra.mxu0 0.0
  %8793 = vmatprep.subr.mxu0 0.0
  %8794 = vmatpush1.msra.mxu0 0.0
  %8795 = vmatprep.subr.mxu0 0.0
  %8796 = vmatpush1.msra.mxu0 0.0
  %8797 = vmatprep.subr.mxu0 0.0
  %8798 = vmatpush1.msra.mxu0 0.0
  %8799 = vmatprep.subr.mxu0 0.0
  %8800 = vmatpush1.msra.mxu0 0.0
  %8801 = vmatprep.subr.mxu0 0.0
  %8802 = vmatpush1.msra.mxu0 0.0
  %8803 = vmatprep.subr.mxu0 0.0
  %8804 = vmatpush1.msra.mxu0 0.0
  %8805 = vmatprep.subr.mxu0 0.0
  %8806 = vmatpush1.msra.mxu0 0.0
  %8807 = vmatprep.subr.mxu0 0.0
  %8808 = vmatpush1.msra.mxu0 0.0
  %8809 = vmatprep.subr.mxu0 0.0
  %8810 = vmatpush1.msra.mxu0 0.0
  %8811 = vmatprep.subr.mxu0 0.0
  %8812 = vmatpush1.msra.mxu0 0.0
  %8813 = vmatprep.subr.mxu0 0.0
  %8814 = vmatpush1.msra.mxu0 0.0
  %8815 = vmatprep.subr.mxu0 0.0
  %8816 = vmatpush1.msra.mxu0 0.0
  %8817 = vmatprep.subr.mxu0 0.0
  %8818 = vmatpush1.msra.mxu0 0.0
  %8819 = vmatprep.subr.mxu0 0.0
  %8820 = vmatpush1.msra.mxu0 0.0
  %8821 = vmatprep.subr.mxu0 0.0
  %8822 = vmatpush1.msra.mxu0 0.0
  %8823 = vmatprep.subr.mxu0 0.0
  %8824 = vmatpush1.msra.mxu0 0.0
  %8825 = vmatprep.subr.mxu0 0.0
  %8826 = vmatpush1.msra.mxu0 0.0
  %8827 = vmatprep.subr.mxu0 0.0
  %8828 = vmatpush1.msra.mxu0 0.0
  %8829 = vmatprep.subr.mxu0 0.0
  %8830 = vmatpush1.msra.mxu0 0.0
  %8831 = vmatprep.subr.mxu0 0.0
  %8832 = vmatpush1.msra.mxu0 0.0
  %8833 = vmatprep.subr.mxu0 0.0
  %8834 = vmatpush1.msra.mxu0 0.0
  %8835 = vmatprep.subr.mxu0 0.0
  %8836 = vmatpush1.msra.mxu0 0.0
  %8837 = vmatprep.subr.mxu0 0.0
  %8838 = vmatpush1.msra.mxu0 0.0
  %8839 = vmatprep.mubr.f32.mxu0 0.0
  %v8840 = vand.u32 %v8772, 4294901760
  %v8841 = vsub.f32 %v8772, %v8840
  %v8842 = vand.u32 %v8841, 4294901760
  %v8843 = vsub.f32 %v8841, %v8842
  %v8844 = vand.u32 %v8843, 4294901760
  %8845 = vmatmul.mubr.f32.gmra.mrb[0].mxu0 %v8844
  %v8846 = vpop.f32.mrb[0].mxu0
  %v8847 = vadd.f32 0.0, %v8846
  %v8848 = vpop.f32.mrb[0].mxu0
  %8849 = vdwg.mxu0
  %8850 = vmatprep.subr.mxu0 0.0
  %v8851 = vand.u32 %v28, 4294901760
  %v8852 = vsub.f32 %v28, %v8851
  %v8853 = vand.u32 %v8852, 4294901760
  %v8854 = vsub.f32 %v8852, %v8853
  %v8855 = vand.u32 %v8854, 4294901760
  %8856 = vmatpush1.msra.mxu0 %v8855
  %8857 = vmatprep.subr.mxu0 0.0
  %8858 = vmatpush1.msra.mxu0 0.0
  %8859 = vmatprep.subr.mxu0 0.0
  %8860 = vmatpush1.msra.mxu0 0.0
  %8861 = vmatprep.subr.mxu0 0.0
  %8862 = vmatpush1.msra.mxu0 0.0
  %8863 = vmatprep.subr.mxu0 0.0
  %8864 = vmatpush1.msra.mxu0 0.0
  %8865 = vmatprep.subr.mxu0 0.0
  %8866 = vmatpush1.msra.mxu0 0.0
  %8867 = vmatprep.subr.mxu0 0.0
  %8868 = vmatpush1.msra.mxu0 0.0
  %8869 = vmatprep.subr.mxu0 0.0
  %8870 = vmatpush1.msra.mxu0 0.0
  %8871 = vmatprep.subr.mxu0 0.0
  %8872 = vmatpush1.msra.mxu0 0.0
  %8873 = vmatprep.subr.mxu0 0.0
  %8874 = vmatpush1.msra.mxu0 0.0
  %8875 = vmatprep.subr.mxu0 0.0
  %8876 = vmatpush1.msra.mxu0 0.0
  %8877 = vmatprep.subr.mxu0 0.0
  %8878 = vmatpush1.msra.mxu0 0.0
  %8879 = vmatprep.subr.mxu0 0.0
  %8880 = vmatpush1.msra.mxu0 0.0
  %8881 = vmatprep.subr.mxu0 0.0
  %8882 = vmatpush1.msra.mxu0 0.0
  %8883 = vmatprep.subr.mxu0 0.0
  %8884 = vmatpush1.msra.mxu0 0.0
  %8885 = vmatprep.subr.mxu0 0.0
  %8886 = vmatpush1.msra.mxu0 0.0
  %8887 = vmatprep.subr.mxu0 0.0
  %8888 = vmatpush1.msra.mxu0 0.0
  %8889 = vmatprep.subr.mxu0 0.0
  %8890 = vmatpush1.msra.mxu0 0.0
  %8891 = vmatprep.subr.mxu0 0.0
  %8892 = vmatpush1.msra.mxu0 0.0
  %8893 = vmatprep.subr.mxu0 0.0
  %8894 = vmatpush1.msra.mxu0 0.0
  %8895 = vmatprep.subr.mxu0 0.0
  %8896 = vmatpush1.msra.mxu0 0.0
  %8897 = vmatprep.subr.mxu0 0.0
  %8898 = vmatpush1.msra.mxu0 0.0
  %8899 = vmatprep.subr.mxu0 0.0
  %8900 = vmatpush1.msra.mxu0 0.0
  %8901 = vmatprep.subr.mxu0 0.0
  %8902 = vmatpush1.msra.mxu0 0.0
  %8903 = vmatprep.subr.mxu0 0.0
  %8904 = vmatpush1.msra.mxu0 0.0
  %8905 = vmatprep.subr.mxu0 0.0
  %8906 = vmatpush1.msra.mxu0 0.0
  %8907 = vmatprep.subr.mxu0 0.0
  %8908 = vmatpush1.msra.mxu0 0.0
  %8909 = vmatprep.subr.mxu0 0.0
  %8910 = vmatpush1.msra.mxu0 0.0
  %8911 = vmatprep.subr.mxu0 0.0
  %8912 = vmatpush1.msra.mxu0 0.0
  %8913 = vmatprep.subr.mxu0 0.0
  %8914 = vmatpush1.msra.mxu0 0.0
  %8915 = vmatprep.subr.mxu0 0.0
  %8916 = vmatpush1.msra.mxu0 0.0
  %8917 = vmatprep.subr.mxu0 0.0
  %8918 = vmatpush1.msra.mxu0 0.0
  %8919 = vmatprep.mubr.f32.mxu0 0.0
  %v8920 = vand.u32 %v8772, 4294901760
  %8921 = vmatmul.mubr.f32.gmra.mrb[0].mxu0 %v8920
  %v8922 = vpop.f32.mrb[0].mxu0
  %v8923 = vadd.f32 %v8847, %v8922
  %v8924 = vpop.f32.mrb[0].mxu0
  %8925 = vdwg.mxu0
  %8926 = vmatprep.subr.mxu0 0.0
  %v8927 = vand.u32 %v28, 4294901760
  %v8928 = vsub.f32 %v28, %v8927
  %8929 = vmatpush1.msra.mxu0 %v8928
  %8930 = vmatprep.subr.mxu0 0.0
  %8931 = vmatpush1.msra.mxu0 0.0
  %8932 = vmatprep.subr.mxu0 0.0
  %8933 = vmatpush1.msra.mxu0 0.0
  %8934 = vmatprep.subr.mxu0 0.0
  %8935 = vmatpush1.msra.mxu0 0.0
  %8936 = vmatprep.subr.mxu0 0.0
  %8937 = vmatpush1.msra.mxu0 0.0
  %8938 = vmatprep.subr.mxu0 0.0
  %8939 = vmatpush1.msra.mxu0 0.0
  %8940 = vmatprep.subr.mxu0 0.0
  %8941 = vmatpush1.msra.mxu0 0.0
  %8942 = vmatprep.subr.mxu0 0.0
  %8943 = vmatpush1.msra.mxu0 0.0
  %8944 = vmatprep.subr.mxu0 0.0
  %8945 = vmatpush1.msra.mxu0 0.0
  %8946 = vmatprep.subr.mxu0 0.0
  %8947 = vmatpush1.msra.mxu0 0.0
  %8948 = vmatprep.subr.mxu0 0.0
  %8949 = vmatpush1.msra.mxu0 0.0
  %8950 = vmatprep.subr.mxu0 0.0
  %8951 = vmatpush1.msra.mxu0 0.0
  %8952 = vmatprep.subr.mxu0 0.0
  %8953 = vmatpush1.msra.mxu0 0.0
  %8954 = vmatprep.subr.mxu0 0.0
  %8955 = vmatpush1.msra.mxu0 0.0
  %8956 = vmatprep.subr.mxu0 0.0
  %8957 = vmatpush1.msra.mxu0 0.0
  %8958 = vmatprep.subr.mxu0 0.0
  %8959 = vmatpush1.msra.mxu0 0.0
  %8960 = vmatprep.subr.mxu0 0.0
  %8961 = vmatpush1.msra.mxu0 0.0
  %8962 = vmatprep.subr.mxu0 0.0
  %8963 = vmatpush1.msra.mxu0 0.0
  %8964 = vmatprep.subr.mxu0 0.0
  %8965 = vmatpush1.msra.mxu0 0.0
  %8966 = vmatprep.subr.mxu0 0.0
  %8967 = vmatpush1.msra.mxu0 0.0
  %8968 = vmatprep.subr.mxu0 0.0
  %8969 = vmatpush1.msra.mxu0 0.0
  %8970 = vmatprep.subr.mxu0 0.0
  %8971 = vmatpush1.msra.mxu0 0.0
  %8972 = vmatprep.subr.mxu0 0.0
  %8973 = vmatpush1.msra.mxu0 0.0
  %8974 = vmatprep.subr.mxu0 0.0
  %8975 = vmatpush1.msra.mxu0 0.0
  %8976 = vmatprep.subr.mxu0 0.0
  %8977 = vmatpush1.msra.mxu0 0.0
  %8978 = vmatprep.subr.mxu0 0.0
  %8979 = vmatpush1.msra.mxu0 0.0
  %8980 = vmatprep.subr.mxu0 0.0
  %8981 = vmatpush1.msra.mxu0 0.0
  %8982 = vmatprep.subr.mxu0 0.0
  %8983 = vmatpush1.msra.mxu0 0.0
  %8984 = vmatprep.subr.mxu0 0.0
  %8985 = vmatpush1.msra.mxu0 0.0
  %8986 = vmatprep.subr.mxu0 0.0
  %8987 = vmatpush1.msra.mxu0 0.0
  %8988 = vmatprep.subr.mxu0 0.0
  %8989 = vmatpush1.msra.mxu0 0.0
  %8990 = vmatprep.subr.mxu0 0.0
  %8991 = vmatpush1.msra.mxu0 0.0
  %8992 = vmatprep.mubr.f32.mxu0 0.0
  %v8993 = vand.u32 %v8772, 4294901760
  %v8994 = vsub.f32 %v8772, %v8993
  %8995 = vmatmul.mubr.f32.gmra.mrb[0].mxu0 %v8994
  %v8996 = vpop.f32.mrb[0].mxu0
  %v8997 = vadd.f32 %v8923, %v8996
  %v8998 = vpop.f32.mrb[0].mxu0
  %8999 = vdwg.mxu0
  %9000 = vmatprep.subr.mxu0 0.0
  %v9001 = vand.u32 %v28, 4294901760
  %9002 = vmatpush1.msra.mxu0 %v9001
  %9003 = vmatprep.subr.mxu0 0.0
  %9004 = vmatpush1.msra.mxu0 0.0
  %9005 = vmatprep.subr.mxu0 0.0
  %9006 = vmatpush1.msra.mxu0 0.0
  %9007 = vmatprep.subr.mxu0 0.0
  %9008 = vmatpush1.msra.mxu0 0.0
  %9009 = vmatprep.subr.mxu0 0.0
  %9010 = vmatpush1.msra.mxu0 0.0
  %9011 = vmatprep.subr.mxu0 0.0
  %9012 = vmatpush1.msra.mxu0 0.0
  %9013 = vmatprep.subr.mxu0 0.0
  %9014 = vmatpush1.msra.mxu0 0.0
  %9015 = vmatprep.subr.mxu0 0.0
  %9016 = vmatpush1.msra.mxu0 0.0
  %9017 = vmatprep.subr.mxu0 0.0
  %9018 = vmatpush1.msra.mxu0 0.0
  %9019 = vmatprep.subr.mxu0 0.0
  %9020 = vmatpush1.msra.mxu0 0.0
  %9021 = vmatprep.subr.mxu0 0.0
  %9022 = vmatpush1.msra.mxu0 0.0
  %9023 = vmatprep.subr.mxu0 0.0
  %9024 = vmatpush1.msra.mxu0 0.0
  %9025 = vmatprep.subr.mxu0 0.0
  %9026 = vmatpush1.msra.mxu0 0.0
  %9027 = vmatprep.subr.mxu0 0.0
  %9028 = vmatpush1.msra.mxu0 0.0
  %9029 = vmatprep.subr.mxu0 0.0
  %9030 = vmatpush1.msra.mxu0 0.0
  %9031 = vmatprep.subr.mxu0 0.0
  %9032 = vmatpush1.msra.mxu0 0.0
  %9033 = vmatprep.subr.mxu0 0.0
  %9034 = vmatpush1.msra.mxu0 0.0
  %9035 = vmatprep.subr.mxu0 0.0
  %9036 = vmatpush1.msra.mxu0 0.0
  %9037 = vmatprep.subr.mxu0 0.0
  %9038 = vmatpush1.msra.mxu0 0.0
  %9039 = vmatprep.subr.mxu0 0.0
  %9040 = vmatpush1.msra.mxu0 0.0
  %9041 = vmatprep.subr.mxu0 0.0
  %9042 = vmatpush1.msra.mxu0 0.0
  %9043 = vmatprep.subr.mxu0 0.0
  %9044 = vmatpush1.msra.mxu0 0.0
  %9045 = vmatprep.subr.mxu0 0.0
  %9046 = vmatpush1.msra.mxu0 0.0
  %9047 = vmatprep.subr.mxu0 0.0
  %9048 = vmatpush1.msra.mxu0 0.0
  %9049 = vmatprep.subr.mxu0 0.0
  %9050 = vmatpush1.msra.mxu0 0.0
  %9051 = vmatprep.subr.mxu0 0.0
  %9052 = vmatpush1.msra.mxu0 0.0
  %9053 = vmatprep.subr.mxu0 0.0
  %9054 = vmatpush1.msra.mxu0 0.0
  %9055 = vmatprep.subr.mxu0 0.0
  %9056 = vmatpush1.msra.mxu0 0.0
  %9057 = vmatprep.subr.mxu0 0.0
  %9058 = vmatpush1.msra.mxu0 0.0
  %9059 = vmatprep.subr.mxu0 0.0
  %9060 = vmatpush1.msra.mxu0 0.0
  %9061 = vmatprep.subr.mxu0 0.0
  %9062 = vmatpush1.msra.mxu0 0.0
  %9063 = vmatprep.subr.mxu0 0.0
  %9064 = vmatpush1.msra.mxu0 0.0
  %9065 = vmatprep.mubr.f32.mxu0 0.0
  %v9066 = vand.u32 %v8772, 4294901760
  %v9067 = vsub.f32 %v8772, %v9066
  %v9068 = vand.u32 %v9067, 4294901760
  %9069 = vmatmul.mubr.f32.gmra.mrb[0].mxu0 %v9068
  %v9070 = vpop.f32.mrb[0].mxu0
  %v9071 = vadd.f32 %v8997, %v9070
  %v9072 = vpop.f32.mrb[0].mxu0
  %9073 = vdwg.mxu0
  %9074 = vmatprep.subr.mxu0 0.0
  %v9075 = vand.u32 %v28, 4294901760
  %v9076 = vsub.f32 %v28, %v9075
  %v9077 = vand.u32 %v9076, 4294901760
  %9078 = vmatpush1.msra.mxu0 %v9077
  %9079 = vmatprep.subr.mxu0 0.0
  %9080 = vmatpush1.msra.mxu0 0.0
  %9081 = vmatprep.subr.mxu0 0.0
  %9082 = vmatpush1.msra.mxu0 0.0
  %9083 = vmatprep.subr.mxu0 0.0
  %9084 = vmatpush1.msra.mxu0 0.0
  %9085 = vmatprep.subr.mxu0 0.0
  %9086 = vmatpush1.msra.mxu0 0.0
  %9087 = vmatprep.subr.mxu0 0.0
  %9088 = vmatpush1.msra.mxu0 0.0
  %9089 = vmatprep.subr.mxu0 0.0
  %9090 = vmatpush1.msra.mxu0 0.0
  %9091 = vmatprep.subr.mxu0 0.0
  %9092 = vmatpush1.msra.mxu0 0.0
  %9093 = vmatprep.subr.mxu0 0.0
  %9094 = vmatpush1.msra.mxu0 0.0
  %9095 = vmatprep.subr.mxu0 0.0
  %9096 = vmatpush1.msra.mxu0 0.0
  %9097 = vmatprep.subr.mxu0 0.0
  %9098 = vmatpush1.msra.mxu0 0.0
  %9099 = vmatprep.subr.mxu0 0.0
  %9100 = vmatpush1.msra.mxu0 0.0
  %9101 = vmatprep.subr.mxu0 0.0
  %9102 = vmatpush1.msra.mxu0 0.0
  %9103 = vmatprep.subr.mxu0 0.0
  %9104 = vmatpush1.msra.mxu0 0.0
  %9105 = vmatprep.subr.mxu0 0.0
  %9106 = vmatpush1.msra.mxu0 0.0
  %9107 = vmatprep.subr.mxu0 0.0
  %9108 = vmatpush1.msra.mxu0 0.0
  %9109 = vmatprep.subr.mxu0 0.0
  %9110 = vmatpush1.msra.mxu0 0.0
  %9111 = vmatprep.subr.mxu0 0.0
  %9112 = vmatpush1.msra.mxu0 0.0
  %9113 = vmatprep.subr.mxu0 0.0
  %9114 = vmatpush1.msra.mxu0 0.0
  %9115 = vmatprep.subr.mxu0 0.0
  %9116 = vmatpush1.msra.mxu0 0.0
  %9117 = vmatprep.subr.mxu0 0.0
  %9118 = vmatpush1.msra.mxu0 0.0
  %9119 = vmatprep.subr.mxu0 0.0
  %9120 = vmatpush1.msra.mxu0 0.0
  %9121 = vmatprep.subr.mxu0 0.0
  %9122 = vmatpush1.msra.mxu0 0.0
  %9123 = vmatprep.subr.mxu0 0.0
  %9124 = vmatpush1.msra.mxu0 0.0
  %9125 = vmatprep.subr.mxu0 0.0
  %9126 = vmatpush1.msra.mxu0 0.0
  %9127 = vmatprep.subr.mxu0 0.0
  %9128 = vmatpush1.msra.mxu0 0.0
  %9129 = vmatprep.subr.mxu0 0.0
  %9130 = vmatpush1.msra.mxu0 0.0
  %9131 = vmatprep.subr.mxu0 0.0
  %9132 = vmatpush1.msra.mxu0 0.0
  %9133 = vmatprep.subr.mxu0 0.0
  %9134 = vmatpush1.msra.mxu0 0.0
  %9135 = vmatprep.subr.mxu0 0.0
  %9136 = vmatpush1.msra.mxu0 0.0
  %9137 = vmatprep.subr.mxu0 0.0
  %9138 = vmatpush1.msra.mxu0 0.0
  %9139 = vmatprep.subr.mxu0 0.0
  %9140 = vmatpush1.msra.mxu0 0.0
  %9141 = vmatprep.mubr.f32.mxu0 0.0
  %v9142 = vand.u32 %v8772, 4294901760
  %9143 = vmatmul.mubr.f32.gmra.mrb[0].mxu0 %v9142
  %v9144 = vpop.f32.mrb[0].mxu0
  %v9145 = vadd.f32 %v9071, %v9144
  %v9146 = vpop.f32.mrb[0].mxu0
  %9147 = vdwg.mxu0
  %9148 = vmatprep.subr.mxu0 0.0
  %v9149 = vand.u32 %v28, 4294901760
  %9150 = vmatpush1.msra.mxu0 %v9149
  %9151 = vmatprep.subr.mxu0 0.0
  %9152 = vmatpush1.msra.mxu0 0.0
  %9153 = vmatprep.subr.mxu0 0.0
  %9154 = vmatpush1.msra.mxu0 0.0
  %9155 = vmatprep.subr.mxu0 0.0
  %9156 = vmatpush1.msra.mxu0 0.0
  %9157 = vmatprep.subr.mxu0 0.0
  %9158 = vmatpush1.msra.mxu0 0.0
  %9159 = vmatprep.subr.mxu0 0.0
  %9160 = vmatpush1.msra.mxu0 0.0
  %9161 = vmatprep.subr.mxu0 0.0
  %9162 = vmatpush1.msra.mxu0 0.0
  %9163 = vmatprep.subr.mxu0 0.0
  %9164 = vmatpush1.msra.mxu0 0.0
  %9165 = vmatprep.subr.mxu0 0.0
  %9166 = vmatpush1.msra.mxu0 0.0
  %9167 = vmatprep.subr.mxu0 0.0
  %9168 = vmatpush1.msra.mxu0 0.0
  %9169 = vmatprep.subr.mxu0 0.0
  %9170 = vmatpush1.msra.mxu0 0.0
  %9171 = vmatprep.subr.mxu0 0.0
  %9172 = vmatpush1.msra.mxu0 0.0
  %9173 = vmatprep.subr.mxu0 0.0
  %9174 = vmatpush1.msra.mxu0 0.0
  %9175 = vmatprep.subr.mxu0 0.0
  %9176 = vmatpush1.msra.mxu0 0.0
  %9177 = vmatprep.subr.mxu0 0.0
  %9178 = vmatpush1.msra.mxu0 0.0
  %9179 = vmatprep.subr.mxu0 0.0
  %9180 = vmatpush1.msra.mxu0 0.0
  %9181 = vmatprep.subr.mxu0 0.0
  %9182 = vmatpush1.msra.mxu0 0.0
  %9183 = vmatprep.subr.mxu0 0.0
  %9184 = vmatpush1.msra.mxu0 0.0
  %9185 = vmatprep.subr.mxu0 0.0
  %9186 = vmatpush1.msra.mxu0 0.0
  %9187 = vmatprep.subr.mxu0 0.0
  %9188 = vmatpush1.msra.mxu0 0.0
  %9189 = vmatprep.subr.mxu0 0.0
  %9190 = vmatpush1.msra.mxu0 0.0
  %9191 = vmatprep.subr.mxu0 0.0
  %9192 = vmatpush1.msra.mxu0 0.0
  %9193 = vmatprep.subr.mxu0 0.0
  %9194 = vmatpush1.msra.mxu0 0.0
  %9195 = vmatprep.subr.mxu0 0.0
  %9196 = vmatpush1.msra.mxu0 0.0
  %9197 = vmatprep.subr.mxu0 0.0
  %9198 = vmatpush1.msra.mxu0 0.0
  %9199 = vmatprep.subr.mxu0 0.0
  %9200 = vmatpush1.msra.mxu0 0.0
  %9201 = vmatprep.subr.mxu0 0.0
  %9202 = vmatpush1.msra.mxu0 0.0
  %9203 = vmatprep.subr.mxu0 0.0
  %9204 = vmatpush1.msra.mxu0 0.0
  %9205 = vmatprep.subr.mxu0 0.0
  %9206 = vmatpush1.msra.mxu0 0.0
  %9207 = vmatprep.subr.mxu0 0.0
  %9208 = vmatpush1.msra.mxu0 0.0
  %9209 = vmatprep.subr.mxu0 0.0
  %9210 = vmatpush1.msra.mxu0 0.0
  %9211 = vmatprep.subr.mxu0 0.0
  %9212 = vmatpush1.msra.mxu0 0.0
  %9213 = vmatprep.mubr.f32.mxu0 0.0
  %v9214 = vand.u32 %v8772, 4294901760
  %9215 = vmatmul.mubr.f32.gmra.mrb[0].mxu0 %v9214
  %v9216 = vpop.f32.mrb[0].mxu0
  %v9217 = vadd.f32 %v9145, %v9216
  %v9218 = vpop.f32.mrb[0].mxu0
  %9219 = vdwg.mxu0
  %s9220 = scalar_lea.vmem %s1, 36
  %v9221 = vld [vmem:[%s9220] sm:$0xf]
  %9222 = vset.pattern.permute.xlu0 0
  %9223 = vperm.xlu0 %9222, %v9221
  %v9224 = vpop.permute.xlu0 %9223
  %vm9225 = vcmp.eq.s32.totalorder %v490, %v9224
  %v9226 = vsel %vm9225, %v9217, 0.0
  %v9228 = vsel %vm496, %v9226, 0
  %9230 = vmatprep.subr.mxu0 0.0
  %v9231 = vand.u32 %v30, 4294901760
  %9232 = vmatpush1.msra.mxu0 %v9231
  %9233 = vmatprep.subr.mxu0 0.0
  %v9234 = vand.u32 %v31, 4294901760
  %9235 = vmatpush1.msra.mxu0 %v9234
  %9236 = vmatprep.subr.mxu0 0.0
  %v9237 = vand.u32 %v32, 4294901760
  %9238 = vmatpush1.msra.mxu0 %v9237
  %9239 = vmatprep.subr.mxu0 0.0
  %v9240 = vand.u32 %v33, 4294901760
  %9241 = vmatpush1.msra.mxu0 %v9240
  %9242 = vmatprep.subr.mxu0 0.0
  %v9243 = vand.u32 %v34, 4294901760
  %9244 = vmatpush1.msra.mxu0 %v9243
  %9245 = vmatprep.subr.mxu0 0.0
  %v9246 = vand.u32 %v35, 4294901760
  %9247 = vmatpush1.msra.mxu0 %v9246
  %9248 = vmatprep.subr.mxu0 0.0
  %9249 = vmatpush1.msra.mxu0 0.0
  %9250 = vmatprep.subr.mxu0 0.0
  %9251 = vmatpush1.msra.mxu0 0.0
  %9252 = vmatprep.subr.mxu0 0.0
  %9253 = vmatpush1.msra.mxu0 0.0
  %9254 = vmatprep.subr.mxu0 0.0
  %9255 = vmatpush1.msra.mxu0 0.0
  %9256 = vmatprep.subr.mxu0 0.0
  %9257 = vmatpush1.msra.mxu0 0.0
  %9258 = vmatprep.subr.mxu0 0.0
  %9259 = vmatpush1.msra.mxu0 0.0
  %9260 = vmatprep.subr.mxu0 0.0
  %9261 = vmatpush1.msra.mxu0 0.0
  %9262 = vmatprep.subr.mxu0 0.0
  %9263 = vmatpush1.msra.mxu0 0.0
  %9264 = vmatprep.subr.mxu0 0.0
  %9265 = vmatpush1.msra.mxu0 0.0
  %9266 = vmatprep.subr.mxu0 0.0
  %9267 = vmatpush1.msra.mxu0 0.0
  %9268 = vmatprep.subr.mxu0 0.0
  %9269 = vmatpush1.msra.mxu0 0.0
  %9270 = vmatprep.subr.mxu0 0.0
  %9271 = vmatpush1.msra.mxu0 0.0
  %9272 = vmatprep.subr.mxu0 0.0
  %9273 = vmatpush1.msra.mxu0 0.0
  %9274 = vmatprep.subr.mxu0 0.0
  %9275 = vmatpush1.msra.mxu0 0.0
  %9276 = vmatprep.subr.mxu0 0.0
  %9277 = vmatpush1.msra.mxu0 0.0
  %9278 = vmatprep.subr.mxu0 0.0
  %9279 = vmatpush1.msra.mxu0 0.0
  %9280 = vmatprep.subr.mxu0 0.0
  %9281 = vmatpush1.msra.mxu0 0.0
  %9282 = vmatprep.subr.mxu0 0.0
  %9283 = vmatpush1.msra.mxu0 0.0
  %9284 = vmatprep.subr.mxu0 0.0
  %9285 = vmatpush1.msra.mxu0 0.0
  %9286 = vmatprep.subr.mxu0 0.0
  %9287 = vmatpush1.msra.mxu0 0.0
  %9288 = vmatprep.subr.mxu0 0.0
  %9289 = vmatpush1.msra.mxu0 0.0
  %9290 = vmatprep.subr.mxu0 0.0
  %9291 = vmatpush1.msra.mxu0 0.0
  %9292 = vmatprep.subr.mxu0 0.0
  %9293 = vmatpush1.msra.mxu0 0.0
  %9294 = vmatprep.subr.mxu0 0.0
  %9295 = vmatpush1.msra.mxu0 0.0
  %9296 = vmatprep.subr.mxu0 0.0
  %9297 = vmatpush1.msra.mxu0 0.0
  %9298 = vmatprep.subr.mxu0 0.0
  %9299 = vmatpush1.msra.mxu0 0.0
  %9300 = vmatprep.mubr.f32.mxu0 0.0
  %v9301 = vand.u32 %v9228, 4294901760
  %v9302 = vsub.f32 %v9228, %v9301
  %v9303 = vand.u32 %v9302, 4294901760
  %v9304 = vsub.f32 %v9302, %v9303
  %v9305 = vand.u32 %v9304, 4294901760
  %9306 = vmatmul.mubr.f32.gmra.mrb[0].mxu0 %v9305
  %v9307 = vpop.f32.mrb[0].mxu0
  %v9308 = vadd.f32 0.0, %v9307
  %v9309 = vpop.f32.mrb[0].mxu0
  %9310 = vdwg.mxu0
  %9311 = vmatprep.subr.mxu0 0.0
  %v9312 = vand.u32 %v30, 4294901760
  %v9313 = vsub.f32 %v30, %v9312
  %v9314 = vand.u32 %v9313, 4294901760
  %v9315 = vsub.f32 %v9313, %v9314
  %v9316 = vand.u32 %v9315, 4294901760
  %9317 = vmatpush1.msra.mxu0 %v9316
  %9318 = vmatprep.subr.mxu0 0.0
  %v9319 = vand.u32 %v31, 4294901760
  %v9320 = vsub.f32 %v31, %v9319
  %v9321 = vand.u32 %v9320, 4294901760
  %v9322 = vsub.f32 %v9320, %v9321
  %v9323 = vand.u32 %v9322, 4294901760
  %9324 = vmatpush1.msra.mxu0 %v9323
  %9325 = vmatprep.subr.mxu0 0.0
  %v9326 = vand.u32 %v32, 4294901760
  %v9327 = vsub.f32 %v32, %v9326
  %v9328 = vand.u32 %v9327, 4294901760
  %v9329 = vsub.f32 %v9327, %v9328
  %v9330 = vand.u32 %v9329, 4294901760
  %9331 = vmatpush1.msra.mxu0 %v9330
  %9332 = vmatprep.subr.mxu0 0.0
  %v9333 = vand.u32 %v33, 4294901760
  %v9334 = vsub.f32 %v33, %v9333
  %v9335 = vand.u32 %v9334, 4294901760
  %v9336 = vsub.f32 %v9334, %v9335
  %v9337 = vand.u32 %v9336, 4294901760
  %9338 = vmatpush1.msra.mxu0 %v9337
  %9339 = vmatprep.subr.mxu0 0.0
  %v9340 = vand.u32 %v34, 4294901760
  %v9341 = vsub.f32 %v34, %v9340
  %v9342 = vand.u32 %v9341, 4294901760
  %v9343 = vsub.f32 %v9341, %v9342
  %v9344 = vand.u32 %v9343, 4294901760
  %9345 = vmatpush1.msra.mxu0 %v9344
  %9346 = vmatprep.subr.mxu0 0.0
  %v9347 = vand.u32 %v35, 4294901760
  %v9348 = vsub.f32 %v35, %v9347
  %v9349 = vand.u32 %v9348, 4294901760
  %v9350 = vsub.f32 %v9348, %v9349
  %v9351 = vand.u32 %v9350, 4294901760
  %9352 = vmatpush1.msra.mxu0 %v9351
  %9353 = vmatprep.subr.mxu0 0.0
  %9354 = vmatpush1.msra.mxu0 0.0
  %9355 = vmatprep.subr.mxu0 0.0
  %9356 = vmatpush1.msra.mxu0 0.0
  %9357 = vmatprep.subr.mxu0 0.0
  %9358 = vmatpush1.msra.mxu0 0.0
  %9359 = vmatprep.subr.mxu0 0.0
  %9360 = vmatpush1.msra.mxu0 0.0
  %9361 = vmatprep.subr.mxu0 0.0
  %9362 = vmatpush1.msra.mxu0 0.0
  %9363 = vmatprep.subr.mxu0 0.0
  %9364 = vmatpush1.msra.mxu0 0.0
  %9365 = vmatprep.subr.mxu0 0.0
  %9366 = vmatpush1.msra.mxu0 0.0
  %9367 = vmatprep.subr.mxu0 0.0
  %9368 = vmatpush1.msra.mxu0 0.0
  %9369 = vmatprep.subr.mxu0 0.0
  %9370 = vmatpush1.msra.mxu0 0.0
  %9371 = vmatprep.subr.mxu0 0.0
  %9372 = vmatpush1.msra.mxu0 0.0
  %9373 = vmatprep.subr.mxu0 0.0
  %9374 = vmatpush1.msra.mxu0 0.0
  %9375 = vmatprep.subr.mxu0 0.0
  %9376 = vmatpush1.msra.mxu0 0.0
  %9377 = vmatprep.subr.mxu0 0.0
  %9378 = vmatpush1.msra.mxu0 0.0
  %9379 = vmatprep.subr.mxu0 0.0
  %9380 = vmatpush1.msra.mxu0 0.0
  %9381 = vmatprep.subr.mxu0 0.0
  %9382 = vmatpush1.msra.mxu0 0.0
  %9383 = vmatprep.subr.mxu0 0.0
  %9384 = vmatpush1.msra.mxu0 0.0
  %9385 = vmatprep.subr.mxu0 0.0
  %9386 = vmatpush1.msra.mxu0 0.0
  %9387 = vmatprep.subr.mxu0 0.0
  %9388 = vmatpush1.msra.mxu0 0.0
  %9389 = vmatprep.subr.mxu0 0.0
  %9390 = vmatpush1.msra.mxu0 0.0
  %9391 = vmatprep.subr.mxu0 0.0
  %9392 = vmatpush1.msra.mxu0 0.0
  %9393 = vmatprep.subr.mxu0 0.0
  %9394 = vmatpush1.msra.mxu0 0.0
  %9395 = vmatprep.subr.mxu0 0.0
  %9396 = vmatpush1.msra.mxu0 0.0
  %9397 = vmatprep.subr.mxu0 0.0
  %9398 = vmatpush1.msra.mxu0 0.0
  %9399 = vmatprep.subr.mxu0 0.0
  %9400 = vmatpush1.msra.mxu0 0.0
  %9401 = vmatprep.subr.mxu0 0.0
  %9402 = vmatpush1.msra.mxu0 0.0
  %9403 = vmatprep.subr.mxu0 0.0
  %9404 = vmatpush1.msra.mxu0 0.0
  %9405 = vmatprep.mubr.f32.mxu0 0.0
  %v9406 = vand.u32 %v9228, 4294901760
  %9407 = vmatmul.mubr.f32.gmra.mrb[0].mxu0 %v9406
  %v9408 = vpop.f32.mrb[0].mxu0
  %v9409 = vadd.f32 %v9308, %v9408
  %v9410 = vpop.f32.mrb[0].mxu0
  %9411 = vdwg.mxu0
  %9412 = vmatprep.subr.mxu0 0.0
  %v9413 = vand.u32 %v30, 4294901760
  %v9414 = vsub.f32 %v30, %v9413
  %9415 = vmatpush1.msra.mxu0 %v9414
  %9416 = vmatprep.subr.mxu0 0.0
  %v9417 = vand.u32 %v31, 4294901760
  %v9418 = vsub.f32 %v31, %v9417
  %9419 = vmatpush1.msra.mxu0 %v9418
  %9420 = vmatprep.subr.mxu0 0.0
  %v9421 = vand.u32 %v32, 4294901760
  %v9422 = vsub.f32 %v32, %v9421
  %9423 = vmatpush1.msra.mxu0 %v9422
  %9424 = vmatprep.subr.mxu0 0.0
  %v9425 = vand.u32 %v33, 4294901760
  %v9426 = vsub.f32 %v33, %v9425
  %9427 = vmatpush1.msra.mxu0 %v9426
  %9428 = vmatprep.subr.mxu0 0.0
  %v9429 = vand.u32 %v34, 4294901760
  %v9430 = vsub.f32 %v34, %v9429
  %9431 = vmatpush1.msra.mxu0 %v9430
  %9432 = vmatprep.subr.mxu0 0.0
  %v9433 = vand.u32 %v35, 4294901760
  %v9434 = vsub.f32 %v35, %v9433
  %9435 = vmatpush1.msra.mxu0 %v9434
  %9436 = vmatprep.subr.mxu0 0.0
  %9437 = vmatpush1.msra.mxu0 0.0
  %9438 = vmatprep.subr.mxu0 0.0
  %9439 = vmatpush1.msra.mxu0 0.0
  %9440 = vmatprep.subr.mxu0 0.0
  %9441 = vmatpush1.msra.mxu0 0.0
  %9442 = vmatprep.subr.mxu0 0.0
  %9443 = vmatpush1.msra.mxu0 0.0
  %9444 = vmatprep.subr.mxu0 0.0
  %9445 = vmatpush1.msra.mxu0 0.0
  %9446 = vmatprep.subr.mxu0 0.0
  %9447 = vmatpush1.msra.mxu0 0.0
  %9448 = vmatprep.subr.mxu0 0.0
  %9449 = vmatpush1.msra.mxu0 0.0
  %9450 = vmatprep.subr.mxu0 0.0
  %9451 = vmatpush1.msra.mxu0 0.0
  %9452 = vmatprep.subr.mxu0 0.0
  %9453 = vmatpush1.msra.mxu0 0.0
  %9454 = vmatprep.subr.mxu0 0.0
  %9455 = vmatpush1.msra.mxu0 0.0
  %9456 = vmatprep.subr.mxu0 0.0
  %9457 = vmatpush1.msra.mxu0 0.0
  %9458 = vmatprep.subr.mxu0 0.0
  %9459 = vmatpush1.msra.mxu0 0.0
  %9460 = vmatprep.subr.mxu0 0.0
  %9461 = vmatpush1.msra.mxu0 0.0
  %9462 = vmatprep.subr.mxu0 0.0
  %9463 = vmatpush1.msra.mxu0 0.0
  %9464 = vmatprep.subr.mxu0 0.0
  %9465 = vmatpush1.msra.mxu0 0.0
  %9466 = vmatprep.subr.mxu0 0.0
  %9467 = vmatpush1.msra.mxu0 0.0
  %9468 = vmatprep.subr.mxu0 0.0
  %9469 = vmatpush1.msra.mxu0 0.0
  %9470 = vmatprep.subr.mxu0 0.0
  %9471 = vmatpush1.msra.mxu0 0.0
  %9472 = vmatprep.subr.mxu0 0.0
  %9473 = vmatpush1.msra.mxu0 0.0
  %9474 = vmatprep.subr.mxu0 0.0
  %9475 = vmatpush1.msra.mxu0 0.0
  %9476 = vmatprep.subr.mxu0 0.0
  %9477 = vmatpush1.msra.mxu0 0.0
  %9478 = vmatprep.subr.mxu0 0.0
  %9479 = vmatpush1.msra.mxu0 0.0
  %9480 = vmatprep.subr.mxu0 0.0
  %9481 = vmatpush1.msra.mxu0 0.0
  %9482 = vmatprep.subr.mxu0 0.0
  %9483 = vmatpush1.msra.mxu0 0.0
  %9484 = vmatprep.subr.mxu0 0.0
  %9485 = vmatpush1.msra.mxu0 0.0
  %9486 = vmatprep.subr.mxu0 0.0
  %9487 = vmatpush1.msra.mxu0 0.0
  %9488 = vmatprep.mubr.f32.mxu0 0.0
  %v9489 = vand.u32 %v9228, 4294901760
  %v9490 = vsub.f32 %v9228, %v9489
  %9491 = vmatmul.mubr.f32.gmra.mrb[0].mxu0 %v9490
  %v9492 = vpop.f32.mrb[0].mxu0
  %v9493 = vadd.f32 %v9409, %v9492
  %v9494 = vpop.f32.mrb[0].mxu0
  %9495 = vdwg.mxu0
  %9496 = vmatprep.subr.mxu0 0.0
  %v9497 = vand.u32 %v30, 4294901760
  %9498 = vmatpush1.msra.mxu0 %v9497
  %9499 = vmatprep.subr.mxu0 0.0
  %v9500 = vand.u32 %v31, 4294901760
  %9501 = vmatpush1.msra.mxu0 %v9500
  %9502 = vmatprep.subr.mxu0 0.0
  %v9503 = vand.u32 %v32, 4294901760
  %9504 = vmatpush1.msra.mxu0 %v9503
  %9505 = vmatprep.subr.mxu0 0.0
  %v9506 = vand.u32 %v33, 4294901760
  %9507 = vmatpush1.msra.mxu0 %v9506
  %9508 = vmatprep.subr.mxu0 0.0
  %v9509 = vand.u32 %v34, 4294901760
  %9510 = vmatpush1.msra.mxu0 %v9509
  %9511 = vmatprep.subr.mxu0 0.0
  %v9512 = vand.u32 %v35, 4294901760
  %9513 = vmatpush1.msra.mxu0 %v9512
  %9514 = vmatprep.subr.mxu0 0.0
  %9515 = vmatpush1.msra.mxu0 0.0
  %9516 = vmatprep.subr.mxu0 0.0
  %9517 = vmatpush1.msra.mxu0 0.0
  %9518 = vmatprep.subr.mxu0 0.0
  %9519 = vmatpush1.msra.mxu0 0.0
  %9520 = vmatprep.subr.mxu0 0.0
  %9521 = vmatpush1.msra.mxu0 0.0
  %9522 = vmatprep.subr.mxu0 0.0
  %9523 = vmatpush1.msra.mxu0 0.0
  %9524 = vmatprep.subr.mxu0 0.0
  %9525 = vmatpush1.msra.mxu0 0.0
  %9526 = vmatprep.subr.mxu0 0.0
  %9527 = vmatpush1.msra.mxu0 0.0
  %9528 = vmatprep.subr.mxu0 0.0
  %9529 = vmatpush1.msra.mxu0 0.0
  %9530 = vmatprep.subr.mxu0 0.0
  %9531 = vmatpush1.msra.mxu0 0.0
  %9532 = vmatprep.subr.mxu0 0.0
  %9533 = vmatpush1.msra.mxu0 0.0
  %9534 = vmatprep.subr.mxu0 0.0
  %9535 = vmatpush1.msra.mxu0 0.0
  %9536 = vmatprep.subr.mxu0 0.0
  %9537 = vmatpush1.msra.mxu0 0.0
  %9538 = vmatprep.subr.mxu0 0.0
  %9539 = vmatpush1.msra.mxu0 0.0
  %9540 = vmatprep.subr.mxu0 0.0
  %9541 = vmatpush1.msra.mxu0 0.0
  %9542 = vmatprep.subr.mxu0 0.0
  %9543 = vmatpush1.msra.mxu0 0.0
  %9544 = vmatprep.subr.mxu0 0.0
  %9545 = vmatpush1.msra.mxu0 0.0
  %9546 = vmatprep.subr.mxu0 0.0
  %9547 = vmatpush1.msra.mxu0 0.0
  %9548 = vmatprep.subr.mxu0 0.0
  %9549 = vmatpush1.msra.mxu0 0.0
  %9550 = vmatprep.subr.mxu0 0.0
  %9551 = vmatpush1.msra.mxu0 0.0
  %9552 = vmatprep.subr.mxu0 0.0
  %9553 = vmatpush1.msra.mxu0 0.0
  %9554 = vmatprep.subr.mxu0 0.0
  %9555 = vmatpush1.msra.mxu0 0.0
  %9556 = vmatprep.subr.mxu0 0.0
  %9557 = vmatpush1.msra.mxu0 0.0
  %9558 = vmatprep.subr.mxu0 0.0
  %9559 = vmatpush1.msra.mxu0 0.0
  %9560 = vmatprep.subr.mxu0 0.0
  %9561 = vmatpush1.msra.mxu0 0.0
  %9562 = vmatprep.subr.mxu0 0.0
  %9563 = vmatpush1.msra.mxu0 0.0
  %9564 = vmatprep.subr.mxu0 0.0
  %9565 = vmatpush1.msra.mxu0 0.0
  %9566 = vmatprep.mubr.f32.mxu0 0.0
  %v9567 = vand.u32 %v9228, 4294901760
  %v9568 = vsub.f32 %v9228, %v9567
  %v9569 = vand.u32 %v9568, 4294901760
  %9570 = vmatmul.mubr.f32.gmra.mrb[0].mxu0 %v9569
  %v9571 = vpop.f32.mrb[0].mxu0
  %v9572 = vadd.f32 %v9493, %v9571
  %v9573 = vpop.f32.mrb[0].mxu0
  %9574 = vdwg.mxu0
  %9575 = vmatprep.subr.mxu0 0.0
  %v9576 = vand.u32 %v30, 4294901760
  %v9577 = vsub.f32 %v30, %v9576
  %v9578 = vand.u32 %v9577, 4294901760
  %9579 = vmatpush1.msra.mxu0 %v9578
  %9580 = vmatprep.subr.mxu0 0.0
  %v9581 = vand.u32 %v31, 4294901760
  %v9582 = vsub.f32 %v31, %v9581
  %v9583 = vand.u32 %v9582, 4294901760
  %9584 = vmatpush1.msra.mxu0 %v9583
  %9585 = vmatprep.subr.mxu0 0.0
  %v9586 = vand.u32 %v32, 4294901760
  %v9587 = vsub.f32 %v32, %v9586
  %v9588 = vand.u32 %v9587, 4294901760
  %9589 = vmatpush1.msra.mxu0 %v9588
  %9590 = vmatprep.subr.mxu0 0.0
  %v9591 = vand.u32 %v33, 4294901760
  %v9592 = vsub.f32 %v33, %v9591
  %v9593 = vand.u32 %v9592, 4294901760
  %9594 = vmatpush1.msra.mxu0 %v9593
  %9595 = vmatprep.subr.mxu0 0.0
  %v9596 = vand.u32 %v34, 4294901760
  %v9597 = vsub.f32 %v34, %v9596
  %v9598 = vand.u32 %v9597, 4294901760
  %9599 = vmatpush1.msra.mxu0 %v9598
  %9600 = vmatprep.subr.mxu0 0.0
  %v9601 = vand.u32 %v35, 4294901760
  %v9602 = vsub.f32 %v35, %v9601
  %v9603 = vand.u32 %v9602, 4294901760
  %9604 = vmatpush1.msra.mxu0 %v9603
  %9605 = vmatprep.subr.mxu0 0.0
  %9606 = vmatpush1.msra.mxu0 0.0
  %9607 = vmatprep.subr.mxu0 0.0
  %9608 = vmatpush1.msra.mxu0 0.0
  %9609 = vmatprep.subr.mxu0 0.0
  %9610 = vmatpush1.msra.mxu0 0.0
  %9611 = vmatprep.subr.mxu0 0.0
  %9612 = vmatpush1.msra.mxu0 0.0
  %9613 = vmatprep.subr.mxu0 0.0
  %9614 = vmatpush1.msra.mxu0 0.0
  %9615 = vmatprep.subr.mxu0 0.0
  %9616 = vmatpush1.msra.mxu0 0.0
  %9617 = vmatprep.subr.mxu0 0.0
  %9618 = vmatpush1.msra.mxu0 0.0
  %9619 = vmatprep.subr.mxu0 0.0
  %9620 = vmatpush1.msra.mxu0 0.0
  %9621 = vmatprep.subr.mxu0 0.0
  %9622 = vmatpush1.msra.mxu0 0.0
  %9623 = vmatprep.subr.mxu0 0.0
  %9624 = vmatpush1.msra.mxu0 0.0
  %9625 = vmatprep.subr.mxu0 0.0
  %9626 = vmatpush1.msra.mxu0 0.0
  %9627 = vmatprep.subr.mxu0 0.0
  %9628 = vmatpush1.msra.mxu0 0.0
  %9629 = vmatprep.subr.mxu0 0.0
  %9630 = vmatpush1.msra.mxu0 0.0
  %9631 = vmatprep.subr.mxu0 0.0
  %9632 = vmatpush1.msra.mxu0 0.0
  %9633 = vmatprep.subr.mxu0 0.0
  %9634 = vmatpush1.msra.mxu0 0.0
  %9635 = vmatprep.subr.mxu0 0.0
  %9636 = vmatpush1.msra.mxu0 0.0
  %9637 = vmatprep.subr.mxu0 0.0
  %9638 = vmatpush1.msra.mxu0 0.0
  %9639 = vmatprep.subr.mxu0 0.0
  %9640 = vmatpush1.msra.mxu0 0.0
  %9641 = vmatprep.subr.mxu0 0.0
  %9642 = vmatpush1.msra.mxu0 0.0
  %9643 = vmatprep.subr.mxu0 0.0
  %9644 = vmatpush1.msra.mxu0 0.0
  %9645 = vmatprep.subr.mxu0 0.0
  %9646 = vmatpush1.msra.mxu0 0.0
  %9647 = vmatprep.subr.mxu0 0.0
  %9648 = vmatpush1.msra.mxu0 0.0
  %9649 = vmatprep.subr.mxu0 0.0
  %9650 = vmatpush1.msra.mxu0 0.0
  %9651 = vmatprep.subr.mxu0 0.0
  %9652 = vmatpush1.msra.mxu0 0.0
  %9653 = vmatprep.subr.mxu0 0.0
  %9654 = vmatpush1.msra.mxu0 0.0
  %9655 = vmatprep.subr.mxu0 0.0
  %9656 = vmatpush1.msra.mxu0 0.0
  %9657 = vmatprep.mubr.f32.mxu0 0.0
  %v9658 = vand.u32 %v9228, 4294901760
  %9659 = vmatmul.mubr.f32.gmra.mrb[0].mxu0 %v9658
  %v9660 = vpop.f32.mrb[0].mxu0
  %v9661 = vadd.f32 %v9572, %v9660
  %v9662 = vpop.f32.mrb[0].mxu0
  %9663 = vdwg.mxu0
  %9664 = vmatprep.subr.mxu0 0.0
  %v9665 = vand.u32 %v30, 4294901760
  %9666 = vmatpush1.msra.mxu0 %v9665
  %9667 = vmatprep.subr.mxu0 0.0
  %v9668 = vand.u32 %v31, 4294901760
  %9669 = vmatpush1.msra.mxu0 %v9668
  %9670 = vmatprep.subr.mxu0 0.0
  %v9671 = vand.u32 %v32, 4294901760
  %9672 = vmatpush1.msra.mxu0 %v9671
  %9673 = vmatprep.subr.mxu0 0.0
  %v9674 = vand.u32 %v33, 4294901760
  %9675 = vmatpush1.msra.mxu0 %v9674
  %9676 = vmatprep.subr.mxu0 0.0
  %v9677 = vand.u32 %v34, 4294901760
  %9678 = vmatpush1.msra.mxu0 %v9677
  %9679 = vmatprep.subr.mxu0 0.0
  %v9680 = vand.u32 %v35, 4294901760
  %9681 = vmatpush1.msra.mxu0 %v9680
  %9682 = vmatprep.subr.mxu0 0.0
  %9683 = vmatpush1.msra.mxu0 0.0
  %9684 = vmatprep.subr.mxu0 0.0
  %9685 = vmatpush1.msra.mxu0 0.0
  %9686 = vmatprep.subr.mxu0 0.0
  %9687 = vmatpush1.msra.mxu0 0.0
  %9688 = vmatprep.subr.mxu0 0.0
  %9689 = vmatpush1.msra.mxu0 0.0
  %9690 = vmatprep.subr.mxu0 0.0
  %9691 = vmatpush1.msra.mxu0 0.0
  %9692 = vmatprep.subr.mxu0 0.0
  %9693 = vmatpush1.msra.mxu0 0.0
  %9694 = vmatprep.subr.mxu0 0.0
  %9695 = vmatpush1.msra.mxu0 0.0
  %9696 = vmatprep.subr.mxu0 0.0
  %9697 = vmatpush1.msra.mxu0 0.0
  %9698 = vmatprep.subr.mxu0 0.0
  %9699 = vmatpush1.msra.mxu0 0.0
  %9700 = vmatprep.subr.mxu0 0.0
  %9701 = vmatpush1.msra.mxu0 0.0
  %9702 = vmatprep.subr.mxu0 0.0
  %9703 = vmatpush1.msra.mxu0 0.0
  %9704 = vmatprep.subr.mxu0 0.0
  %9705 = vmatpush1.msra.mxu0 0.0
  %9706 = vmatprep.subr.mxu0 0.0
  %9707 = vmatpush1.msra.mxu0 0.0
  %9708 = vmatprep.subr.mxu0 0.0
  %9709 = vmatpush1.msra.mxu0 0.0
  %9710 = vmatprep.subr.mxu0 0.0
  %9711 = vmatpush1.msra.mxu0 0.0
  %9712 = vmatprep.subr.mxu0 0.0
  %9713 = vmatpush1.msra.mxu0 0.0
  %9714 = vmatprep.subr.mxu0 0.0
  %9715 = vmatpush1.msra.mxu0 0.0
  %9716 = vmatprep.subr.mxu0 0.0
  %9717 = vmatpush1.msra.mxu0 0.0
  %9718 = vmatprep.subr.mxu0 0.0
  %9719 = vmatpush1.msra.mxu0 0.0
  %9720 = vmatprep.subr.mxu0 0.0
  %9721 = vmatpush1.msra.mxu0 0.0
  %9722 = vmatprep.subr.mxu0 0.0
  %9723 = vmatpush1.msra.mxu0 0.0
  %9724 = vmatprep.subr.mxu0 0.0
  %9725 = vmatpush1.msra.mxu0 0.0
  %9726 = vmatprep.subr.mxu0 0.0
  %9727 = vmatpush1.msra.mxu0 0.0
  %9728 = vmatprep.subr.mxu0 0.0
  %9729 = vmatpush1.msra.mxu0 0.0
  %9730 = vmatprep.subr.mxu0 0.0
  %9731 = vmatpush1.msra.mxu0 0.0
  %9732 = vmatprep.subr.mxu0 0.0
  %9733 = vmatpush1.msra.mxu0 0.0
  %9734 = vmatprep.mubr.f32.mxu0 0.0
  %v9735 = vand.u32 %v9228, 4294901760
  %9736 = vmatmul.mubr.f32.gmra.mrb[0].mxu0 %v9735
  %v9737 = vpop.f32.mrb[0].mxu0
  %v9738 = vadd.f32 %v9661, %v9737
  %v9739 = vpop.f32.mrb[0].mxu0
  %9740 = vdwg.mxu0
  %v9742 = vsel %vm36, %v9738, 0
  %9744 = vmatprep.subr.mxu0 0.0
  %v9745 = vand.u32 %v28, 4294901760
  %9746 = vmatpush1.msra.mxu0 %v9745
  %9747 = vmatprep.subr.mxu0 0.0
  %9748 = vmatpush1.msra.mxu0 0.0
  %9749 = vmatprep.subr.mxu0 0.0
  %9750 = vmatpush1.msra.mxu0 0.0
  %9751 = vmatprep.subr.mxu0 0.0
  %9752 = vmatpush1.msra.mxu0 0.0
  %9753 = vmatprep.subr.mxu0 0.0
  %9754 = vmatpush1.msra.mxu0 0.0
  %9755 = vmatprep.subr.mxu0 0.0
  %9756 = vmatpush1.msra.mxu0 0.0
  %9757 = vmatprep.subr.mxu0 0.0
  %9758 = vmatpush1.msra.mxu0 0.0
  %9759 = vmatprep.subr.mxu0 0.0
  %9760 = vmatpush1.msra.mxu0 0.0
  %9761 = vmatprep.subr.mxu0 0.0
  %9762 = vmatpush1.msra.mxu0 0.0
  %9763 = vmatprep.subr.mxu0 0.0
  %9764 = vmatpush1.msra.mxu0 0.0
  %9765 = vmatprep.subr.mxu0 0.0
  %9766 = vmatpush1.msra.mxu0 0.0
  %9767 = vmatprep.subr.mxu0 0.0
  %9768 = vmatpush1.msra.mxu0 0.0
  %9769 = vmatprep.subr.mxu0 0.0
  %9770 = vmatpush1.msra.mxu0 0.0
  %9771 = vmatprep.subr.mxu0 0.0
  %9772 = vmatpush1.msra.mxu0 0.0
  %9773 = vmatprep.subr.mxu0 0.0
  %9774 = vmatpush1.msra.mxu0 0.0
  %9775 = vmatprep.subr.mxu0 0.0
  %9776 = vmatpush1.msra.mxu0 0.0
  %9777 = vmatprep.subr.mxu0 0.0
  %9778 = vmatpush1.msra.mxu0 0.0
  %9779 = vmatprep.subr.mxu0 0.0
  %9780 = vmatpush1.msra.mxu0 0.0
  %9781 = vmatprep.subr.mxu0 0.0
  %9782 = vmatpush1.msra.mxu0 0.0
  %9783 = vmatprep.subr.mxu0 0.0
  %9784 = vmatpush1.msra.mxu0 0.0
  %9785 = vmatprep.subr.mxu0 0.0
  %9786 = vmatpush1.msra.mxu0 0.0
  %9787 = vmatprep.subr.mxu0 0.0
  %9788 = vmatpush1.msra.mxu0 0.0
  %9789 = vmatprep.subr.mxu0 0.0
  %9790 = vmatpush1.msra.mxu0 0.0
  %9791 = vmatprep.subr.mxu0 0.0
  %9792 = vmatpush1.msra.mxu0 0.0
  %9793 = vmatprep.subr.mxu0 0.0
  %9794 = vmatpush1.msra.mxu0 0.0
  %9795 = vmatprep.subr.mxu0 0.0
  %9796 = vmatpush1.msra.mxu0 0.0
  %9797 = vmatprep.subr.mxu0 0.0
  %9798 = vmatpush1.msra.mxu0 0.0
  %9799 = vmatprep.subr.mxu0 0.0
  %9800 = vmatpush1.msra.mxu0 0.0
  %9801 = vmatprep.subr.mxu0 0.0
  %9802 = vmatpush1.msra.mxu0 0.0
  %9803 = vmatprep.subr.mxu0 0.0
  %9804 = vmatpush1.msra.mxu0 0.0
  %9805 = vmatprep.subr.mxu0 0.0
  %9806 = vmatpush1.msra.mxu0 0.0
  %9807 = vmatprep.subr.mxu0 0.0
  %9808 = vmatpush1.msra.mxu0 0.0
  %9809 = vmatprep.mubr.f32.mxu0 0.0
  %v9810 = vand.u32 %v9742, 4294901760
  %v9811 = vsub.f32 %v9742, %v9810
  %v9812 = vand.u32 %v9811, 4294901760
  %v9813 = vsub.f32 %v9811, %v9812
  %v9814 = vand.u32 %v9813, 4294901760
  %9815 = vmatmul.mubr.f32.gmra.mrb[0].mxu0 %v9814
  %v9816 = vpop.f32.mrb[0].mxu0
  %v9817 = vadd.f32 0.0, %v9816
  %v9818 = vpop.f32.mrb[0].mxu0
  %9819 = vdwg.mxu0
  %9820 = vmatprep.subr.mxu0 0.0
  %v9821 = vand.u32 %v28, 4294901760
  %v9822 = vsub.f32 %v28, %v9821
  %v9823 = vand.u32 %v9822, 4294901760
  %v9824 = vsub.f32 %v9822, %v9823
  %v9825 = vand.u32 %v9824, 4294901760
  %9826 = vmatpush1.msra.mxu0 %v9825
  %9827 = vmatprep.subr.mxu0 0.0
  %9828 = vmatpush1.msra.mxu0 0.0
  %9829 = vmatprep.subr.mxu0 0.0
  %9830 = vmatpush1.msra.mxu0 0.0
  %9831 = vmatprep.subr.mxu0 0.0
  %9832 = vmatpush1.msra.mxu0 0.0
  %9833 = vmatprep.subr.mxu0 0.0
  %9834 = vmatpush1.msra.mxu0 0.0
  %9835 = vmatprep.subr.mxu0 0.0
  %9836 = vmatpush1.msra.mxu0 0.0
  %9837 = vmatprep.subr.mxu0 0.0
  %9838 = vmatpush1.msra.mxu0 0.0
  %9839 = vmatprep.subr.mxu0 0.0
  %9840 = vmatpush1.msra.mxu0 0.0
  %9841 = vmatprep.subr.mxu0 0.0
  %9842 = vmatpush1.msra.mxu0 0.0
  %9843 = vmatprep.subr.mxu0 0.0
  %9844 = vmatpush1.msra.mxu0 0.0
  %9845 = vmatprep.subr.mxu0 0.0
  %9846 = vmatpush1.msra.mxu0 0.0
  %9847 = vmatprep.subr.mxu0 0.0
  %9848 = vmatpush1.msra.mxu0 0.0
  %9849 = vmatprep.subr.mxu0 0.0
  %9850 = vmatpush1.msra.mxu0 0.0
  %9851 = vmatprep.subr.mxu0 0.0
  %9852 = vmatpush1.msra.mxu0 0.0
  %9853 = vmatprep.subr.mxu0 0.0
  %9854 = vmatpush1.msra.mxu0 0.0
  %9855 = vmatprep.subr.mxu0 0.0
  %9856 = vmatpush1.msra.mxu0 0.0
  %9857 = vmatprep.subr.mxu0 0.0
  %9858 = vmatpush1.msra.mxu0 0.0
  %9859 = vmatprep.subr.mxu0 0.0
  %9860 = vmatpush1.msra.mxu0 0.0
  %9861 = vmatprep.subr.mxu0 0.0
  %9862 = vmatpush1.msra.mxu0 0.0
  %9863 = vmatprep.subr.mxu0 0.0
  %9864 = vmatpush1.msra.mxu0 0.0
  %9865 = vmatprep.subr.mxu0 0.0
  %9866 = vmatpush1.msra.mxu0 0.0
  %9867 = vmatprep.subr.mxu0 0.0
  %9868 = vmatpush1.msra.mxu0 0.0
  %9869 = vmatprep.subr.mxu0 0.0
  %9870 = vmatpush1.msra.mxu0 0.0
  %9871 = vmatprep.subr.mxu0 0.0
  %9872 = vmatpush1.msra.mxu0 0.0
  %9873 = vmatprep.subr.mxu0 0.0
  %9874 = vmatpush1.msra.mxu0 0.0
  %9875 = vmatprep.subr.mxu0 0.0
  %9876 = vmatpush1.msra.mxu0 0.0
  %9877 = vmatprep.subr.mxu0 0.0
  %9878 = vmatpush1.msra.mxu0 0.0
  %9879 = vmatprep.subr.mxu0 0.0
  %9880 = vmatpush1.msra.mxu0 0.0
  %9881 = vmatprep.subr.mxu0 0.0
  %9882 = vmatpush1.msra.mxu0 0.0
  %9883 = vmatprep.subr.mxu0 0.0
  %9884 = vmatpush1.msra.mxu0 0.0
  %9885 = vmatprep.subr.mxu0 0.0
  %9886 = vmatpush1.msra.mxu0 0.0
  %9887 = vmatprep.subr.mxu0 0.0
  %9888 = vmatpush1.msra.mxu0 0.0
  %9889 = vmatprep.mubr.f32.mxu0 0.0
  %v9890 = vand.u32 %v9742, 4294901760
  %9891 = vmatmul.mubr.f32.gmra.mrb[0].mxu0 %v9890
  %v9892 = vpop.f32.mrb[0].mxu0
  %v9893 = vadd.f32 %v9817, %v9892
  %v9894 = vpop.f32.mrb[0].mxu0
  %9895 = vdwg.mxu0
  %9896 = vmatprep.subr.mxu0 0.0
  %v9897 = vand.u32 %v28, 4294901760
  %v9898 = vsub.f32 %v28, %v9897
  %9899 = vmatpush1.msra.mxu0 %v9898
  %9900 = vmatprep.subr.mxu0 0.0
  %9901 = vmatpush1.msra.mxu0 0.0
  %9902 = vmatprep.subr.mxu0 0.0
  %9903 = vmatpush1.msra.mxu0 0.0
  %9904 = vmatprep.subr.mxu0 0.0
  %9905 = vmatpush1.msra.mxu0 0.0
  %9906 = vmatprep.subr.mxu0 0.0
  %9907 = vmatpush1.msra.mxu0 0.0
  %9908 = vmatprep.subr.mxu0 0.0
  %9909 = vmatpush1.msra.mxu0 0.0
  %9910 = vmatprep.subr.mxu0 0.0
  %9911 = vmatpush1.msra.mxu0 0.0
  %9912 = vmatprep.subr.mxu0 0.0
  %9913 = vmatpush1.msra.mxu0 0.0
  %9914 = vmatprep.subr.mxu0 0.0
  %9915 = vmatpush1.msra.mxu0 0.0
  %9916 = vmatprep.subr.mxu0 0.0
  %9917 = vmatpush1.msra.mxu0 0.0
  %9918 = vmatprep.subr.mxu0 0.0
  %9919 = vmatpush1.msra.mxu0 0.0
  %9920 = vmatprep.subr.mxu0 0.0
  %9921 = vmatpush1.msra.mxu0 0.0
  %9922 = vmatprep.subr.mxu0 0.0
  %9923 = vmatpush1.msra.mxu0 0.0
  %9924 = vmatprep.subr.mxu0 0.0
  %9925 = vmatpush1.msra.mxu0 0.0
  %9926 = vmatprep.subr.mxu0 0.0
  %9927 = vmatpush1.msra.mxu0 0.0
  %9928 = vmatprep.subr.mxu0 0.0
  %9929 = vmatpush1.msra.mxu0 0.0
  %9930 = vmatprep.subr.mxu0 0.0
  %9931 = vmatpush1.msra.mxu0 0.0
  %9932 = vmatprep.subr.mxu0 0.0
  %9933 = vmatpush1.msra.mxu0 0.0
  %9934 = vmatprep.subr.mxu0 0.0
  %9935 = vmatpush1.msra.mxu0 0.0
  %9936 = vmatprep.subr.mxu0 0.0
  %9937 = vmatpush1.msra.mxu0 0.0
  %9938 = vmatprep.subr.mxu0 0.0
  %9939 = vmatpush1.msra.mxu0 0.0
  %9940 = vmatprep.subr.mxu0 0.0
  %9941 = vmatpush1.msra.mxu0 0.0
  %9942 = vmatprep.subr.mxu0 0.0
  %9943 = vmatpush1.msra.mxu0 0.0
  %9944 = vmatprep.subr.mxu0 0.0
  %9945 = vmatpush1.msra.mxu0 0.0
  %9946 = vmatprep.subr.mxu0 0.0
  %9947 = vmatpush1.msra.mxu0 0.0
  %9948 = vmatprep.subr.mxu0 0.0
  %9949 = vmatpush1.msra.mxu0 0.0
  %9950 = vmatprep.subr.mxu0 0.0
  %9951 = vmatpush1.msra.mxu0 0.0
  %9952 = vmatprep.subr.mxu0 0.0
  %9953 = vmatpush1.msra.mxu0 0.0
  %9954 = vmatprep.subr.mxu0 0.0
  %9955 = vmatpush1.msra.mxu0 0.0
  %9956 = vmatprep.subr.mxu0 0.0
  %9957 = vmatpush1.msra.mxu0 0.0
  %9958 = vmatprep.subr.mxu0 0.0
  %9959 = vmatpush1.msra.mxu0 0.0
  %9960 = vmatprep.subr.mxu0 0.0
  %9961 = vmatpush1.msra.mxu0 0.0
  %9962 = vmatprep.mubr.f32.mxu0 0.0
  %v9963 = vand.u32 %v9742, 4294901760
  %v9964 = vsub.f32 %v9742, %v9963
  %9965 = vmatmul.mubr.f32.gmra.mrb[0].mxu0 %v9964
  %v9966 = vpop.f32.mrb[0].mxu0
  %v9967 = vadd.f32 %v9893, %v9966
  %v9968 = vpop.f32.mrb[0].mxu0
  %9969 = vdwg.mxu0
  %9970 = vmatprep.subr.mxu0 0.0
  %v9971 = vand.u32 %v28, 4294901760
  %9972 = vmatpush1.msra.mxu0 %v9971
  %9973 = vmatprep.subr.mxu0 0.0
  %9974 = vmatpush1.msra.mxu0 0.0
  %9975 = vmatprep.subr.mxu0 0.0
  %9976 = vmatpush1.msra.mxu0 0.0
  %9977 = vmatprep.subr.mxu0 0.0
  %9978 = vmatpush1.msra.mxu0 0.0
  %9979 = vmatprep.subr.mxu0 0.0
  %9980 = vmatpush1.msra.mxu0 0.0
  %9981 = vmatprep.subr.mxu0 0.0
  %9982 = vmatpush1.msra.mxu0 0.0
  %9983 = vmatprep.subr.mxu0 0.0
  %9984 = vmatpush1.msra.mxu0 0.0
  %9985 = vmatprep.subr.mxu0 0.0
  %9986 = vmatpush1.msra.mxu0 0.0
  %9987 = vmatprep.subr.mxu0 0.0
  %9988 = vmatpush1.msra.mxu0 0.0
  %9989 = vmatprep.subr.mxu0 0.0
  %9990 = vmatpush1.msra.mxu0 0.0
  %9991 = vmatprep.subr.mxu0 0.0
  %9992 = vmatpush1.msra.mxu0 0.0
  %9993 = vmatprep.subr.mxu0 0.0
  %9994 = vmatpush1.msra.mxu0 0.0
  %9995 = vmatprep.subr.mxu0 0.0
  %9996 = vmatpush1.msra.mxu0 0.0
  %9997 = vmatprep.subr.mxu0 0.0
  %9998 = vmatpush1.msra.mxu0 0.0
  %9999 = vmatprep.subr.mxu0 0.0
  %10000 = vmatpush1.msra.mxu0 0.0
  %10001 = vmatprep.subr.mxu0 0.0
  %10002 = vmatpush1.msra.mxu0 0.0
  %10003 = vmatprep.subr.mxu0 0.0
  %10004 = vmatpush1.msra.mxu0 0.0
  %10005 = vmatprep.subr.mxu0 0.0
  %10006 = vmatpush1.msra.mxu0 0.0
  %10007 = vmatprep.subr.mxu0 0.0
  %10008 = vmatpush1.msra.mxu0 0.0
  %10009 = vmatprep.subr.mxu0 0.0
  %10010 = vmatpush1.msra.mxu0 0.0
  %10011 = vmatprep.subr.mxu0 0.0
  %10012 = vmatpush1.msra.mxu0 0.0
  %10013 = vmatprep.subr.mxu0 0.0
  %10014 = vmatpush1.msra.mxu0 0.0
  %10015 = vmatprep.subr.mxu0 0.0
  %10016 = vmatpush1.msra.mxu0 0.0
  %10017 = vmatprep.subr.mxu0 0.0
  %10018 = vmatpush1.msra.mxu0 0.0
  %10019 = vmatprep.subr.mxu0 0.0
  %10020 = vmatpush1.msra.mxu0 0.0
  %10021 = vmatprep.subr.mxu0 0.0
  %10022 = vmatpush1.msra.mxu0 0.0
  %10023 = vmatprep.subr.mxu0 0.0
  %10024 = vmatpush1.msra.mxu0 0.0
  %10025 = vmatprep.subr.mxu0 0.0
  %10026 = vmatpush1.msra.mxu0 0.0
  %10027 = vmatprep.subr.mxu0 0.0
  %10028 = vmatpush1.msra.mxu0 0.0
  %10029 = vmatprep.subr.mxu0 0.0
  %10030 = vmatpush1.msra.mxu0 0.0
  %10031 = vmatprep.subr.mxu0 0.0
  %10032 = vmatpush1.msra.mxu0 0.0
  %10033 = vmatprep.subr.mxu0 0.0
  %10034 = vmatpush1.msra.mxu0 0.0
  %10035 = vmatprep.mubr.f32.mxu0 0.0
  %v10036 = vand.u32 %v9742, 4294901760
  %v10037 = vsub.f32 %v9742, %v10036
  %v10038 = vand.u32 %v10037, 4294901760
  %10039 = vmatmul.mubr.f32.gmra.mrb[0].mxu0 %v10038
  %v10040 = vpop.f32.mrb[0].mxu0
  %v10041 = vadd.f32 %v9967, %v10040
  %v10042 = vpop.f32.mrb[0].mxu0
  %10043 = vdwg.mxu0
  %10044 = vmatprep.subr.mxu0 0.0
  %v10045 = vand.u32 %v28, 4294901760
  %v10046 = vsub.f32 %v28, %v10045
  %v10047 = vand.u32 %v10046, 4294901760
  %10048 = vmatpush1.msra.mxu0 %v10047
  %10049 = vmatprep.subr.mxu0 0.0
  %10050 = vmatpush1.msra.mxu0 0.0
  %10051 = vmatprep.subr.mxu0 0.0
  %10052 = vmatpush1.msra.mxu0 0.0
  %10053 = vmatprep.subr.mxu0 0.0
  %10054 = vmatpush1.msra.mxu0 0.0
  %10055 = vmatprep.subr.mxu0 0.0
  %10056 = vmatpush1.msra.mxu0 0.0
  %10057 = vmatprep.subr.mxu0 0.0
  %10058 = vmatpush1.msra.mxu0 0.0
  %10059 = vmatprep.subr.mxu0 0.0
  %10060 = vmatpush1.msra.mxu0 0.0
  %10061 = vmatprep.subr.mxu0 0.0
  %10062 = vmatpush1.msra.mxu0 0.0
  %10063 = vmatprep.subr.mxu0 0.0
  %10064 = vmatpush1.msra.mxu0 0.0
  %10065 = vmatprep.subr.mxu0 0.0
  %10066 = vmatpush1.msra.mxu0 0.0
  %10067 = vmatprep.subr.mxu0 0.0
  %10068 = vmatpush1.msra.mxu0 0.0
  %10069 = vmatprep.subr.mxu0 0.0
  %10070 = vmatpush1.msra.mxu0 0.0
  %10071 = vmatprep.subr.mxu0 0.0
  %10072 = vmatpush1.msra.mxu0 0.0
  %10073 = vmatprep.subr.mxu0 0.0
  %10074 = vmatpush1.msra.mxu0 0.0
  %10075 = vmatprep.subr.mxu0 0.0
  %10076 = vmatpush1.msra.mxu0 0.0
  %10077 = vmatprep.subr.mxu0 0.0
  %10078 = vmatpush1.msra.mxu0 0.0
  %10079 = vmatprep.subr.mxu0 0.0
  %10080 = vmatpush1.msra.mxu0 0.0
  %10081 = vmatprep.subr.mxu0 0.0
  %10082 = vmatpush1.msra.mxu0 0.0
  %10083 = vmatprep.subr.mxu0 0.0
  %10084 = vmatpush1.msra.mxu0 0.0
  %10085 = vmatprep.subr.mxu0 0.0
  %10086 = vmatpush1.msra.mxu0 0.0
  %10087 = vmatprep.subr.mxu0 0.0
  %10088 = vmatpush1.msra.mxu0 0.0
  %10089 = vmatprep.subr.mxu0 0.0
  %10090 = vmatpush1.msra.mxu0 0.0
  %10091 = vmatprep.subr.mxu0 0.0
  %10092 = vmatpush1.msra.mxu0 0.0
  %10093 = vmatprep.subr.mxu0 0.0
  %10094 = vmatpush1.msra.mxu0 0.0
  %10095 = vmatprep.subr.mxu0 0.0
  %10096 = vmatpush1.msra.mxu0 0.0
  %10097 = vmatprep.subr.mxu0 0.0
  %10098 = vmatpush1.msra.mxu0 0.0
  %10099 = vmatprep.subr.mxu0 0.0
  %10100 = vmatpush1.msra.mxu0 0.0
  %10101 = vmatprep.subr.mxu0 0.0
  %10102 = vmatpush1.msra.mxu0 0.0
  %10103 = vmatprep.subr.mxu0 0.0
  %10104 = vmatpush1.msra.mxu0 0.0
  %10105 = vmatprep.subr.mxu0 0.0
  %10106 = vmatpush1.msra.mxu0 0.0
  %10107 = vmatprep.subr.mxu0 0.0
  %10108 = vmatpush1.msra.mxu0 0.0
  %10109 = vmatprep.subr.mxu0 0.0
  %10110 = vmatpush1.msra.mxu0 0.0
  %10111 = vmatprep.mubr.f32.mxu0 0.0
  %v10112 = vand.u32 %v9742, 4294901760
  %10113 = vmatmul.mubr.f32.gmra.mrb[0].mxu0 %v10112
  %v10114 = vpop.f32.mrb[0].mxu0
  %v10115 = vadd.f32 %v10041, %v10114
  %v10116 = vpop.f32.mrb[0].mxu0
  %10117 = vdwg.mxu0
  %10118 = vmatprep.subr.mxu0 0.0
  %v10119 = vand.u32 %v28, 4294901760
  %10120 = vmatpush1.msra.mxu0 %v10119
  %10121 = vmatprep.subr.mxu0 0.0
  %10122 = vmatpush1.msra.mxu0 0.0
  %10123 = vmatprep.subr.mxu0 0.0
  %10124 = vmatpush1.msra.mxu0 0.0
  %10125 = vmatprep.subr.mxu0 0.0
  %10126 = vmatpush1.msra.mxu0 0.0
  %10127 = vmatprep.subr.mxu0 0.0
  %10128 = vmatpush1.msra.mxu0 0.0
  %10129 = vmatprep.subr.mxu0 0.0
  %10130 = vmatpush1.msra.mxu0 0.0
  %10131 = vmatprep.subr.mxu0 0.0
  %10132 = vmatpush1.msra.mxu0 0.0
  %10133 = vmatprep.subr.mxu0 0.0
  %10134 = vmatpush1.msra.mxu0 0.0
  %10135 = vmatprep.subr.mxu0 0.0
  %10136 = vmatpush1.msra.mxu0 0.0
  %10137 = vmatprep.subr.mxu0 0.0
  %10138 = vmatpush1.msra.mxu0 0.0
  %10139 = vmatprep.subr.mxu0 0.0
  %10140 = vmatpush1.msra.mxu0 0.0
  %10141 = vmatprep.subr.mxu0 0.0
  %10142 = vmatpush1.msra.mxu0 0.0
  %10143 = vmatprep.subr.mxu0 0.0
  %10144 = vmatpush1.msra.mxu0 0.0
  %10145 = vmatprep.subr.mxu0 0.0
  %10146 = vmatpush1.msra.mxu0 0.0
  %10147 = vmatprep.subr.mxu0 0.0
  %10148 = vmatpush1.msra.mxu0 0.0
  %10149 = vmatprep.subr.mxu0 0.0
  %10150 = vmatpush1.msra.mxu0 0.0
  %10151 = vmatprep.subr.mxu0 0.0
  %10152 = vmatpush1.msra.mxu0 0.0
  %10153 = vmatprep.subr.mxu0 0.0
  %10154 = vmatpush1.msra.mxu0 0.0
  %10155 = vmatprep.subr.mxu0 0.0
  %10156 = vmatpush1.msra.mxu0 0.0
  %10157 = vmatprep.subr.mxu0 0.0
  %10158 = vmatpush1.msra.mxu0 0.0
  %10159 = vmatprep.subr.mxu0 0.0
  %10160 = vmatpush1.msra.mxu0 0.0
  %10161 = vmatprep.subr.mxu0 0.0
  %10162 = vmatpush1.msra.mxu0 0.0
  %10163 = vmatprep.subr.mxu0 0.0
  %10164 = vmatpush1.msra.mxu0 0.0
  %10165 = vmatprep.subr.mxu0 0.0
  %10166 = vmatpush1.msra.mxu0 0.0
  %10167 = vmatprep.subr.mxu0 0.0
  %10168 = vmatpush1.msra.mxu0 0.0
  %10169 = vmatprep.subr.mxu0 0.0
  %10170 = vmatpush1.msra.mxu0 0.0
  %10171 = vmatprep.subr.mxu0 0.0
  %10172 = vmatpush1.msra.mxu0 0.0
  %10173 = vmatprep.subr.mxu0 0.0
  %10174 = vmatpush1.msra.mxu0 0.0
  %10175 = vmatprep.subr.mxu0 0.0
  %10176 = vmatpush1.msra.mxu0 0.0
  %10177 = vmatprep.subr.mxu0 0.0
  %10178 = vmatpush1.msra.mxu0 0.0
  %10179 = vmatprep.subr.mxu0 0.0
  %10180 = vmatpush1.msra.mxu0 0.0
  %10181 = vmatprep.subr.mxu0 0.0
  %10182 = vmatpush1.msra.mxu0 0.0
  %10183 = vmatprep.mubr.f32.mxu0 0.0
  %v10184 = vand.u32 %v9742, 4294901760
  %10185 = vmatmul.mubr.f32.gmra.mrb[0].mxu0 %v10184
  %v10186 = vpop.f32.mrb[0].mxu0
  %v10187 = vadd.f32 %v10115, %v10186
  %v10188 = vpop.f32.mrb[0].mxu0
  %10189 = vdwg.mxu0
  %s10190 = scalar_lea.vmem %s1, 40
  %v10191 = vld [vmem:[%s10190] sm:$0xf]
  %10192 = vset.pattern.permute.xlu0 0
  %10193 = vperm.xlu0 %10192, %v10191
  %v10194 = vpop.permute.xlu0 %10193
  %vm10195 = vcmp.eq.s32.totalorder %v490, %v10194
  %v10196 = vsel %vm10195, %v10187, 0.0
  %v10198 = vsel %vm496, %v10196, 0
  %10200 = vmatprep.subr.mxu0 0.0
  %v10201 = vand.u32 %v30, 4294901760
  %10202 = vmatpush1.msra.mxu0 %v10201
  %10203 = vmatprep.subr.mxu0 0.0
  %v10204 = vand.u32 %v31, 4294901760
  %10205 = vmatpush1.msra.mxu0 %v10204
  %10206 = vmatprep.subr.mxu0 0.0
  %v10207 = vand.u32 %v32, 4294901760
  %10208 = vmatpush1.msra.mxu0 %v10207
  %10209 = vmatprep.subr.mxu0 0.0
  %v10210 = vand.u32 %v33, 4294901760
  %10211 = vmatpush1.msra.mxu0 %v10210
  %10212 = vmatprep.subr.mxu0 0.0
  %v10213 = vand.u32 %v34, 4294901760
  %10214 = vmatpush1.msra.mxu0 %v10213
  %10215 = vmatprep.subr.mxu0 0.0
  %v10216 = vand.u32 %v35, 4294901760
  %10217 = vmatpush1.msra.mxu0 %v10216
  %10218 = vmatprep.subr.mxu0 0.0
  %10219 = vmatpush1.msra.mxu0 0.0
  %10220 = vmatprep.subr.mxu0 0.0
  %10221 = vmatpush1.msra.mxu0 0.0
  %10222 = vmatprep.subr.mxu0 0.0
  %10223 = vmatpush1.msra.mxu0 0.0
  %10224 = vmatprep.subr.mxu0 0.0
  %10225 = vmatpush1.msra.mxu0 0.0
  %10226 = vmatprep.subr.mxu0 0.0
  %10227 = vmatpush1.msra.mxu0 0.0
  %10228 = vmatprep.subr.mxu0 0.0
  %10229 = vmatpush1.msra.mxu0 0.0
  %10230 = vmatprep.subr.mxu0 0.0
  %10231 = vmatpush1.msra.mxu0 0.0
  %10232 = vmatprep.subr.mxu0 0.0
  %10233 = vmatpush1.msra.mxu0 0.0
  %10234 = vmatprep.subr.mxu0 0.0
  %10235 = vmatpush1.msra.mxu0 0.0
  %10236 = vmatprep.subr.mxu0 0.0
  %10237 = vmatpush1.msra.mxu0 0.0
  %10238 = vmatprep.subr.mxu0 0.0
  %10239 = vmatpush1.msra.mxu0 0.0
  %10240 = vmatprep.subr.mxu0 0.0
  %10241 = vmatpush1.msra.mxu0 0.0
  %10242 = vmatprep.subr.mxu0 0.0
  %10243 = vmatpush1.msra.mxu0 0.0
  %10244 = vmatprep.subr.mxu0 0.0
  %10245 = vmatpush1.msra.mxu0 0.0
  %10246 = vmatprep.subr.mxu0 0.0
  %10247 = vmatpush1.msra.mxu0 0.0
  %10248 = vmatprep.subr.mxu0 0.0
  %10249 = vmatpush1.msra.mxu0 0.0
  %10250 = vmatprep.subr.mxu0 0.0
  %10251 = vmatpush1.msra.mxu0 0.0
  %10252 = vmatprep.subr.mxu0 0.0
  %10253 = vmatpush1.msra.mxu0 0.0
  %10254 = vmatprep.subr.mxu0 0.0
  %10255 = vmatpush1.msra.mxu0 0.0
  %10256 = vmatprep.subr.mxu0 0.0
  %10257 = vmatpush1.msra.mxu0 0.0
  %10258 = vmatprep.subr.mxu0 0.0
  %10259 = vmatpush1.msra.mxu0 0.0
  %10260 = vmatprep.subr.mxu0 0.0
  %10261 = vmatpush1.msra.mxu0 0.0
  %10262 = vmatprep.subr.mxu0 0.0
  %10263 = vmatpush1.msra.mxu0 0.0
  %10264 = vmatprep.subr.mxu0 0.0
  %10265 = vmatpush1.msra.mxu0 0.0
  %10266 = vmatprep.subr.mxu0 0.0
  %10267 = vmatpush1.msra.mxu0 0.0
  %10268 = vmatprep.subr.mxu0 0.0
  %10269 = vmatpush1.msra.mxu0 0.0
  %10270 = vmatprep.mubr.f32.mxu0 0.0
  %v10271 = vand.u32 %v10198, 4294901760
  %v10272 = vsub.f32 %v10198, %v10271
  %v10273 = vand.u32 %v10272, 4294901760
  %v10274 = vsub.f32 %v10272, %v10273
  %v10275 = vand.u32 %v10274, 4294901760
  %10276 = vmatmul.mubr.f32.gmra.mrb[0].mxu0 %v10275
  %v10277 = vpop.f32.mrb[0].mxu0
  %v10278 = vadd.f32 0.0, %v10277
  %v10279 = vpop.f32.mrb[0].mxu0
  %10280 = vdwg.mxu0
  %10281 = vmatprep.subr.mxu0 0.0
  %v10282 = vand.u32 %v30, 4294901760
  %v10283 = vsub.f32 %v30, %v10282
  %v10284 = vand.u32 %v10283, 4294901760
  %v10285 = vsub.f32 %v10283, %v10284
  %v10286 = vand.u32 %v10285, 4294901760
  %10287 = vmatpush1.msra.mxu0 %v10286
  %10288 = vmatprep.subr.mxu0 0.0
  %v10289 = vand.u32 %v31, 4294901760
  %v10290 = vsub.f32 %v31, %v10289
  %v10291 = vand.u32 %v10290, 4294901760
  %v10292 = vsub.f32 %v10290, %v10291
  %v10293 = vand.u32 %v10292, 4294901760
  %10294 = vmatpush1.msra.mxu0 %v10293
  %10295 = vmatprep.subr.mxu0 0.0
  %v10296 = vand.u32 %v32, 4294901760
  %v10297 = vsub.f32 %v32, %v10296
  %v10298 = vand.u32 %v10297, 4294901760
  %v10299 = vsub.f32 %v10297, %v10298
  %v10300 = vand.u32 %v10299, 4294901760
  %10301 = vmatpush1.msra.mxu0 %v10300
  %10302 = vmatprep.subr.mxu0 0.0
  %v10303 = vand.u32 %v33, 4294901760
  %v10304 = vsub.f32 %v33, %v10303
  %v10305 = vand.u32 %v10304, 4294901760
  %v10306 = vsub.f32 %v10304, %v10305
  %v10307 = vand.u32 %v10306, 4294901760
  %10308 = vmatpush1.msra.mxu0 %v10307
  %10309 = vmatprep.subr.mxu0 0.0
  %v10310 = vand.u32 %v34, 4294901760
  %v10311 = vsub.f32 %v34, %v10310
  %v10312 = vand.u32 %v10311, 4294901760
  %v10313 = vsub.f32 %v10311, %v10312
  %v10314 = vand.u32 %v10313, 4294901760
  %10315 = vmatpush1.msra.mxu0 %v10314
  %10316 = vmatprep.subr.mxu0 0.0
  %v10317 = vand.u32 %v35, 4294901760
  %v10318 = vsub.f32 %v35, %v10317
  %v10319 = vand.u32 %v10318, 4294901760
  %v10320 = vsub.f32 %v10318, %v10319
  %v10321 = vand.u32 %v10320, 4294901760
  %10322 = vmatpush1.msra.mxu0 %v10321
  %10323 = vmatprep.subr.mxu0 0.0
  %10324 = vmatpush1.msra.mxu0 0.0
  %10325 = vmatprep.subr.mxu0 0.0
  %10326 = vmatpush1.msra.mxu0 0.0
  %10327 = vmatprep.subr.mxu0 0.0
  %10328 = vmatpush1.msra.mxu0 0.0
  %10329 = vmatprep.subr.mxu0 0.0
  %10330 = vmatpush1.msra.mxu0 0.0
  %10331 = vmatprep.subr.mxu0 0.0
  %10332 = vmatpush1.msra.mxu0 0.0
  %10333 = vmatprep.subr.mxu0 0.0
  %10334 = vmatpush1.msra.mxu0 0.0
  %10335 = vmatprep.subr.mxu0 0.0
  %10336 = vmatpush1.msra.mxu0 0.0
  %10337 = vmatprep.subr.mxu0 0.0
  %10338 = vmatpush1.msra.mxu0 0.0
  %10339 = vmatprep.subr.mxu0 0.0
  %10340 = vmatpush1.msra.mxu0 0.0
  %10341 = vmatprep.subr.mxu0 0.0
  %10342 = vmatpush1.msra.mxu0 0.0
  %10343 = vmatprep.subr.mxu0 0.0
  %10344 = vmatpush1.msra.mxu0 0.0
  %10345 = vmatprep.subr.mxu0 0.0
  %10346 = vmatpush1.msra.mxu0 0.0
  %10347 = vmatprep.subr.mxu0 0.0
  %10348 = vmatpush1.msra.mxu0 0.0
  %10349 = vmatprep.subr.mxu0 0.0
  %10350 = vmatpush1.msra.mxu0 0.0
  %10351 = vmatprep.subr.mxu0 0.0
  %10352 = vmatpush1.msra.mxu0 0.0
  %10353 = vmatprep.subr.mxu0 0.0
  %10354 = vmatpush1.msra.mxu0 0.0
  %10355 = vmatprep.subr.mxu0 0.0
  %10356 = vmatpush1.msra.mxu0 0.0
  %10357 = vmatprep.subr.mxu0 0.0
  %10358 = vmatpush1.msra.mxu0 0.0
  %10359 = vmatprep.subr.mxu0 0.0
  %10360 = vmatpush1.msra.mxu0 0.0
  %10361 = vmatprep.subr.mxu0 0.0
  %10362 = vmatpush1.msra.mxu0 0.0
  %10363 = vmatprep.subr.mxu0 0.0
  %10364 = vmatpush1.msra.mxu0 0.0
  %10365 = vmatprep.subr.mxu0 0.0
  %10366 = vmatpush1.msra.mxu0 0.0
  %10367 = vmatprep.subr.mxu0 0.0
  %10368 = vmatpush1.msra.mxu0 0.0
  %10369 = vmatprep.subr.mxu0 0.0
  %10370 = vmatpush1.msra.mxu0 0.0
  %10371 = vmatprep.subr.mxu0 0.0
  %10372 = vmatpush1.msra.mxu0 0.0
  %10373 = vmatprep.subr.mxu0 0.0
  %10374 = vmatpush1.msra.mxu0 0.0
  %10375 = vmatprep.mubr.f32.mxu0 0.0
  %v10376 = vand.u32 %v10198, 4294901760
  %10377 = vmatmul.mubr.f32.gmra.mrb[0].mxu0 %v10376
  %v10378 = vpop.f32.mrb[0].mxu0
  %v10379 = vadd.f32 %v10278, %v10378
  %v10380 = vpop.f32.mrb[0].mxu0
  %10381 = vdwg.mxu0
  %10382 = vmatprep.subr.mxu0 0.0
  %v10383 = vand.u32 %v30, 4294901760
  %v10384 = vsub.f32 %v30, %v10383
  %10385 = vmatpush1.msra.mxu0 %v10384
  %10386 = vmatprep.subr.mxu0 0.0
  %v10387 = vand.u32 %v31, 4294901760
  %v10388 = vsub.f32 %v31, %v10387
  %10389 = vmatpush1.msra.mxu0 %v10388
  %10390 = vmatprep.subr.mxu0 0.0
  %v10391 = vand.u32 %v32, 4294901760
  %v10392 = vsub.f32 %v32, %v10391
  %10393 = vmatpush1.msra.mxu0 %v10392
  %10394 = vmatprep.subr.mxu0 0.0
  %v10395 = vand.u32 %v33, 4294901760
  %v10396 = vsub.f32 %v33, %v10395
  %10397 = vmatpush1.msra.mxu0 %v10396
  %10398 = vmatprep.subr.mxu0 0.0
  %v10399 = vand.u32 %v34, 4294901760
  %v10400 = vsub.f32 %v34, %v10399
  %10401 = vmatpush1.msra.mxu0 %v10400
  %10402 = vmatprep.subr.mxu0 0.0
  %v10403 = vand.u32 %v35, 4294901760
  %v10404 = vsub.f32 %v35, %v10403
  %10405 = vmatpush1.msra.mxu0 %v10404
  %10406 = vmatprep.subr.mxu0 0.0
  %10407 = vmatpush1.msra.mxu0 0.0
  %10408 = vmatprep.subr.mxu0 0.0
  %10409 = vmatpush1.msra.mxu0 0.0
  %10410 = vmatprep.subr.mxu0 0.0
  %10411 = vmatpush1.msra.mxu0 0.0
  %10412 = vmatprep.subr.mxu0 0.0
  %10413 = vmatpush1.msra.mxu0 0.0
  %10414 = vmatprep.subr.mxu0 0.0
  %10415 = vmatpush1.msra.mxu0 0.0
  %10416 = vmatprep.subr.mxu0 0.0
  %10417 = vmatpush1.msra.mxu0 0.0
  %10418 = vmatprep.subr.mxu0 0.0
  %10419 = vmatpush1.msra.mxu0 0.0
  %10420 = vmatprep.subr.mxu0 0.0
  %10421 = vmatpush1.msra.mxu0 0.0
  %10422 = vmatprep.subr.mxu0 0.0
  %10423 = vmatpush1.msra.mxu0 0.0
  %10424 = vmatprep.subr.mxu0 0.0
  %10425 = vmatpush1.msra.mxu0 0.0
  %10426 = vmatprep.subr.mxu0 0.0
  %10427 = vmatpush1.msra.mxu0 0.0
  %10428 = vmatprep.subr.mxu0 0.0
  %10429 = vmatpush1.msra.mxu0 0.0
  %10430 = vmatprep.subr.mxu0 0.0
  %10431 = vmatpush1.msra.mxu0 0.0
  %10432 = vmatprep.subr.mxu0 0.0
  %10433 = vmatpush1.msra.mxu0 0.0
  %10434 = vmatprep.subr.mxu0 0.0
  %10435 = vmatpush1.msra.mxu0 0.0
  %10436 = vmatprep.subr.mxu0 0.0
  %10437 = vmatpush1.msra.mxu0 0.0
  %10438 = vmatprep.subr.mxu0 0.0
  %10439 = vmatpush1.msra.mxu0 0.0
  %10440 = vmatprep.subr.mxu0 0.0
  %10441 = vmatpush1.msra.mxu0 0.0
  %10442 = vmatprep.subr.mxu0 0.0
  %10443 = vmatpush1.msra.mxu0 0.0
  %10444 = vmatprep.subr.mxu0 0.0
  %10445 = vmatpush1.msra.mxu0 0.0
  %10446 = vmatprep.subr.mxu0 0.0
  %10447 = vmatpush1.msra.mxu0 0.0
  %10448 = vmatprep.subr.mxu0 0.0
  %10449 = vmatpush1.msra.mxu0 0.0
  %10450 = vmatprep.subr.mxu0 0.0
  %10451 = vmatpush1.msra.mxu0 0.0
  %10452 = vmatprep.subr.mxu0 0.0
  %10453 = vmatpush1.msra.mxu0 0.0
  %10454 = vmatprep.subr.mxu0 0.0
  %10455 = vmatpush1.msra.mxu0 0.0
  %10456 = vmatprep.subr.mxu0 0.0
  %10457 = vmatpush1.msra.mxu0 0.0
  %10458 = vmatprep.mubr.f32.mxu0 0.0
  %v10459 = vand.u32 %v10198, 4294901760
  %v10460 = vsub.f32 %v10198, %v10459
  %10461 = vmatmul.mubr.f32.gmra.mrb[0].mxu0 %v10460
  %v10462 = vpop.f32.mrb[0].mxu0
  %v10463 = vadd.f32 %v10379, %v10462
  %v10464 = vpop.f32.mrb[0].mxu0
  %10465 = vdwg.mxu0
  %10466 = vmatprep.subr.mxu0 0.0
  %v10467 = vand.u32 %v30, 4294901760
  %10468 = vmatpush1.msra.mxu0 %v10467
  %10469 = vmatprep.subr.mxu0 0.0
  %v10470 = vand.u32 %v31, 4294901760
  %10471 = vmatpush1.msra.mxu0 %v10470
  %10472 = vmatprep.subr.mxu0 0.0
  %v10473 = vand.u32 %v32, 4294901760
  %10474 = vmatpush1.msra.mxu0 %v10473
  %10475 = vmatprep.subr.mxu0 0.0
  %v10476 = vand.u32 %v33, 4294901760
  %10477 = vmatpush1.msra.mxu0 %v10476
  %10478 = vmatprep.subr.mxu0 0.0
  %v10479 = vand.u32 %v34, 4294901760
  %10480 = vmatpush1.msra.mxu0 %v10479
  %10481 = vmatprep.subr.mxu0 0.0
  %v10482 = vand.u32 %v35, 4294901760
  %10483 = vmatpush1.msra.mxu0 %v10482
  %10484 = vmatprep.subr.mxu0 0.0
  %10485 = vmatpush1.msra.mxu0 0.0
  %10486 = vmatprep.subr.mxu0 0.0
  %10487 = vmatpush1.msra.mxu0 0.0
  %10488 = vmatprep.subr.mxu0 0.0
  %10489 = vmatpush1.msra.mxu0 0.0
  %10490 = vmatprep.subr.mxu0 0.0
  %10491 = vmatpush1.msra.mxu0 0.0
  %10492 = vmatprep.subr.mxu0 0.0
  %10493 = vmatpush1.msra.mxu0 0.0
  %10494 = vmatprep.subr.mxu0 0.0
  %10495 = vmatpush1.msra.mxu0 0.0
  %10496 = vmatprep.subr.mxu0 0.0
  %10497 = vmatpush1.msra.mxu0 0.0
  %10498 = vmatprep.subr.mxu0 0.0
  %10499 = vmatpush1.msra.mxu0 0.0
  %10500 = vmatprep.subr.mxu0 0.0
  %10501 = vmatpush1.msra.mxu0 0.0
  %10502 = vmatprep.subr.mxu0 0.0
  %10503 = vmatpush1.msra.mxu0 0.0
  %10504 = vmatprep.subr.mxu0 0.0
  %10505 = vmatpush1.msra.mxu0 0.0
  %10506 = vmatprep.subr.mxu0 0.0
  %10507 = vmatpush1.msra.mxu0 0.0
  %10508 = vmatprep.subr.mxu0 0.0
  %10509 = vmatpush1.msra.mxu0 0.0
  %10510 = vmatprep.subr.mxu0 0.0
  %10511 = vmatpush1.msra.mxu0 0.0
  %10512 = vmatprep.subr.mxu0 0.0
  %10513 = vmatpush1.msra.mxu0 0.0
  %10514 = vmatprep.subr.mxu0 0.0
  %10515 = vmatpush1.msra.mxu0 0.0
  %10516 = vmatprep.subr.mxu0 0.0
  %10517 = vmatpush1.msra.mxu0 0.0
  %10518 = vmatprep.subr.mxu0 0.0
  %10519 = vmatpush1.msra.mxu0 0.0
  %10520 = vmatprep.subr.mxu0 0.0
  %10521 = vmatpush1.msra.mxu0 0.0
  %10522 = vmatprep.subr.mxu0 0.0
  %10523 = vmatpush1.msra.mxu0 0.0
  %10524 = vmatprep.subr.mxu0 0.0
  %10525 = vmatpush1.msra.mxu0 0.0
  %10526 = vmatprep.subr.mxu0 0.0
  %10527 = vmatpush1.msra.mxu0 0.0
  %10528 = vmatprep.subr.mxu0 0.0
  %10529 = vmatpush1.msra.mxu0 0.0
  %10530 = vmatprep.subr.mxu0 0.0
  %10531 = vmatpush1.msra.mxu0 0.0
  %10532 = vmatprep.subr.mxu0 0.0
  %10533 = vmatpush1.msra.mxu0 0.0
  %10534 = vmatprep.subr.mxu0 0.0
  %10535 = vmatpush1.msra.mxu0 0.0
  %10536 = vmatprep.mubr.f32.mxu0 0.0
  %v10537 = vand.u32 %v10198, 4294901760
  %v10538 = vsub.f32 %v10198, %v10537
  %v10539 = vand.u32 %v10538, 4294901760
  %10540 = vmatmul.mubr.f32.gmra.mrb[0].mxu0 %v10539
  %v10541 = vpop.f32.mrb[0].mxu0
  %v10542 = vadd.f32 %v10463, %v10541
  %v10543 = vpop.f32.mrb[0].mxu0
  %10544 = vdwg.mxu0
  %10545 = vmatprep.subr.mxu0 0.0
  %v10546 = vand.u32 %v30, 4294901760
  %v10547 = vsub.f32 %v30, %v10546
  %v10548 = vand.u32 %v10547, 4294901760
  %10549 = vmatpush1.msra.mxu0 %v10548
  %10550 = vmatprep.subr.mxu0 0.0
  %v10551 = vand.u32 %v31, 4294901760
  %v10552 = vsub.f32 %v31, %v10551
  %v10553 = vand.u32 %v10552, 4294901760
  %10554 = vmatpush1.msra.mxu0 %v10553
  %10555 = vmatprep.subr.mxu0 0.0
  %v10556 = vand.u32 %v32, 4294901760
  %v10557 = vsub.f32 %v32, %v10556
  %v10558 = vand.u32 %v10557, 4294901760
  %10559 = vmatpush1.msra.mxu0 %v10558
  %10560 = vmatprep.subr.mxu0 0.0
  %v10561 = vand.u32 %v33, 4294901760
  %v10562 = vsub.f32 %v33, %v10561
  %v10563 = vand.u32 %v10562, 4294901760
  %10564 = vmatpush1.msra.mxu0 %v10563
  %10565 = vmatprep.subr.mxu0 0.0
  %v10566 = vand.u32 %v34, 4294901760
  %v10567 = vsub.f32 %v34, %v10566
  %v10568 = vand.u32 %v10567, 4294901760
  %10569 = vmatpush1.msra.mxu0 %v10568
  %10570 = vmatprep.subr.mxu0 0.0
  %v10571 = vand.u32 %v35, 4294901760
  %v10572 = vsub.f32 %v35, %v10571
  %v10573 = vand.u32 %v10572, 4294901760
  %10574 = vmatpush1.msra.mxu0 %v10573
  %10575 = vmatprep.subr.mxu0 0.0
  %10576 = vmatpush1.msra.mxu0 0.0
  %10577 = vmatprep.subr.mxu0 0.0
  %10578 = vmatpush1.msra.mxu0 0.0
  %10579 = vmatprep.subr.mxu0 0.0
  %10580 = vmatpush1.msra.mxu0 0.0
  %10581 = vmatprep.subr.mxu0 0.0
  %10582 = vmatpush1.msra.mxu0 0.0
  %10583 = vmatprep.subr.mxu0 0.0
  %10584 = vmatpush1.msra.mxu0 0.0
  %10585 = vmatprep.subr.mxu0 0.0
  %10586 = vmatpush1.msra.mxu0 0.0
  %10587 = vmatprep.subr.mxu0 0.0
  %10588 = vmatpush1.msra.mxu0 0.0
  %10589 = vmatprep.subr.mxu0 0.0
  %10590 = vmatpush1.msra.mxu0 0.0
  %10591 = vmatprep.subr.mxu0 0.0
  %10592 = vmatpush1.msra.mxu0 0.0
  %10593 = vmatprep.subr.mxu0 0.0
  %10594 = vmatpush1.msra.mxu0 0.0
  %10595 = vmatprep.subr.mxu0 0.0
  %10596 = vmatpush1.msra.mxu0 0.0
  %10597 = vmatprep.subr.mxu0 0.0
  %10598 = vmatpush1.msra.mxu0 0.0
  %10599 = vmatprep.subr.mxu0 0.0
  %10600 = vmatpush1.msra.mxu0 0.0
  %10601 = vmatprep.subr.mxu0 0.0
  %10602 = vmatpush1.msra.mxu0 0.0
  %10603 = vmatprep.subr.mxu0 0.0
  %10604 = vmatpush1.msra.mxu0 0.0
  %10605 = vmatprep.subr.mxu0 0.0
  %10606 = vmatpush1.msra.mxu0 0.0
  %10607 = vmatprep.subr.mxu0 0.0
  %10608 = vmatpush1.msra.mxu0 0.0
  %10609 = vmatprep.subr.mxu0 0.0
  %10610 = vmatpush1.msra.mxu0 0.0
  %10611 = vmatprep.subr.mxu0 0.0
  %10612 = vmatpush1.msra.mxu0 0.0
  %10613 = vmatprep.subr.mxu0 0.0
  %10614 = vmatpush1.msra.mxu0 0.0
  %10615 = vmatprep.subr.mxu0 0.0
  %10616 = vmatpush1.msra.mxu0 0.0
  %10617 = vmatprep.subr.mxu0 0.0
  %10618 = vmatpush1.msra.mxu0 0.0
  %10619 = vmatprep.subr.mxu0 0.0
  %10620 = vmatpush1.msra.mxu0 0.0
  %10621 = vmatprep.subr.mxu0 0.0
  %10622 = vmatpush1.msra.mxu0 0.0
  %10623 = vmatprep.subr.mxu0 0.0
  %10624 = vmatpush1.msra.mxu0 0.0
  %10625 = vmatprep.subr.mxu0 0.0
  %10626 = vmatpush1.msra.mxu0 0.0
  %10627 = vmatprep.mubr.f32.mxu0 0.0
  %v10628 = vand.u32 %v10198, 4294901760
  %10629 = vmatmul.mubr.f32.gmra.mrb[0].mxu0 %v10628
  %v10630 = vpop.f32.mrb[0].mxu0
  %v10631 = vadd.f32 %v10542, %v10630
  %v10632 = vpop.f32.mrb[0].mxu0
  %10633 = vdwg.mxu0
  %10634 = vmatprep.subr.mxu0 0.0
  %v10635 = vand.u32 %v30, 4294901760
  %10636 = vmatpush1.msra.mxu0 %v10635
  %10637 = vmatprep.subr.mxu0 0.0
  %v10638 = vand.u32 %v31, 4294901760
  %10639 = vmatpush1.msra.mxu0 %v10638
  %10640 = vmatprep.subr.mxu0 0.0
  %v10641 = vand.u32 %v32, 4294901760
  %10642 = vmatpush1.msra.mxu0 %v10641
  %10643 = vmatprep.subr.mxu0 0.0
  %v10644 = vand.u32 %v33, 4294901760
  %10645 = vmatpush1.msra.mxu0 %v10644
  %10646 = vmatprep.subr.mxu0 0.0
  %v10647 = vand.u32 %v34, 4294901760
  %10648 = vmatpush1.msra.mxu0 %v10647
  %10649 = vmatprep.subr.mxu0 0.0
  %v10650 = vand.u32 %v35, 4294901760
  %10651 = vmatpush1.msra.mxu0 %v10650
  %10652 = vmatprep.subr.mxu0 0.0
  %10653 = vmatpush1.msra.mxu0 0.0
  %10654 = vmatprep.subr.mxu0 0.0
  %10655 = vmatpush1.msra.mxu0 0.0
  %10656 = vmatprep.subr.mxu0 0.0
  %10657 = vmatpush1.msra.mxu0 0.0
  %10658 = vmatprep.subr.mxu0 0.0
  %10659 = vmatpush1.msra.mxu0 0.0
  %10660 = vmatprep.subr.mxu0 0.0
  %10661 = vmatpush1.msra.mxu0 0.0
  %10662 = vmatprep.subr.mxu0 0.0
  %10663 = vmatpush1.msra.mxu0 0.0
  %10664 = vmatprep.subr.mxu0 0.0
  %10665 = vmatpush1.msra.mxu0 0.0
  %10666 = vmatprep.subr.mxu0 0.0
  %10667 = vmatpush1.msra.mxu0 0.0
  %10668 = vmatprep.subr.mxu0 0.0
  %10669 = vmatpush1.msra.mxu0 0.0
  %10670 = vmatprep.subr.mxu0 0.0
  %10671 = vmatpush1.msra.mxu0 0.0
  %10672 = vmatprep.subr.mxu0 0.0
  %10673 = vmatpush1.msra.mxu0 0.0
  %10674 = vmatprep.subr.mxu0 0.0
  %10675 = vmatpush1.msra.mxu0 0.0
  %10676 = vmatprep.subr.mxu0 0.0
  %10677 = vmatpush1.msra.mxu0 0.0
  %10678 = vmatprep.subr.mxu0 0.0
  %10679 = vmatpush1.msra.mxu0 0.0
  %10680 = vmatprep.subr.mxu0 0.0
  %10681 = vmatpush1.msra.mxu0 0.0
  %10682 = vmatprep.subr.mxu0 0.0
  %10683 = vmatpush1.msra.mxu0 0.0
  %10684 = vmatprep.subr.mxu0 0.0
  %10685 = vmatpush1.msra.mxu0 0.0
  %10686 = vmatprep.subr.mxu0 0.0
  %10687 = vmatpush1.msra.mxu0 0.0
  %10688 = vmatprep.subr.mxu0 0.0
  %10689 = vmatpush1.msra.mxu0 0.0
  %10690 = vmatprep.subr.mxu0 0.0
  %10691 = vmatpush1.msra.mxu0 0.0
  %10692 = vmatprep.subr.mxu0 0.0
  %10693 = vmatpush1.msra.mxu0 0.0
  %10694 = vmatprep.subr.mxu0 0.0
  %10695 = vmatpush1.msra.mxu0 0.0
  %10696 = vmatprep.subr.mxu0 0.0
  %10697 = vmatpush1.msra.mxu0 0.0
  %10698 = vmatprep.subr.mxu0 0.0
  %10699 = vmatpush1.msra.mxu0 0.0
  %10700 = vmatprep.subr.mxu0 0.0
  %10701 = vmatpush1.msra.mxu0 0.0
  %10702 = vmatprep.subr.mxu0 0.0
  %10703 = vmatpush1.msra.mxu0 0.0
  %10704 = vmatprep.mubr.f32.mxu0 0.0
  %v10705 = vand.u32 %v10198, 4294901760
  %10706 = vmatmul.mubr.f32.gmra.mrb[0].mxu0 %v10705
  %v10707 = vpop.f32.mrb[0].mxu0
  %v10708 = vadd.f32 %v10631, %v10707
  %v10709 = vpop.f32.mrb[0].mxu0
  %10710 = vdwg.mxu0
  %v10712 = vsel %vm36, %v10708, 0
  %10714 = vmatprep.subr.mxu0 0.0
  %v10715 = vand.u32 %v28, 4294901760
  %10716 = vmatpush1.msra.mxu0 %v10715
  %10717 = vmatprep.subr.mxu0 0.0
  %10718 = vmatpush1.msra.mxu0 0.0
  %10719 = vmatprep.subr.mxu0 0.0
  %10720 = vmatpush1.msra.mxu0 0.0
  %10721 = vmatprep.subr.mxu0 0.0
  %10722 = vmatpush1.msra.mxu0 0.0
  %10723 = vmatprep.subr.mxu0 0.0
  %10724 = vmatpush1.msra.mxu0 0.0
  %10725 = vmatprep.subr.mxu0 0.0
  %10726 = vmatpush1.msra.mxu0 0.0
  %10727 = vmatprep.subr.mxu0 0.0
  %10728 = vmatpush1.msra.mxu0 0.0
  %10729 = vmatprep.subr.mxu0 0.0
  %10730 = vmatpush1.msra.mxu0 0.0
  %10731 = vmatprep.subr.mxu0 0.0
  %10732 = vmatpush1.msra.mxu0 0.0
  %10733 = vmatprep.subr.mxu0 0.0
  %10734 = vmatpush1.msra.mxu0 0.0
  %10735 = vmatprep.subr.mxu0 0.0
  %10736 = vmatpush1.msra.mxu0 0.0
  %10737 = vmatprep.subr.mxu0 0.0
  %10738 = vmatpush1.msra.mxu0 0.0
  %10739 = vmatprep.subr.mxu0 0.0
  %10740 = vmatpush1.msra.mxu0 0.0
  %10741 = vmatprep.subr.mxu0 0.0
  %10742 = vmatpush1.msra.mxu0 0.0
  %10743 = vmatprep.subr.mxu0 0.0
  %10744 = vmatpush1.msra.mxu0 0.0
  %10745 = vmatprep.subr.mxu0 0.0
  %10746 = vmatpush1.msra.mxu0 0.0
  %10747 = vmatprep.subr.mxu0 0.0
  %10748 = vmatpush1.msra.mxu0 0.0
  %10749 = vmatprep.subr.mxu0 0.0
  %10750 = vmatpush1.msra.mxu0 0.0
  %10751 = vmatprep.subr.mxu0 0.0
  %10752 = vmatpush1.msra.mxu0 0.0
  %10753 = vmatprep.subr.mxu0 0.0
  %10754 = vmatpush1.msra.mxu0 0.0
  %10755 = vmatprep.subr.mxu0 0.0
  %10756 = vmatpush1.msra.mxu0 0.0
  %10757 = vmatprep.subr.mxu0 0.0
  %10758 = vmatpush1.msra.mxu0 0.0
  %10759 = vmatprep.subr.mxu0 0.0
  %10760 = vmatpush1.msra.mxu0 0.0
  %10761 = vmatprep.subr.mxu0 0.0
  %10762 = vmatpush1.msra.mxu0 0.0
  %10763 = vmatprep.subr.mxu0 0.0
  %10764 = vmatpush1.msra.mxu0 0.0
  %10765 = vmatprep.subr.mxu0 0.0
  %10766 = vmatpush1.msra.mxu0 0.0
  %10767 = vmatprep.subr.mxu0 0.0
  %10768 = vmatpush1.msra.mxu0 0.0
  %10769 = vmatprep.subr.mxu0 0.0
  %10770 = vmatpush1.msra.mxu0 0.0
  %10771 = vmatprep.subr.mxu0 0.0
  %10772 = vmatpush1.msra.mxu0 0.0
  %10773 = vmatprep.subr.mxu0 0.0
  %10774 = vmatpush1.msra.mxu0 0.0
  %10775 = vmatprep.subr.mxu0 0.0
  %10776 = vmatpush1.msra.mxu0 0.0
  %10777 = vmatprep.subr.mxu0 0.0
  %10778 = vmatpush1.msra.mxu0 0.0
  %10779 = vmatprep.mubr.f32.mxu0 0.0
  %v10780 = vand.u32 %v10712, 4294901760
  %v10781 = vsub.f32 %v10712, %v10780
  %v10782 = vand.u32 %v10781, 4294901760
  %v10783 = vsub.f32 %v10781, %v10782
  %v10784 = vand.u32 %v10783, 4294901760
  %10785 = vmatmul.mubr.f32.gmra.mrb[0].mxu0 %v10784
  %v10786 = vpop.f32.mrb[0].mxu0
  %v10787 = vadd.f32 0.0, %v10786
  %v10788 = vpop.f32.mrb[0].mxu0
  %10789 = vdwg.mxu0
  %10790 = vmatprep.subr.mxu0 0.0
  %v10791 = vand.u32 %v28, 4294901760
  %v10792 = vsub.f32 %v28, %v10791
  %v10793 = vand.u32 %v10792, 4294901760
  %v10794 = vsub.f32 %v10792, %v10793
  %v10795 = vand.u32 %v10794, 4294901760
  %10796 = vmatpush1.msra.mxu0 %v10795
  %10797 = vmatprep.subr.mxu0 0.0
  %10798 = vmatpush1.msra.mxu0 0.0
  %10799 = vmatprep.subr.mxu0 0.0
  %10800 = vmatpush1.msra.mxu0 0.0
  %10801 = vmatprep.subr.mxu0 0.0
  %10802 = vmatpush1.msra.mxu0 0.0
  %10803 = vmatprep.subr.mxu0 0.0
  %10804 = vmatpush1.msra.mxu0 0.0
  %10805 = vmatprep.subr.mxu0 0.0
  %10806 = vmatpush1.msra.mxu0 0.0
  %10807 = vmatprep.subr.mxu0 0.0
  %10808 = vmatpush1.msra.mxu0 0.0
  %10809 = vmatprep.subr.mxu0 0.0
  %10810 = vmatpush1.msra.mxu0 0.0
  %10811 = vmatprep.subr.mxu0 0.0
  %10812 = vmatpush1.msra.mxu0 0.0
  %10813 = vmatprep.subr.mxu0 0.0
  %10814 = vmatpush1.msra.mxu0 0.0
  %10815 = vmatprep.subr.mxu0 0.0
  %10816 = vmatpush1.msra.mxu0 0.0
  %10817 = vmatprep.subr.mxu0 0.0
  %10818 = vmatpush1.msra.mxu0 0.0
  %10819 = vmatprep.subr.mxu0 0.0
  %10820 = vmatpush1.msra.mxu0 0.0
  %10821 = vmatprep.subr.mxu0 0.0
  %10822 = vmatpush1.msra.mxu0 0.0
  %10823 = vmatprep.subr.mxu0 0.0
  %10824 = vmatpush1.msra.mxu0 0.0
  %10825 = vmatprep.subr.mxu0 0.0
  %10826 = vmatpush1.msra.mxu0 0.0
  %10827 = vmatprep.subr.mxu0 0.0
  %10828 = vmatpush1.msra.mxu0 0.0
  %10829 = vmatprep.subr.mxu0 0.0
  %10830 = vmatpush1.msra.mxu0 0.0
  %10831 = vmatprep.subr.mxu0 0.0
  %10832 = vmatpush1.msra.mxu0 0.0
  %10833 = vmatprep.subr.mxu0 0.0
  %10834 = vmatpush1.msra.mxu0 0.0
  %10835 = vmatprep.subr.mxu0 0.0
  %10836 = vmatpush1.msra.mxu0 0.0
  %10837 = vmatprep.subr.mxu0 0.0
  %10838 = vmatpush1.msra.mxu0 0.0
  %10839 = vmatprep.subr.mxu0 0.0
  %10840 = vmatpush1.msra.mxu0 0.0
  %10841 = vmatprep.subr.mxu0 0.0
  %10842 = vmatpush1.msra.mxu0 0.0
  %10843 = vmatprep.subr.mxu0 0.0
  %10844 = vmatpush1.msra.mxu0 0.0
  %10845 = vmatprep.subr.mxu0 0.0
  %10846 = vmatpush1.msra.mxu0 0.0
  %10847 = vmatprep.subr.mxu0 0.0
  %10848 = vmatpush1.msra.mxu0 0.0
  %10849 = vmatprep.subr.mxu0 0.0
  %10850 = vmatpush1.msra.mxu0 0.0
  %10851 = vmatprep.subr.mxu0 0.0
  %10852 = vmatpush1.msra.mxu0 0.0
  %10853 = vmatprep.subr.mxu0 0.0
  %10854 = vmatpush1.msra.mxu0 0.0
  %10855 = vmatprep.subr.mxu0 0.0
  %10856 = vmatpush1.msra.mxu0 0.0
  %10857 = vmatprep.subr.mxu0 0.0
  %10858 = vmatpush1.msra.mxu0 0.0
  %10859 = vmatprep.mubr.f32.mxu0 0.0
  %v10860 = vand.u32 %v10712, 4294901760
  %10861 = vmatmul.mubr.f32.gmra.mrb[0].mxu0 %v10860
  %v10862 = vpop.f32.mrb[0].mxu0
  %v10863 = vadd.f32 %v10787, %v10862
  %v10864 = vpop.f32.mrb[0].mxu0
  %10865 = vdwg.mxu0
  %10866 = vmatprep.subr.mxu0 0.0
  %v10867 = vand.u32 %v28, 4294901760
  %v10868 = vsub.f32 %v28, %v10867
  %10869 = vmatpush1.msra.mxu0 %v10868
  %10870 = vmatprep.subr.mxu0 0.0
  %10871 = vmatpush1.msra.mxu0 0.0
  %10872 = vmatprep.subr.mxu0 0.0
  %10873 = vmatpush1.msra.mxu0 0.0
  %10874 = vmatprep.subr.mxu0 0.0
  %10875 = vmatpush1.msra.mxu0 0.0
  %10876 = vmatprep.subr.mxu0 0.0
  %10877 = vmatpush1.msra.mxu0 0.0
  %10878 = vmatprep.subr.mxu0 0.0
  %10879 = vmatpush1.msra.mxu0 0.0
  %10880 = vmatprep.subr.mxu0 0.0
  %10881 = vmatpush1.msra.mxu0 0.0
  %10882 = vmatprep.subr.mxu0 0.0
  %10883 = vmatpush1.msra.mxu0 0.0
  %10884 = vmatprep.subr.mxu0 0.0
  %10885 = vmatpush1.msra.mxu0 0.0
  %10886 = vmatprep.subr.mxu0 0.0
  %10887 = vmatpush1.msra.mxu0 0.0
  %10888 = vmatprep.subr.mxu0 0.0
  %10889 = vmatpush1.msra.mxu0 0.0
  %10890 = vmatprep.subr.mxu0 0.0
  %10891 = vmatpush1.msra.mxu0 0.0
  %10892 = vmatprep.subr.mxu0 0.0
  %10893 = vmatpush1.msra.mxu0 0.0
  %10894 = vmatprep.subr.mxu0 0.0
  %10895 = vmatpush1.msra.mxu0 0.0
  %10896 = vmatprep.subr.mxu0 0.0
  %10897 = vmatpush1.msra.mxu0 0.0
  %10898 = vmatprep.subr.mxu0 0.0
  %10899 = vmatpush1.msra.mxu0 0.0
  %10900 = vmatprep.subr.mxu0 0.0
  %10901 = vmatpush1.msra.mxu0 0.0
  %10902 = vmatprep.subr.mxu0 0.0
  %10903 = vmatpush1.msra.mxu0 0.0
  %10904 = vmatprep.subr.mxu0 0.0
  %10905 = vmatpush1.msra.mxu0 0.0
  %10906 = vmatprep.subr.mxu0 0.0
  %10907 = vmatpush1.msra.mxu0 0.0
  %10908 = vmatprep.subr.mxu0 0.0
  %10909 = vmatpush1.msra.mxu0 0.0
  %10910 = vmatprep.subr.mxu0 0.0
  %10911 = vmatpush1.msra.mxu0 0.0
  %10912 = vmatprep.subr.mxu0 0.0
  %10913 = vmatpush1.msra.mxu0 0.0
  %10914 = vmatprep.subr.mxu0 0.0
  %10915 = vmatpush1.msra.mxu0 0.0
  %10916 = vmatprep.subr.mxu0 0.0
  %10917 = vmatpush1.msra.mxu0 0.0
  %10918 = vmatprep.subr.mxu0 0.0
  %10919 = vmatpush1.msra.mxu0 0.0
  %10920 = vmatprep.subr.mxu0 0.0
  %10921 = vmatpush1.msra.mxu0 0.0
  %10922 = vmatprep.subr.mxu0 0.0
  %10923 = vmatpush1.msra.mxu0 0.0
  %10924 = vmatprep.subr.mxu0 0.0
  %10925 = vmatpush1.msra.mxu0 0.0
  %10926 = vmatprep.subr.mxu0 0.0
  %10927 = vmatpush1.msra.mxu0 0.0
  %10928 = vmatprep.subr.mxu0 0.0
  %10929 = vmatpush1.msra.mxu0 0.0
  %10930 = vmatprep.subr.mxu0 0.0
  %10931 = vmatpush1.msra.mxu0 0.0
  %10932 = vmatprep.mubr.f32.mxu0 0.0
  %v10933 = vand.u32 %v10712, 4294901760
  %v10934 = vsub.f32 %v10712, %v10933
  %10935 = vmatmul.mubr.f32.gmra.mrb[0].mxu0 %v10934
  %v10936 = vpop.f32.mrb[0].mxu0
  %v10937 = vadd.f32 %v10863, %v10936
  %v10938 = vpop.f32.mrb[0].mxu0
  %10939 = vdwg.mxu0
  %10940 = vmatprep.subr.mxu0 0.0
  %v10941 = vand.u32 %v28, 4294901760
  %10942 = vmatpush1.msra.mxu0 %v10941
  %10943 = vmatprep.subr.mxu0 0.0
  %10944 = vmatpush1.msra.mxu0 0.0
  %10945 = vmatprep.subr.mxu0 0.0
  %10946 = vmatpush1.msra.mxu0 0.0
  %10947 = vmatprep.subr.mxu0 0.0
  %10948 = vmatpush1.msra.mxu0 0.0
  %10949 = vmatprep.subr.mxu0 0.0
  %10950 = vmatpush1.msra.mxu0 0.0
  %10951 = vmatprep.subr.mxu0 0.0
  %10952 = vmatpush1.msra.mxu0 0.0
  %10953 = vmatprep.subr.mxu0 0.0
  %10954 = vmatpush1.msra.mxu0 0.0
  %10955 = vmatprep.subr.mxu0 0.0
  %10956 = vmatpush1.msra.mxu0 0.0
  %10957 = vmatprep.subr.mxu0 0.0
  %10958 = vmatpush1.msra.mxu0 0.0
  %10959 = vmatprep.subr.mxu0 0.0
  %10960 = vmatpush1.msra.mxu0 0.0
  %10961 = vmatprep.subr.mxu0 0.0
  %10962 = vmatpush1.msra.mxu0 0.0
  %10963 = vmatprep.subr.mxu0 0.0
  %10964 = vmatpush1.msra.mxu0 0.0
  %10965 = vmatprep.subr.mxu0 0.0
  %10966 = vmatpush1.msra.mxu0 0.0
  %10967 = vmatprep.subr.mxu0 0.0
  %10968 = vmatpush1.msra.mxu0 0.0
  %10969 = vmatprep.subr.mxu0 0.0
  %10970 = vmatpush1.msra.mxu0 0.0
  %10971 = vmatprep.subr.mxu0 0.0
  %10972 = vmatpush1.msra.mxu0 0.0
  %10973 = vmatprep.subr.mxu0 0.0
  %10974 = vmatpush1.msra.mxu0 0.0
  %10975 = vmatprep.subr.mxu0 0.0
  %10976 = vmatpush1.msra.mxu0 0.0
  %10977 = vmatprep.subr.mxu0 0.0
  %10978 = vmatpush1.msra.mxu0 0.0
  %10979 = vmatprep.subr.mxu0 0.0
  %10980 = vmatpush1.msra.mxu0 0.0
  %10981 = vmatprep.subr.mxu0 0.0
  %10982 = vmatpush1.msra.mxu0 0.0
  %10983 = vmatprep.subr.mxu0 0.0
  %10984 = vmatpush1.msra.mxu0 0.0
  %10985 = vmatprep.subr.mxu0 0.0
  %10986 = vmatpush1.msra.mxu0 0.0
  %10987 = vmatprep.subr.mxu0 0.0
  %10988 = vmatpush1.msra.mxu0 0.0
  %10989 = vmatprep.subr.mxu0 0.0
  %10990 = vmatpush1.msra.mxu0 0.0
  %10991 = vmatprep.subr.mxu0 0.0
  %10992 = vmatpush1.msra.mxu0 0.0
  %10993 = vmatprep.subr.mxu0 0.0
  %10994 = vmatpush1.msra.mxu0 0.0
  %10995 = vmatprep.subr.mxu0 0.0
  %10996 = vmatpush1.msra.mxu0 0.0
  %10997 = vmatprep.subr.mxu0 0.0
  %10998 = vmatpush1.msra.mxu0 0.0
  %10999 = vmatprep.subr.mxu0 0.0
  %11000 = vmatpush1.msra.mxu0 0.0
  %11001 = vmatprep.subr.mxu0 0.0
  %11002 = vmatpush1.msra.mxu0 0.0
  %11003 = vmatprep.subr.mxu0 0.0
  %11004 = vmatpush1.msra.mxu0 0.0
  %11005 = vmatprep.mubr.f32.mxu0 0.0
  %v11006 = vand.u32 %v10712, 4294901760
  %v11007 = vsub.f32 %v10712, %v11006
  %v11008 = vand.u32 %v11007, 4294901760
  %11009 = vmatmul.mubr.f32.gmra.mrb[0].mxu0 %v11008
  %v11010 = vpop.f32.mrb[0].mxu0
  %v11011 = vadd.f32 %v10937, %v11010
  %v11012 = vpop.f32.mrb[0].mxu0
  %11013 = vdwg.mxu0
  %11014 = vmatprep.subr.mxu0 0.0
  %v11015 = vand.u32 %v28, 4294901760
  %v11016 = vsub.f32 %v28, %v11015
  %v11017 = vand.u32 %v11016, 4294901760
  %11018 = vmatpush1.msra.mxu0 %v11017
  %11019 = vmatprep.subr.mxu0 0.0
  %11020 = vmatpush1.msra.mxu0 0.0
  %11021 = vmatprep.subr.mxu0 0.0
  %11022 = vmatpush1.msra.mxu0 0.0
  %11023 = vmatprep.subr.mxu0 0.0
  %11024 = vmatpush1.msra.mxu0 0.0
  %11025 = vmatprep.subr.mxu0 0.0
  %11026 = vmatpush1.msra.mxu0 0.0
  %11027 = vmatprep.subr.mxu0 0.0
  %11028 = vmatpush1.msra.mxu0 0.0
  %11029 = vmatprep.subr.mxu0 0.0
  %11030 = vmatpush1.msra.mxu0 0.0
  %11031 = vmatprep.subr.mxu0 0.0
  %11032 = vmatpush1.msra.mxu0 0.0
  %11033 = vmatprep.subr.mxu0 0.0
  %11034 = vmatpush1.msra.mxu0 0.0
  %11035 = vmatprep.subr.mxu0 0.0
  %11036 = vmatpush1.msra.mxu0 0.0
  %11037 = vmatprep.subr.mxu0 0.0
  %11038 = vmatpush1.msra.mxu0 0.0
  %11039 = vmatprep.subr.mxu0 0.0
  %11040 = vmatpush1.msra.mxu0 0.0
  %11041 = vmatprep.subr.mxu0 0.0
  %11042 = vmatpush1.msra.mxu0 0.0
  %11043 = vmatprep.subr.mxu0 0.0
  %11044 = vmatpush1.msra.mxu0 0.0
  %11045 = vmatprep.subr.mxu0 0.0
  %11046 = vmatpush1.msra.mxu0 0.0
  %11047 = vmatprep.subr.mxu0 0.0
  %11048 = vmatpush1.msra.mxu0 0.0
  %11049 = vmatprep.subr.mxu0 0.0
  %11050 = vmatpush1.msra.mxu0 0.0
  %11051 = vmatprep.subr.mxu0 0.0
  %11052 = vmatpush1.msra.mxu0 0.0
  %11053 = vmatprep.subr.mxu0 0.0
  %11054 = vmatpush1.msra.mxu0 0.0
  %11055 = vmatprep.subr.mxu0 0.0
  %11056 = vmatpush1.msra.mxu0 0.0
  %11057 = vmatprep.subr.mxu0 0.0
  %11058 = vmatpush1.msra.mxu0 0.0
  %11059 = vmatprep.subr.mxu0 0.0
  %11060 = vmatpush1.msra.mxu0 0.0
  %11061 = vmatprep.subr.mxu0 0.0
  %11062 = vmatpush1.msra.mxu0 0.0
  %11063 = vmatprep.subr.mxu0 0.0
  %11064 = vmatpush1.msra.mxu0 0.0
  %11065 = vmatprep.subr.mxu0 0.0
  %11066 = vmatpush1.msra.mxu0 0.0
  %11067 = vmatprep.subr.mxu0 0.0
  %11068 = vmatpush1.msra.mxu0 0.0
  %11069 = vmatprep.subr.mxu0 0.0
  %11070 = vmatpush1.msra.mxu0 0.0
  %11071 = vmatprep.subr.mxu0 0.0
  %11072 = vmatpush1.msra.mxu0 0.0
  %11073 = vmatprep.subr.mxu0 0.0
  %11074 = vmatpush1.msra.mxu0 0.0
  %11075 = vmatprep.subr.mxu0 0.0
  %11076 = vmatpush1.msra.mxu0 0.0
  %11077 = vmatprep.subr.mxu0 0.0
  %11078 = vmatpush1.msra.mxu0 0.0
  %11079 = vmatprep.subr.mxu0 0.0
  %11080 = vmatpush1.msra.mxu0 0.0
  %11081 = vmatprep.mubr.f32.mxu0 0.0
  %v11082 = vand.u32 %v10712, 4294901760
  %11083 = vmatmul.mubr.f32.gmra.mrb[0].mxu0 %v11082
  %v11084 = vpop.f32.mrb[0].mxu0
  %v11085 = vadd.f32 %v11011, %v11084
  %v11086 = vpop.f32.mrb[0].mxu0
  %11087 = vdwg.mxu0
  %11088 = vmatprep.subr.mxu0 0.0
  %v11089 = vand.u32 %v28, 4294901760
  %11090 = vmatpush1.msra.mxu0 %v11089
  %11091 = vmatprep.subr.mxu0 0.0
  %11092 = vmatpush1.msra.mxu0 0.0
  %11093 = vmatprep.subr.mxu0 0.0
  %11094 = vmatpush1.msra.mxu0 0.0
  %11095 = vmatprep.subr.mxu0 0.0
  %11096 = vmatpush1.msra.mxu0 0.0
  %11097 = vmatprep.subr.mxu0 0.0
  %11098 = vmatpush1.msra.mxu0 0.0
  %11099 = vmatprep.subr.mxu0 0.0
  %11100 = vmatpush1.msra.mxu0 0.0
  %11101 = vmatprep.subr.mxu0 0.0
  %11102 = vmatpush1.msra.mxu0 0.0
  %11103 = vmatprep.subr.mxu0 0.0
  %11104 = vmatpush1.msra.mxu0 0.0
  %11105 = vmatprep.subr.mxu0 0.0
  %11106 = vmatpush1.msra.mxu0 0.0
  %11107 = vmatprep.subr.mxu0 0.0
  %11108 = vmatpush1.msra.mxu0 0.0
  %11109 = vmatprep.subr.mxu0 0.0
  %11110 = vmatpush1.msra.mxu0 0.0
  %11111 = vmatprep.subr.mxu0 0.0
  %11112 = vmatpush1.msra.mxu0 0.0
  %11113 = vmatprep.subr.mxu0 0.0
  %11114 = vmatpush1.msra.mxu0 0.0
  %11115 = vmatprep.subr.mxu0 0.0
  %11116 = vmatpush1.msra.mxu0 0.0
  %11117 = vmatprep.subr.mxu0 0.0
  %11118 = vmatpush1.msra.mxu0 0.0
  %11119 = vmatprep.subr.mxu0 0.0
  %11120 = vmatpush1.msra.mxu0 0.0
  %11121 = vmatprep.subr.mxu0 0.0
  %11122 = vmatpush1.msra.mxu0 0.0
  %11123 = vmatprep.subr.mxu0 0.0
  %11124 = vmatpush1.msra.mxu0 0.0
  %11125 = vmatprep.subr.mxu0 0.0
  %11126 = vmatpush1.msra.mxu0 0.0
  %11127 = vmatprep.subr.mxu0 0.0
  %11128 = vmatpush1.msra.mxu0 0.0
  %11129 = vmatprep.subr.mxu0 0.0
  %11130 = vmatpush1.msra.mxu0 0.0
  %11131 = vmatprep.subr.mxu0 0.0
  %11132 = vmatpush1.msra.mxu0 0.0
  %11133 = vmatprep.subr.mxu0 0.0
  %11134 = vmatpush1.msra.mxu0 0.0
  %11135 = vmatprep.subr.mxu0 0.0
  %11136 = vmatpush1.msra.mxu0 0.0
  %11137 = vmatprep.subr.mxu0 0.0
  %11138 = vmatpush1.msra.mxu0 0.0
  %11139 = vmatprep.subr.mxu0 0.0
  %11140 = vmatpush1.msra.mxu0 0.0
  %11141 = vmatprep.subr.mxu0 0.0
  %11142 = vmatpush1.msra.mxu0 0.0
  %11143 = vmatprep.subr.mxu0 0.0
  %11144 = vmatpush1.msra.mxu0 0.0
  %11145 = vmatprep.subr.mxu0 0.0
  %11146 = vmatpush1.msra.mxu0 0.0
  %11147 = vmatprep.subr.mxu0 0.0
  %11148 = vmatpush1.msra.mxu0 0.0
  %11149 = vmatprep.subr.mxu0 0.0
  %11150 = vmatpush1.msra.mxu0 0.0
  %11151 = vmatprep.subr.mxu0 0.0
  %11152 = vmatpush1.msra.mxu0 0.0
  %11153 = vmatprep.mubr.f32.mxu0 0.0
  %v11154 = vand.u32 %v10712, 4294901760
  %11155 = vmatmul.mubr.f32.gmra.mrb[0].mxu0 %v11154
  %v11156 = vpop.f32.mrb[0].mxu0
  %v11157 = vadd.f32 %v11085, %v11156
  %v11158 = vpop.f32.mrb[0].mxu0
  %11159 = vdwg.mxu0
  %s11160 = scalar_lea.vmem %s1, 44
  %v11161 = vld [vmem:[%s11160] sm:$0xf]
  %11162 = vset.pattern.permute.xlu0 0
  %11163 = vperm.xlu0 %11162, %v11161
  %v11164 = vpop.permute.xlu0 %11163
  %vm11165 = vcmp.eq.s32.totalorder %v490, %v11164
  %v11166 = vsel %vm11165, %v11157, 0.0
  %v11168 = vsel %vm496, %v11166, 0
  %11170 = vmatprep.subr.mxu0 0.0
  %v11171 = vand.u32 %v30, 4294901760
  %11172 = vmatpush1.msra.mxu0 %v11171
  %11173 = vmatprep.subr.mxu0 0.0
  %v11174 = vand.u32 %v31, 4294901760
  %11175 = vmatpush1.msra.mxu0 %v11174
  %11176 = vmatprep.subr.mxu0 0.0
  %v11177 = vand.u32 %v32, 4294901760
  %11178 = vmatpush1.msra.mxu0 %v11177
  %11179 = vmatprep.subr.mxu0 0.0
  %v11180 = vand.u32 %v33, 4294901760
  %11181 = vmatpush1.msra.mxu0 %v11180
  %11182 = vmatprep.subr.mxu0 0.0
  %v11183 = vand.u32 %v34, 4294901760
  %11184 = vmatpush1.msra.mxu0 %v11183
  %11185 = vmatprep.subr.mxu0 0.0
  %v11186 = vand.u32 %v35, 4294901760
  %11187 = vmatpush1.msra.mxu0 %v11186
  %11188 = vmatprep.subr.mxu0 0.0
  %11189 = vmatpush1.msra.mxu0 0.0
  %11190 = vmatprep.subr.mxu0 0.0
  %11191 = vmatpush1.msra.mxu0 0.0
  %11192 = vmatprep.subr.mxu0 0.0
  %11193 = vmatpush1.msra.mxu0 0.0
  %11194 = vmatprep.subr.mxu0 0.0
  %11195 = vmatpush1.msra.mxu0 0.0
  %11196 = vmatprep.subr.mxu0 0.0
  %11197 = vmatpush1.msra.mxu0 0.0
  %11198 = vmatprep.subr.mxu0 0.0
  %11199 = vmatpush1.msra.mxu0 0.0
  %11200 = vmatprep.subr.mxu0 0.0
  %11201 = vmatpush1.msra.mxu0 0.0
  %11202 = vmatprep.subr.mxu0 0.0
  %11203 = vmatpush1.msra.mxu0 0.0
  %11204 = vmatprep.subr.mxu0 0.0
  %11205 = vmatpush1.msra.mxu0 0.0
  %11206 = vmatprep.subr.mxu0 0.0
  %11207 = vmatpush1.msra.mxu0 0.0
  %11208 = vmatprep.subr.mxu0 0.0
  %11209 = vmatpush1.msra.mxu0 0.0
  %11210 = vmatprep.subr.mxu0 0.0
  %11211 = vmatpush1.msra.mxu0 0.0
  %11212 = vmatprep.subr.mxu0 0.0
  %11213 = vmatpush1.msra.mxu0 0.0
  %11214 = vmatprep.subr.mxu0 0.0
  %11215 = vmatpush1.msra.mxu0 0.0
  %11216 = vmatprep.subr.mxu0 0.0
  %11217 = vmatpush1.msra.mxu0 0.0
  %11218 = vmatprep.subr.mxu0 0.0
  %11219 = vmatpush1.msra.mxu0 0.0
  %11220 = vmatprep.subr.mxu0 0.0
  %11221 = vmatpush1.msra.mxu0 0.0
  %11222 = vmatprep.subr.mxu0 0.0
  %11223 = vmatpush1.msra.mxu0 0.0
  %11224 = vmatprep.subr.mxu0 0.0
  %11225 = vmatpush1.msra.mxu0 0.0
  %11226 = vmatprep.subr.mxu0 0.0
  %11227 = vmatpush1.msra.mxu0 0.0
  %11228 = vmatprep.subr.mxu0 0.0
  %11229 = vmatpush1.msra.mxu0 0.0
  %11230 = vmatprep.subr.mxu0 0.0
  %11231 = vmatpush1.msra.mxu0 0.0
  %11232 = vmatprep.subr.mxu0 0.0
  %11233 = vmatpush1.msra.mxu0 0.0
  %11234 = vmatprep.subr.mxu0 0.0
  %11235 = vmatpush1.msra.mxu0 0.0
  %11236 = vmatprep.subr.mxu0 0.0
  %11237 = vmatpush1.msra.mxu0 0.0
  %11238 = vmatprep.subr.mxu0 0.0
  %11239 = vmatpush1.msra.mxu0 0.0
  %11240 = vmatprep.mubr.f32.mxu0 0.0
  %v11241 = vand.u32 %v11168, 4294901760
  %v11242 = vsub.f32 %v11168, %v11241
  %v11243 = vand.u32 %v11242, 4294901760
  %v11244 = vsub.f32 %v11242, %v11243
  %v11245 = vand.u32 %v11244, 4294901760
  %11246 = vmatmul.mubr.f32.gmra.mrb[0].mxu0 %v11245
  %v11247 = vpop.f32.mrb[0].mxu0
  %v11248 = vadd.f32 0.0, %v11247
  %v11249 = vpop.f32.mrb[0].mxu0
  %11250 = vdwg.mxu0
  %11251 = vmatprep.subr.mxu0 0.0
  %v11252 = vand.u32 %v30, 4294901760
  %v11253 = vsub.f32 %v30, %v11252
  %v11254 = vand.u32 %v11253, 4294901760
  %v11255 = vsub.f32 %v11253, %v11254
  %v11256 = vand.u32 %v11255, 4294901760
  %11257 = vmatpush1.msra.mxu0 %v11256
  %11258 = vmatprep.subr.mxu0 0.0
  %v11259 = vand.u32 %v31, 4294901760
  %v11260 = vsub.f32 %v31, %v11259
  %v11261 = vand.u32 %v11260, 4294901760
  %v11262 = vsub.f32 %v11260, %v11261
  %v11263 = vand.u32 %v11262, 4294901760
  %11264 = vmatpush1.msra.mxu0 %v11263
  %11265 = vmatprep.subr.mxu0 0.0
  %v11266 = vand.u32 %v32, 4294901760
  %v11267 = vsub.f32 %v32, %v11266
  %v11268 = vand.u32 %v11267, 4294901760
  %v11269 = vsub.f32 %v11267, %v11268
  %v11270 = vand.u32 %v11269, 4294901760
  %11271 = vmatpush1.msra.mxu0 %v11270
  %11272 = vmatprep.subr.mxu0 0.0
  %v11273 = vand.u32 %v33, 4294901760
  %v11274 = vsub.f32 %v33, %v11273
  %v11275 = vand.u32 %v11274, 4294901760
  %v11276 = vsub.f32 %v11274, %v11275
  %v11277 = vand.u32 %v11276, 4294901760
  %11278 = vmatpush1.msra.mxu0 %v11277
  %11279 = vmatprep.subr.mxu0 0.0
  %v11280 = vand.u32 %v34, 4294901760
  %v11281 = vsub.f32 %v34, %v11280
  %v11282 = vand.u32 %v11281, 4294901760
  %v11283 = vsub.f32 %v11281, %v11282
  %v11284 = vand.u32 %v11283, 4294901760
  %11285 = vmatpush1.msra.mxu0 %v11284
  %11286 = vmatprep.subr.mxu0 0.0
  %v11287 = vand.u32 %v35, 4294901760
  %v11288 = vsub.f32 %v35, %v11287
  %v11289 = vand.u32 %v11288, 4294901760
  %v11290 = vsub.f32 %v11288, %v11289
  %v11291 = vand.u32 %v11290, 4294901760
  %11292 = vmatpush1.msra.mxu0 %v11291
  %11293 = vmatprep.subr.mxu0 0.0
  %11294 = vmatpush1.msra.mxu0 0.0
  %11295 = vmatprep.subr.mxu0 0.0
  %11296 = vmatpush1.msra.mxu0 0.0
  %11297 = vmatprep.subr.mxu0 0.0
  %11298 = vmatpush1.msra.mxu0 0.0
  %11299 = vmatprep.subr.mxu0 0.0
  %11300 = vmatpush1.msra.mxu0 0.0
  %11301 = vmatprep.subr.mxu0 0.0
  %11302 = vmatpush1.msra.mxu0 0.0
  %11303 = vmatprep.subr.mxu0 0.0
  %11304 = vmatpush1.msra.mxu0 0.0
  %11305 = vmatprep.subr.mxu0 0.0
  %11306 = vmatpush1.msra.mxu0 0.0
  %11307 = vmatprep.subr.mxu0 0.0
  %11308 = vmatpush1.msra.mxu0 0.0
  %11309 = vmatprep.subr.mxu0 0.0
  %11310 = vmatpush1.msra.mxu0 0.0
  %11311 = vmatprep.subr.mxu0 0.0
  %11312 = vmatpush1.msra.mxu0 0.0
  %11313 = vmatprep.subr.mxu0 0.0
  %11314 = vmatpush1.msra.mxu0 0.0
  %11315 = vmatprep.subr.mxu0 0.0
  %11316 = vmatpush1.msra.mxu0 0.0
  %11317 = vmatprep.subr.mxu0 0.0
  %11318 = vmatpush1.msra.mxu0 0.0
  %11319 = vmatprep.subr.mxu0 0.0
  %11320 = vmatpush1.msra.mxu0 0.0
  %11321 = vmatprep.subr.mxu0 0.0
  %11322 = vmatpush1.msra.mxu0 0.0
  %11323 = vmatprep.subr.mxu0 0.0
  %11324 = vmatpush1.msra.mxu0 0.0
  %11325 = vmatprep.subr.mxu0 0.0
  %11326 = vmatpush1.msra.mxu0 0.0
  %11327 = vmatprep.subr.mxu0 0.0
  %11328 = vmatpush1.msra.mxu0 0.0
  %11329 = vmatprep.subr.mxu0 0.0
  %11330 = vmatpush1.msra.mxu0 0.0
  %11331 = vmatprep.subr.mxu0 0.0
  %11332 = vmatpush1.msra.mxu0 0.0
  %11333 = vmatprep.subr.mxu0 0.0
  %11334 = vmatpush1.msra.mxu0 0.0
  %11335 = vmatprep.subr.mxu0 0.0
  %11336 = vmatpush1.msra.mxu0 0.0
  %11337 = vmatprep.subr.mxu0 0.0
  %11338 = vmatpush1.msra.mxu0 0.0
  %11339 = vmatprep.subr.mxu0 0.0
  %11340 = vmatpush1.msra.mxu0 0.0
  %11341 = vmatprep.subr.mxu0 0.0
  %11342 = vmatpush1.msra.mxu0 0.0
  %11343 = vmatprep.subr.mxu0 0.0
  %11344 = vmatpush1.msra.mxu0 0.0
  %11345 = vmatprep.mubr.f32.mxu0 0.0
  %v11346 = vand.u32 %v11168, 4294901760
  %11347 = vmatmul.mubr.f32.gmra.mrb[0].mxu0 %v11346
  %v11348 = vpop.f32.mrb[0].mxu0
  %v11349 = vadd.f32 %v11248, %v11348
  %v11350 = vpop.f32.mrb[0].mxu0
  %11351 = vdwg.mxu0
  %11352 = vmatprep.subr.mxu0 0.0
  %v11353 = vand.u32 %v30, 4294901760
  %v11354 = vsub.f32 %v30, %v11353
  %11355 = vmatpush1.msra.mxu0 %v11354
  %11356 = vmatprep.subr.mxu0 0.0
  %v11357 = vand.u32 %v31, 4294901760
  %v11358 = vsub.f32 %v31, %v11357
  %11359 = vmatpush1.msra.mxu0 %v11358
  %11360 = vmatprep.subr.mxu0 0.0
  %v11361 = vand.u32 %v32, 4294901760
  %v11362 = vsub.f32 %v32, %v11361
  %11363 = vmatpush1.msra.mxu0 %v11362
  %11364 = vmatprep.subr.mxu0 0.0
  %v11365 = vand.u32 %v33, 4294901760
  %v11366 = vsub.f32 %v33, %v11365
  %11367 = vmatpush1.msra.mxu0 %v11366
  %11368 = vmatprep.subr.mxu0 0.0
  %v11369 = vand.u32 %v34, 4294901760
  %v11370 = vsub.f32 %v34, %v11369
  %11371 = vmatpush1.msra.mxu0 %v11370
  %11372 = vmatprep.subr.mxu0 0.0
  %v11373 = vand.u32 %v35, 4294901760
  %v11374 = vsub.f32 %v35, %v11373
  %11375 = vmatpush1.msra.mxu0 %v11374
  %11376 = vmatprep.subr.mxu0 0.0
  %11377 = vmatpush1.msra.mxu0 0.0
  %11378 = vmatprep.subr.mxu0 0.0
  %11379 = vmatpush1.msra.mxu0 0.0
  %11380 = vmatprep.subr.mxu0 0.0
  %11381 = vmatpush1.msra.mxu0 0.0
  %11382 = vmatprep.subr.mxu0 0.0
  %11383 = vmatpush1.msra.mxu0 0.0
  %11384 = vmatprep.subr.mxu0 0.0
  %11385 = vmatpush1.msra.mxu0 0.0
  %11386 = vmatprep.subr.mxu0 0.0
  %11387 = vmatpush1.msra.mxu0 0.0
  %11388 = vmatprep.subr.mxu0 0.0
  %11389 = vmatpush1.msra.mxu0 0.0
  %11390 = vmatprep.subr.mxu0 0.0
  %11391 = vmatpush1.msra.mxu0 0.0
  %11392 = vmatprep.subr.mxu0 0.0
  %11393 = vmatpush1.msra.mxu0 0.0
  %11394 = vmatprep.subr.mxu0 0.0
  %11395 = vmatpush1.msra.mxu0 0.0
  %11396 = vmatprep.subr.mxu0 0.0
  %11397 = vmatpush1.msra.mxu0 0.0
  %11398 = vmatprep.subr.mxu0 0.0
  %11399 = vmatpush1.msra.mxu0 0.0
  %11400 = vmatprep.subr.mxu0 0.0
  %11401 = vmatpush1.msra.mxu0 0.0
  %11402 = vmatprep.subr.mxu0 0.0
  %11403 = vmatpush1.msra.mxu0 0.0
  %11404 = vmatprep.subr.mxu0 0.0
  %11405 = vmatpush1.msra.mxu0 0.0
  %11406 = vmatprep.subr.mxu0 0.0
  %11407 = vmatpush1.msra.mxu0 0.0
  %11408 = vmatprep.subr.mxu0 0.0
  %11409 = vmatpush1.msra.mxu0 0.0
  %11410 = vmatprep.subr.mxu0 0.0
  %11411 = vmatpush1.msra.mxu0 0.0
  %11412 = vmatprep.subr.mxu0 0.0
  %11413 = vmatpush1.msra.mxu0 0.0
  %11414 = vmatprep.subr.mxu0 0.0
  %11415 = vmatpush1.msra.mxu0 0.0
  %11416 = vmatprep.subr.mxu0 0.0
  %11417 = vmatpush1.msra.mxu0 0.0
  %11418 = vmatprep.subr.mxu0 0.0
  %11419 = vmatpush1.msra.mxu0 0.0
  %11420 = vmatprep.subr.mxu0 0.0
  %11421 = vmatpush1.msra.mxu0 0.0
  %11422 = vmatprep.subr.mxu0 0.0
  %11423 = vmatpush1.msra.mxu0 0.0
  %11424 = vmatprep.subr.mxu0 0.0
  %11425 = vmatpush1.msra.mxu0 0.0
  %11426 = vmatprep.subr.mxu0 0.0
  %11427 = vmatpush1.msra.mxu0 0.0
  %11428 = vmatprep.mubr.f32.mxu0 0.0
  %v11429 = vand.u32 %v11168, 4294901760
  %v11430 = vsub.f32 %v11168, %v11429
  %11431 = vmatmul.mubr.f32.gmra.mrb[0].mxu0 %v11430
  %v11432 = vpop.f32.mrb[0].mxu0
  %v11433 = vadd.f32 %v11349, %v11432
  %v11434 = vpop.f32.mrb[0].mxu0
  %11435 = vdwg.mxu0
  %11436 = vmatprep.subr.mxu0 0.0
  %v11437 = vand.u32 %v30, 4294901760
  %11438 = vmatpush1.msra.mxu0 %v11437
  %11439 = vmatprep.subr.mxu0 0.0
  %v11440 = vand.u32 %v31, 4294901760
  %11441 = vmatpush1.msra.mxu0 %v11440
  %11442 = vmatprep.subr.mxu0 0.0
  %v11443 = vand.u32 %v32, 4294901760
  %11444 = vmatpush1.msra.mxu0 %v11443
  %11445 = vmatprep.subr.mxu0 0.0
  %v11446 = vand.u32 %v33, 4294901760
  %11447 = vmatpush1.msra.mxu0 %v11446
  %11448 = vmatprep.subr.mxu0 0.0
  %v11449 = vand.u32 %v34, 4294901760
  %11450 = vmatpush1.msra.mxu0 %v11449
  %11451 = vmatprep.subr.mxu0 0.0
  %v11452 = vand.u32 %v35, 4294901760
  %11453 = vmatpush1.msra.mxu0 %v11452
  %11454 = vmatprep.subr.mxu0 0.0
  %11455 = vmatpush1.msra.mxu0 0.0
  %11456 = vmatprep.subr.mxu0 0.0
  %11457 = vmatpush1.msra.mxu0 0.0
  %11458 = vmatprep.subr.mxu0 0.0
  %11459 = vmatpush1.msra.mxu0 0.0
  %11460 = vmatprep.subr.mxu0 0.0
  %11461 = vmatpush1.msra.mxu0 0.0
  %11462 = vmatprep.subr.mxu0 0.0
  %11463 = vmatpush1.msra.mxu0 0.0
  %11464 = vmatprep.subr.mxu0 0.0
  %11465 = vmatpush1.msra.mxu0 0.0
  %11466 = vmatprep.subr.mxu0 0.0
  %11467 = vmatpush1.msra.mxu0 0.0
  %11468 = vmatprep.subr.mxu0 0.0
  %11469 = vmatpush1.msra.mxu0 0.0
  %11470 = vmatprep.subr.mxu0 0.0
  %11471 = vmatpush1.msra.mxu0 0.0
  %11472 = vmatprep.subr.mxu0 0.0
  %11473 = vmatpush1.msra.mxu0 0.0
  %11474 = vmatprep.subr.mxu0 0.0
  %11475 = vmatpush1.msra.mxu0 0.0
  %11476 = vmatprep.subr.mxu0 0.0
  %11477 = vmatpush1.msra.mxu0 0.0
  %11478 = vmatprep.subr.mxu0 0.0
  %11479 = vmatpush1.msra.mxu0 0.0
  %11480 = vmatprep.subr.mxu0 0.0
  %11481 = vmatpush1.msra.mxu0 0.0
  %11482 = vmatprep.subr.mxu0 0.0
  %11483 = vmatpush1.msra.mxu0 0.0
  %11484 = vmatprep.subr.mxu0 0.0
  %11485 = vmatpush1.msra.mxu0 0.0
  %11486 = vmatprep.subr.mxu0 0.0
  %11487 = vmatpush1.msra.mxu0 0.0
  %11488 = vmatprep.subr.mxu0 0.0
  %11489 = vmatpush1.msra.mxu0 0.0
  %11490 = vmatprep.subr.mxu0 0.0
  %11491 = vmatpush1.msra.mxu0 0.0
  %11492 = vmatprep.subr.mxu0 0.0
  %11493 = vmatpush1.msra.mxu0 0.0
  %11494 = vmatprep.subr.mxu0 0.0
  %11495 = vmatpush1.msra.mxu0 0.0
  %11496 = vmatprep.subr.mxu0 0.0
  %11497 = vmatpush1.msra.mxu0 0.0
  %11498 = vmatprep.subr.mxu0 0.0
  %11499 = vmatpush1.msra.mxu0 0.0
  %11500 = vmatprep.subr.mxu0 0.0
  %11501 = vmatpush1.msra.mxu0 0.0
  %11502 = vmatprep.subr.mxu0 0.0
  %11503 = vmatpush1.msra.mxu0 0.0
  %11504 = vmatprep.subr.mxu0 0.0
  %11505 = vmatpush1.msra.mxu0 0.0
  %11506 = vmatprep.mubr.f32.mxu0 0.0
  %v11507 = vand.u32 %v11168, 4294901760
  %v11508 = vsub.f32 %v11168, %v11507
  %v11509 = vand.u32 %v11508, 4294901760
  %11510 = vmatmul.mubr.f32.gmra.mrb[0].mxu0 %v11509
  %v11511 = vpop.f32.mrb[0].mxu0
  %v11512 = vadd.f32 %v11433, %v11511
  %v11513 = vpop.f32.mrb[0].mxu0
  %11514 = vdwg.mxu0
  %11515 = vmatprep.subr.mxu0 0.0
  %v11516 = vand.u32 %v30, 4294901760
  %v11517 = vsub.f32 %v30, %v11516
  %v11518 = vand.u32 %v11517, 4294901760
  %11519 = vmatpush1.msra.mxu0 %v11518
  %11520 = vmatprep.subr.mxu0 0.0
  %v11521 = vand.u32 %v31, 4294901760
  %v11522 = vsub.f32 %v31, %v11521
  %v11523 = vand.u32 %v11522, 4294901760
  %11524 = vmatpush1.msra.mxu0 %v11523
  %11525 = vmatprep.subr.mxu0 0.0
  %v11526 = vand.u32 %v32, 4294901760
  %v11527 = vsub.f32 %v32, %v11526
  %v11528 = vand.u32 %v11527, 4294901760
  %11529 = vmatpush1.msra.mxu0 %v11528
  %11530 = vmatprep.subr.mxu0 0.0
  %v11531 = vand.u32 %v33, 4294901760
  %v11532 = vsub.f32 %v33, %v11531
  %v11533 = vand.u32 %v11532, 4294901760
  %11534 = vmatpush1.msra.mxu0 %v11533
  %11535 = vmatprep.subr.mxu0 0.0
  %v11536 = vand.u32 %v34, 4294901760
  %v11537 = vsub.f32 %v34, %v11536
  %v11538 = vand.u32 %v11537, 4294901760
  %11539 = vmatpush1.msra.mxu0 %v11538
  %11540 = vmatprep.subr.mxu0 0.0
  %v11541 = vand.u32 %v35, 4294901760
  %v11542 = vsub.f32 %v35, %v11541
  %v11543 = vand.u32 %v11542, 4294901760
  %11544 = vmatpush1.msra.mxu0 %v11543
  %11545 = vmatprep.subr.mxu0 0.0
  %11546 = vmatpush1.msra.mxu0 0.0
  %11547 = vmatprep.subr.mxu0 0.0
  %11548 = vmatpush1.msra.mxu0 0.0
  %11549 = vmatprep.subr.mxu0 0.0
  %11550 = vmatpush1.msra.mxu0 0.0
  %11551 = vmatprep.subr.mxu0 0.0
  %11552 = vmatpush1.msra.mxu0 0.0
  %11553 = vmatprep.subr.mxu0 0.0
  %11554 = vmatpush1.msra.mxu0 0.0
  %11555 = vmatprep.subr.mxu0 0.0
  %11556 = vmatpush1.msra.mxu0 0.0
  %11557 = vmatprep.subr.mxu0 0.0
  %11558 = vmatpush1.msra.mxu0 0.0
  %11559 = vmatprep.subr.mxu0 0.0
  %11560 = vmatpush1.msra.mxu0 0.0
  %11561 = vmatprep.subr.mxu0 0.0
  %11562 = vmatpush1.msra.mxu0 0.0
  %11563 = vmatprep.subr.mxu0 0.0
  %11564 = vmatpush1.msra.mxu0 0.0
  %11565 = vmatprep.subr.mxu0 0.0
  %11566 = vmatpush1.msra.mxu0 0.0
  %11567 = vmatprep.subr.mxu0 0.0
  %11568 = vmatpush1.msra.mxu0 0.0
  %11569 = vmatprep.subr.mxu0 0.0
  %11570 = vmatpush1.msra.mxu0 0.0
  %11571 = vmatprep.subr.mxu0 0.0
  %11572 = vmatpush1.msra.mxu0 0.0
  %11573 = vmatprep.subr.mxu0 0.0
  %11574 = vmatpush1.msra.mxu0 0.0
  %11575 = vmatprep.subr.mxu0 0.0
  %11576 = vmatpush1.msra.mxu0 0.0
  %11577 = vmatprep.subr.mxu0 0.0
  %11578 = vmatpush1.msra.mxu0 0.0
  %11579 = vmatprep.subr.mxu0 0.0
  %11580 = vmatpush1.msra.mxu0 0.0
  %11581 = vmatprep.subr.mxu0 0.0
  %11582 = vmatpush1.msra.mxu0 0.0
  %11583 = vmatprep.subr.mxu0 0.0
  %11584 = vmatpush1.msra.mxu0 0.0
  %11585 = vmatprep.subr.mxu0 0.0
  %11586 = vmatpush1.msra.mxu0 0.0
  %11587 = vmatprep.subr.mxu0 0.0
  %11588 = vmatpush1.msra.mxu0 0.0
  %11589 = vmatprep.subr.mxu0 0.0
  %11590 = vmatpush1.msra.mxu0 0.0
  %11591 = vmatprep.subr.mxu0 0.0
  %11592 = vmatpush1.msra.mxu0 0.0
  %11593 = vmatprep.subr.mxu0 0.0
  %11594 = vmatpush1.msra.mxu0 0.0
  %11595 = vmatprep.subr.mxu0 0.0
  %11596 = vmatpush1.msra.mxu0 0.0
  %11597 = vmatprep.mubr.f32.mxu0 0.0
  %v11598 = vand.u32 %v11168, 4294901760
  %11599 = vmatmul.mubr.f32.gmra.mrb[0].mxu0 %v11598
  %v11600 = vpop.f32.mrb[0].mxu0
  %v11601 = vadd.f32 %v11512, %v11600
  %v11602 = vpop.f32.mrb[0].mxu0
  %11603 = vdwg.mxu0
  %11604 = vmatprep.subr.mxu0 0.0
  %v11605 = vand.u32 %v30, 4294901760
  %11606 = vmatpush1.msra.mxu0 %v11605
  %11607 = vmatprep.subr.mxu0 0.0
  %v11608 = vand.u32 %v31, 4294901760
  %11609 = vmatpush1.msra.mxu0 %v11608
  %11610 = vmatprep.subr.mxu0 0.0
  %v11611 = vand.u32 %v32, 4294901760
  %11612 = vmatpush1.msra.mxu0 %v11611
  %11613 = vmatprep.subr.mxu0 0.0
  %v11614 = vand.u32 %v33, 4294901760
  %11615 = vmatpush1.msra.mxu0 %v11614
  %11616 = vmatprep.subr.mxu0 0.0
  %v11617 = vand.u32 %v34, 4294901760
  %11618 = vmatpush1.msra.mxu0 %v11617
  %11619 = vmatprep.subr.mxu0 0.0
  %v11620 = vand.u32 %v35, 4294901760
  %11621 = vmatpush1.msra.mxu0 %v11620
  %11622 = vmatprep.subr.mxu0 0.0
  %11623 = vmatpush1.msra.mxu0 0.0
  %11624 = vmatprep.subr.mxu0 0.0
  %11625 = vmatpush1.msra.mxu0 0.0
  %11626 = vmatprep.subr.mxu0 0.0
  %11627 = vmatpush1.msra.mxu0 0.0
  %11628 = vmatprep.subr.mxu0 0.0
  %11629 = vmatpush1.msra.mxu0 0.0
  %11630 = vmatprep.subr.mxu0 0.0
  %11631 = vmatpush1.msra.mxu0 0.0
  %11632 = vmatprep.subr.mxu0 0.0
  %11633 = vmatpush1.msra.mxu0 0.0
  %11634 = vmatprep.subr.mxu0 0.0
  %11635 = vmatpush1.msra.mxu0 0.0
  %11636 = vmatprep.subr.mxu0 0.0
  %11637 = vmatpush1.msra.mxu0 0.0
  %11638 = vmatprep.subr.mxu0 0.0
  %11639 = vmatpush1.msra.mxu0 0.0
  %11640 = vmatprep.subr.mxu0 0.0
  %11641 = vmatpush1.msra.mxu0 0.0
  %11642 = vmatprep.subr.mxu0 0.0
  %11643 = vmatpush1.msra.mxu0 0.0
  %11644 = vmatprep.subr.mxu0 0.0
  %11645 = vmatpush1.msra.mxu0 0.0
  %11646 = vmatprep.subr.mxu0 0.0
  %11647 = vmatpush1.msra.mxu0 0.0
  %11648 = vmatprep.subr.mxu0 0.0
  %11649 = vmatpush1.msra.mxu0 0.0
  %11650 = vmatprep.subr.mxu0 0.0
  %11651 = vmatpush1.msra.mxu0 0.0
  %11652 = vmatprep.subr.mxu0 0.0
  %11653 = vmatpush1.msra.mxu0 0.0
  %11654 = vmatprep.subr.mxu0 0.0
  %11655 = vmatpush1.msra.mxu0 0.0
  %11656 = vmatprep.subr.mxu0 0.0
  %11657 = vmatpush1.msra.mxu0 0.0
  %11658 = vmatprep.subr.mxu0 0.0
  %11659 = vmatpush1.msra.mxu0 0.0
  %11660 = vmatprep.subr.mxu0 0.0
  %11661 = vmatpush1.msra.mxu0 0.0
  %11662 = vmatprep.subr.mxu0 0.0
  %11663 = vmatpush1.msra.mxu0 0.0
  %11664 = vmatprep.subr.mxu0 0.0
  %11665 = vmatpush1.msra.mxu0 0.0
  %11666 = vmatprep.subr.mxu0 0.0
  %11667 = vmatpush1.msra.mxu0 0.0
  %11668 = vmatprep.subr.mxu0 0.0
  %11669 = vmatpush1.msra.mxu0 0.0
  %11670 = vmatprep.subr.mxu0 0.0
  %11671 = vmatpush1.msra.mxu0 0.0
  %11672 = vmatprep.subr.mxu0 0.0
  %11673 = vmatpush1.msra.mxu0 0.0
  %11674 = vmatprep.mubr.f32.mxu0 0.0
  %v11675 = vand.u32 %v11168, 4294901760
  %11676 = vmatmul.mubr.f32.gmra.mrb[0].mxu0 %v11675
  %v11677 = vpop.f32.mrb[0].mxu0
  %v11678 = vadd.f32 %v11601, %v11677
  %v11679 = vpop.f32.mrb[0].mxu0
  %11680 = vdwg.mxu0
  %v11681 = vld [vmem:[%s4] sm:$0xff]
  %v11682 = vld [vmem:[%s5] sm:$0x1]
  %v11684 = vlaneseq
  %v11685 = vshrl.u32 %v11684, 7
  %v11686 = vsub.s32 0, %v11685
  %v11687 = vrot.slane %v11682, %v11686
  %v11690 = vsel %vm36, %v11678, 0
  %11692 = vmatprep.subr.mxu0 0.0
  %v11693 = vand.u32 %v11681, 4294901760
  %11694 = vmatpush1.msra.mxu0 %v11693
  %11695 = vmatprep.subr.mxu0 0.0
  %11696 = vmatpush1.msra.mxu0 0.0
  %11697 = vmatprep.subr.mxu0 0.0
  %11698 = vmatpush1.msra.mxu0 0.0
  %11699 = vmatprep.subr.mxu0 0.0
  %11700 = vmatpush1.msra.mxu0 0.0
  %11701 = vmatprep.subr.mxu0 0.0
  %11702 = vmatpush1.msra.mxu0 0.0
  %11703 = vmatprep.subr.mxu0 0.0
  %11704 = vmatpush1.msra.mxu0 0.0
  %11705 = vmatprep.subr.mxu0 0.0
  %11706 = vmatpush1.msra.mxu0 0.0
  %11707 = vmatprep.subr.mxu0 0.0
  %11708 = vmatpush1.msra.mxu0 0.0
  %11709 = vmatprep.subr.mxu0 0.0
  %11710 = vmatpush1.msra.mxu0 0.0
  %11711 = vmatprep.subr.mxu0 0.0
  %11712 = vmatpush1.msra.mxu0 0.0
  %11713 = vmatprep.subr.mxu0 0.0
  %11714 = vmatpush1.msra.mxu0 0.0
  %11715 = vmatprep.subr.mxu0 0.0
  %11716 = vmatpush1.msra.mxu0 0.0
  %11717 = vmatprep.subr.mxu0 0.0
  %11718 = vmatpush1.msra.mxu0 0.0
  %11719 = vmatprep.subr.mxu0 0.0
  %11720 = vmatpush1.msra.mxu0 0.0
  %11721 = vmatprep.subr.mxu0 0.0
  %11722 = vmatpush1.msra.mxu0 0.0
  %11723 = vmatprep.subr.mxu0 0.0
  %11724 = vmatpush1.msra.mxu0 0.0
  %11725 = vmatprep.subr.mxu0 0.0
  %11726 = vmatpush1.msra.mxu0 0.0
  %11727 = vmatprep.subr.mxu0 0.0
  %11728 = vmatpush1.msra.mxu0 0.0
  %11729 = vmatprep.subr.mxu0 0.0
  %11730 = vmatpush1.msra.mxu0 0.0
  %11731 = vmatprep.subr.mxu0 0.0
  %11732 = vmatpush1.msra.mxu0 0.0
  %11733 = vmatprep.subr.mxu0 0.0
  %11734 = vmatpush1.msra.mxu0 0.0
  %11735 = vmatprep.subr.mxu0 0.0
  %11736 = vmatpush1.msra.mxu0 0.0
  %11737 = vmatprep.subr.mxu0 0.0
  %11738 = vmatpush1.msra.mxu0 0.0
  %11739 = vmatprep.subr.mxu0 0.0
  %11740 = vmatpush1.msra.mxu0 0.0
  %11741 = vmatprep.subr.mxu0 0.0
  %11742 = vmatpush1.msra.mxu0 0.0
  %11743 = vmatprep.subr.mxu0 0.0
  %11744 = vmatpush1.msra.mxu0 0.0
  %11745 = vmatprep.subr.mxu0 0.0
  %11746 = vmatpush1.msra.mxu0 0.0
  %11747 = vmatprep.subr.mxu0 0.0
  %11748 = vmatpush1.msra.mxu0 0.0
  %11749 = vmatprep.subr.mxu0 0.0
  %11750 = vmatpush1.msra.mxu0 0.0
  %11751 = vmatprep.subr.mxu0 0.0
  %11752 = vmatpush1.msra.mxu0 0.0
  %11753 = vmatprep.subr.mxu0 0.0
  %11754 = vmatpush1.msra.mxu0 0.0
  %11755 = vmatprep.subr.mxu0 0.0
  %11756 = vmatpush1.msra.mxu0 0.0
  %11757 = vmatprep.mubr.f32.mxu0 0.0
  %v11758 = vand.u32 %v11690, 4294901760
  %v11759 = vsub.f32 %v11690, %v11758
  %v11760 = vand.u32 %v11759, 4294901760
  %v11761 = vsub.f32 %v11759, %v11760
  %v11762 = vand.u32 %v11761, 4294901760
  %11763 = vmatmul.mubr.f32.gmra.mrb[0].mxu0 %v11762
  %v11764 = vpop.f32.mrb[0].mxu0
  %v11765 = vadd.f32 %v11687, %v11764
  %v11766 = vpop.f32.mrb[0].mxu0
  %11767 = vdwg.mxu0
  %11768 = vmatprep.subr.mxu0 0.0
  %v11769 = vand.u32 %v11681, 4294901760
  %v11770 = vsub.f32 %v11681, %v11769
  %v11771 = vand.u32 %v11770, 4294901760
  %v11772 = vsub.f32 %v11770, %v11771
  %v11773 = vand.u32 %v11772, 4294901760
  %11774 = vmatpush1.msra.mxu0 %v11773
  %11775 = vmatprep.subr.mxu0 0.0
  %11776 = vmatpush1.msra.mxu0 0.0
  %11777 = vmatprep.subr.mxu0 0.0
  %11778 = vmatpush1.msra.mxu0 0.0
  %11779 = vmatprep.subr.mxu0 0.0
  %11780 = vmatpush1.msra.mxu0 0.0
  %11781 = vmatprep.subr.mxu0 0.0
  %11782 = vmatpush1.msra.mxu0 0.0
  %11783 = vmatprep.subr.mxu0 0.0
  %11784 = vmatpush1.msra.mxu0 0.0
  %11785 = vmatprep.subr.mxu0 0.0
  %11786 = vmatpush1.msra.mxu0 0.0
  %11787 = vmatprep.subr.mxu0 0.0
  %11788 = vmatpush1.msra.mxu0 0.0
  %11789 = vmatprep.subr.mxu0 0.0
  %11790 = vmatpush1.msra.mxu0 0.0
  %11791 = vmatprep.subr.mxu0 0.0
  %11792 = vmatpush1.msra.mxu0 0.0
  %11793 = vmatprep.subr.mxu0 0.0
  %11794 = vmatpush1.msra.mxu0 0.0
  %11795 = vmatprep.subr.mxu0 0.0
  %11796 = vmatpush1.msra.mxu0 0.0
  %11797 = vmatprep.subr.mxu0 0.0
  %11798 = vmatpush1.msra.mxu0 0.0
  %11799 = vmatprep.subr.mxu0 0.0
  %11800 = vmatpush1.msra.mxu0 0.0
  %11801 = vmatprep.subr.mxu0 0.0
  %11802 = vmatpush1.msra.mxu0 0.0
  %11803 = vmatprep.subr.mxu0 0.0
  %11804 = vmatpush1.msra.mxu0 0.0
  %11805 = vmatprep.subr.mxu0 0.0
  %11806 = vmatpush1.msra.mxu0 0.0
  %11807 = vmatprep.subr.mxu0 0.0
  %11808 = vmatpush1.msra.mxu0 0.0
  %11809 = vmatprep.subr.mxu0 0.0
  %11810 = vmatpush1.msra.mxu0 0.0
  %11811 = vmatprep.subr.mxu0 0.0
  %11812 = vmatpush1.msra.mxu0 0.0
  %11813 = vmatprep.subr.mxu0 0.0
  %11814 = vmatpush1.msra.mxu0 0.0
  %11815 = vmatprep.subr.mxu0 0.0
  %11816 = vmatpush1.msra.mxu0 0.0
  %11817 = vmatprep.subr.mxu0 0.0
  %11818 = vmatpush1.msra.mxu0 0.0
  %11819 = vmatprep.subr.mxu0 0.0
  %11820 = vmatpush1.msra.mxu0 0.0
  %11821 = vmatprep.subr.mxu0 0.0
  %11822 = vmatpush1.msra.mxu0 0.0
  %11823 = vmatprep.subr.mxu0 0.0
  %11824 = vmatpush1.msra.mxu0 0.0
  %11825 = vmatprep.subr.mxu0 0.0
  %11826 = vmatpush1.msra.mxu0 0.0
  %11827 = vmatprep.subr.mxu0 0.0
  %11828 = vmatpush1.msra.mxu0 0.0
  %11829 = vmatprep.subr.mxu0 0.0
  %11830 = vmatpush1.msra.mxu0 0.0
  %11831 = vmatprep.subr.mxu0 0.0
  %11832 = vmatpush1.msra.mxu0 0.0
  %11833 = vmatprep.subr.mxu0 0.0
  %11834 = vmatpush1.msra.mxu0 0.0
  %11835 = vmatprep.subr.mxu0 0.0
  %11836 = vmatpush1.msra.mxu0 0.0
  %11837 = vmatprep.mubr.f32.mxu0 0.0
  %v11838 = vand.u32 %v11690, 4294901760
  %11839 = vmatmul.mubr.f32.gmra.mrb[0].mxu0 %v11838
  %v11840 = vpop.f32.mrb[0].mxu0
  %v11841 = vadd.f32 %v11765, %v11840
  %v11842 = vpop.f32.mrb[0].mxu0
  %11843 = vdwg.mxu0
  %11844 = vmatprep.subr.mxu0 0.0
  %v11845 = vand.u32 %v11681, 4294901760
  %v11846 = vsub.f32 %v11681, %v11845
  %11847 = vmatpush1.msra.mxu0 %v11846
  %11848 = vmatprep.subr.mxu0 0.0
  %11849 = vmatpush1.msra.mxu0 0.0
  %11850 = vmatprep.subr.mxu0 0.0
  %11851 = vmatpush1.msra.mxu0 0.0
  %11852 = vmatprep.subr.mxu0 0.0
  %11853 = vmatpush1.msra.mxu0 0.0
  %11854 = vmatprep.subr.mxu0 0.0
  %11855 = vmatpush1.msra.mxu0 0.0
  %11856 = vmatprep.subr.mxu0 0.0
  %11857 = vmatpush1.msra.mxu0 0.0
  %11858 = vmatprep.subr.mxu0 0.0
  %11859 = vmatpush1.msra.mxu0 0.0
  %11860 = vmatprep.subr.mxu0 0.0
  %11861 = vmatpush1.msra.mxu0 0.0
  %11862 = vmatprep.subr.mxu0 0.0
  %11863 = vmatpush1.msra.mxu0 0.0
  %11864 = vmatprep.subr.mxu0 0.0
  %11865 = vmatpush1.msra.mxu0 0.0
  %11866 = vmatprep.subr.mxu0 0.0
  %11867 = vmatpush1.msra.mxu0 0.0
  %11868 = vmatprep.subr.mxu0 0.0
  %11869 = vmatpush1.msra.mxu0 0.0
  %11870 = vmatprep.subr.mxu0 0.0
  %11871 = vmatpush1.msra.mxu0 0.0
  %11872 = vmatprep.subr.mxu0 0.0
  %11873 = vmatpush1.msra.mxu0 0.0
  %11874 = vmatprep.subr.mxu0 0.0
  %11875 = vmatpush1.msra.mxu0 0.0
  %11876 = vmatprep.subr.mxu0 0.0
  %11877 = vmatpush1.msra.mxu0 0.0
  %11878 = vmatprep.subr.mxu0 0.0
  %11879 = vmatpush1.msra.mxu0 0.0
  %11880 = vmatprep.subr.mxu0 0.0
  %11881 = vmatpush1.msra.mxu0 0.0
  %11882 = vmatprep.subr.mxu0 0.0
  %11883 = vmatpush1.msra.mxu0 0.0
  %11884 = vmatprep.subr.mxu0 0.0
  %11885 = vmatpush1.msra.mxu0 0.0
  %11886 = vmatprep.subr.mxu0 0.0
  %11887 = vmatpush1.msra.mxu0 0.0
  %11888 = vmatprep.subr.mxu0 0.0
  %11889 = vmatpush1.msra.mxu0 0.0
  %11890 = vmatprep.subr.mxu0 0.0
  %11891 = vmatpush1.msra.mxu0 0.0
  %11892 = vmatprep.subr.mxu0 0.0
  %11893 = vmatpush1.msra.mxu0 0.0
  %11894 = vmatprep.subr.mxu0 0.0
  %11895 = vmatpush1.msra.mxu0 0.0
  %11896 = vmatprep.subr.mxu0 0.0
  %11897 = vmatpush1.msra.mxu0 0.0
  %11898 = vmatprep.subr.mxu0 0.0
  %11899 = vmatpush1.msra.mxu0 0.0
  %11900 = vmatprep.subr.mxu0 0.0
  %11901 = vmatpush1.msra.mxu0 0.0
  %11902 = vmatprep.subr.mxu0 0.0
  %11903 = vmatpush1.msra.mxu0 0.0
  %11904 = vmatprep.subr.mxu0 0.0
  %11905 = vmatpush1.msra.mxu0 0.0
  %11906 = vmatprep.subr.mxu0 0.0
  %11907 = vmatpush1.msra.mxu0 0.0
  %11908 = vmatprep.subr.mxu0 0.0
  %11909 = vmatpush1.msra.mxu0 0.0
  %11910 = vmatprep.mubr.f32.mxu0 0.0
  %v11911 = vand.u32 %v11690, 4294901760
  %v11912 = vsub.f32 %v11690, %v11911
  %11913 = vmatmul.mubr.f32.gmra.mrb[0].mxu0 %v11912
  %v11914 = vpop.f32.mrb[0].mxu0
  %v11915 = vadd.f32 %v11841, %v11914
  %v11916 = vpop.f32.mrb[0].mxu0
  %11917 = vdwg.mxu0
  %11918 = vmatprep.subr.mxu0 0.0
  %v11919 = vand.u32 %v11681, 4294901760
  %11920 = vmatpush1.msra.mxu0 %v11919
  %11921 = vmatprep.subr.mxu0 0.0
  %11922 = vmatpush1.msra.mxu0 0.0
  %11923 = vmatprep.subr.mxu0 0.0
  %11924 = vmatpush1.msra.mxu0 0.0
  %11925 = vmatprep.subr.mxu0 0.0
  %11926 = vmatpush1.msra.mxu0 0.0
  %11927 = vmatprep.subr.mxu0 0.0
  %11928 = vmatpush1.msra.mxu0 0.0
  %11929 = vmatprep.subr.mxu0 0.0
  %11930 = vmatpush1.msra.mxu0 0.0
  %11931 = vmatprep.subr.mxu0 0.0
  %11932 = vmatpush1.msra.mxu0 0.0
  %11933 = vmatprep.subr.mxu0 0.0
  %11934 = vmatpush1.msra.mxu0 0.0
  %11935 = vmatprep.subr.mxu0 0.0
  %11936 = vmatpush1.msra.mxu0 0.0
  %11937 = vmatprep.subr.mxu0 0.0
  %11938 = vmatpush1.msra.mxu0 0.0
  %11939 = vmatprep.subr.mxu0 0.0
  %11940 = vmatpush1.msra.mxu0 0.0
  %11941 = vmatprep.subr.mxu0 0.0
  %11942 = vmatpush1.msra.mxu0 0.0
  %11943 = vmatprep.subr.mxu0 0.0
  %11944 = vmatpush1.msra.mxu0 0.0
  %11945 = vmatprep.subr.mxu0 0.0
  %11946 = vmatpush1.msra.mxu0 0.0
  %11947 = vmatprep.subr.mxu0 0.0
  %11948 = vmatpush1.msra.mxu0 0.0
  %11949 = vmatprep.subr.mxu0 0.0
  %11950 = vmatpush1.msra.mxu0 0.0
  %11951 = vmatprep.subr.mxu0 0.0
  %11952 = vmatpush1.msra.mxu0 0.0
  %11953 = vmatprep.subr.mxu0 0.0
  %11954 = vmatpush1.msra.mxu0 0.0
  %11955 = vmatprep.subr.mxu0 0.0
  %11956 = vmatpush1.msra.mxu0 0.0
  %11957 = vmatprep.subr.mxu0 0.0
  %11958 = vmatpush1.msra.mxu0 0.0
  %11959 = vmatprep.subr.mxu0 0.0
  %11960 = vmatpush1.msra.mxu0 0.0
  %11961 = vmatprep.subr.mxu0 0.0
  %11962 = vmatpush1.msra.mxu0 0.0
  %11963 = vmatprep.subr.mxu0 0.0
  %11964 = vmatpush1.msra.mxu0 0.0
  %11965 = vmatprep.subr.mxu0 0.0
  %11966 = vmatpush1.msra.mxu0 0.0
  %11967 = vmatprep.subr.mxu0 0.0
  %11968 = vmatpush1.msra.mxu0 0.0
  %11969 = vmatprep.subr.mxu0 0.0
  %11970 = vmatpush1.msra.mxu0 0.0
  %11971 = vmatprep.subr.mxu0 0.0
  %11972 = vmatpush1.msra.mxu0 0.0
  %11973 = vmatprep.subr.mxu0 0.0
  %11974 = vmatpush1.msra.mxu0 0.0
  %11975 = vmatprep.subr.mxu0 0.0
  %11976 = vmatpush1.msra.mxu0 0.0
  %11977 = vmatprep.subr.mxu0 0.0
  %11978 = vmatpush1.msra.mxu0 0.0
  %11979 = vmatprep.subr.mxu0 0.0
  %11980 = vmatpush1.msra.mxu0 0.0
  %11981 = vmatprep.subr.mxu0 0.0
  %11982 = vmatpush1.msra.mxu0 0.0
  %11983 = vmatprep.mubr.f32.mxu0 0.0
  %v11984 = vand.u32 %v11690, 4294901760
  %v11985 = vsub.f32 %v11690, %v11984
  %v11986 = vand.u32 %v11985, 4294901760
  %11987 = vmatmul.mubr.f32.gmra.mrb[0].mxu0 %v11986
  %v11988 = vpop.f32.mrb[0].mxu0
  %v11989 = vadd.f32 %v11915, %v11988
  %v11990 = vpop.f32.mrb[0].mxu0
  %11991 = vdwg.mxu0
  %11992 = vmatprep.subr.mxu0 0.0
  %v11993 = vand.u32 %v11681, 4294901760
  %v11994 = vsub.f32 %v11681, %v11993
  %v11995 = vand.u32 %v11994, 4294901760
  %11996 = vmatpush1.msra.mxu0 %v11995
  %11997 = vmatprep.subr.mxu0 0.0
  %11998 = vmatpush1.msra.mxu0 0.0
  %11999 = vmatprep.subr.mxu0 0.0
  %12000 = vmatpush1.msra.mxu0 0.0
  %12001 = vmatprep.subr.mxu0 0.0
  %12002 = vmatpush1.msra.mxu0 0.0
  %12003 = vmatprep.subr.mxu0 0.0
  %12004 = vmatpush1.msra.mxu0 0.0
  %12005 = vmatprep.subr.mxu0 0.0
  %12006 = vmatpush1.msra.mxu0 0.0
  %12007 = vmatprep.subr.mxu0 0.0
  %12008 = vmatpush1.msra.mxu0 0.0
  %12009 = vmatprep.subr.mxu0 0.0
  %12010 = vmatpush1.msra.mxu0 0.0
  %12011 = vmatprep.subr.mxu0 0.0
  %12012 = vmatpush1.msra.mxu0 0.0
  %12013 = vmatprep.subr.mxu0 0.0
  %12014 = vmatpush1.msra.mxu0 0.0
  %12015 = vmatprep.subr.mxu0 0.0
  %12016 = vmatpush1.msra.mxu0 0.0
  %12017 = vmatprep.subr.mxu0 0.0
  %12018 = vmatpush1.msra.mxu0 0.0
  %12019 = vmatprep.subr.mxu0 0.0
  %12020 = vmatpush1.msra.mxu0 0.0
  %12021 = vmatprep.subr.mxu0 0.0
  %12022 = vmatpush1.msra.mxu0 0.0
  %12023 = vmatprep.subr.mxu0 0.0
  %12024 = vmatpush1.msra.mxu0 0.0
  %12025 = vmatprep.subr.mxu0 0.0
  %12026 = vmatpush1.msra.mxu0 0.0
  %12027 = vmatprep.subr.mxu0 0.0
  %12028 = vmatpush1.msra.mxu0 0.0
  %12029 = vmatprep.subr.mxu0 0.0
  %12030 = vmatpush1.msra.mxu0 0.0
  %12031 = vmatprep.subr.mxu0 0.0
  %12032 = vmatpush1.msra.mxu0 0.0
  %12033 = vmatprep.subr.mxu0 0.0
  %12034 = vmatpush1.msra.mxu0 0.0
  %12035 = vmatprep.subr.mxu0 0.0
  %12036 = vmatpush1.msra.mxu0 0.0
  %12037 = vmatprep.subr.mxu0 0.0
  %12038 = vmatpush1.msra.mxu0 0.0
  %12039 = vmatprep.subr.mxu0 0.0
  %12040 = vmatpush1.msra.mxu0 0.0
  %12041 = vmatprep.subr.mxu0 0.0
  %12042 = vmatpush1.msra.mxu0 0.0
  %12043 = vmatprep.subr.mxu0 0.0
  %12044 = vmatpush1.msra.mxu0 0.0
  %12045 = vmatprep.subr.mxu0 0.0
  %12046 = vmatpush1.msra.mxu0 0.0
  %12047 = vmatprep.subr.mxu0 0.0
  %12048 = vmatpush1.msra.mxu0 0.0
  %12049 = vmatprep.subr.mxu0 0.0
  %12050 = vmatpush1.msra.mxu0 0.0
  %12051 = vmatprep.subr.mxu0 0.0
  %12052 = vmatpush1.msra.mxu0 0.0
  %12053 = vmatprep.subr.mxu0 0.0
  %12054 = vmatpush1.msra.mxu0 0.0
  %12055 = vmatprep.subr.mxu0 0.0
  %12056 = vmatpush1.msra.mxu0 0.0
  %12057 = vmatprep.subr.mxu0 0.0
  %12058 = vmatpush1.msra.mxu0 0.0
  %12059 = vmatprep.mubr.f32.mxu0 0.0
  %v12060 = vand.u32 %v11690, 4294901760
  %12061 = vmatmul.mubr.f32.gmra.mrb[0].mxu0 %v12060
  %v12062 = vpop.f32.mrb[0].mxu0
  %v12063 = vadd.f32 %v11989, %v12062
  %v12064 = vpop.f32.mrb[0].mxu0
  %12065 = vdwg.mxu0
  %12066 = vmatprep.subr.mxu0 0.0
  %v12067 = vand.u32 %v11681, 4294901760
  %12068 = vmatpush1.msra.mxu0 %v12067
  %12069 = vmatprep.subr.mxu0 0.0
  %12070 = vmatpush1.msra.mxu0 0.0
  %12071 = vmatprep.subr.mxu0 0.0
  %12072 = vmatpush1.msra.mxu0 0.0
  %12073 = vmatprep.subr.mxu0 0.0
  %12074 = vmatpush1.msra.mxu0 0.0
  %12075 = vmatprep.subr.mxu0 0.0
  %12076 = vmatpush1.msra.mxu0 0.0
  %12077 = vmatprep.subr.mxu0 0.0
  %12078 = vmatpush1.msra.mxu0 0.0
  %12079 = vmatprep.subr.mxu0 0.0
  %12080 = vmatpush1.msra.mxu0 0.0
  %12081 = vmatprep.subr.mxu0 0.0
  %12082 = vmatpush1.msra.mxu0 0.0
  %12083 = vmatprep.subr.mxu0 0.0
  %12084 = vmatpush1.msra.mxu0 0.0
  %12085 = vmatprep.subr.mxu0 0.0
  %12086 = vmatpush1.msra.mxu0 0.0
  %12087 = vmatprep.subr.mxu0 0.0
  %12088 = vmatpush1.msra.mxu0 0.0
  %12089 = vmatprep.subr.mxu0 0.0
  %12090 = vmatpush1.msra.mxu0 0.0
  %12091 = vmatprep.subr.mxu0 0.0
  %12092 = vmatpush1.msra.mxu0 0.0
  %12093 = vmatprep.subr.mxu0 0.0
  %12094 = vmatpush1.msra.mxu0 0.0
  %12095 = vmatprep.subr.mxu0 0.0
  %12096 = vmatpush1.msra.mxu0 0.0
  %12097 = vmatprep.subr.mxu0 0.0
  %12098 = vmatpush1.msra.mxu0 0.0
  %12099 = vmatprep.subr.mxu0 0.0
  %12100 = vmatpush1.msra.mxu0 0.0
  %12101 = vmatprep.subr.mxu0 0.0
  %12102 = vmatpush1.msra.mxu0 0.0
  %12103 = vmatprep.subr.mxu0 0.0
  %12104 = vmatpush1.msra.mxu0 0.0
  %12105 = vmatprep.subr.mxu0 0.0
  %12106 = vmatpush1.msra.mxu0 0.0
  %12107 = vmatprep.subr.mxu0 0.0
  %12108 = vmatpush1.msra.mxu0 0.0
  %12109 = vmatprep.subr.mxu0 0.0
  %12110 = vmatpush1.msra.mxu0 0.0
  %12111 = vmatprep.subr.mxu0 0.0
  %12112 = vmatpush1.msra.mxu0 0.0
  %12113 = vmatprep.subr.mxu0 0.0
  %12114 = vmatpush1.msra.mxu0 0.0
  %12115 = vmatprep.subr.mxu0 0.0
  %12116 = vmatpush1.msra.mxu0 0.0
  %12117 = vmatprep.subr.mxu0 0.0
  %12118 = vmatpush1.msra.mxu0 0.0
  %12119 = vmatprep.subr.mxu0 0.0
  %12120 = vmatpush1.msra.mxu0 0.0
  %12121 = vmatprep.subr.mxu0 0.0
  %12122 = vmatpush1.msra.mxu0 0.0
  %12123 = vmatprep.subr.mxu0 0.0
  %12124 = vmatpush1.msra.mxu0 0.0
  %12125 = vmatprep.subr.mxu0 0.0
  %12126 = vmatpush1.msra.mxu0 0.0
  %12127 = vmatprep.subr.mxu0 0.0
  %12128 = vmatpush1.msra.mxu0 0.0
  %12129 = vmatprep.subr.mxu0 0.0
  %12130 = vmatpush1.msra.mxu0 0.0
  %12131 = vmatprep.mubr.f32.mxu0 0.0
  %v12132 = vand.u32 %v11690, 4294901760
  %12133 = vmatmul.mubr.f32.gmra.mrb[0].mxu0 %v12132
  %v12134 = vpop.f32.mrb[0].mxu0
  %v12135 = vadd.f32 %v12063, %v12134
  %v12136 = vpop.f32.mrb[0].mxu0
  %12137 = vdwg.mxu0
  %vm12138 = vcmask 11264
  %12139 = vst.msk [vmem:[%s6] sm:$0xf] %vm12138, %v12135
  // Predicated region
  $region26: #{tpu_custom_call.1} parent=0 // pred_check
    _
  $region27: #{tpu_custom_call.1} parent=0 // pred_check_branch
    %12141 = sbr.rel (0) target = $region29
  $region28: #{tpu_custom_call.1} parent=0 // pred_region
    _
  $region29: #{tpu_custom_call.1} parent=0 // pred_fallthru
    _
  // Predicated region
  $region30: #{tpu_custom_call.1} parent=0 // pred_check
    _
  $region31: #{tpu_custom_call.1} parent=0 // pred_check_branch
    %12143 = sbr.rel (0) target = $region33
  $region32: #{tpu_custom_call.1} parent=0 // pred_region
    _
  $region33: #{tpu_custom_call.1} parent=0 // pred_fallthru
    _

</llo_original>
